<compile_context>
chip_gen: v6e
topology: v6e:2x2x1
jax: 0.10.0
libtpu: 0.0.40
codegen_flags: <defaults>
</compile_context>

<pallas_src>
import math
import numpy as np
import jax
import jax.numpy as jnp
from jax.experimental import pallas as pl
from jax.experimental.pallas import tpu as pltpu


# ----------------------------------------------------------------------------
# Constants / small helpers
# ----------------------------------------------------------------------------
_VMEM_LIMIT_BYTES = 32 * 1024 * 1024   # safe on v5e/v6e (128 MiB phys) and v7x (64 MiB)
_MXU_DTYPE = jnp.bfloat16              # matmul operand dtype (accumulation stays f32)
_SQRT_2_OVER_PI = math.sqrt(2.0 / math.pi)


def _round_up(x, m):
    return ((x + m - 1) // m) * m


def _divisor_tile(dim, target, align):
    """Largest tile <= target that is a multiple of `align` and divides `dim`.
    Falls back to the full dim (always a legal block) if no such tile exists."""
    if dim <= target:
        return dim
    t = (target // align) * align
    while t >= align:
        if dim % t == 0:
            return t
        t -= align
    return dim


def _gelu_tanh(x):
    return 0.5 * x * (1.0 + jnp.tanh(_SQRT_2_OVER_PI * (x + 0.044715 * x * x * x)))


def _silu(x):
    return x * jax.nn.sigmoid(x)


def _apply_act(x, act):
    if act == "silu":
        return _silu(x)
    if act == "gelu_tanh":
        return _gelu_tanh(x)
    return x


# ----------------------------------------------------------------------------
# sincos positional embedding (numpy, identical to the PyTorch reference)
# ----------------------------------------------------------------------------
def get_1d_sincos_pos_embed_from_grid(embed_dim, pos):
    assert embed_dim % 2 == 0
    omega = np.arange(embed_dim // 2, dtype=np.float64)
    omega /= embed_dim / 2.0
    omega = 1.0 / 10000 ** omega
    pos = pos.reshape(-1)
    out = np.einsum('m,d->md', pos, omega)
    emb_sin = np.sin(out)
    emb_cos = np.cos(out)
    return np.concatenate([emb_sin, emb_cos], axis=1)


def get_2d_sincos_pos_embed_from_grid(embed_dim, grid):
    assert embed_dim % 2 == 0
    emb_h = get_1d_sincos_pos_embed_from_grid(embed_dim // 2, grid[0])
    emb_w = get_1d_sincos_pos_embed_from_grid(embed_dim // 2, grid[1])
    return np.concatenate([emb_h, emb_w], axis=1)


def get_2d_sincos_pos_embed(embed_dim, grid_size):
    grid_h = np.arange(grid_size, dtype=np.float32)
    grid_w = np.arange(grid_size, dtype=np.float32)
    grid = np.meshgrid(grid_w, grid_h)
    grid = np.stack(grid, axis=0)
    grid = grid.reshape([2, 1, grid_size, grid_size])
    return get_2d_sincos_pos_embed_from_grid(embed_dim, grid)


# ----------------------------------------------------------------------------
# Pallas kernels
# ----------------------------------------------------------------------------
def pallas_linear(x, w, b, act_in=None, act_out=None):
    """o = act_out(act_in(x) @ w + b); x:[M,K] w:[K,N] b:[N] -> [M,N] f32.

    Tiled over (M, N, K) with an f32 VMEM accumulator (pl.when init/finalize on
    the K axis).  N is padded up to a multiple of 128 so output stores are
    lane-dense; the pad is sliced off outside the kernel.
    """
    M, K = x.shape
    N = w.shape[1]

    Np = _round_up(N, 128)
    if Np != N:
        w = jnp.pad(w, ((0, 0), (0, Np - N)))
        b = jnp.pad(b, ((0, Np - N),))

    tm = _divisor_tile(M, 256, 8)
    tn = _divisor_tile(Np, 256, 128)
    tk = _divisor_tile(K, 512, 128)
    grid = (M // tm, Np // tn, K // tk)

    def kernel(x_ref, w_ref, b_ref, o_ref, acc_ref):
        kk = pl.program_id(2)

        @pl.when(kk == 0)
        def _init():
            acc_ref[...] = jnp.zeros_like(acc_ref)

        xv = _apply_act(x_ref[...], act_in)          # activations in f32 (v5e-safe)
        acc_ref[...] += jnp.dot(xv.astype(_MXU_DTYPE),
                                w_ref[...].astype(_MXU_DTYPE),
                                preferred_element_type=jnp.float32)

        @pl.when(kk == pl.num_programs(2) - 1)
        def _finalize():
            o_ref[...] = _apply_act(acc_ref[...] + b_ref[...], act_out)

    out = pl.pallas_call(
        kernel,
        out_shape=jax.ShapeDtypeStruct((M, Np), jnp.float32),
        grid=grid,
        in_specs=[
            pl.BlockSpec((tm, tk), lambda i, j, k: (i, k)),
            pl.BlockSpec((tk, tn), lambda i, j, k: (k, j)),
            pl.BlockSpec((1, tn), lambda i, j, k: (0, j)),
        ],
        out_specs=pl.BlockSpec((tm, tn), lambda i, j, k: (i, j)),
        scratch_shapes=[pltpu.VMEM((tm, tn), jnp.float32)],
        compiler_params=pltpu.CompilerParams(
            dimension_semantics=("parallel", "parallel", "arbitrary"),
            vmem_limit_bytes=_VMEM_LIMIT_BYTES),
    )(x, w, b.reshape(1, Np))
    return out[:, :N] if Np != N else out


def pallas_ln_mod_matmul(x, shift, scale, w, b, act_out=None, eps=1e-6):
    """act_out(modulate(LayerNorm(x), shift, scale) @ w + b).

    x:[B,T,D] shift/scale:[B,D] w:[D,N] b:[N] -> [B,T,N] f32.
    The LN (no affine) + adaLN modulate prologue is computed once per
    (batch, T-tile) (at N-tile index 0) into a bf16 VMEM scratch and reused for
    every N tile.  K (=D) is kept un-tiled because the LN reduction needs the
    full feature row.
    """
    B, T, D = x.shape
    N = w.shape[1]

    Np = _round_up(N, 128)
    if Np != N:
        w = jnp.pad(w, ((0, 0), (0, Np - N)))
        b = jnp.pad(b, ((0, Np - N),))

    tm = _divisor_tile(T, 256, 8)
    tn = _divisor_tile(Np, 256, 128)
    grid = (B, T // tm, Np // tn)

    def kernel(x_ref, sh_ref, sc_ref, w_ref, b_ref, o_ref, xm_ref):
        @pl.when(pl.program_id(2) == 0)
        def _prologue():
            xv = x_ref[...]                                   # (tm, D) f32
            mean = jnp.mean(xv, axis=-1, keepdims=True)
            var = jnp.mean(jnp.square(xv - mean), axis=-1, keepdims=True)
            xn = (xv - mean) * jax.lax.rsqrt(var + eps)
            xm = xn * (1.0 + sc_ref[...]) + sh_ref[...]
            xm_ref[...] = xm.astype(xm_ref.dtype)

        y = jnp.dot(xm_ref[...], w_ref[...].astype(_MXU_DTYPE),
                    preferred_element_type=jnp.float32) + b_ref[...]
        o_ref[...] = _apply_act(y, act_out)

    out = pl.pallas_call(
        kernel,
        out_shape=jax.ShapeDtypeStruct((B, T, Np), jnp.float32),
        grid=grid,
        in_specs=[
            pl.BlockSpec((None, tm, D), lambda bb, i, j: (bb, i, 0)),
            pl.BlockSpec((None, 1, D), lambda bb, i, j: (bb, 0, 0)),
            pl.BlockSpec((None, 1, D), lambda bb, i, j: (bb, 0, 0)),
            pl.BlockSpec((D, tn), lambda bb, i, j: (0, j)),
            pl.BlockSpec((1, tn), lambda bb, i, j: (0, j)),
        ],
        out_specs=pl.BlockSpec((None, tm, tn), lambda bb, i, j: (bb, i, j)),
        scratch_shapes=[pltpu.VMEM((tm, D), _MXU_DTYPE)],
        compiler_params=pltpu.CompilerParams(
            dimension_semantics=("parallel", "parallel", "arbitrary"),
            vmem_limit_bytes=_VMEM_LIMIT_BYTES),
    )(x, shift.reshape(B, 1, D), scale.reshape(B, 1, D), w, b.reshape(1, Np))
    return out[..., :N] if Np != N else out


def pallas_matmul_gated_residual(h, w, b, gate, x_res):
    """x_res + gate[:, None, :] * (h @ w + b).

    h:[B,T,K] w:[K,N] b:[N] gate:[B,N] x_res:[B,T,N] -> [B,T,N] f32.
    Matmul + bias + adaLN gate + residual add are fused; f32 VMEM accumulator
    over the K grid axis with pl.when init/finalize.
    """
    B, T, K = h.shape
    N = w.shape[1]

    tm = _divisor_tile(T, 256, 8)
    tn = _divisor_tile(N, 256, 128)
    tk = _divisor_tile(K, 512, 128)
    grid = (B, T // tm, N // tn, K // tk)

    def kernel(h_ref, w_ref, b_ref, g_ref, x_ref, o_ref, acc_ref):
        kk = pl.program_id(3)

        @pl.when(kk == 0)
        def _init():
            acc_ref[...] = jnp.zeros_like(acc_ref)

        acc_ref[...] += jnp.dot(h_ref[...].astype(_MXU_DTYPE),
                                w_ref[...].astype(_MXU_DTYPE),
                                preferred_element_type=jnp.float32)

        @pl.when(kk == pl.num_programs(3) - 1)
        def _finalize():
            o_ref[...] = x_ref[...] + g_ref[...] * (acc_ref[...] + b_ref[...])

    return pl.pallas_call(
        kernel,
        out_shape=jax.ShapeDtypeStruct((B, T, N), jnp.float32),
        grid=grid,
        in_specs=[
            pl.BlockSpec((None, tm, tk), lambda bb, i, j, k: (bb, i, k)),
            pl.BlockSpec((tk, tn), lambda bb, i, j, k: (k, j)),
            pl.BlockSpec((1, tn), lambda bb, i, j, k: (0, j)),
            pl.BlockSpec((None, 1, tn), lambda bb, i, j, k: (bb, 0, j)),
            pl.BlockSpec((None, tm, tn), lambda bb, i, j, k: (bb, i, j)),
        ],
        out_specs=pl.BlockSpec((None, tm, tn), lambda bb, i, j, k: (bb, i, j)),
        scratch_shapes=[pltpu.VMEM((tm, tn), jnp.float32)],
        compiler_params=pltpu.CompilerParams(
            dimension_semantics=("parallel", "parallel", "parallel", "arbitrary"),
            vmem_limit_bytes=_VMEM_LIMIT_BYTES),
    )(h, w, b.reshape(1, N), gate.reshape(B, 1, N), x_res)


def pallas_attention(qkv, num_heads):
    """Multi-head softmax attention reading Q/K/V directly from the fused qkv
    activation [B, T, 3*D] (BlockSpec index maps slice the q/k/v column slabs,
    so no JAX-level 5-D transposes are needed).  Returns [B, T, D] f32 laid out
    exactly as the following projection expects.  One grid step = one batch
    element with all heads (lane-dense [T, D] blocks)."""
    B, T, threeD = qkv.shape
    D = threeD // 3
    H = num_heads
    dh = D // H
    scale = 1.0 / math.sqrt(dh)

    # TODO(synk): for T >~ 512 switch to a KV-tiled flash-style online softmax so
    # the [T, T] score block stays inside v7x's smaller VMEM budget.
    def kernel(q_ref, k_ref, v_ref, o_ref):
        qv = q_ref[...]                    # (T, D) f32, lane-dense
        kv = k_ref[...]
        vv = v_ref[...]
        for h in range(H):                 # static unrolled loop over heads
            sl = slice(h * dh, (h + 1) * dh)
            qh = (qv[:, sl] * scale).astype(_MXU_DTYPE)
            kh = kv[:, sl].astype(_MXU_DTYPE)
            vh = vv[:, sl].astype(_MXU_DTYPE)
            # scores = qh @ kh.T  (contract the dh axis of both operands)
            s = jax.lax.dot_general(qh, kh, (((1,), (1,)), ((), ())),
                                    preferred_element_type=jnp.float32)
            s = s - jnp.max(s, axis=-1, keepdims=True)
            p = jnp.exp(s)
            p = p * pl.reciprocal(jnp.sum(p, axis=-1, keepdims=True), approx=True)
            oh = jnp.dot(p.astype(_MXU_DTYPE), vh,
                         preferred_element_type=jnp.float32)
            o_ref[:, sl] = oh

    q_spec = pl.BlockSpec((None, T, D), lambda bb: (bb, 0, 0))
    k_spec = pl.BlockSpec((None, T, D), lambda bb: (bb, 0, 1))
    v_spec = pl.BlockSpec((None, T, D), lambda bb: (bb, 0, 2))
    o_spec = pl.BlockSpec((None, T, D), lambda bb: (bb, 0, 0))
    return pl.pallas_call(
        kernel,
        out_shape=jax.ShapeDtypeStruct((B, T, D), jnp.float32),
        grid=(B,),
        in_specs=[q_spec, k_spec, v_spec],
        out_specs=o_spec,
        compiler_params=pltpu.CompilerParams(
            dimension_semantics=("parallel",),
            vmem_limit_bytes=_VMEM_LIMIT_BYTES),
    )(qkv, qkv, qkv)


# ----------------------------------------------------------------------------
# DiT model (forward only)
# ----------------------------------------------------------------------------
class DiTConfig:
    def __init__(self, input_size=16, patch_size=2, in_channels=4,
                 hidden_size=128, depth=2, num_heads=4, mlp_ratio=4.0,
                 num_classes=10, learn_sigma=True, freq_dim=256):
        self.input_size = input_size
        self.patch_size = patch_size
        self.in_channels = in_channels
        self.hidden_size = hidden_size
        self.depth = depth
        self.num_heads = num_heads
        self.mlp_hidden = int(hidden_size * mlp_ratio)
        self.num_classes = num_classes
        self.learn_sigma = learn_sigma
        self.out_channels = in_channels * 2 if learn_sigma else in_channels
        self.freq_dim = freq_dim
        self.grid_size = input_size // patch_size
        self.num_patches = self.grid_size ** 2


def make_params(key, cfg):
    D = cfg.hidden_size

    def dense(k, fan_in, fan_out):
        return jax.random.normal(k, (fan_in, fan_out), jnp.float32) * 0.02

    keys = jax.random.split(key, 8 + 5 * cfg.depth)
    ki = iter(keys)
    p = {}
    p["patch_w"] = dense(next(ki), cfg.in_channels * cfg.patch_size ** 2, D)
    p["patch_b"] = jnp.zeros((D,), jnp.float32)
    p["pos_embed"] = jnp.asarray(
        get_2d_sincos_pos_embed(D, cfg.grid_size), jnp.float32)[None]  # [1,T,D]
    p["t_w1"] = dense(next(ki), cfg.freq_dim, D)
    p["t_b1"] = jnp.zeros((D,), jnp.float32)
    p["t_w2"] = dense(next(ki), D, D)
    p["t_b2"] = jnp.zeros((D,), jnp.float32)
    p["y_table"] = jax.random.normal(
        next(ki), (cfg.num_classes + 1, D), jnp.float32) * 0.02
    p["blocks"] = []
    for _ in range(cfg.depth):
        blk = {
            "adaln_w": dense(next(ki), D, 6 * D),
            "adaln_b": jnp.zeros((6 * D,), jnp.float32),
            "qkv_w": dense(next(ki), D, 3 * D),
            "qkv_b": jnp.zeros((3 * D,), jnp.float32),
            "proj_w": dense(next(ki), D, D),
            "proj_b": jnp.zeros((D,), jnp.float32),
            "fc1_w": dense(next(ki), D, cfg.mlp_hidden),
            "fc1_b": jnp.zeros((cfg.mlp_hidden,), jnp.float32),
            "fc2_w": dense(next(ki), cfg.mlp_hidden, D),
            "fc2_b": jnp.zeros((D,), jnp.float32),
        }
        p["blocks"].append(blk)
    p["final_adaln_w"] = dense(next(ki), D, 2 * D)
    p["final_adaln_b"] = jnp.zeros((2 * D,), jnp.float32)
    out_dim = cfg.patch_size ** 2 * cfg.out_channels
    p["final_w"] = dense(next(ki), D, out_dim)
    p["final_b"] = jnp.zeros((out_dim,), jnp.float32)
    return p


def timestep_embedding(t, dim, max_period=10000):
    half = dim // 2
    freqs = jnp.exp(
        -math.log(max_period) * jnp.arange(half, dtype=jnp.float32) / half)
    args = t.astype(jnp.float32)[:, None] * freqs[None]
    return jnp.concatenate([jnp.cos(args), jnp.sin(args)], axis=-1)


def patchify(x, p):
    """NCHW -> [B, T, C*p*p] with the same flattening order as conv2d(stride=p)."""
    B, C, H, W = x.shape
    x = x.reshape(B, C, H // p, p, W // p, p)
    x = jnp.transpose(x, (0, 2, 4, 1, 3, 5))       # [B, h, w, C, p, p]
    return x.reshape(B, (H // p) * (W // p), C * p * p)


def unpatchify(x, p, c):
    B, T, _ = x.shape
    h = w = int(round(math.sqrt(T)))
    x = x.reshape(B, h, w, p, p, c)
    x = jnp.einsum('nhwpqc->nchpwq', x)
    return x.reshape(B, c, h * p, w * p)


def dit_block(x, c, blk, cfg):
    B, T, D = x.shape

    mod = pallas_linear(c, blk["adaln_w"], blk["adaln_b"], act_in="silu")  # [B,6D]
    shift_msa, scale_msa, gate_msa, shift_mlp, scale_mlp, gate_mlp = [
        mod[:, i * D:(i + 1) * D] for i in range(6)]

    # --- attention branch (LN + modulate fused into the qkv projection) ---
    qkv = pallas_ln_mod_matmul(x, shift_msa, scale_msa,
                               blk["qkv_w"], blk["qkv_b"])            # [B,T,3D]
    attn = pallas_attention(qkv, cfg.num_heads)                       # [B,T,D]
    # proj matmul + bias + gate + residual fused in one kernel
    x = pallas_matmul_gated_residual(attn, blk["proj_w"], blk["proj_b"],
                                     gate_msa, x)

    # --- MLP branch (LN + modulate fused into fc1; residual fused into fc2) ---
    h1 = pallas_ln_mod_matmul(x, shift_mlp, scale_mlp,
                              blk["fc1_w"], blk["fc1_b"], act_out="gelu_tanh")
    x = pallas_matmul_gated_residual(h1, blk["fc2_w"], blk["fc2_b"],
                                     gate_mlp, x)
    return x


def dit_forward(params, cfg, x, t, y, current_step=0):
    """x: [B, C, H, W] (NCHW), t: [B] float, y: [B] int32.  current_step=0
    corresponds to the full-compute row of skip_matrix (all ones)."""
    # TODO(synk): the reuse_feature / skip_matrix feature-caching path
    # (reuse_att_weight != 0, dotrend) is host-side Python control flow across
    # diffusion steps; only the full-compute path is implemented here.
    B = x.shape[0]
    D = cfg.hidden_size
    p = cfg.patch_size

    # Patch embed + positional embed
    patches = patchify(x, p)                                  # [B,T,C*p*p]
    T = patches.shape[1]
    x_tok = pallas_linear(patches.reshape(B * T, -1),
                          params["patch_w"], params["patch_b"]).reshape(B, T, D)
    x_tok = x_tok + params["pos_embed"]

    # Timestep embedding
    t_freq = timestep_embedding(t, cfg.freq_dim)              # [B,256]
    t_h = pallas_linear(t_freq, params["t_w1"], params["t_b1"], act_out="silu")
    t_emb = pallas_linear(t_h, params["t_w2"], params["t_b2"])

    # Label embedding (eval mode: no token drop)
    y_emb = params["y_table"][y]
    c = t_emb + y_emb                                         # [B,D]

    for blk in params["blocks"]:
        x_tok = dit_block(x_tok, c, blk, cfg)

    # Final layer: LN + modulate fused into the final linear
    fmod = pallas_linear(c, params["final_adaln_w"], params["final_adaln_b"],
                         act_in="silu")
    shift, scale = fmod[:, :D], fmod[:, D:]
    out = pallas_ln_mod_matmul(x_tok, shift, scale,
                               params["final_w"], params["final_b"])  # [B,T,p*p*oc]
    return unpatchify(out, p, cfg.out_channels)               # [B, out_c, H, W]


if __name__ == "__main__":
    cfg = DiTConfig(input_size=16, patch_size=2, in_channels=4,
                    hidden_size=128, depth=2, num_heads=4, mlp_ratio=4.0,
                    num_classes=10, learn_sigma=True)

    root = jax.random.PRNGKey(0)
    k_param, k_x, k_t, k_y = jax.random.split(root, 4)
    params = make_params(k_param, cfg)

    x = jax.random.normal(k_x, (2, cfg.in_channels, cfg.input_size,
                                cfg.input_size), jnp.float32)
    t = jax.random.uniform(k_t, (2,), jnp.float32, 0.0, 1000.0)
    y = jax.random.randint(k_y, (2,), 0, cfg.num_classes)

    @jax.jit
    def fwd(params, x, t, y):
        return dit_forward(params, cfg, x, t, y, current_step=0)

    out = jax.block_until_ready(fwd(params, x, t, y))
    assert out.shape == (2, cfg.out_channels, cfg.input_size, cfg.input_size)
    assert bool(jnp.all(jnp.isfinite(out)))
    print("KERNEL_OK")
</pallas_src>

<mosaic_0001>
module attributes {stable_mosaic.version = 11 : i64} {
  func.func @kernel(%arg0: i32, %arg1: i32, %arg2: i32, %arg3: memref<2x128xf32, #tpu.memory_space<vmem>>, %arg4: memref<128x128xf32, #tpu.memory_space<vmem>>, %arg5: memref<1x128xf32, #tpu.memory_space<vmem>>, %arg6: memref<2x128xf32, #tpu.memory_space<vmem>>, %arg7: memref<2x128xf32, #tpu.memory_space<vmem>>) attributes {dimension_semantics = [#tpu.dimension_semantics<parallel>, #tpu.dimension_semantics<parallel>, #tpu.dimension_semantics<arbitrary>], iteration_bounds = array<i64: 1, 1, 1>, scalar_prefetch = 0 : i64, scratch_operands = 1 : i64, tpu.core_type = #tpu.core_type<tc>, window_params = [{transform_indices = @transform_0, window_bounds = array<i64: 2, 128>}, {transform_indices = @transform_1, window_bounds = array<i64: 128, 128>}, {transform_indices = @transform_2, window_bounds = array<i64: 1, 128>}, {transform_indices = @transform_3, window_bounds = array<i64: 2, 128>}]} {
    %c0_i32 = arith.constant 0 : i32
    %0 = arith.cmpi eq, %arg2, %c0_i32 : i32
    %1 = arith.extui %0 : i1 to i32
    %c0_i32_0 = arith.constant 0 : i32
    %2 = arith.cmpi ne, %1, %c0_i32_0 : i32
    scf.if %2 {
      %cst_10 = arith.constant 0.000000e+00 : f32
      %14 = vector.broadcast %cst_10 : f32 to vector<2x128xf32>
      %c0_11 = arith.constant 0 : index
      %c0_12 = arith.constant 0 : index
      %15 = vector.load %arg7[%c0_11, %c0_12] : memref<2x128xf32, #tpu.memory_space<vmem>>, vector<2x128xf32>
      tpu.vector_store %arg7[%c0_11, %c0_12], %14 {strides = array<i32>} : memref<2x128xf32, #tpu.memory_space<vmem>>, vector<2x128xf32>,
    } else {
    }
    %c0 = arith.constant 0 : index
    %c0_1 = arith.constant 0 : index
    %3 = vector.load %arg3[%c0, %c0_1] : memref<2x128xf32, #tpu.memory_space<vmem>>, vector<2x128xf32>
    %c0_2 = arith.constant 0 : index
    %c0_3 = arith.constant 0 : index
    %4 = vector.load %arg7[%c0_2, %c0_3] : memref<2x128xf32, #tpu.memory_space<vmem>>, vector<2x128xf32>
    %5 = arith.truncf %3 : vector<2x128xf32> to vector<2x128xbf16>
    %c0_4 = arith.constant 0 : index
    %c0_5 = arith.constant 0 : index
    %6 = vector.load %arg4[%c0_4, %c0_5] : memref<128x128xf32, #tpu.memory_space<vmem>>, vector<128x128xf32>
    %7 = arith.truncf %6 : vector<128x128xf32> to vector<128x128xbf16>
    %cst = arith.constant dense<0.000000e+00> : vector<2x128xf32>
    %8 = tpu.matmul %5, %7, %cst {dimension_numbers = #tpu.dot_dimension_numbers<[1], [0], [0], [1], [0, 0, 1, 1], [], []>} : vector<2x128xbf16>, vector<128x128xbf16>, vector<2x128xf32> -> vector<2x128xf32>
    %9 = arith.addf %4, %8 : vector<2x128xf32>
    %c0_6 = arith.constant 0 : index
    %c0_7 = arith.constant 0 : index
    %10 = vector.load %arg7[%c0_6, %c0_7] : memref<2x128xf32, #tpu.memory_space<vmem>>, vector<2x128xf32>
    tpu.vector_store %arg7[%c0_6, %c0_7], %9 {strides = array<i32>} : memref<2x128xf32, #tpu.memory_space<vmem>>, vector<2x128xf32>,
    %c0_i32_8 = arith.constant 0 : i32
    %11 = arith.cmpi eq, %arg2, %c0_i32_8 : i32
    %12 = arith.extui %11 : i1 to i32
    %c0_i32_9 = arith.constant 0 : i32
    %13 = arith.cmpi ne, %12, %c0_i32_9 : i32
    scf.if %13 {
      %c0_10 = arith.constant 0 : index
      %c0_11 = arith.constant 0 : index
      %14 = vector.load %arg7[%c0_10, %c0_11] : memref<2x128xf32, #tpu.memory_space<vmem>>, vector<2x128xf32>
      %c0_12 = arith.constant 0 : index
      %c0_13 = arith.constant 0 : index
      %15 = vector.load %arg5[%c0_12, %c0_13] : memref<1x128xf32, #tpu.memory_space<vmem>>, vector<1x128xf32>
      %16 = vector.broadcast %15 : vector<1x128xf32> to vector<2x128xf32>
      %17 = arith.addf %14, %16 : vector<2x128xf32>
      %c0_14 = arith.constant 0 : index
      %c0_15 = arith.constant 0 : index
      %18 = vector.load %arg6[%c0_14, %c0_15] : memref<2x128xf32, #tpu.memory_space<vmem>>, vector<2x128xf32>
      tpu.vector_store %arg6[%c0_14, %c0_15], %17 {strides = array<i32>} : memref<2x128xf32, #tpu.memory_space<vmem>>, vector<2x128xf32>,
    } else {
    }
    return
  }
  func.func @transform_0(%arg0: i32, %arg1: i32, %arg2: i32) -> (i32, i32) {
    %c0_i32 = arith.constant 0 : i32
    return %arg0, %arg2 : i32, i32
  }
  func.func @transform_1(%arg0: i32, %arg1: i32, %arg2: i32) -> (i32, i32) {
    %c0_i32 = arith.constant 0 : i32
    return %arg2, %arg1 : i32, i32
  }
  func.func @transform_2(%arg0: i32, %arg1: i32, %arg2: i32) -> (i32, i32) {
    %c0_i32 = arith.constant 0 : i32
    %c0_i32_0 = arith.constant 0 : i32
    return %c0_i32, %arg1 : i32, i32
  }
  func.func @transform_3(%arg0: i32, %arg1: i32, %arg2: i32) -> (i32, i32) {
    %c0_i32 = arith.constant 0 : i32
    return %arg0, %arg1 : i32, i32
  }
}

module attributes {stable_mosaic.version = 11 : i64} {
  func.func @kernel(%arg0: i32, %arg1: i32, %arg2: i32, %arg3: memref<2x128xf32, #tpu.memory_space<vmem>>, %arg4: memref<128x256xf32, #tpu.memory_space<vmem>>, %arg5: memref<1x256xf32, #tpu.memory_space<vmem>>, %arg6: memref<2x256xf32, #tpu.memory_space<vmem>>, %arg7: memref<2x256xf32, #tpu.memory_space<vmem>>) attributes {dimension_semantics = [#tpu.dimension_semantics<parallel>, #tpu.dimension_semantics<parallel>, #tpu.dimension_semantics<arbitrary>], iteration_bounds = array<i64: 1, 1, 1>, scalar_prefetch = 0 : i64, scratch_operands = 1 : i64, tpu.core_type = #tpu.core_type<tc>, window_params = [{transform_indices = @transform_0, window_bounds = array<i64: 2, 128>}, {transform_indices = @transform_1, window_bounds = array<i64: 128, 256>}, {transform_indices = @transform_2, window_bounds = array<i64: 1, 256>}, {transform_indices = @transform_3, window_bounds = array<i64: 2, 256>}]} {
    %c0_i32 = arith.constant 0 : i32
    %0 = arith.cmpi eq, %arg2, %c0_i32 : i32
    %1 = arith.extui %0 : i1 to i32
    %c0_i32_0 = arith.constant 0 : i32
    %2 = arith.cmpi ne, %1, %c0_i32_0 : i32
    scf.if %2 {
      %cst_11 = arith.constant 0.000000e+00 : f32
      %20 = vector.broadcast %cst_11 : f32 to vector<2x256xf32>
      %c0_12 = arith.constant 0 : index
      %c0_13 = arith.constant 0 : index
      %21 = vector.load %arg7[%c0_12, %c0_13] : memref<2x256xf32, #tpu.memory_space<vmem>>, vector<2x256xf32>
      tpu.vector_store %arg7[%c0_12, %c0_13], %20 {strides = array<i32>} : memref<2x256xf32, #tpu.memory_space<vmem>>, vector<2x256xf32>,
    } else {
    }
    %c0 = arith.constant 0 : index
    %c0_1 = arith.constant 0 : index
    %3 = vector.load %arg3[%c0, %c0_1] : memref<2x128xf32, #tpu.memory_space<vmem>>, vector<2x128xf32>
    %4 = arith.negf %3 : vector<2x128xf32>
    %5 = math.exp %4 : vector<2x128xf32>
    %cst = arith.constant 1.000000e+00 : f32
    %6 = vector.broadcast %cst : f32 to vector<2x128xf32>
    %7 = arith.addf %6, %5 : vector<2x128xf32>
    %8 = arith.divf %6, %7 : vector<2x128xf32>
    %9 = arith.mulf %3, %8 : vector<2x128xf32>
    %c0_2 = arith.constant 0 : index
    %c0_3 = arith.constant 0 : index
    %10 = vector.load %arg7[%c0_2, %c0_3] : memref<2x256xf32, #tpu.memory_space<vmem>>, vector<2x256xf32>
    %11 = arith.truncf %9 : vector<2x128xf32> to vector<2x128xbf16>
    %c0_4 = arith.constant 0 : index
    %c0_5 = arith.constant 0 : index
    %12 = vector.load %arg4[%c0_4, %c0_5] : memref<128x256xf32, #tpu.memory_space<vmem>>, vector<128x256xf32>
    %13 = arith.truncf %12 : vector<128x256xf32> to vector<128x256xbf16>
    %cst_6 = arith.constant dense<0.000000e+00> : vector<2x256xf32>
    %14 = tpu.matmul %11, %13, %cst_6 {dimension_numbers = #tpu.dot_dimension_numbers<[1], [0], [0], [1], [0, 0, 1, 1], [], []>} : vector<2x128xbf16>, vector<128x256xbf16>, vector<2x256xf32> -> vector<2x256xf32>
    %15 = arith.addf %10, %14 : vector<2x256xf32>
    %c0_7 = arith.constant 0 : index
    %c0_8 = arith.constant 0 : index
    %16 = vector.load %arg7[%c0_7, %c0_8] : memref<2x256xf32, #tpu.memory_space<vmem>>, vector<2x256xf32>
    tpu.vector_store %arg7[%c0_7, %c0_8], %15 {strides = array<i32>} : memref<2x256xf32, #tpu.memory_space<vmem>>, vector<2x256xf32>,
    %c0_i32_9 = arith.constant 0 : i32
    %17 = arith.cmpi eq, %arg2, %c0_i32_9 : i32
    %18 = arith.extui %17 : i1 to i32
    %c0_i32_10 = arith.constant 0 : i32
    %19 = arith.cmpi ne, %18, %c0_i32_10 : i32
    scf.if %19 {
      %c0_11 = arith.constant 0 : index
      %c0_12 = arith.constant 0 : index
      %20 = vector.load %arg7[%c0_11, %c0_12] : memref<2x256xf32, #tpu.memory_space<vmem>>, vector<2x256xf32>
      %c0_13 = arith.constant 0 : index
      %c0_14 = arith.constant 0 : index
      %21 = vector.load %arg5[%c0_13, %c0_14] : memref<1x256xf32, #tpu.memory_space<vmem>>, vector<1x256xf32>
      %22 = vector.broadcast %21 : vector<1x256xf32> to vector<2x256xf32>
      %23 = arith.addf %20, %22 : vector<2x256xf32>
      %c0_15 = arith.constant 0 : index
      %c0_16 = arith.constant 0 : index
      %24 = vector.load %arg6[%c0_15, %c0_16] : memref<2x256xf32, #tpu.memory_space<vmem>>, vector<2x256xf32>
      tpu.vector_store %arg6[%c0_15, %c0_16], %23 {strides = array<i32>} : memref<2x256xf32, #tpu.memory_space<vmem>>, vector<2x256xf32>,
    } else {
    }
    return
  }
  func.func @transform_0(%arg0: i32, %arg1: i32, %arg2: i32) -> (i32, i32) {
    %c0_i32 = arith.constant 0 : i32
    return %arg0, %arg2 : i32, i32
  }
  func.func @transform_1(%arg0: i32, %arg1: i32, %arg2: i32) -> (i32, i32) {
    %c0_i32 = arith.constant 0 : i32
    return %arg2, %arg1 : i32, i32
  }
  func.func @transform_2(%arg0: i32, %arg1: i32, %arg2: i32) -> (i32, i32) {
    %c0_i32 = arith.constant 0 : i32
    %c0_i32_0 = arith.constant 0 : i32
    return %c0_i32, %arg1 : i32, i32
  }
  func.func @transform_3(%arg0: i32, %arg1: i32, %arg2: i32) -> (i32, i32) {
    %c0_i32 = arith.constant 0 : i32
    return %arg0, %arg1 : i32, i32
  }
}

module attributes {stable_mosaic.version = 11 : i64} {
  func.func @kernel(%arg0: i32, %arg1: i32, %arg2: i32, %arg3: memref<2x256xf32, #tpu.memory_space<vmem>>, %arg4: memref<256x128xf32, #tpu.memory_space<vmem>>, %arg5: memref<1x128xf32, #tpu.memory_space<vmem>>, %arg6: memref<2x128xf32, #tpu.memory_space<vmem>>, %arg7: memref<2x128xf32, #tpu.memory_space<vmem>>) attributes {dimension_semantics = [#tpu.dimension_semantics<parallel>, #tpu.dimension_semantics<parallel>, #tpu.dimension_semantics<arbitrary>], iteration_bounds = array<i64: 1, 1, 1>, scalar_prefetch = 0 : i64, scratch_operands = 1 : i64, tpu.core_type = #tpu.core_type<tc>, window_params = [{transform_indices = @transform_0, window_bounds = array<i64: 2, 256>}, {transform_indices = @transform_1, window_bounds = array<i64: 256, 128>}, {transform_indices = @transform_2, window_bounds = array<i64: 1, 128>}, {transform_indices = @transform_3, window_bounds = array<i64: 2, 128>}]} {
    %c0_i32 = arith.constant 0 : i32
    %0 = arith.cmpi eq, %arg2, %c0_i32 : i32
    %1 = arith.extui %0 : i1 to i32
    %c0_i32_0 = arith.constant 0 : i32
    %2 = arith.cmpi ne, %1, %c0_i32_0 : i32
    scf.if %2 {
      %cst_10 = arith.constant 0.000000e+00 : f32
      %14 = vector.broadcast %cst_10 : f32 to vector<2x128xf32>
      %c0_11 = arith.constant 0 : index
      %c0_12 = arith.constant 0 : index
      %15 = vector.load %arg7[%c0_11, %c0_12] : memref<2x128xf32, #tpu.memory_space<vmem>>, vector<2x128xf32>
      tpu.vector_store %arg7[%c0_11, %c0_12], %14 {strides = array<i32>} : memref<2x128xf32, #tpu.memory_space<vmem>>, vector<2x128xf32>,
    } else {
    }
    %c0 = arith.constant 0 : index
    %c0_1 = arith.constant 0 : index
    %3 = vector.load %arg3[%c0, %c0_1] : memref<2x256xf32, #tpu.memory_space<vmem>>, vector<2x256xf32>
    %c0_2 = arith.constant 0 : index
    %c0_3 = arith.constant 0 : index
    %4 = vector.load %arg7[%c0_2, %c0_3] : memref<2x128xf32, #tpu.memory_space<vmem>>, vector<2x128xf32>
    %5 = arith.truncf %3 : vector<2x256xf32> to vector<2x256xbf16>
    %c0_4 = arith.constant 0 : index
    %c0_5 = arith.constant 0 : index
    %6 = vector.load %arg4[%c0_4, %c0_5] : memref<256x128xf32, #tpu.memory_space<vmem>>, vector<256x128xf32>
    %7 = arith.truncf %6 : vector<256x128xf32> to vector<256x128xbf16>
    %cst = arith.constant dense<0.000000e+00> : vector<2x128xf32>
    %8 = tpu.matmul %5, %7, %cst {dimension_numbers = #tpu.dot_dimension_numbers<[1], [0], [0], [1], [0, 0, 1, 1], [], []>} : vector<2x256xbf16>, vector<256x128xbf16>, vector<2x128xf32> -> vector<2x128xf32>
    %9 = arith.addf %4, %8 : vector<2x128xf32>
    %c0_6 = arith.constant 0 : index
    %c0_7 = arith.constant 0 : index
    %10 = vector.load %arg7[%c0_6, %c0_7] : memref<2x128xf32, #tpu.memory_space<vmem>>, vector<2x128xf32>
    tpu.vector_store %arg7[%c0_6, %c0_7], %9 {strides = array<i32>} : memref<2x128xf32, #tpu.memory_space<vmem>>, vector<2x128xf32>,
    %c0_i32_8 = arith.constant 0 : i32
    %11 = arith.cmpi eq, %arg2, %c0_i32_8 : i32
    %12 = arith.extui %11 : i1 to i32
    %c0_i32_9 = arith.constant 0 : i32
    %13 = arith.cmpi ne, %12, %c0_i32_9 : i32
    scf.if %13 {
      %c0_10 = arith.constant 0 : index
      %c0_11 = arith.constant 0 : index
      %14 = vector.load %arg7[%c0_10, %c0_11] : memref<2x128xf32, #tpu.memory_space<vmem>>, vector<2x128xf32>
      %c0_12 = arith.constant 0 : index
      %c0_13 = arith.constant 0 : index
      %15 = vector.load %arg5[%c0_12, %c0_13] : memref<1x128xf32, #tpu.memory_space<vmem>>, vector<1x128xf32>
      %16 = vector.broadcast %15 : vector<1x128xf32> to vector<2x128xf32>
      %17 = arith.addf %14, %16 : vector<2x128xf32>
      %18 = arith.negf %17 : vector<2x128xf32>
      %19 = math.exp %18 : vector<2x128xf32>
      %cst_14 = arith.constant 1.000000e+00 : f32
      %20 = vector.broadcast %cst_14 : f32 to vector<2x128xf32>
      %21 = arith.addf %20, %19 : vector<2x128xf32>
      %22 = arith.divf %20, %21 : vector<2x128xf32>
      %23 = arith.mulf %17, %22 : vector<2x128xf32>
      %c0_15 = arith.constant 0 : index
      %c0_16 = arith.constant 0 : index
      %24 = vector.load %arg6[%c0_15, %c0_16] : memref<2x128xf32, #tpu.memory_space<vmem>>, vector<2x128xf32>
      tpu.vector_store %arg6[%c0_15, %c0_16], %23 {strides = array<i32>} : memref<2x128xf32, #tpu.memory_space<vmem>>, vector<2x128xf32>,
    } else {
    }
    return
  }
  func.func @transform_0(%arg0: i32, %arg1: i32, %arg2: i32) -> (i32, i32) {
    %c0_i32 = arith.constant 0 : i32
    return %arg0, %arg2 : i32, i32
  }
  func.func @transform_1(%arg0: i32, %arg1: i32, %arg2: i32) -> (i32, i32) {
    %c0_i32 = arith.constant 0 : i32
    return %arg2, %arg1 : i32, i32
  }
  func.func @transform_2(%arg0: i32, %arg1: i32, %arg2: i32) -> (i32, i32) {
    %c0_i32 = arith.constant 0 : i32
    %c0_i32_0 = arith.constant 0 : i32
    return %c0_i32, %arg1 : i32, i32
  }
  func.func @transform_3(%arg0: i32, %arg1: i32, %arg2: i32) -> (i32, i32) {
    %c0_i32 = arith.constant 0 : i32
    return %arg0, %arg1 : i32, i32
  }
}

module attributes {stable_mosaic.version = 11 : i64} {
  func.func @kernel(%arg0: i32, %arg1: i32, %arg2: i32, %arg3: memref<2x128xf32, #tpu.memory_space<vmem>>, %arg4: memref<128x256xf32, #tpu.memory_space<vmem>>, %arg5: memref<1x256xf32, #tpu.memory_space<vmem>>, %arg6: memref<2x256xf32, #tpu.memory_space<vmem>>, %arg7: memref<2x256xf32, #tpu.memory_space<vmem>>) attributes {dimension_semantics = [#tpu.dimension_semantics<parallel>, #tpu.dimension_semantics<parallel>, #tpu.dimension_semantics<arbitrary>], iteration_bounds = array<i64: 1, 3, 1>, scalar_prefetch = 0 : i64, scratch_operands = 1 : i64, tpu.core_type = #tpu.core_type<tc>, window_params = [{transform_indices = @transform_0, window_bounds = array<i64: 2, 128>}, {transform_indices = @transform_1, window_bounds = array<i64: 128, 256>}, {transform_indices = @transform_2, window_bounds = array<i64: 1, 256>}, {transform_indices = @transform_3, window_bounds = array<i64: 2, 256>}]} {
    %c0_i32 = arith.constant 0 : i32
    %0 = arith.cmpi eq, %arg2, %c0_i32 : i32
    %1 = arith.extui %0 : i1 to i32
    %c0_i32_0 = arith.constant 0 : i32
    %2 = arith.cmpi ne, %1, %c0_i32_0 : i32
    scf.if %2 {
      %cst_11 = arith.constant 0.000000e+00 : f32
      %20 = vector.broadcast %cst_11 : f32 to vector<2x256xf32>
      %c0_12 = arith.constant 0 : index
      %c0_13 = arith.constant 0 : index
      %21 = vector.load %arg7[%c0_12, %c0_13] : memref<2x256xf32, #tpu.memory_space<vmem>>, vector<2x256xf32>
      tpu.vector_store %arg7[%c0_12, %c0_13], %20 {strides = array<i32>} : memref<2x256xf32, #tpu.memory_space<vmem>>, vector<2x256xf32>,
    } else {
    }
    %c0 = arith.constant 0 : index
    %c0_1 = arith.constant 0 : index
    %3 = vector.load %arg3[%c0, %c0_1] : memref<2x128xf32, #tpu.memory_space<vmem>>, vector<2x128xf32>
    %4 = arith.negf %3 : vector<2x128xf32>
    %5 = math.exp %4 : vector<2x128xf32>
    %cst = arith.constant 1.000000e+00 : f32
    %6 = vector.broadcast %cst : f32 to vector<2x128xf32>
    %7 = arith.addf %6, %5 : vector<2x128xf32>
    %8 = arith.divf %6, %7 : vector<2x128xf32>
    %9 = arith.mulf %3, %8 : vector<2x128xf32>
    %c0_2 = arith.constant 0 : index
    %c0_3 = arith.constant 0 : index
    %10 = vector.load %arg7[%c0_2, %c0_3] : memref<2x256xf32, #tpu.memory_space<vmem>>, vector<2x256xf32>
    %11 = arith.truncf %9 : vector<2x128xf32> to vector<2x128xbf16>
    %c0_4 = arith.constant 0 : index
    %c0_5 = arith.constant 0 : index
    %12 = vector.load %arg4[%c0_4, %c0_5] : memref<128x256xf32, #tpu.memory_space<vmem>>, vector<128x256xf32>
    %13 = arith.truncf %12 : vector<128x256xf32> to vector<128x256xbf16>
    %cst_6 = arith.constant dense<0.000000e+00> : vector<2x256xf32>
    %14 = tpu.matmul %11, %13, %cst_6 {dimension_numbers = #tpu.dot_dimension_numbers<[1], [0], [0], [1], [0, 0, 1, 1], [], []>} : vector<2x128xbf16>, vector<128x256xbf16>, vector<2x256xf32> -> vector<2x256xf32>
    %15 = arith.addf %10, %14 : vector<2x256xf32>
    %c0_7 = arith.constant 0 : index
    %c0_8 = arith.constant 0 : index
    %16 = vector.load %arg7[%c0_7, %c0_8] : memref<2x256xf32, #tpu.memory_space<vmem>>, vector<2x256xf32>
    tpu.vector_store %arg7[%c0_7, %c0_8], %15 {strides = array<i32>} : memref<2x256xf32, #tpu.memory_space<vmem>>, vector<2x256xf32>,
    %c0_i32_9 = arith.constant 0 : i32
    %17 = arith.cmpi eq, %arg2, %c0_i32_9 : i32
    %18 = arith.extui %17 : i1 to i32
    %c0_i32_10 = arith.constant 0 : i32
    %19 = arith.cmpi ne, %18, %c0_i32_10 : i32
    scf.if %19 {
      %c0_11 = arith.constant 0 : index
      %c0_12 = arith.constant 0 : index
      %20 = vector.load %arg7[%c0_11, %c0_12] : memref<2x256xf32, #tpu.memory_space<vmem>>, vector<2x256xf32>
      %c0_13 = arith.constant 0 : index
      %c0_14 = arith.constant 0 : index
      %21 = vector.load %arg5[%c0_13, %c0_14] : memref<1x256xf32, #tpu.memory_space<vmem>>, vector<1x256xf32>
      %22 = vector.broadcast %21 : vector<1x256xf32> to vector<2x256xf32>
      %23 = arith.addf %20, %22 : vector<2x256xf32>
      %c0_15 = arith.constant 0 : index
      %c0_16 = arith.constant 0 : index
      %24 = vector.load %arg6[%c0_15, %c0_16] : memref<2x256xf32, #tpu.memory_space<vmem>>, vector<2x256xf32>
      tpu.vector_store %arg6[%c0_15, %c0_16], %23 {strides = array<i32>} : memref<2x256xf32, #tpu.memory_space<vmem>>, vector<2x256xf32>,
    } else {
    }
    return
  }
  func.func @transform_0(%arg0: i32, %arg1: i32, %arg2: i32) -> (i32, i32) {
    %c0_i32 = arith.constant 0 : i32
    return %arg0, %arg2 : i32, i32
  }
  func.func @transform_1(%arg0: i32, %arg1: i32, %arg2: i32) -> (i32, i32) {
    %c0_i32 = arith.constant 0 : i32
    return %arg2, %arg1 : i32, i32
  }
  func.func @transform_2(%arg0: i32, %arg1: i32, %arg2: i32) -> (i32, i32) {
    %c0_i32 = arith.constant 0 : i32
    %c0_i32_0 = arith.constant 0 : i32
    return %c0_i32, %arg1 : i32, i32
  }
  func.func @transform_3(%arg0: i32, %arg1: i32, %arg2: i32) -> (i32, i32) {
    %c0_i32 = arith.constant 0 : i32
    return %arg0, %arg1 : i32, i32
  }
}

module attributes {stable_mosaic.version = 11 : i64} {
  func.func @kernel(%arg0: i32, %arg1: i32, %arg2: i32, %arg3: memref<128x16xf32, #tpu.memory_space<vmem>>, %arg4: memref<16x128xf32, #tpu.memory_space<vmem>>, %arg5: memref<1x128xf32, #tpu.memory_space<vmem>>, %arg6: memref<128x128xf32, #tpu.memory_space<vmem>>, %arg7: memref<128x128xf32, #tpu.memory_space<vmem>>) attributes {dimension_semantics = [#tpu.dimension_semantics<parallel>, #tpu.dimension_semantics<parallel>, #tpu.dimension_semantics<arbitrary>], iteration_bounds = array<i64: 1, 1, 1>, scalar_prefetch = 0 : i64, scratch_operands = 1 : i64, tpu.core_type = #tpu.core_type<tc>, window_params = [{transform_indices = @transform_0, window_bounds = array<i64: 128, 16>}, {transform_indices = @transform_1, window_bounds = array<i64: 16, 128>}, {transform_indices = @transform_2, window_bounds = array<i64: 1, 128>}, {transform_indices = @transform_3, window_bounds = array<i64: 128, 128>}]} {
    %c0_i32 = arith.constant 0 : i32
    %0 = arith.cmpi eq, %arg2, %c0_i32 : i32
    %1 = arith.extui %0 : i1 to i32
    %c0_i32_0 = arith.constant 0 : i32
    %2 = arith.cmpi ne, %1, %c0_i32_0 : i32
    scf.if %2 {
      %cst_10 = arith.constant 0.000000e+00 : f32
      %14 = vector.broadcast %cst_10 : f32 to vector<128x128xf32>
      %c0_11 = arith.constant 0 : index
      %c0_12 = arith.constant 0 : index
      %15 = vector.load %arg7[%c0_11, %c0_12] : memref<128x128xf32, #tpu.memory_space<vmem>>, vector<128x128xf32>
      tpu.vector_store %arg7[%c0_11, %c0_12], %14 {strides = array<i32>} : memref<128x128xf32, #tpu.memory_space<vmem>>, vector<128x128xf32>,
    } else {
    }
    %c0 = arith.constant 0 : index
    %c0_1 = arith.constant 0 : index
    %3 = vector.load %arg3[%c0, %c0_1] : memref<128x16xf32, #tpu.memory_space<vmem>>, vector<128x16xf32>
    %c0_2 = arith.constant 0 : index
    %c0_3 = arith.constant 0 : index
    %4 = vector.load %arg7[%c0_2, %c0_3] : memref<128x128xf32, #tpu.memory_space<vmem>>, vector<128x128xf32>
    %5 = arith.truncf %3 : vector<128x16xf32> to vector<128x16xbf16>
    %c0_4 = arith.constant 0 : index
    %c0_5 = arith.constant 0 : index
    %6 = vector.load %arg4[%c0_4, %c0_5] : memref<16x128xf32, #tpu.memory_space<vmem>>, vector<16x128xf32>
    %7 = arith.truncf %6 : vector<16x128xf32> to vector<16x128xbf16>
    %cst = arith.constant dense<0.000000e+00> : vector<128x128xf32>
    %8 = tpu.matmul %5, %7, %cst {dimension_numbers = #tpu.dot_dimension_numbers<[1], [0], [0], [1], [0, 0, 1, 1], [], []>} : vector<128x16xbf16>, vector<16x128xbf16>, vector<128x128xf32> -> vector<128x128xf32>
    %9 = arith.addf %4, %8 : vector<128x128xf32>
    %c0_6 = arith.constant 0 : index
    %c0_7 = arith.constant 0 : index
    %10 = vector.load %arg7[%c0_6, %c0_7] : memref<128x128xf32, #tpu.memory_space<vmem>>, vector<128x128xf32>
    tpu.vector_store %arg7[%c0_6, %c0_7], %9 {strides = array<i32>} : memref<128x128xf32, #tpu.memory_space<vmem>>, vector<128x128xf32>,
    %c0_i32_8 = arith.constant 0 : i32
    %11 = arith.cmpi eq, %arg2, %c0_i32_8 : i32
    %12 = arith.extui %11 : i1 to i32
    %c0_i32_9 = arith.constant 0 : i32
    %13 = arith.cmpi ne, %12, %c0_i32_9 : i32
    scf.if %13 {
      %c0_10 = arith.constant 0 : index
      %c0_11 = arith.constant 0 : index
      %14 = vector.load %arg7[%c0_10, %c0_11] : memref<128x128xf32, #tpu.memory_space<vmem>>, vector<128x128xf32>
      %c0_12 = arith.constant 0 : index
      %c0_13 = arith.constant 0 : index
      %15 = vector.load %arg5[%c0_12, %c0_13] : memref<1x128xf32, #tpu.memory_space<vmem>>, vector<1x128xf32>
      %16 = vector.broadcast %15 : vector<1x128xf32> to vector<128x128xf32>
      %17 = arith.addf %14, %16 : vector<128x128xf32>
      %c0_14 = arith.constant 0 : index
      %c0_15 = arith.constant 0 : index
      %18 = vector.load %arg6[%c0_14, %c0_15] : memref<128x128xf32, #tpu.memory_space<vmem>>, vector<128x128xf32>
      tpu.vector_store %arg6[%c0_14, %c0_15], %17 {strides = array<i32>} : memref<128x128xf32, #tpu.memory_space<vmem>>, vector<128x128xf32>,
    } else {
    }
    return
  }
  func.func @transform_0(%arg0: i32, %arg1: i32, %arg2: i32) -> (i32, i32) {
    %c0_i32 = arith.constant 0 : i32
    return %arg0, %arg2 : i32, i32
  }
  func.func @transform_1(%arg0: i32, %arg1: i32, %arg2: i32) -> (i32, i32) {
    %c0_i32 = arith.constant 0 : i32
    return %arg2, %arg1 : i32, i32
  }
  func.func @transform_2(%arg0: i32, %arg1: i32, %arg2: i32) -> (i32, i32) {
    %c0_i32 = arith.constant 0 : i32
    %c0_i32_0 = arith.constant 0 : i32
    return %c0_i32, %arg1 : i32, i32
  }
  func.func @transform_3(%arg0: i32, %arg1: i32, %arg2: i32) -> (i32, i32) {
    %c0_i32 = arith.constant 0 : i32
    return %arg0, %arg1 : i32, i32
  }
}

module attributes {stable_mosaic.version = 11 : i64} {
  func.func @kernel(%arg0: i32, %arg1: i32, %arg2: i32, %arg3: memref<1x64x128xf32, #tpu.memory_space<vmem>>, %arg4: memref<1x1x128xf32, #tpu.memory_space<vmem>>, %arg5: memref<1x1x128xf32, #tpu.memory_space<vmem>>, %arg6: memref<128x128xf32, #tpu.memory_space<vmem>>, %arg7: memref<1x128xf32, #tpu.memory_space<vmem>>, %arg8: memref<1x64x128xf32, #tpu.memory_space<vmem>>, %arg9: memref<64x128xbf16, #tpu.memory_space<vmem>>) attributes {dimension_semantics = [#tpu.dimension_semantics<parallel>, #tpu.dimension_semantics<parallel>, #tpu.dimension_semantics<arbitrary>], iteration_bounds = array<i64: 2, 1, 3>, scalar_prefetch = 0 : i64, scratch_operands = 1 : i64, tpu.core_type = #tpu.core_type<tc>, window_params = [{transform_indices = @transform_0, window_bounds = array<i64: 1, 64, 128>}, {transform_indices = @transform_1, window_bounds = array<i64: 1, 1, 128>}, {transform_indices = @transform_2, window_bounds = array<i64: 1, 1, 128>}, {transform_indices = @transform_3, window_bounds = array<i64: 128, 128>}, {transform_indices = @transform_4, window_bounds = array<i64: 1, 128>}, {transform_indices = @transform_5, window_bounds = array<i64: 1, 64, 128>}]} {
    %c0_i32 = arith.constant 0 : i32
    %0 = arith.cmpi eq, %arg2, %c0_i32 : i32
    %1 = arith.extui %0 : i1 to i32
    %c0_i32_0 = arith.constant 0 : i32
    %2 = arith.cmpi ne, %1, %c0_i32_0 : i32
    scf.if %2 {
      %c0_9 = arith.constant 0 : index
      %c0_10 = arith.constant 0 : index
      %c0_11 = arith.constant 0 : index
      %13 = vector.load %arg3[%c0_9, %c0_10, %c0_11] : memref<1x64x128xf32, #tpu.memory_space<vmem>>, vector<1x64x128xf32>
      %14 = vector.shape_cast %13 : vector<1x64x128xf32> to vector<64x128xf32>
      %cst_12 = arith.constant dense<0.000000e+00> : vector<64xf32>
      %15 = vector.multi_reduction <add>, %14, %cst_12 [1] : vector<64x128xf32> to vector<64xf32>
      %16 = vector.shape_cast %15 : vector<64xf32> to vector<64x1xf32>
      %cst_13 = arith.constant 1.280000e+02 : f32
      %17 = vector.broadcast %cst_13 : f32 to vector<64x1xf32>
      %18 = arith.divf %16, %17 : vector<64x1xf32>
      %19 = vector.broadcast %18 : vector<64x1xf32> to vector<64x128xf32>
      %20 = arith.subf %14, %19 : vector<64x128xf32>
      %21 = arith.mulf %20, %20 : vector<64x128xf32>
      %cst_14 = arith.constant dense<0.000000e+00> : vector<64xf32>
      %22 = vector.multi_reduction <add>, %21, %cst_14 [1] : vector<64x128xf32> to vector<64xf32>
      %23 = vector.shape_cast %22 : vector<64xf32> to vector<64x1xf32>
      %cst_15 = arith.constant 1.280000e+02 : f32
      %24 = vector.broadcast %cst_15 : f32 to vector<64x1xf32>
      %25 = arith.divf %23, %24 : vector<64x1xf32>
      %26 = vector.broadcast %18 : vector<64x1xf32> to vector<64x128xf32>
      %27 = arith.subf %14, %26 : vector<64x128xf32>
      %cst_16 = arith.constant 9.99999997E-7 : f32
      %28 = vector.broadcast %cst_16 : f32 to vector<64x1xf32>
      %29 = arith.addf %25, %28 : vector<64x1xf32>
      %30 = math.rsqrt %29 : vector<64x1xf32>
      %31 = vector.broadcast %30 : vector<64x1xf32> to vector<64x128xf32>
      %32 = arith.mulf %27, %31 : vector<64x128xf32>
      %c0_17 = arith.constant 0 : index
      %c0_18 = arith.constant 0 : index
      %c0_19 = arith.constant 0 : index
      %33 = vector.load %arg5[%c0_17, %c0_18, %c0_19] : memref<1x1x128xf32, #tpu.memory_space<vmem>>, vector<1x1x128xf32>
      %34 = vector.shape_cast %33 : vector<1x1x128xf32> to vector<1x128xf32>
      %cst_20 = arith.constant 1.000000e+00 : f32
      %35 = vector.broadcast %cst_20 : f32 to vector<1x128xf32>
      %36 = arith.addf %35, %34 : vector<1x128xf32>
      %37 = vector.broadcast %36 : vector<1x128xf32> to vector<64x128xf32>
      %38 = arith.mulf %32, %37 : vector<64x128xf32>
      %c0_21 = arith.constant 0 : index
      %c0_22 = arith.constant 0 : index
      %c0_23 = arith.constant 0 : index
      %39 = vector.load %arg4[%c0_21, %c0_22, %c0_23] : memref<1x1x128xf32, #tpu.memory_space<vmem>>, vector<1x1x128xf32>
      %40 = vector.shape_cast %39 : vector<1x1x128xf32> to vector<1x128xf32>
      %41 = vector.broadcast %40 : vector<1x128xf32> to vector<64x128xf32>
      %42 = arith.addf %38, %41 : vector<64x128xf32>
      %43 = arith.truncf %42 : vector<64x128xf32> to vector<64x128xbf16>
      %c0_24 = arith.constant 0 : index
      %c0_25 = arith.constant 0 : index
      %44 = vector.load %arg9[%c0_24, %c0_25] : memref<64x128xbf16, #tpu.memory_space<vmem>>, vector<64x128xbf16>
      tpu.vector_store %arg9[%c0_24, %c0_25], %43 {strides = array<i32>} : memref<64x128xbf16, #tpu.memory_space<vmem>>, vector<64x128xbf16>,
    } else {
    }
    %c0 = arith.constant 0 : index
    %c0_1 = arith.constant 0 : index
    %3 = vector.load %arg9[%c0, %c0_1] : memref<64x128xbf16, #tpu.memory_space<vmem>>, vector<64x128xbf16>
    %c0_2 = arith.constant 0 : index
    %c0_3 = arith.constant 0 : index
    %4 = vector.load %arg6[%c0_2, %c0_3] : memref<128x128xf32, #tpu.memory_space<vmem>>, vector<128x128xf32>
    %5 = arith.truncf %4 : vector<128x128xf32> to vector<128x128xbf16>
    %cst = arith.constant dense<0.000000e+00> : vector<64x128xf32>
    %6 = tpu.matmul %3, %5, %cst {dimension_numbers = #tpu.dot_dimension_numbers<[1], [0], [0], [1], [0, 0, 1, 1], [], []>} : vector<64x128xbf16>, vector<128x128xbf16>, vector<64x128xf32> -> vector<64x128xf32>
    %c0_4 = arith.constant 0 : index
    %c0_5 = arith.constant 0 : index
    %7 = vector.load %arg7[%c0_4, %c0_5] : memref<1x128xf32, #tpu.memory_space<vmem>>, vector<1x128xf32>
    %8 = vector.broadcast %7 : vector<1x128xf32> to vector<64x128xf32>
    %9 = arith.addf %6, %8 : vector<64x128xf32>
    %c0_6 = arith.constant 0 : index
    %c0_7 = arith.constant 0 : index
    %c0_8 = arith.constant 0 : index
    %10 = vector.load %arg8[%c0_6, %c0_7, %c0_8] : memref<1x64x128xf32, #tpu.memory_space<vmem>>, vector<1x64x128xf32>
    %11 = vector.shape_cast %10 : vector<1x64x128xf32> to vector<64x128xf32>
    %12 = vector.shape_cast %9 : vector<64x128xf32> to vector<1x64x128xf32>
    tpu.vector_store %arg8[%c0_6, %c0_7, %c0_8], %12 {strides = array<i32>} : memref<1x64x128xf32, #tpu.memory_space<vmem>>, vector<1x64x128xf32>,
    return
  }
  func.func @transform_0(%arg0: i32, %arg1: i32, %arg2: i32) -> (i32, i32, i32) {
    %c0_i32 = arith.constant 0 : i32
    %c0_i32_0 = arith.constant 0 : i32
    return %arg0, %arg1, %c0_i32 : i32, i32, i32
  }
  func.func @transform_1(%arg0: i32, %arg1: i32, %arg2: i32) -> (i32, i32, i32) {
    %c0_i32 = arith.constant 0 : i32
    %c0_i32_0 = arith.constant 0 : i32
    %c0_i32_1 = arith.constant 0 : i32
    return %arg0, %c0_i32, %c0_i32_0 : i32, i32, i32
  }
  func.func @transform_2(%arg0: i32, %arg1: i32, %arg2: i32) -> (i32, i32, i32) {
    %c0_i32 = arith.constant 0 : i32
    %c0_i32_0 = arith.constant 0 : i32
    %c0_i32_1 = arith.constant 0 : i32
    return %arg0, %c0_i32, %c0_i32_0 : i32, i32, i32
  }
  func.func @transform_3(%arg0: i32, %arg1: i32, %arg2: i32) -> (i32, i32) {
    %c0_i32 = arith.constant 0 : i32
    %c0_i32_0 = arith.constant 0 : i32
    return %c0_i32, %arg2 : i32, i32
  }
  func.func @transform_4(%arg0: i32, %arg1: i32, %arg2: i32) -> (i32, i32) {
    %c0_i32 = arith.constant 0 : i32
    %c0_i32_0 = arith.constant 0 : i32
    return %c0_i32, %arg2 : i32, i32
  }
  func.func @transform_5(%arg0: i32, %arg1: i32, %arg2: i32) -> (i32, i32, i32) {
    %c0_i32 = arith.constant 0 : i32
    return %arg0, %arg1, %arg2 : i32, i32, i32
  }
}

module attributes {stable_mosaic.version = 11 : i64} {
  func.func @kernel(%arg0: i32, %arg1: memref<1x64x128xf32, #tpu.memory_space<vmem>>, %arg2: memref<1x64x128xf32, #tpu.memory_space<vmem>>, %arg3: memref<1x64x128xf32, #tpu.memory_space<vmem>>, %arg4: memref<1x64x128xf32, #tpu.memory_space<vmem>>) attributes {dimension_semantics = [#tpu.dimension_semantics<parallel>], iteration_bounds = array<i64: 2>, scalar_prefetch = 0 : i64, scratch_operands = 0 : i64, tpu.core_type = #tpu.core_type<tc>, window_params = [{transform_indices = @transform_0, window_bounds = array<i64: 1, 64, 128>}, {transform_indices = @transform_1, window_bounds = array<i64: 1, 64, 128>}, {transform_indices = @transform_2, window_bounds = array<i64: 1, 64, 128>}, {transform_indices = @transform_3, window_bounds = array<i64: 1, 64, 128>}]} {
    %c0 = arith.constant 0 : index
    %c0_0 = arith.constant 0 : index
    %c0_1 = arith.constant 0 : index
    %0 = vector.load %arg1[%c0, %c0_0, %c0_1] : memref<1x64x128xf32, #tpu.memory_space<vmem>>, vector<1x64x128xf32>
    %1 = vector.shape_cast %0 : vector<1x64x128xf32> to vector<64x128xf32>
    %c0_2 = arith.constant 0 : index
    %c0_3 = arith.constant 0 : index
    %c0_4 = arith.constant 0 : index
    %2 = vector.load %arg2[%c0_2, %c0_3, %c0_4] : memref<1x64x128xf32, #tpu.memory_space<vmem>>, vector<1x64x128xf32>
    %3 = vector.shape_cast %2 : vector<1x64x128xf32> to vector<64x128xf32>
    %c0_5 = arith.constant 0 : index
    %c0_6 = arith.constant 0 : index
    %c0_7 = arith.constant 0 : index
    %4 = vector.load %arg3[%c0_5, %c0_6, %c0_7] : memref<1x64x128xf32, #tpu.memory_space<vmem>>, vector<1x64x128xf32>
    %5 = vector.shape_cast %4 : vector<1x64x128xf32> to vector<64x128xf32>
    %6 = vector.extract_strided_slice %1 {offsets = [0, 0], sizes = [64, 32], strides = [1, 1]} : vector<64x128xf32> to vector<64x32xf32>
    %cst = arith.constant 0.176776692 : f32
    %7 = vector.broadcast %cst : f32 to vector<64x32xf32>
    %8 = arith.mulf %6, %7 : vector<64x32xf32>
    %9 = arith.truncf %8 : vector<64x32xf32> to vector<64x32xbf16>
    %10 = vector.extract_strided_slice %3 {offsets = [0, 0], sizes = [64, 32], strides = [1, 1]} : vector<64x128xf32> to vector<64x32xf32>
    %11 = arith.truncf %10 : vector<64x32xf32> to vector<64x32xbf16>
    %12 = vector.extract_strided_slice %5 {offsets = [0, 0], sizes = [64, 32], strides = [1, 1]} : vector<64x128xf32> to vector<64x32xf32>
    %13 = arith.truncf %12 : vector<64x32xf32> to vector<64x32xbf16>
    %cst_8 = arith.constant dense<0.000000e+00> : vector<64x64xf32>
    %14 = tpu.matmul %9, %11, %cst_8 {dimension_numbers = #tpu.dot_dimension_numbers<[1], [1], [0], [0], [0, 0, 1, 0], [], []>} : vector<64x32xbf16>, vector<64x32xbf16>, vector<64x64xf32> -> vector<64x64xf32>
    %cst_9 = arith.constant dense<0xFF800000> : vector<64xf32>
    %15 = vector.multi_reduction <maximumf>, %14, %cst_9 [1] : vector<64x64xf32> to vector<64xf32>
    %16 = vector.shape_cast %15 : vector<64xf32> to vector<64x1xf32>
    %17 = vector.broadcast %16 : vector<64x1xf32> to vector<64x64xf32>
    %18 = arith.subf %14, %17 : vector<64x64xf32>
    %19 = math.exp %18 : vector<64x64xf32>
    %cst_10 = arith.constant dense<0.000000e+00> : vector<64xf32>
    %20 = vector.multi_reduction <add>, %19, %cst_10 [1] : vector<64x64xf32> to vector<64xf32>
    %21 = vector.shape_cast %20 : vector<64xf32> to vector<64x1xf32>
    %22 = tpu.reciprocal %21 {approx = true} : vector<64x1xf32> -> vector<64x1xf32>
    %23 = vector.broadcast %22 : vector<64x1xf32> to vector<64x64xf32>
    %24 = arith.mulf %19, %23 : vector<64x64xf32>
    %25 = arith.truncf %24 : vector<64x64xf32> to vector<64x64xbf16>
    %cst_11 = arith.constant dense<0.000000e+00> : vector<64x32xf32>
    %26 = tpu.matmul %25, %13, %cst_11 {dimension_numbers = #tpu.dot_dimension_numbers<[1], [0], [0], [1], [0, 0, 1, 1], [], []>} : vector<64x64xbf16>, vector<64x32xbf16>, vector<64x32xf32> -> vector<64x32xf32>
    %c0_12 = arith.constant 0 : index
    %c0_13 = arith.constant 0 : index
    %c0_14 = arith.constant 0 : index
    %27 = vector.load %arg4[%c0_12, %c0_13, %c0_14] : memref<1x64x128xf32, #tpu.memory_space<vmem>>, vector<1x64x32xf32>
    %28 = vector.shape_cast %27 : vector<1x64x32xf32> to vector<64x32xf32>
    %29 = vector.shape_cast %26 : vector<64x32xf32> to vector<1x64x32xf32>
    tpu.vector_store %arg4[%c0_12, %c0_13, %c0_14], %29 {strides = array<i32>} : memref<1x64x128xf32, #tpu.memory_space<vmem>>, vector<1x64x32xf32>,
    %30 = vector.extract_strided_slice %1 {offsets = [0, 32], sizes = [64, 32], strides = [1, 1]} : vector<64x128xf32> to vector<64x32xf32>
    %cst_15 = arith.constant 0.176776692 : f32
    %31 = vector.broadcast %cst_15 : f32 to vector<64x32xf32>
    %32 = arith.mulf %30, %31 : vector<64x32xf32>
    %33 = arith.truncf %32 : vector<64x32xf32> to vector<64x32xbf16>
    %34 = vector.extract_strided_slice %3 {offsets = [0, 32], sizes = [64, 32], strides = [1, 1]} : vector<64x128xf32> to vector<64x32xf32>
    %35 = arith.truncf %34 : vector<64x32xf32> to vector<64x32xbf16>
    %36 = vector.extract_strided_slice %5 {offsets = [0, 32], sizes = [64, 32], strides = [1, 1]} : vector<64x128xf32> to vector<64x32xf32>
    %37 = arith.truncf %36 : vector<64x32xf32> to vector<64x32xbf16>
    %cst_16 = arith.constant dense<0.000000e+00> : vector<64x64xf32>
    %38 = tpu.matmul %33, %35, %cst_16 {dimension_numbers = #tpu.dot_dimension_numbers<[1], [1], [0], [0], [0, 0, 1, 0], [], []>} : vector<64x32xbf16>, vector<64x32xbf16>, vector<64x64xf32> -> vector<64x64xf32>
    %cst_17 = arith.constant dense<0xFF800000> : vector<64xf32>
    %39 = vector.multi_reduction <maximumf>, %38, %cst_17 [1] : vector<64x64xf32> to vector<64xf32>
    %40 = vector.shape_cast %39 : vector<64xf32> to vector<64x1xf32>
    %41 = vector.broadcast %40 : vector<64x1xf32> to vector<64x64xf32>
    %42 = arith.subf %38, %41 : vector<64x64xf32>
    %43 = math.exp %42 : vector<64x64xf32>
    %cst_18 = arith.constant dense<0.000000e+00> : vector<64xf32>
    %44 = vector.multi_reduction <add>, %43, %cst_18 [1] : vector<64x64xf32> to vector<64xf32>
    %45 = vector.shape_cast %44 : vector<64xf32> to vector<64x1xf32>
    %46 = tpu.reciprocal %45 {approx = true} : vector<64x1xf32> -> vector<64x1xf32>
    %47 = vector.broadcast %46 : vector<64x1xf32> to vector<64x64xf32>
    %48 = arith.mulf %43, %47 : vector<64x64xf32>
    %49 = arith.truncf %48 : vector<64x64xf32> to vector<64x64xbf16>
    %cst_19 = arith.constant dense<0.000000e+00> : vector<64x32xf32>
    %50 = tpu.matmul %49, %37, %cst_19 {dimension_numbers = #tpu.dot_dimension_numbers<[1], [0], [0], [1], [0, 0, 1, 1], [], []>} : vector<64x64xbf16>, vector<64x32xbf16>, vector<64x32xf32> -> vector<64x32xf32>
    %c0_20 = arith.constant 0 : index
    %c0_21 = arith.constant 0 : index
    %c32 = arith.constant 32 : index
    %51 = vector.load %arg4[%c0_20, %c0_21, %c32] : memref<1x64x128xf32, #tpu.memory_space<vmem>>, vector<1x64x32xf32>
    %52 = vector.shape_cast %51 : vector<1x64x32xf32> to vector<64x32xf32>
    %53 = vector.shape_cast %50 : vector<64x32xf32> to vector<1x64x32xf32>
    tpu.vector_store %arg4[%c0_20, %c0_21, %c32], %53 {strides = array<i32>} : memref<1x64x128xf32, #tpu.memory_space<vmem>>, vector<1x64x32xf32>,
    %54 = vector.extract_strided_slice %1 {offsets = [0, 64], sizes = [64, 32], strides = [1, 1]} : vector<64x128xf32> to vector<64x32xf32>
    %cst_22 = arith.constant 0.176776692 : f32
    %55 = vector.broadcast %cst_22 : f32 to vector<64x32xf32>
    %56 = arith.mulf %54, %55 : vector<64x32xf32>
    %57 = arith.truncf %56 : vector<64x32xf32> to vector<64x32xbf16>
    %58 = vector.extract_strided_slice %3 {offsets = [0, 64], sizes = [64, 32], strides = [1, 1]} : vector<64x128xf32> to vector<64x32xf32>
    %59 = arith.truncf %58 : vector<64x32xf32> to vector<64x32xbf16>
    %60 = vector.extract_strided_slice %5 {offsets = [0, 64], sizes = [64, 32], strides = [1, 1]} : vector<64x128xf32> to vector<64x32xf32>
    %61 = arith.truncf %60 : vector<64x32xf32> to vector<64x32xbf16>
    %cst_23 = arith.constant dense<0.000000e+00> : vector<64x64xf32>
    %62 = tpu.matmul %57, %59, %cst_23 {dimension_numbers = #tpu.dot_dimension_numbers<[1], [1], [0], [0], [0, 0, 1, 0], [], []>} : vector<64x32xbf16>, vector<64x32xbf16>, vector<64x64xf32> -> vector<64x64xf32>
    %cst_24 = arith.constant dense<0xFF800000> : vector<64xf32>
    %63 = vector.multi_reduction <maximumf>, %62, %cst_24 [1] : vector<64x64xf32> to vector<64xf32>
    %64 = vector.shape_cast %63 : vector<64xf32> to vector<64x1xf32>
    %65 = vector.broadcast %64 : vector<64x1xf32> to vector<64x64xf32>
    %66 = arith.subf %62, %65 : vector<64x64xf32>
    %67 = math.exp %66 : vector<64x64xf32>
    %cst_25 = arith.constant dense<0.000000e+00> : vector<64xf32>
    %68 = vector.multi_reduction <add>, %67, %cst_25 [1] : vector<64x64xf32> to vector<64xf32>
    %69 = vector.shape_cast %68 : vector<64xf32> to vector<64x1xf32>
    %70 = tpu.reciprocal %69 {approx = true} : vector<64x1xf32> -> vector<64x1xf32>
    %71 = vector.broadcast %70 : vector<64x1xf32> to vector<64x64xf32>
    %72 = arith.mulf %67, %71 : vector<64x64xf32>
    %73 = arith.truncf %72 : vector<64x64xf32> to vector<64x64xbf16>
    %cst_26 = arith.constant dense<0.000000e+00> : vector<64x32xf32>
    %74 = tpu.matmul %73, %61, %cst_26 {dimension_numbers = #tpu.dot_dimension_numbers<[1], [0], [0], [1], [0, 0, 1, 1], [], []>} : vector<64x64xbf16>, vector<64x32xbf16>, vector<64x32xf32> -> vector<64x32xf32>
    %c0_27 = arith.constant 0 : index
    %c0_28 = arith.constant 0 : index
    %c64 = arith.constant 64 : index
    %75 = vector.load %arg4[%c0_27, %c0_28, %c64] : memref<1x64x128xf32, #tpu.memory_space<vmem>>, vector<1x64x32xf32>
    %76 = vector.shape_cast %75 : vector<1x64x32xf32> to vector<64x32xf32>
    %77 = vector.shape_cast %74 : vector<64x32xf32> to vector<1x64x32xf32>
    tpu.vector_store %arg4[%c0_27, %c0_28, %c64], %77 {strides = array<i32>} : memref<1x64x128xf32, #tpu.memory_space<vmem>>, vector<1x64x32xf32>,
    %78 = vector.extract_strided_slice %1 {offsets = [0, 96], sizes = [64, 32], strides = [1, 1]} : vector<64x128xf32> to vector<64x32xf32>
    %cst_29 = arith.constant 0.176776692 : f32
    %79 = vector.broadcast %cst_29 : f32 to vector<64x32xf32>
    %80 = arith.mulf %78, %79 : vector<64x32xf32>
    %81 = arith.truncf %80 : vector<64x32xf32> to vector<64x32xbf16>
    %82 = vector.extract_strided_slice %3 {offsets = [0, 96], sizes = [64, 32], strides = [1, 1]} : vector<64x128xf32> to vector<64x32xf32>
    %83 = arith.truncf %82 : vector<64x32xf32> to vector<64x32xbf16>
    %84 = vector.extract_strided_slice %5 {offsets = [0, 96], sizes = [64, 32], strides = [1, 1]} : vector<64x128xf32> to vector<64x32xf32>
    %85 = arith.truncf %84 : vector<64x32xf32> to vector<64x32xbf16>
    %cst_30 = arith.constant dense<0.000000e+00> : vector<64x64xf32>
    %86 = tpu.matmul %81, %83, %cst_30 {dimension_numbers = #tpu.dot_dimension_numbers<[1], [1], [0], [0], [0, 0, 1, 0], [], []>} : vector<64x32xbf16>, vector<64x32xbf16>, vector<64x64xf32> -> vector<64x64xf32>
    %cst_31 = arith.constant dense<0xFF800000> : vector<64xf32>
    %87 = vector.multi_reduction <maximumf>, %86, %cst_31 [1] : vector<64x64xf32> to vector<64xf32>
    %88 = vector.shape_cast %87 : vector<64xf32> to vector<64x1xf32>
    %89 = vector.broadcast %88 : vector<64x1xf32> to vector<64x64xf32>
    %90 = arith.subf %86, %89 : vector<64x64xf32>
    %91 = math.exp %90 : vector<64x64xf32>
    %cst_32 = arith.constant dense<0.000000e+00> : vector<64xf32>
    %92 = vector.multi_reduction <add>, %91, %cst_32 [1] : vector<64x64xf32> to vector<64xf32>
    %93 = vector.shape_cast %92 : vector<64xf32> to vector<64x1xf32>
    %94 = tpu.reciprocal %93 {approx = true} : vector<64x1xf32> -> vector<64x1xf32>
    %95 = vector.broadcast %94 : vector<64x1xf32> to vector<64x64xf32>
    %96 = arith.mulf %91, %95 : vector<64x64xf32>
    %97 = arith.truncf %96 : vector<64x64xf32> to vector<64x64xbf16>
    %cst_33 = arith.constant dense<0.000000e+00> : vector<64x32xf32>
    %98 = tpu.matmul %97, %85, %cst_33 {dimension_numbers = #tpu.dot_dimension_numbers<[1], [0], [0], [1], [0, 0, 1, 1], [], []>} : vector<64x64xbf16>, vector<64x32xbf16>, vector<64x32xf32> -> vector<64x32xf32>
    %c0_34 = arith.constant 0 : index
    %c0_35 = arith.constant 0 : index
    %c96 = arith.constant 96 : index
    %99 = vector.load %arg4[%c0_34, %c0_35, %c96] : memref<1x64x128xf32, #tpu.memory_space<vmem>>, vector<1x64x32xf32>
    %100 = vector.shape_cast %99 : vector<1x64x32xf32> to vector<64x32xf32>
    %101 = vector.shape_cast %98 : vector<64x32xf32> to vector<1x64x32xf32>
    tpu.vector_store %arg4[%c0_34, %c0_35, %c96], %101 {strides = array<i32>} : memref<1x64x128xf32, #tpu.memory_space<vmem>>, vector<1x64x32xf32>,
    return
  }
  func.func @transform_0(%arg0: i32) -> (i32, i32, i32) {
    %c0_i32 = arith.constant 0 : i32
    %c0_i32_0 = arith.constant 0 : i32
    %c0_i32_1 = arith.constant 0 : i32
    return %arg0, %c0_i32, %c0_i32_0 : i32, i32, i32
  }
  func.func @transform_1(%arg0: i32) -> (i32, i32, i32) {
    %c0_i32 = arith.constant 0 : i32
    %c1_i32 = arith.constant 1 : i32
    %c0_i32_0 = arith.constant 0 : i32
    return %arg0, %c0_i32, %c1_i32 : i32, i32, i32
  }
  func.func @transform_2(%arg0: i32) -> (i32, i32, i32) {
    %c0_i32 = arith.constant 0 : i32
    %c2_i32 = arith.constant 2 : i32
    %c0_i32_0 = arith.constant 0 : i32
    return %arg0, %c0_i32, %c2_i32 : i32, i32, i32
  }
  func.func @transform_3(%arg0: i32) -> (i32, i32, i32) {
    %c0_i32 = arith.constant 0 : i32
    %c0_i32_0 = arith.constant 0 : i32
    %c0_i32_1 = arith.constant 0 : i32
    return %arg0, %c0_i32, %c0_i32_0 : i32, i32, i32
  }
}

module attributes {stable_mosaic.version = 11 : i64} {
  func.func @kernel(%arg0: i32, %arg1: i32, %arg2: i32, %arg3: i32, %arg4: memref<1x64x128xf32, #tpu.memory_space<vmem>>, %arg5: memref<128x128xf32, #tpu.memory_space<vmem>>, %arg6: memref<1x128xf32, #tpu.memory_space<vmem>>, %arg7: memref<1x1x128xf32, #tpu.memory_space<vmem>>, %arg8: memref<1x64x128xf32, #tpu.memory_space<vmem>>, %arg9: memref<1x64x128xf32, #tpu.memory_space<vmem>>, %arg10: memref<64x128xf32, #tpu.memory_space<vmem>>) attributes {dimension_semantics = [#tpu.dimension_semantics<parallel>, #tpu.dimension_semantics<parallel>, #tpu.dimension_semantics<parallel>, #tpu.dimension_semantics<arbitrary>], iteration_bounds = array<i64: 2, 1, 1, 1>, scalar_prefetch = 0 : i64, scratch_operands = 1 : i64, tpu.core_type = #tpu.core_type<tc>, window_params = [{transform_indices = @transform_0, window_bounds = array<i64: 1, 64, 128>}, {transform_indices = @transform_1, window_bounds = array<i64: 128, 128>}, {transform_indices = @transform_2, window_bounds = array<i64: 1, 128>}, {transform_indices = @transform_3, window_bounds = array<i64: 1, 1, 128>}, {transform_indices = @transform_4, window_bounds = array<i64: 1, 64, 128>}, {transform_indices = @transform_5, window_bounds = array<i64: 1, 64, 128>}]} {
    %c0_i32 = arith.constant 0 : i32
    %0 = arith.cmpi eq, %arg3, %c0_i32 : i32
    %1 = arith.extui %0 : i1 to i32
    %c0_i32_0 = arith.constant 0 : i32
    %2 = arith.cmpi ne, %1, %c0_i32_0 : i32
    scf.if %2 {
      %cst_11 = arith.constant 0.000000e+00 : f32
      %15 = vector.broadcast %cst_11 : f32 to vector<64x128xf32>
      %c0_12 = arith.constant 0 : index
      %c0_13 = arith.constant 0 : index
      %16 = vector.load %arg10[%c0_12, %c0_13] : memref<64x128xf32, #tpu.memory_space<vmem>>, vector<64x128xf32>
      tpu.vector_store %arg10[%c0_12, %c0_13], %15 {strides = array<i32>} : memref<64x128xf32, #tpu.memory_space<vmem>>, vector<64x128xf32>,
    } else {
    }
    %c0 = arith.constant 0 : index
    %c0_1 = arith.constant 0 : index
    %3 = vector.load %arg10[%c0, %c0_1] : memref<64x128xf32, #tpu.memory_space<vmem>>, vector<64x128xf32>
    %c0_2 = arith.constant 0 : index
    %c0_3 = arith.constant 0 : index
    %c0_4 = arith.constant 0 : index
    %4 = vector.load %arg4[%c0_2, %c0_3, %c0_4] : memref<1x64x128xf32, #tpu.memory_space<vmem>>, vector<1x64x128xf32>
    %5 = vector.shape_cast %4 : vector<1x64x128xf32> to vector<64x128xf32>
    %6 = arith.truncf %5 : vector<64x128xf32> to vector<64x128xbf16>
    %c0_5 = arith.constant 0 : index
    %c0_6 = arith.constant 0 : index
    %7 = vector.load %arg5[%c0_5, %c0_6] : memref<128x128xf32, #tpu.memory_space<vmem>>, vector<128x128xf32>
    %8 = arith.truncf %7 : vector<128x128xf32> to vector<128x128xbf16>
    %cst = arith.constant dense<0.000000e+00> : vector<64x128xf32>
    %9 = tpu.matmul %6, %8, %cst {dimension_numbers = #tpu.dot_dimension_numbers<[1], [0], [0], [1], [0, 0, 1, 1], [], []>} : vector<64x128xbf16>, vector<128x128xbf16>, vector<64x128xf32> -> vector<64x128xf32>
    %10 = arith.addf %3, %9 : vector<64x128xf32>
    %c0_7 = arith.constant 0 : index
    %c0_8 = arith.constant 0 : index
    %11 = vector.load %arg10[%c0_7, %c0_8] : memref<64x128xf32, #tpu.memory_space<vmem>>, vector<64x128xf32>
    tpu.vector_store %arg10[%c0_7, %c0_8], %10 {strides = array<i32>} : memref<64x128xf32, #tpu.memory_space<vmem>>, vector<64x128xf32>,
    %c0_i32_9 = arith.constant 0 : i32
    %12 = arith.cmpi eq, %arg3, %c0_i32_9 : i32
    %13 = arith.extui %12 : i1 to i32
    %c0_i32_10 = arith.constant 0 : i32
    %14 = arith.cmpi ne, %13, %c0_i32_10 : i32
    scf.if %14 {
      %c0_11 = arith.constant 0 : index
      %c0_12 = arith.constant 0 : index
      %c0_13 = arith.constant 0 : index
      %15 = vector.load %arg8[%c0_11, %c0_12, %c0_13] : memref<1x64x128xf32, #tpu.memory_space<vmem>>, vector<1x64x128xf32>
      %16 = vector.shape_cast %15 : vector<1x64x128xf32> to vector<64x128xf32>
      %c0_14 = arith.constant 0 : index
      %c0_15 = arith.constant 0 : index
      %c0_16 = arith.constant 0 : index
      %17 = vector.load %arg7[%c0_14, %c0_15, %c0_16] : memref<1x1x128xf32, #tpu.memory_space<vmem>>, vector<1x1x128xf32>
      %18 = vector.shape_cast %17 : vector<1x1x128xf32> to vector<1x128xf32>
      %c0_17 = arith.constant 0 : index
      %c0_18 = arith.constant 0 : index
      %19 = vector.load %arg10[%c0_17, %c0_18] : memref<64x128xf32, #tpu.memory_space<vmem>>, vector<64x128xf32>
      %c0_19 = arith.constant 0 : index
      %c0_20 = arith.constant 0 : index
      %20 = vector.load %arg6[%c0_19, %c0_20] : memref<1x128xf32, #tpu.memory_space<vmem>>, vector<1x128xf32>
      %21 = vector.broadcast %20 : vector<1x128xf32> to vector<64x128xf32>
      %22 = arith.addf %19, %21 : vector<64x128xf32>
      %23 = vector.broadcast %18 : vector<1x128xf32> to vector<64x128xf32>
      %24 = arith.mulf %23, %22 : vector<64x128xf32>
      %25 = arith.addf %16, %24 : vector<64x128xf32>
      %c0_21 = arith.constant 0 : index
      %c0_22 = arith.constant 0 : index
      %c0_23 = arith.constant 0 : index
      %26 = vector.load %arg9[%c0_21, %c0_22, %c0_23] : memref<1x64x128xf32, #tpu.memory_space<vmem>>, vector<1x64x128xf32>
      %27 = vector.shape_cast %26 : vector<1x64x128xf32> to vector<64x128xf32>
      %28 = vector.shape_cast %25 : vector<64x128xf32> to vector<1x64x128xf32>
      tpu.vector_store %arg9[%c0_21, %c0_22, %c0_23], %28 {strides = array<i32>} : memref<1x64x128xf32, #tpu.memory_space<vmem>>, vector<1x64x128xf32>,
    } else {
    }
    return
  }
  func.func @transform_0(%arg0: i32, %arg1: i32, %arg2: i32, %arg3: i32) -> (i32, i32, i32) {
    %c0_i32 = arith.constant 0 : i32
    return %arg0, %arg1, %arg3 : i32, i32, i32
  }
  func.func @transform_1(%arg0: i32, %arg1: i32, %arg2: i32, %arg3: i32) -> (i32, i32) {
    %c0_i32 = arith.constant 0 : i32
    return %arg3, %arg2 : i32, i32
  }
  func.func @transform_2(%arg0: i32, %arg1: i32, %arg2: i32, %arg3: i32) -> (i32, i32) {
    %c0_i32 = arith.constant 0 : i32
    %c0_i32_0 = arith.constant 0 : i32
    return %c0_i32, %arg2 : i32, i32
  }
  func.func @transform_3(%arg0: i32, %arg1: i32, %arg2: i32, %arg3: i32) -> (i32, i32, i32) {
    %c0_i32 = arith.constant 0 : i32
    %c0_i32_0 = arith.constant 0 : i32
    return %arg0, %c0_i32, %arg2 : i32, i32, i32
  }
  func.func @transform_4(%arg0: i32, %arg1: i32, %arg2: i32, %arg3: i32) -> (i32, i32, i32) {
    %c0_i32 = arith.constant 0 : i32
    return %arg0, %arg1, %arg2 : i32, i32, i32
  }
  func.func @transform_5(%arg0: i32, %arg1: i32, %arg2: i32, %arg3: i32) -> (i32, i32, i32) {
    %c0_i32 = arith.constant 0 : i32
    return %arg0, %arg1, %arg2 : i32, i32, i32
  }
}

module attributes {stable_mosaic.version = 11 : i64} {
  func.func @kernel(%arg0: i32, %arg1: i32, %arg2: i32, %arg3: memref<1x64x128xf32, #tpu.memory_space<vmem>>, %arg4: memref<1x1x128xf32, #tpu.memory_space<vmem>>, %arg5: memref<1x1x128xf32, #tpu.memory_space<vmem>>, %arg6: memref<128x256xf32, #tpu.memory_space<vmem>>, %arg7: memref<1x256xf32, #tpu.memory_space<vmem>>, %arg8: memref<1x64x256xf32, #tpu.memory_space<vmem>>, %arg9: memref<64x128xbf16, #tpu.memory_space<vmem>>) attributes {dimension_semantics = [#tpu.dimension_semantics<parallel>, #tpu.dimension_semantics<parallel>, #tpu.dimension_semantics<arbitrary>], iteration_bounds = array<i64: 2, 1, 2>, scalar_prefetch = 0 : i64, scratch_operands = 1 : i64, tpu.core_type = #tpu.core_type<tc>, window_params = [{transform_indices = @transform_0, window_bounds = array<i64: 1, 64, 128>}, {transform_indices = @transform_1, window_bounds = array<i64: 1, 1, 128>}, {transform_indices = @transform_2, window_bounds = array<i64: 1, 1, 128>}, {transform_indices = @transform_3, window_bounds = array<i64: 128, 256>}, {transform_indices = @transform_4, window_bounds = array<i64: 1, 256>}, {transform_indices = @transform_5, window_bounds = array<i64: 1, 64, 256>}]} {
    %c0_i32 = arith.constant 0 : i32
    %0 = arith.cmpi eq, %arg2, %c0_i32 : i32
    %1 = arith.extui %0 : i1 to i32
    %c0_i32_0 = arith.constant 0 : i32
    %2 = arith.cmpi ne, %1, %c0_i32_0 : i32
    scf.if %2 {
      %c0_13 = arith.constant 0 : index
      %c0_14 = arith.constant 0 : index
      %c0_15 = arith.constant 0 : index
      %26 = vector.load %arg3[%c0_13, %c0_14, %c0_15] : memref<1x64x128xf32, #tpu.memory_space<vmem>>, vector<1x64x128xf32>
      %27 = vector.shape_cast %26 : vector<1x64x128xf32> to vector<64x128xf32>
      %cst_16 = arith.constant dense<0.000000e+00> : vector<64xf32>
      %28 = vector.multi_reduction <add>, %27, %cst_16 [1] : vector<64x128xf32> to vector<64xf32>
      %29 = vector.shape_cast %28 : vector<64xf32> to vector<64x1xf32>
      %cst_17 = arith.constant 1.280000e+02 : f32
      %30 = vector.broadcast %cst_17 : f32 to vector<64x1xf32>
      %31 = arith.divf %29, %30 : vector<64x1xf32>
      %32 = vector.broadcast %31 : vector<64x1xf32> to vector<64x128xf32>
      %33 = arith.subf %27, %32 : vector<64x128xf32>
      %34 = arith.mulf %33, %33 : vector<64x128xf32>
      %cst_18 = arith.constant dense<0.000000e+00> : vector<64xf32>
      %35 = vector.multi_reduction <add>, %34, %cst_18 [1] : vector<64x128xf32> to vector<64xf32>
      %36 = vector.shape_cast %35 : vector<64xf32> to vector<64x1xf32>
      %cst_19 = arith.constant 1.280000e+02 : f32
      %37 = vector.broadcast %cst_19 : f32 to vector<64x1xf32>
      %38 = arith.divf %36, %37 : vector<64x1xf32>
      %39 = vector.broadcast %31 : vector<64x1xf32> to vector<64x128xf32>
      %40 = arith.subf %27, %39 : vector<64x128xf32>
      %cst_20 = arith.constant 9.99999997E-7 : f32
      %41 = vector.broadcast %cst_20 : f32 to vector<64x1xf32>
      %42 = arith.addf %38, %41 : vector<64x1xf32>
      %43 = math.rsqrt %42 : vector<64x1xf32>
      %44 = vector.broadcast %43 : vector<64x1xf32> to vector<64x128xf32>
      %45 = arith.mulf %40, %44 : vector<64x128xf32>
      %c0_21 = arith.constant 0 : index
      %c0_22 = arith.constant 0 : index
      %c0_23 = arith.constant 0 : index
      %46 = vector.load %arg5[%c0_21, %c0_22, %c0_23] : memref<1x1x128xf32, #tpu.memory_space<vmem>>, vector<1x1x128xf32>
      %47 = vector.shape_cast %46 : vector<1x1x128xf32> to vector<1x128xf32>
      %cst_24 = arith.constant 1.000000e+00 : f32
      %48 = vector.broadcast %cst_24 : f32 to vector<1x128xf32>
      %49 = arith.addf %48, %47 : vector<1x128xf32>
      %50 = vector.broadcast %49 : vector<1x128xf32> to vector<64x128xf32>
      %51 = arith.mulf %45, %50 : vector<64x128xf32>
      %c0_25 = arith.constant 0 : index
      %c0_26 = arith.constant 0 : index
      %c0_27 = arith.constant 0 : index
      %52 = vector.load %arg4[%c0_25, %c0_26, %c0_27] : memref<1x1x128xf32, #tpu.memory_space<vmem>>, vector<1x1x128xf32>
      %53 = vector.shape_cast %52 : vector<1x1x128xf32> to vector<1x128xf32>
      %54 = vector.broadcast %53 : vector<1x128xf32> to vector<64x128xf32>
      %55 = arith.addf %51, %54 : vector<64x128xf32>
      %56 = arith.truncf %55 : vector<64x128xf32> to vector<64x128xbf16>
      %c0_28 = arith.constant 0 : index
      %c0_29 = arith.constant 0 : index
      %57 = vector.load %arg9[%c0_28, %c0_29] : memref<64x128xbf16, #tpu.memory_space<vmem>>, vector<64x128xbf16>
      tpu.vector_store %arg9[%c0_28, %c0_29], %56 {strides = array<i32>} : memref<64x128xbf16, #tpu.memory_space<vmem>>, vector<64x128xbf16>,
    } else {
    }
    %c0 = arith.constant 0 : index
    %c0_1 = arith.constant 0 : index
    %3 = vector.load %arg9[%c0, %c0_1] : memref<64x128xbf16, #tpu.memory_space<vmem>>, vector<64x128xbf16>
    %c0_2 = arith.constant 0 : index
    %c0_3 = arith.constant 0 : index
    %4 = vector.load %arg6[%c0_2, %c0_3] : memref<128x256xf32, #tpu.memory_space<vmem>>, vector<128x256xf32>
    %5 = arith.truncf %4 : vector<128x256xf32> to vector<128x256xbf16>
    %cst = arith.constant dense<0.000000e+00> : vector<64x256xf32>
    %6 = tpu.matmul %3, %5, %cst {dimension_numbers = #tpu.dot_dimension_numbers<[1], [0], [0], [1], [0, 0, 1, 1], [], []>} : vector<64x128xbf16>, vector<128x256xbf16>, vector<64x256xf32> -> vector<64x256xf32>
    %c0_4 = arith.constant 0 : index
    %c0_5 = arith.constant 0 : index
    %7 = vector.load %arg7[%c0_4, %c0_5] : memref<1x256xf32, #tpu.memory_space<vmem>>, vector<1x256xf32>
    %8 = vector.broadcast %7 : vector<1x256xf32> to vector<64x256xf32>
    %9 = arith.addf %6, %8 : vector<64x256xf32>
    %cst_6 = arith.constant 5.000000e-01 : f32
    %10 = vector.broadcast %cst_6 : f32 to vector<64x256xf32>
    %11 = arith.mulf %10, %9 : vector<64x256xf32>
    %cst_7 = arith.constant 4.471500e-02 : f32
    %12 = vector.broadcast %cst_7 : f32 to vector<64x256xf32>
    %13 = arith.mulf %12, %9 : vector<64x256xf32>
    %14 = arith.mulf %13, %9 : vector<64x256xf32>
    %15 = arith.mulf %14, %9 : vector<64x256xf32>
    %16 = arith.addf %9, %15 : vector<64x256xf32>
    %cst_8 = arith.constant 0.797884583 : f32
    %17 = vector.broadcast %cst_8 : f32 to vector<64x256xf32>
    %18 = arith.mulf %17, %16 : vector<64x256xf32>
    %19 = math.tanh %18 : vector<64x256xf32>
    %cst_9 = arith.constant 1.000000e+00 : f32
    %20 = vector.broadcast %cst_9 : f32 to vector<64x256xf32>
    %21 = arith.addf %20, %19 : vector<64x256xf32>
    %22 = arith.mulf %11, %21 : vector<64x256xf32>
    %c0_10 = arith.constant 0 : index
    %c0_11 = arith.constant 0 : index
    %c0_12 = arith.constant 0 : index
    %23 = vector.load %arg8[%c0_10, %c0_11, %c0_12] : memref<1x64x256xf32, #tpu.memory_space<vmem>>, vector<1x64x256xf32>
    %24 = vector.shape_cast %23 : vector<1x64x256xf32> to vector<64x256xf32>
    %25 = vector.shape_cast %22 : vector<64x256xf32> to vector<1x64x256xf32>
    tpu.vector_store %arg8[%c0_10, %c0_11, %c0_12], %25 {strides = array<i32>} : memref<1x64x256xf32, #tpu.memory_space<vmem>>, vector<1x64x256xf32>,
    return
  }
  func.func @transform_0(%arg0: i32, %arg1: i32, %arg2: i32) -> (i32, i32, i32) {
    %c0_i32 = arith.constant 0 : i32
    %c0_i32_0 = arith.constant 0 : i32
    return %arg0, %arg1, %c0_i32 : i32, i32, i32
  }
  func.func @transform_1(%arg0: i32, %arg1: i32, %arg2: i32) -> (i32, i32, i32) {
    %c0_i32 = arith.constant 0 : i32
    %c0_i32_0 = arith.constant 0 : i32
    %c0_i32_1 = arith.constant 0 : i32
    return %arg0, %c0_i32, %c0_i32_0 : i32, i32, i32
  }
  func.func @transform_2(%arg0: i32, %arg1: i32, %arg2: i32) -> (i32, i32, i32) {
    %c0_i32 = arith.constant 0 : i32
    %c0_i32_0 = arith.constant 0 : i32
    %c0_i32_1 = arith.constant 0 : i32
    return %arg0, %c0_i32, %c0_i32_0 : i32, i32, i32
  }
  func.func @transform_3(%arg0: i32, %arg1: i32, %arg2: i32) -> (i32, i32) {
    %c0_i32 = arith.constant 0 : i32
    %c0_i32_0 = arith.constant 0 : i32
    return %c0_i32, %arg2 : i32, i32
  }
  func.func @transform_4(%arg0: i32, %arg1: i32, %arg2: i32) -> (i32, i32) {
    %c0_i32 = arith.constant 0 : i32
    %c0_i32_0 = arith.constant 0 : i32
    return %c0_i32, %arg2 : i32, i32
  }
  func.func @transform_5(%arg0: i32, %arg1: i32, %arg2: i32) -> (i32, i32, i32) {
    %c0_i32 = arith.constant 0 : i32
    return %arg0, %arg1, %arg2 : i32, i32, i32
  }
}

module attributes {stable_mosaic.version = 11 : i64} {
  func.func @kernel(%arg0: i32, %arg1: i32, %arg2: i32, %arg3: i32, %arg4: memref<1x64x512xf32, #tpu.memory_space<vmem>>, %arg5: memref<512x128xf32, #tpu.memory_space<vmem>>, %arg6: memref<1x128xf32, #tpu.memory_space<vmem>>, %arg7: memref<1x1x128xf32, #tpu.memory_space<vmem>>, %arg8: memref<1x64x128xf32, #tpu.memory_space<vmem>>, %arg9: memref<1x64x128xf32, #tpu.memory_space<vmem>>, %arg10: memref<64x128xf32, #tpu.memory_space<vmem>>) attributes {dimension_semantics = [#tpu.dimension_semantics<parallel>, #tpu.dimension_semantics<parallel>, #tpu.dimension_semantics<parallel>, #tpu.dimension_semantics<arbitrary>], iteration_bounds = array<i64: 2, 1, 1, 1>, scalar_prefetch = 0 : i64, scratch_operands = 1 : i64, tpu.core_type = #tpu.core_type<tc>, window_params = [{transform_indices = @transform_0, window_bounds = array<i64: 1, 64, 512>}, {transform_indices = @transform_1, window_bounds = array<i64: 512, 128>}, {transform_indices = @transform_2, window_bounds = array<i64: 1, 128>}, {transform_indices = @transform_3, window_bounds = array<i64: 1, 1, 128>}, {transform_indices = @transform_4, window_bounds = array<i64: 1, 64, 128>}, {transform_indices = @transform_5, window_bounds = array<i64: 1, 64, 128>}]} {
    %c0_i32 = arith.constant 0 : i32
    %0 = arith.cmpi eq, %arg3, %c0_i32 : i32
    %1 = arith.extui %0 : i1 to i32
    %c0_i32_0 = arith.constant 0 : i32
    %2 = arith.cmpi ne, %1, %c0_i32_0 : i32
    scf.if %2 {
      %cst_11 = arith.constant 0.000000e+00 : f32
      %15 = vector.broadcast %cst_11 : f32 to vector<64x128xf32>
      %c0_12 = arith.constant 0 : index
      %c0_13 = arith.constant 0 : index
      %16 = vector.load %arg10[%c0_12, %c0_13] : memref<64x128xf32, #tpu.memory_space<vmem>>, vector<64x128xf32>
      tpu.vector_store %arg10[%c0_12, %c0_13], %15 {strides = array<i32>} : memref<64x128xf32, #tpu.memory_space<vmem>>, vector<64x128xf32>,
    } else {
    }
    %c0 = arith.constant 0 : index
    %c0_1 = arith.constant 0 : index
    %3 = vector.load %arg10[%c0, %c0_1] : memref<64x128xf32, #tpu.memory_space<vmem>>, vector<64x128xf32>
    %c0_2 = arith.constant 0 : index
    %c0_3 = arith.constant 0 : index
    %c0_4 = arith.constant 0 : index
    %4 = vector.load %arg4[%c0_2, %c0_3, %c0_4] : memref<1x64x512xf32, #tpu.memory_space<vmem>>, vector<1x64x512xf32>
    %5 = vector.shape_cast %4 : vector<1x64x512xf32> to vector<64x512xf32>
    %6 = arith.truncf %5 : vector<64x512xf32> to vector<64x512xbf16>
    %c0_5 = arith.constant 0 : index
    %c0_6 = arith.constant 0 : index
    %7 = vector.load %arg5[%c0_5, %c0_6] : memref<512x128xf32, #tpu.memory_space<vmem>>, vector<512x128xf32>
    %8 = arith.truncf %7 : vector<512x128xf32> to vector<512x128xbf16>
    %cst = arith.constant dense<0.000000e+00> : vector<64x128xf32>
    %9 = tpu.matmul %6, %8, %cst {dimension_numbers = #tpu.dot_dimension_numbers<[1], [0], [0], [1], [0, 0, 1, 1], [], []>} : vector<64x512xbf16>, vector<512x128xbf16>, vector<64x128xf32> -> vector<64x128xf32>
    %10 = arith.addf %3, %9 : vector<64x128xf32>
    %c0_7 = arith.constant 0 : index
    %c0_8 = arith.constant 0 : index
    %11 = vector.load %arg10[%c0_7, %c0_8] : memref<64x128xf32, #tpu.memory_space<vmem>>, vector<64x128xf32>
    tpu.vector_store %arg10[%c0_7, %c0_8], %10 {strides = array<i32>} : memref<64x128xf32, #tpu.memory_space<vmem>>, vector<64x128xf32>,
    %c0_i32_9 = arith.constant 0 : i32
    %12 = arith.cmpi eq, %arg3, %c0_i32_9 : i32
    %13 = arith.extui %12 : i1 to i32
    %c0_i32_10 = arith.constant 0 : i32
    %14 = arith.cmpi ne, %13, %c0_i32_10 : i32
    scf.if %14 {
      %c0_11 = arith.constant 0 : index
      %c0_12 = arith.constant 0 : index
      %c0_13 = arith.constant 0 : index
      %15 = vector.load %arg8[%c0_11, %c0_12, %c0_13] : memref<1x64x128xf32, #tpu.memory_space<vmem>>, vector<1x64x128xf32>
      %16 = vector.shape_cast %15 : vector<1x64x128xf32> to vector<64x128xf32>
      %c0_14 = arith.constant 0 : index
      %c0_15 = arith.constant 0 : index
      %c0_16 = arith.constant 0 : index
      %17 = vector.load %arg7[%c0_14, %c0_15, %c0_16] : memref<1x1x128xf32, #tpu.memory_space<vmem>>, vector<1x1x128xf32>
      %18 = vector.shape_cast %17 : vector<1x1x128xf32> to vector<1x128xf32>
      %c0_17 = arith.constant 0 : index
      %c0_18 = arith.constant 0 : index
      %19 = vector.load %arg10[%c0_17, %c0_18] : memref<64x128xf32, #tpu.memory_space<vmem>>, vector<64x128xf32>
      %c0_19 = arith.constant 0 : index
      %c0_20 = arith.constant 0 : index
      %20 = vector.load %arg6[%c0_19, %c0_20] : memref<1x128xf32, #tpu.memory_space<vmem>>, vector<1x128xf32>
      %21 = vector.broadcast %20 : vector<1x128xf32> to vector<64x128xf32>
      %22 = arith.addf %19, %21 : vector<64x128xf32>
      %23 = vector.broadcast %18 : vector<1x128xf32> to vector<64x128xf32>
      %24 = arith.mulf %23, %22 : vector<64x128xf32>
      %25 = arith.addf %16, %24 : vector<64x128xf32>
      %c0_21 = arith.constant 0 : index
      %c0_22 = arith.constant 0 : index
      %c0_23 = arith.constant 0 : index
      %26 = vector.load %arg9[%c0_21, %c0_22, %c0_23] : memref<1x64x128xf32, #tpu.memory_space<vmem>>, vector<1x64x128xf32>
      %27 = vector.shape_cast %26 : vector<1x64x128xf32> to vector<64x128xf32>
      %28 = vector.shape_cast %25 : vector<64x128xf32> to vector<1x64x128xf32>
      tpu.vector_store %arg9[%c0_21, %c0_22, %c0_23], %28 {strides = array<i32>} : memref<1x64x128xf32, #tpu.memory_space<vmem>>, vector<1x64x128xf32>,
    } else {
    }
    return
  }
  func.func @transform_0(%arg0: i32, %arg1: i32, %arg2: i32, %arg3: i32) -> (i32, i32, i32) {
    %c0_i32 = arith.constant 0 : i32
    return %arg0, %arg1, %arg3 : i32, i32, i32
  }
  func.func @transform_1(%arg0: i32, %arg1: i32, %arg2: i32, %arg3: i32) -> (i32, i32) {
    %c0_i32 = arith.constant 0 : i32
    return %arg3, %arg2 : i32, i32
  }
  func.func @transform_2(%arg0: i32, %arg1: i32, %arg2: i32, %arg3: i32) -> (i32, i32) {
    %c0_i32 = arith.constant 0 : i32
    %c0_i32_0 = arith.constant 0 : i32
    return %c0_i32, %arg2 : i32, i32
  }
  func.func @transform_3(%arg0: i32, %arg1: i32, %arg2: i32, %arg3: i32) -> (i32, i32, i32) {
    %c0_i32 = arith.constant 0 : i32
    %c0_i32_0 = arith.constant 0 : i32
    return %arg0, %c0_i32, %arg2 : i32, i32, i32
  }
  func.func @transform_4(%arg0: i32, %arg1: i32, %arg2: i32, %arg3: i32) -> (i32, i32, i32) {
    %c0_i32 = arith.constant 0 : i32
    return %arg0, %arg1, %arg2 : i32, i32, i32
  }
  func.func @transform_5(%arg0: i32, %arg1: i32, %arg2: i32, %arg3: i32) -> (i32, i32, i32) {
    %c0_i32 = arith.constant 0 : i32
    return %arg0, %arg1, %arg2 : i32, i32, i32
  }
}

module attributes {stable_mosaic.version = 11 : i64} {
  func.func @kernel(%arg0: i32, %arg1: i32, %arg2: i32, %arg3: memref<1x64x128xf32, #tpu.memory_space<vmem>>, %arg4: memref<1x1x128xf32, #tpu.memory_space<vmem>>, %arg5: memref<1x1x128xf32, #tpu.memory_space<vmem>>, %arg6: memref<128x128xf32, #tpu.memory_space<vmem>>, %arg7: memref<1x128xf32, #tpu.memory_space<vmem>>, %arg8: memref<1x64x128xf32, #tpu.memory_space<vmem>>, %arg9: memref<64x128xbf16, #tpu.memory_space<vmem>>) attributes {dimension_semantics = [#tpu.dimension_semantics<parallel>, #tpu.dimension_semantics<parallel>, #tpu.dimension_semantics<arbitrary>], iteration_bounds = array<i64: 2, 1, 1>, scalar_prefetch = 0 : i64, scratch_operands = 1 : i64, tpu.core_type = #tpu.core_type<tc>, window_params = [{transform_indices = @transform_0, window_bounds = array<i64: 1, 64, 128>}, {transform_indices = @transform_1, window_bounds = array<i64: 1, 1, 128>}, {transform_indices = @transform_2, window_bounds = array<i64: 1, 1, 128>}, {transform_indices = @transform_3, window_bounds = array<i64: 128, 128>}, {transform_indices = @transform_4, window_bounds = array<i64: 1, 128>}, {transform_indices = @transform_5, window_bounds = array<i64: 1, 64, 128>}]} {
    %c0_i32 = arith.constant 0 : i32
    %0 = arith.cmpi eq, %arg2, %c0_i32 : i32
    %1 = arith.extui %0 : i1 to i32
    %c0_i32_0 = arith.constant 0 : i32
    %2 = arith.cmpi ne, %1, %c0_i32_0 : i32
    scf.if %2 {
      %c0_9 = arith.constant 0 : index
      %c0_10 = arith.constant 0 : index
      %c0_11 = arith.constant 0 : index
      %13 = vector.load %arg3[%c0_9, %c0_10, %c0_11] : memref<1x64x128xf32, #tpu.memory_space<vmem>>, vector<1x64x128xf32>
      %14 = vector.shape_cast %13 : vector<1x64x128xf32> to vector<64x128xf32>
      %cst_12 = arith.constant dense<0.000000e+00> : vector<64xf32>
      %15 = vector.multi_reduction <add>, %14, %cst_12 [1] : vector<64x128xf32> to vector<64xf32>
      %16 = vector.shape_cast %15 : vector<64xf32> to vector<64x1xf32>
      %cst_13 = arith.constant 1.280000e+02 : f32
      %17 = vector.broadcast %cst_13 : f32 to vector<64x1xf32>
      %18 = arith.divf %16, %17 : vector<64x1xf32>
      %19 = vector.broadcast %18 : vector<64x1xf32> to vector<64x128xf32>
      %20 = arith.subf %14, %19 : vector<64x128xf32>
      %21 = arith.mulf %20, %20 : vector<64x128xf32>
      %cst_14 = arith.constant dense<0.000000e+00> : vector<64xf32>
      %22 = vector.multi_reduction <add>, %21, %cst_14 [1] : vector<64x128xf32> to vector<64xf32>
      %23 = vector.shape_cast %22 : vector<64xf32> to vector<64x1xf32>
      %cst_15 = arith.constant 1.280000e+02 : f32
      %24 = vector.broadcast %cst_15 : f32 to vector<64x1xf32>
      %25 = arith.divf %23, %24 : vector<64x1xf32>
      %26 = vector.broadcast %18 : vector<64x1xf32> to vector<64x128xf32>
      %27 = arith.subf %14, %26 : vector<64x128xf32>
      %cst_16 = arith.constant 9.99999997E-7 : f32
      %28 = vector.broadcast %cst_16 : f32 to vector<64x1xf32>
      %29 = arith.addf %25, %28 : vector<64x1xf32>
      %30 = math.rsqrt %29 : vector<64x1xf32>
      %31 = vector.broadcast %30 : vector<64x1xf32> to vector<64x128xf32>
      %32 = arith.mulf %27, %31 : vector<64x128xf32>
      %c0_17 = arith.constant 0 : index
      %c0_18 = arith.constant 0 : index
      %c0_19 = arith.constant 0 : index
      %33 = vector.load %arg5[%c0_17, %c0_18, %c0_19] : memref<1x1x128xf32, #tpu.memory_space<vmem>>, vector<1x1x128xf32>
      %34 = vector.shape_cast %33 : vector<1x1x128xf32> to vector<1x128xf32>
      %cst_20 = arith.constant 1.000000e+00 : f32
      %35 = vector.broadcast %cst_20 : f32 to vector<1x128xf32>
      %36 = arith.addf %35, %34 : vector<1x128xf32>
      %37 = vector.broadcast %36 : vector<1x128xf32> to vector<64x128xf32>
      %38 = arith.mulf %32, %37 : vector<64x128xf32>
      %c0_21 = arith.constant 0 : index
      %c0_22 = arith.constant 0 : index
      %c0_23 = arith.constant 0 : index
      %39 = vector.load %arg4[%c0_21, %c0_22, %c0_23] : memref<1x1x128xf32, #tpu.memory_space<vmem>>, vector<1x1x128xf32>
      %40 = vector.shape_cast %39 : vector<1x1x128xf32> to vector<1x128xf32>
      %41 = vector.broadcast %40 : vector<1x128xf32> to vector<64x128xf32>
      %42 = arith.addf %38, %41 : vector<64x128xf32>
      %43 = arith.truncf %42 : vector<64x128xf32> to vector<64x128xbf16>
      %c0_24 = arith.constant 0 : index
      %c0_25 = arith.constant 0 : index
      %44 = vector.load %arg9[%c0_24, %c0_25] : memref<64x128xbf16, #tpu.memory_space<vmem>>, vector<64x128xbf16>
      tpu.vector_store %arg9[%c0_24, %c0_25], %43 {strides = array<i32>} : memref<64x128xbf16, #tpu.memory_space<vmem>>, vector<64x128xbf16>,
    } else {
    }
    %c0 = arith.constant 0 : index
    %c0_1 = arith.constant 0 : index
    %3 = vector.load %arg9[%c0, %c0_1] : memref<64x128xbf16, #tpu.memory_space<vmem>>, vector<64x128xbf16>
    %c0_2 = arith.constant 0 : index
    %c0_3 = arith.constant 0 : index
    %4 = vector.load %arg6[%c0_2, %c0_3] : memref<128x128xf32, #tpu.memory_space<vmem>>, vector<128x128xf32>
    %5 = arith.truncf %4 : vector<128x128xf32> to vector<128x128xbf16>
    %cst = arith.constant dense<0.000000e+00> : vector<64x128xf32>
    %6 = tpu.matmul %3, %5, %cst {dimension_numbers = #tpu.dot_dimension_numbers<[1], [0], [0], [1], [0, 0, 1, 1], [], []>} : vector<64x128xbf16>, vector<128x128xbf16>, vector<64x128xf32> -> vector<64x128xf32>
    %c0_4 = arith.constant 0 : index
    %c0_5 = arith.constant 0 : index
    %7 = vector.load %arg7[%c0_4, %c0_5] : memref<1x128xf32, #tpu.memory_space<vmem>>, vector<1x128xf32>
    %8 = vector.broadcast %7 : vector<1x128xf32> to vector<64x128xf32>
    %9 = arith.addf %6, %8 : vector<64x128xf32>
    %c0_6 = arith.constant 0 : index
    %c0_7 = arith.constant 0 : index
    %c0_8 = arith.constant 0 : index
    %10 = vector.load %arg8[%c0_6, %c0_7, %c0_8] : memref<1x64x128xf32, #tpu.memory_space<vmem>>, vector<1x64x128xf32>
    %11 = vector.shape_cast %10 : vector<1x64x128xf32> to vector<64x128xf32>
    %12 = vector.shape_cast %9 : vector<64x128xf32> to vector<1x64x128xf32>
    tpu.vector_store %arg8[%c0_6, %c0_7, %c0_8], %12 {strides = array<i32>} : memref<1x64x128xf32, #tpu.memory_space<vmem>>, vector<1x64x128xf32>,
    return
  }
  func.func @transform_0(%arg0: i32, %arg1: i32, %arg2: i32) -> (i32, i32, i32) {
    %c0_i32 = arith.constant 0 : i32
    %c0_i32_0 = arith.constant 0 : i32
    return %arg0, %arg1, %c0_i32 : i32, i32, i32
  }
  func.func @transform_1(%arg0: i32, %arg1: i32, %arg2: i32) -> (i32, i32, i32) {
    %c0_i32 = arith.constant 0 : i32
    %c0_i32_0 = arith.constant 0 : i32
    %c0_i32_1 = arith.constant 0 : i32
    return %arg0, %c0_i32, %c0_i32_0 : i32, i32, i32
  }
  func.func @transform_2(%arg0: i32, %arg1: i32, %arg2: i32) -> (i32, i32, i32) {
    %c0_i32 = arith.constant 0 : i32
    %c0_i32_0 = arith.constant 0 : i32
    %c0_i32_1 = arith.constant 0 : i32
    return %arg0, %c0_i32, %c0_i32_0 : i32, i32, i32
  }
  func.func @transform_3(%arg0: i32, %arg1: i32, %arg2: i32) -> (i32, i32) {
    %c0_i32 = arith.constant 0 : i32
    %c0_i32_0 = arith.constant 0 : i32
    return %c0_i32, %arg2 : i32, i32
  }
  func.func @transform_4(%arg0: i32, %arg1: i32, %arg2: i32) -> (i32, i32) {
    %c0_i32 = arith.constant 0 : i32
    %c0_i32_0 = arith.constant 0 : i32
    return %c0_i32, %arg2 : i32, i32
  }
  func.func @transform_5(%arg0: i32, %arg1: i32, %arg2: i32) -> (i32, i32, i32) {
    %c0_i32 = arith.constant 0 : i32
    return %arg0, %arg1, %arg2 : i32, i32, i32
  }
}

</mosaic_0001>

<llo_original>
// kernel: fwd.19
$region0: #{fwd.19}
  #allocation0 [shape = 'u32[]', space=smem, size = 0x4, offset = 0x4, fixed_abs, tag = 'smem constant byte address 0x4 - core index']
  #allocation1 [shape = 'u32[144,128]{1,0:T(1,128)}', space=vmem, size = 0x12000, scoped, tag = 'internal scratch']
  #allocation2 [shape = 'f32[2,128]{1,0:T(2,128)}', space=vmem, size = 0x400, scoped, tag = 'scratch operand']
  %s0 = inlined_call_operand.vmem [shape: f32[2,128], index: 0, kind: input, shape index: {}]
  %s1 = inlined_call_operand.hbm [shape: f32[128,128], index: 1, kind: input, shape index: {}]
  %s2 = inlined_call_operand.vmem [shape: f32[1,128], index: 2, kind: input, shape index: {}]
  %s3 = inlined_call_operand.vmem [shape: f32[2,128], index: 3, kind: output, shape index: {}]
  %s4 = sld [smem:[#allocation0]]
  $region34: #{fwd.19} parent=0
    _
  %s6 = ssub.s32 1, %s4
  %s7 = scalar_select 0, %s6, %s4
  $region1: #{fwd.19} parent=0
    #allocation3 [shape = 'u8[65536]{0}', space=vmem, size = 0x10000, scoped, tag = 'input window, operand 1, single buffered']
    #allocation4 [shape = 's32[1]{0}', space=sflag, size = 0x4, scoped, tag = 'scoped memory for fwd.19']
    %8 = vsyncpa [#allocation4], 0
    // Predicated region
    $region2: #{fwd.19} parent=1 // pred_check
      _
    $region3: #{fwd.19} parent=1 // pred_check_branch
      %10 = sbr.rel (0) target = $region5
    $region4: #{fwd.19} parent=1 // pred_region
      _
    $region5: #{fwd.19} parent=1 // pred_fallthru
      _
    // Predicated region
    $region6: #{fwd.19} parent=1 // pred_check
      _
    $region7: #{fwd.19} parent=1 // pred_check_branch
      %12 = sbr.rel (0) target = $region9
    $region8: #{fwd.19} parent=1 // pred_region
      %s14 = ssub.s32 2048, 2048
      %15 = vsyncadd [#allocation4], %s14
      %s16 = sshll.u32 [#allocation3], 4
      %s17 = int_to_ptr.vmem [resolvable:$true] %s16
      %22 = dma.hbm_to_vmem [thread:$0]  %s1, 2048, %s17, [#allocation4], 128, 128, 8
    $region9: #{fwd.19} parent=1 // pred_fallthru
      _
    // Predicated region
    $region10: #{fwd.19} parent=1 // pred_check
      _
    $region11: #{fwd.19} parent=1 // pred_check_branch
      %24 = sbr.rel (0) target = $region13
    $region12: #{fwd.19} parent=1 // pred_region
      _
    $region13: #{fwd.19} parent=1 // pred_fallthru
      _
    // Predicated region
    $region14: #{fwd.19} parent=1 // pred_check
      _
    $region15: #{fwd.19} parent=1 // pred_check_branch
      %26 = sbr.rel (0) target = $region17
    $region16: #{fwd.19} parent=1 // pred_region
      %27 = dma.done [#allocation4], 2048
    $region17: #{fwd.19} parent=1 // pred_fallthru
      _
    %p29 = scmp.eq.s32.totalorder 0, 0
    // Predicated region
    $region18: #{fwd.19} parent=1 // pred_check
      %p30 = pneg %p29
    $region19: #{fwd.19} parent=1 // pred_check_branch
      %32 = sbr.rel (%p30) target = $region21
    $region20: #{fwd.19} parent=1 // pred_region
      %33 = vst [vmem:[#allocation2] sm:$0x3] 0.0
    $region21: #{fwd.19} parent=1 // pred_fallthru
      _
    %v34 = vld [vmem:[%s0] sm:$0x3]
    %v35 = vld [vmem:[#allocation2] sm:$0x3]
    %v36 = vpack.c.bf16 %v34, %v34
    %v37 = vld [vmem:[#allocation3] sm:$0xff]
    %v38 = vld [vmem:[#allocation3 + $0x8] sm:$0xff]
    %v39 = vld [vmem:[#allocation3 + $0x10] sm:$0xff]
    %v40 = vld [vmem:[#allocation3 + $0x18] sm:$0xff]
    %v41 = vld [vmem:[#allocation3 + $0x20] sm:$0xff]
    %v42 = vld [vmem:[#allocation3 + $0x28] sm:$0xff]
    %v43 = vld [vmem:[#allocation3 + $0x30] sm:$0xff]
    %v44 = vld [vmem:[#allocation3 + $0x38] sm:$0xff]
    %v45 = vld [vmem:[#allocation3 + $0x40] sm:$0xff]
    %v46 = vld [vmem:[#allocation3 + $0x48] sm:$0xff]
    %v47 = vld [vmem:[#allocation3 + $0x50] sm:$0xff]
    %v48 = vld [vmem:[#allocation3 + $0x58] sm:$0xff]
    %v49 = vld [vmem:[#allocation3 + $0x60] sm:$0xff]
    %v50 = vld [vmem:[#allocation3 + $0x68] sm:$0xff]
    %v51 = vld [vmem:[#allocation3 + $0x70] sm:$0xff]
    %v52 = vld [vmem:[#allocation3 + $0x78] sm:$0xff]
    %v53 = vpack.c.bf16 %v38, %v37
    %v54 = vpack.c.bf16 %v40, %v39
    %v55 = vpack.c.bf16 %v42, %v41
    %v56 = vpack.c.bf16 %v44, %v43
    %v57 = vpack.c.bf16 %v46, %v45
    %v58 = vpack.c.bf16 %v48, %v47
    %v59 = vpack.c.bf16 %v50, %v49
    %v60 = vpack.c.bf16 %v52, %v51
    %61 = vmatprep.subr.bf16.mxu0 0
    %62 = vmatpush1.bf16.msra.mxu0 %v60
    %63 = vmatprep.subr.bf16.mxu0 0
    %64 = vmatpush1.bf16.msra.mxu0 %v59
    %65 = vmatprep.subr.bf16.mxu0 0
    %66 = vmatpush1.bf16.msra.mxu0 %v58
    %67 = vmatprep.subr.bf16.mxu0 0
    %68 = vmatpush1.bf16.msra.mxu0 %v57
    %69 = vmatprep.subr.bf16.mxu0 0
    %70 = vmatpush1.bf16.msra.mxu0 %v56
    %71 = vmatprep.subr.bf16.mxu0 0
    %72 = vmatpush1.bf16.msra.mxu0 %v55
    %73 = vmatprep.subr.bf16.mxu0 0
    %74 = vmatpush1.bf16.msra.mxu0 %v54
    %75 = vmatprep.subr.bf16.mxu0 0
    %76 = vmatpush1.bf16.msra.mxu0 %v53
    %77 = vmatprep.subr.bf16.mxu0 0
    %78 = vmatpush2.bf16.msra.mxu0 0
    %79 = vmatprep.subr.bf16.mxu0 0
    %80 = vmatpush2.bf16.msra.mxu0 0
    %81 = vmatprep.subr.bf16.mxu0 0
    %82 = vmatpush2.bf16.msra.mxu0 0
    %83 = vmatprep.subr.bf16.mxu0 0
    %84 = vmatpush2.bf16.msra.mxu0 0
    %85 = vmatprep.subr.bf16.mxu0 0
    %86 = vmatpush2.bf16.msra.mxu0 0
    %87 = vmatprep.subr.bf16.mxu0 0
    %88 = vmatpush2.bf16.msra.mxu0 0
    %89 = vmatprep.subr.bf16.mxu0 0
    %90 = vmatpush2.bf16.msra.mxu0 0
    %91 = vmatprep.subr.bf16.mxu0 0
    %92 = vmatpush2.bf16.msra.mxu0 0
    %93 = vmatprep.mubr.bf16.mxu0 0
    %94 = vmatmul.mubr.bf16.gmra.mxu0 %v36
    %v95 = vpop.f32.mrf.mxu0
    %v96 = vadd.f32 0.0, %v95
    %v97 = vpop.f32.mrf.mxu0
    %v98 = vpop.f32.mrf.mxu0
    %v99 = vpop.f32.mrf.mxu0
    %100 = vdwg.mxu0
    %v101 = vadd.f32 %v35, %v96
    %102 = vst [vmem:[#allocation2] sm:$0x3] %v101
    // Predicated region
    $region22: #{fwd.19} parent=1 // pred_check
      %p103 = pneg %p29
    $region23: #{fwd.19} parent=1 // pred_check_branch
      %105 = sbr.rel (%p103) target = $region25
    $region24: #{fwd.19} parent=1 // pred_region
      %v106 = vld [vmem:[#allocation2] sm:$0x3]
      %v107 = vld [vmem:[%s2] sm:$0x1]
      %v109 = vlaneseq
      %v110 = vshrl.u32 %v109, 7
      %v111 = vsub.s32 0, %v110
      %v112 = vrot.slane %v107, %v111
      %v114 = vadd.f32 %v106, %v112
      %115 = vst [vmem:[%s3] sm:$0x3] %v114
    $region25: #{fwd.19} parent=1 // pred_fallthru
      _
    // Predicated region
    $region26: #{fwd.19} parent=1 // pred_check
      _
    $region27: #{fwd.19} parent=1 // pred_check_branch
      %117 = sbr.rel (0) target = $region29
    $region28: #{fwd.19} parent=1 // pred_region
      _
    $region29: #{fwd.19} parent=1 // pred_fallthru
      _
    // Predicated region
    $region30: #{fwd.19} parent=1 // pred_check
      _
    $region31: #{fwd.19} parent=1 // pred_check_branch
      %119 = sbr.rel (0) target = $region33
    $region32: #{fwd.19} parent=1 // pred_region
      _
    $region33: #{fwd.19} parent=1 // pred_fallthru
      _
    %120 = vsyncpa [#allocation4], 1

// kernel: fwd.18
$region0: #{fwd.18}
  #allocation0 [shape = 'u32[]', space=smem, size = 0x4, offset = 0x4, fixed_abs, tag = 'smem constant byte address 0x4 - core index']
  #allocation1 [shape = 'u32[144,128]{1,0:T(1,128)}', space=vmem, size = 0x12000, scoped, tag = 'internal scratch']
  #allocation2 [shape = 'f32[2,128]{1,0:T(2,128)}', space=vmem, size = 0x400, scoped, tag = 'scratch operand']
  %s0 = inlined_call_operand.vmem [shape: f32[2,256], index: 0, kind: input, shape index: {}]
  %s1 = inlined_call_operand.hbm [shape: f32[256,128], index: 1, kind: input, shape index: {}]
  %s2 = inlined_call_operand.vmem [shape: f32[1,128], index: 2, kind: input, shape index: {}]
  %s3 = inlined_call_operand.vmem [shape: f32[2,128], index: 3, kind: output, shape index: {}]
  %s4 = sld [smem:[#allocation0]]
  $region34: #{fwd.18} parent=0
    _
  %s6 = ssub.s32 1, %s4
  %s7 = scalar_select 0, %s6, %s4
  $region1: #{fwd.18} parent=0
    #allocation3 [shape = 'u8[131072]{0}', space=vmem, size = 0x20000, scoped, tag = 'input window, operand 1, single buffered']
    #allocation4 [shape = 's32[1]{0}', space=sflag, size = 0x4, scoped, tag = 'scoped memory for fwd.18']
    %8 = vsyncpa [#allocation4], 0
    // Predicated region
    $region2: #{fwd.18} parent=1 // pred_check
      _
    $region3: #{fwd.18} parent=1 // pred_check_branch
      %10 = sbr.rel (0) target = $region5
    $region4: #{fwd.18} parent=1 // pred_region
      _
    $region5: #{fwd.18} parent=1 // pred_fallthru
      _
    // Predicated region
    $region6: #{fwd.18} parent=1 // pred_check
      _
    $region7: #{fwd.18} parent=1 // pred_check_branch
      %12 = sbr.rel (0) target = $region9
    $region8: #{fwd.18} parent=1 // pred_region
      %s14 = ssub.s32 4096, 4096
      %15 = vsyncadd [#allocation4], %s14
      %s16 = sshll.u32 [#allocation3], 4
      %s17 = int_to_ptr.vmem [resolvable:$true] %s16
      %22 = dma.hbm_to_vmem [thread:$0]  %s1, 4096, %s17, [#allocation4], 128, 128, 8
    $region9: #{fwd.18} parent=1 // pred_fallthru
      _
    // Predicated region
    $region10: #{fwd.18} parent=1 // pred_check
      _
    $region11: #{fwd.18} parent=1 // pred_check_branch
      %24 = sbr.rel (0) target = $region13
    $region12: #{fwd.18} parent=1 // pred_region
      _
    $region13: #{fwd.18} parent=1 // pred_fallthru
      _
    // Predicated region
    $region14: #{fwd.18} parent=1 // pred_check
      _
    $region15: #{fwd.18} parent=1 // pred_check_branch
      %26 = sbr.rel (0) target = $region17
    $region16: #{fwd.18} parent=1 // pred_region
      %27 = dma.done [#allocation4], 4096
    $region17: #{fwd.18} parent=1 // pred_fallthru
      _
    %p29 = scmp.eq.s32.totalorder 0, 0
    // Predicated region
    $region18: #{fwd.18} parent=1 // pred_check
      %p30 = pneg %p29
    $region19: #{fwd.18} parent=1 // pred_check_branch
      %32 = sbr.rel (%p30) target = $region21
    $region20: #{fwd.18} parent=1 // pred_region
      %33 = vst [vmem:[#allocation2] sm:$0x3] 0.0
    $region21: #{fwd.18} parent=1 // pred_fallthru
      _
    %v34 = vld [vmem:[%s0] sm:$0xf]
    %v35 = vld [vmem:[#allocation2] sm:$0x3]
    %v38 = vunpack.c.l.s4 1983009808
    %v39 = vunpack.c.0.s8 %v38
    %v40 = vlaneseq
    %v41 = vshrl.u32 %v40, 7
    %v42 = vsub.s32 %v39, %v41
    %v43 = vrot.slane %v34, %v42
    %v44 = vcombine.high %v43, %v43
    %v47 = vpack.c.bf16 %v43, %v43
    %v48 = vpack.c.bf16 %v44, %v44
    %v49 = vld [vmem:[#allocation3] sm:$0xff]
    %v50 = vld [vmem:[#allocation3 + $0x8] sm:$0xff]
    %v51 = vld [vmem:[#allocation3 + $0x10] sm:$0xff]
    %v52 = vld [vmem:[#allocation3 + $0x18] sm:$0xff]
    %v53 = vld [vmem:[#allocation3 + $0x20] sm:$0xff]
    %v54 = vld [vmem:[#allocation3 + $0x28] sm:$0xff]
    %v55 = vld [vmem:[#allocation3 + $0x30] sm:$0xff]
    %v56 = vld [vmem:[#allocation3 + $0x38] sm:$0xff]
    %v57 = vld [vmem:[#allocation3 + $0x40] sm:$0xff]
    %v58 = vld [vmem:[#allocation3 + $0x48] sm:$0xff]
    %v59 = vld [vmem:[#allocation3 + $0x50] sm:$0xff]
    %v60 = vld [vmem:[#allocation3 + $0x58] sm:$0xff]
    %v61 = vld [vmem:[#allocation3 + $0x60] sm:$0xff]
    %v62 = vld [vmem:[#allocation3 + $0x68] sm:$0xff]
    %v63 = vld [vmem:[#allocation3 + $0x70] sm:$0xff]
    %v64 = vld [vmem:[#allocation3 + $0x78] sm:$0xff]
    %v65 = vld [vmem:[#allocation3 + $0x80] sm:$0xff]
    %v66 = vld [vmem:[#allocation3 + $0x88] sm:$0xff]
    %v67 = vld [vmem:[#allocation3 + $0x90] sm:$0xff]
    %v68 = vld [vmem:[#allocation3 + $0x98] sm:$0xff]
    %v69 = vld [vmem:[#allocation3 + $0xa0] sm:$0xff]
    %v70 = vld [vmem:[#allocation3 + $0xa8] sm:$0xff]
    %v71 = vld [vmem:[#allocation3 + $0xb0] sm:$0xff]
    %v72 = vld [vmem:[#allocation3 + $0xb8] sm:$0xff]
    %v73 = vld [vmem:[#allocation3 + $0xc0] sm:$0xff]
    %v74 = vld [vmem:[#allocation3 + $0xc8] sm:$0xff]
    %v75 = vld [vmem:[#allocation3 + $0xd0] sm:$0xff]
    %v76 = vld [vmem:[#allocation3 + $0xd8] sm:$0xff]
    %v77 = vld [vmem:[#allocation3 + $0xe0] sm:$0xff]
    %v78 = vld [vmem:[#allocation3 + $0xe8] sm:$0xff]
    %v79 = vld [vmem:[#allocation3 + $0xf0] sm:$0xff]
    %v80 = vld [vmem:[#allocation3 + $0xf8] sm:$0xff]
    %v81 = vpack.c.bf16 %v50, %v49
    %v82 = vpack.c.bf16 %v52, %v51
    %v83 = vpack.c.bf16 %v54, %v53
    %v84 = vpack.c.bf16 %v56, %v55
    %v85 = vpack.c.bf16 %v58, %v57
    %v86 = vpack.c.bf16 %v60, %v59
    %v87 = vpack.c.bf16 %v62, %v61
    %v88 = vpack.c.bf16 %v64, %v63
    %v89 = vpack.c.bf16 %v66, %v65
    %v90 = vpack.c.bf16 %v68, %v67
    %v91 = vpack.c.bf16 %v70, %v69
    %v92 = vpack.c.bf16 %v72, %v71
    %v93 = vpack.c.bf16 %v74, %v73
    %v94 = vpack.c.bf16 %v76, %v75
    %v95 = vpack.c.bf16 %v78, %v77
    %v96 = vpack.c.bf16 %v80, %v79
    %97 = vmatprep.subr.bf16.mxu0 0
    %98 = vmatpush1.bf16.msra.mxu0 %v88
    %99 = vmatprep.subr.bf16.mxu0 0
    %100 = vmatpush1.bf16.msra.mxu0 %v87
    %101 = vmatprep.subr.bf16.mxu0 0
    %102 = vmatpush1.bf16.msra.mxu0 %v86
    %103 = vmatprep.subr.bf16.mxu0 0
    %104 = vmatpush1.bf16.msra.mxu0 %v85
    %105 = vmatprep.subr.bf16.mxu0 0
    %106 = vmatpush1.bf16.msra.mxu0 %v84
    %107 = vmatprep.subr.bf16.mxu0 0
    %108 = vmatpush1.bf16.msra.mxu0 %v83
    %109 = vmatprep.subr.bf16.mxu0 0
    %110 = vmatpush1.bf16.msra.mxu0 %v82
    %111 = vmatprep.subr.bf16.mxu0 0
    %112 = vmatpush1.bf16.msra.mxu0 %v81
    %113 = vmatprep.subr.bf16.mxu0 0
    %114 = vmatpush2.bf16.msra.mxu0 %v96
    %115 = vmatprep.subr.bf16.mxu0 0
    %116 = vmatpush2.bf16.msra.mxu0 %v95
    %117 = vmatprep.subr.bf16.mxu0 0
    %118 = vmatpush2.bf16.msra.mxu0 %v94
    %119 = vmatprep.subr.bf16.mxu0 0
    %120 = vmatpush2.bf16.msra.mxu0 %v93
    %121 = vmatprep.subr.bf16.mxu0 0
    %122 = vmatpush2.bf16.msra.mxu0 %v92
    %123 = vmatprep.subr.bf16.mxu0 0
    %124 = vmatpush2.bf16.msra.mxu0 %v91
    %125 = vmatprep.subr.bf16.mxu0 0
    %126 = vmatpush2.bf16.msra.mxu0 %v90
    %127 = vmatprep.subr.bf16.mxu0 0
    %128 = vmatpush2.bf16.msra.mxu0 %v89
    %129 = vmatprep.mubr.bf16.mxu0 %v48
    %130 = vmatmul.mubr.bf16.gmra.mxu0 %v47
    %v131 = vpop.f32.mrf.mxu0
    %v132 = vadd.f32 0.0, %v131
    %v133 = vpop.f32.mrf.mxu0
    %v134 = vpop.f32.mrf.mxu0
    %v135 = vpop.f32.mrf.mxu0
    %136 = vdwg.mxu0
    %v137 = vadd.f32 %v35, %v132
    %138 = vst [vmem:[#allocation2] sm:$0x3] %v137
    // Predicated region
    $region22: #{fwd.18} parent=1 // pred_check
      %p139 = pneg %p29
    $region23: #{fwd.18} parent=1 // pred_check_branch
      %141 = sbr.rel (%p139) target = $region25
    $region24: #{fwd.18} parent=1 // pred_region
      %v142 = vld [vmem:[#allocation2] sm:$0x3]
      %v143 = vld [vmem:[%s2] sm:$0x1]
      %v145 = vlaneseq
      %v146 = vshrl.u32 %v145, 7
      %v147 = vsub.s32 0, %v146
      %v148 = vrot.slane %v143, %v147
      %v150 = vadd.f32 %v142, %v148
      %v151 = vxor.u32 %v150, 2147483648
      %v152 = vmul.f32 %v151, 1.442695
      %v153 = vpow.pop %v152
      %v154 = vadd.f32 %v153, 1.0
      %v155 = vrcp.pop %v154
      %v156 = vmul.f32 1.0, %v155
      %v157 = vmul.f32 %v150, %v156
      %158 = vst [vmem:[%s3] sm:$0x3] %v157
    $region25: #{fwd.18} parent=1 // pred_fallthru
      _
    // Predicated region
    $region26: #{fwd.18} parent=1 // pred_check
      _
    $region27: #{fwd.18} parent=1 // pred_check_branch
      %160 = sbr.rel (0) target = $region29
    $region28: #{fwd.18} parent=1 // pred_region
      _
    $region29: #{fwd.18} parent=1 // pred_fallthru
      _
    // Predicated region
    $region30: #{fwd.18} parent=1 // pred_check
      _
    $region31: #{fwd.18} parent=1 // pred_check_branch
      %162 = sbr.rel (0) target = $region33
    $region32: #{fwd.18} parent=1 // pred_region
      _
    $region33: #{fwd.18} parent=1 // pred_fallthru
      _
    %163 = vsyncpa [#allocation4], 1

// kernel: fwd.32
$region0: #{fwd.32}
  #allocation0 [shape = 'u32[]', space=smem, size = 0x4, offset = 0x4, fixed_abs, tag = 'smem constant byte address 0x4 - core index']
  #allocation1 [shape = 'u32[144,128]{1,0:T(1,128)}', space=vmem, size = 0x12000, scoped, tag = 'internal scratch']
  #allocation2 [shape = 'f32[2,256]{1,0:T(2,128)}', space=vmem, size = 0x800, scoped, tag = 'scratch operand']
  %s0 = inlined_call_operand.vmem [shape: f32[2,128], index: 0, kind: input, shape index: {}]
  %s1 = inlined_call_operand.hbm [shape: f32[128,256], index: 1, kind: input, shape index: {}]
  %s2 = inlined_call_operand.vmem [shape: f32[1,256], index: 2, kind: input, shape index: {}]
  %s3 = inlined_call_operand.vmem [shape: f32[2,256], index: 3, kind: output, shape index: {}]
  %s4 = sld [smem:[#allocation0]]
  $region34: #{fwd.32} parent=0
    _
  %s6 = ssub.s32 1, %s4
  %s7 = scalar_select 0, %s6, %s4
  $region1: #{fwd.32} parent=0
    #allocation3 [shape = 'u8[131072]{0}', space=vmem, size = 0x20000, scoped, tag = 'input window, operand 1, single buffered']
    #allocation4 [shape = 's32[1]{0}', space=sflag, size = 0x4, scoped, tag = 'scoped memory for fwd.32']
    %8 = vsyncpa [#allocation4], 0
    // Predicated region
    $region2: #{fwd.32} parent=1 // pred_check
      _
    $region3: #{fwd.32} parent=1 // pred_check_branch
      %10 = sbr.rel (0) target = $region5
    $region4: #{fwd.32} parent=1 // pred_region
      _
    $region5: #{fwd.32} parent=1 // pred_fallthru
      _
    // Predicated region
    $region6: #{fwd.32} parent=1 // pred_check
      _
    $region7: #{fwd.32} parent=1 // pred_check_branch
      %12 = sbr.rel (0) target = $region9
    $region8: #{fwd.32} parent=1 // pred_region
      %s14 = ssub.s32 4096, 4096
      %15 = vsyncadd [#allocation4], %s14
      %s16 = sshll.u32 [#allocation3], 4
      %s17 = int_to_ptr.vmem [resolvable:$true] %s16
      %22 = dma.hbm_to_vmem [thread:$0]  %s1, 4096, %s17, [#allocation4], 256, 256, 16
    $region9: #{fwd.32} parent=1 // pred_fallthru
      _
    // Predicated region
    $region10: #{fwd.32} parent=1 // pred_check
      _
    $region11: #{fwd.32} parent=1 // pred_check_branch
      %24 = sbr.rel (0) target = $region13
    $region12: #{fwd.32} parent=1 // pred_region
      _
    $region13: #{fwd.32} parent=1 // pred_fallthru
      _
    // Predicated region
    $region14: #{fwd.32} parent=1 // pred_check
      _
    $region15: #{fwd.32} parent=1 // pred_check_branch
      %26 = sbr.rel (0) target = $region17
    $region16: #{fwd.32} parent=1 // pred_region
      %27 = dma.done [#allocation4], 4096
    $region17: #{fwd.32} parent=1 // pred_fallthru
      _
    %p29 = scmp.eq.s32.totalorder 0, 0
    // Predicated region
    $region18: #{fwd.32} parent=1 // pred_check
      %p30 = pneg %p29
    $region19: #{fwd.32} parent=1 // pred_check_branch
      %32 = sbr.rel (%p30) target = $region21
    $region20: #{fwd.32} parent=1 // pred_region
      %33 = vst [vmem:[#allocation2] sm:$0xf] 0.0
    $region21: #{fwd.32} parent=1 // pred_fallthru
      _
    %v34 = vld [vmem:[%s0] sm:$0x3]
    %v35 = vxor.u32 %v34, 2147483648
    %v36 = vmul.f32 %v35, 1.442695
    %v37 = vpow.pop %v36
    %v38 = vadd.f32 %v37, 1.0
    %v39 = vrcp.pop %v38
    %v40 = vmul.f32 1.0, %v39
    %v41 = vmul.f32 %v34, %v40
    %v42 = vld [vmem:[#allocation2] sm:$0xf]
    %v43 = vpack.c.bf16 %v41, %v41
    %v44 = vld [vmem:[#allocation3] sm:$0xff]
    %v45 = vld [vmem:[#allocation3 + $0x8] sm:$0xff]
    %v46 = vld [vmem:[#allocation3 + $0x10] sm:$0xff]
    %v47 = vld [vmem:[#allocation3 + $0x18] sm:$0xff]
    %v48 = vld [vmem:[#allocation3 + $0x20] sm:$0xff]
    %v49 = vld [vmem:[#allocation3 + $0x28] sm:$0xff]
    %v50 = vld [vmem:[#allocation3 + $0x30] sm:$0xff]
    %v51 = vld [vmem:[#allocation3 + $0x38] sm:$0xff]
    %v52 = vld [vmem:[#allocation3 + $0x40] sm:$0xff]
    %v53 = vld [vmem:[#allocation3 + $0x48] sm:$0xff]
    %v54 = vld [vmem:[#allocation3 + $0x50] sm:$0xff]
    %v55 = vld [vmem:[#allocation3 + $0x58] sm:$0xff]
    %v56 = vld [vmem:[#allocation3 + $0x60] sm:$0xff]
    %v57 = vld [vmem:[#allocation3 + $0x68] sm:$0xff]
    %v58 = vld [vmem:[#allocation3 + $0x70] sm:$0xff]
    %v59 = vld [vmem:[#allocation3 + $0x78] sm:$0xff]
    %v60 = vld [vmem:[#allocation3 + $0x80] sm:$0xff]
    %v61 = vld [vmem:[#allocation3 + $0x88] sm:$0xff]
    %v62 = vld [vmem:[#allocation3 + $0x90] sm:$0xff]
    %v63 = vld [vmem:[#allocation3 + $0x98] sm:$0xff]
    %v64 = vld [vmem:[#allocation3 + $0xa0] sm:$0xff]
    %v65 = vld [vmem:[#allocation3 + $0xa8] sm:$0xff]
    %v66 = vld [vmem:[#allocation3 + $0xb0] sm:$0xff]
    %v67 = vld [vmem:[#allocation3 + $0xb8] sm:$0xff]
    %v68 = vld [vmem:[#allocation3 + $0xc0] sm:$0xff]
    %v69 = vld [vmem:[#allocation3 + $0xc8] sm:$0xff]
    %v70 = vld [vmem:[#allocation3 + $0xd0] sm:$0xff]
    %v71 = vld [vmem:[#allocation3 + $0xd8] sm:$0xff]
    %v72 = vld [vmem:[#allocation3 + $0xe0] sm:$0xff]
    %v73 = vld [vmem:[#allocation3 + $0xe8] sm:$0xff]
    %v74 = vld [vmem:[#allocation3 + $0xf0] sm:$0xff]
    %v75 = vld [vmem:[#allocation3 + $0xf8] sm:$0xff]
    %v76 = vpack.c.bf16 %v46, %v44
    %v77 = vpack.c.bf16 %v47, %v45
    %v78 = vpack.c.bf16 %v50, %v48
    %v79 = vpack.c.bf16 %v51, %v49
    %v80 = vpack.c.bf16 %v54, %v52
    %v81 = vpack.c.bf16 %v55, %v53
    %v82 = vpack.c.bf16 %v58, %v56
    %v83 = vpack.c.bf16 %v59, %v57
    %v84 = vpack.c.bf16 %v62, %v60
    %v85 = vpack.c.bf16 %v63, %v61
    %v86 = vpack.c.bf16 %v66, %v64
    %v87 = vpack.c.bf16 %v67, %v65
    %v88 = vpack.c.bf16 %v70, %v68
    %v89 = vpack.c.bf16 %v71, %v69
    %v90 = vpack.c.bf16 %v74, %v72
    %v91 = vpack.c.bf16 %v75, %v73
    %92 = vmatprep.subr.bf16.mxu0 %v91
    %93 = vmatpush1.bf16.msra.mxu0 %v90
    %94 = vmatprep.subr.bf16.mxu0 %v89
    %95 = vmatpush1.bf16.msra.mxu0 %v88
    %96 = vmatprep.subr.bf16.mxu0 %v87
    %97 = vmatpush1.bf16.msra.mxu0 %v86
    %98 = vmatprep.subr.bf16.mxu0 %v85
    %99 = vmatpush1.bf16.msra.mxu0 %v84
    %100 = vmatprep.subr.bf16.mxu0 %v83
    %101 = vmatpush1.bf16.msra.mxu0 %v82
    %102 = vmatprep.subr.bf16.mxu0 %v81
    %103 = vmatpush1.bf16.msra.mxu0 %v80
    %104 = vmatprep.subr.bf16.mxu0 %v79
    %105 = vmatpush1.bf16.msra.mxu0 %v78
    %106 = vmatprep.subr.bf16.mxu0 %v77
    %107 = vmatpush1.bf16.msra.mxu0 %v76
    %108 = vmatprep.subr.bf16.mxu0 0
    %109 = vmatpush2.bf16.msra.mxu0 0
    %110 = vmatprep.subr.bf16.mxu0 0
    %111 = vmatpush2.bf16.msra.mxu0 0
    %112 = vmatprep.subr.bf16.mxu0 0
    %113 = vmatpush2.bf16.msra.mxu0 0
    %114 = vmatprep.subr.bf16.mxu0 0
    %115 = vmatpush2.bf16.msra.mxu0 0
    %116 = vmatprep.subr.bf16.mxu0 0
    %117 = vmatpush2.bf16.msra.mxu0 0
    %118 = vmatprep.subr.bf16.mxu0 0
    %119 = vmatpush2.bf16.msra.mxu0 0
    %120 = vmatprep.subr.bf16.mxu0 0
    %121 = vmatpush2.bf16.msra.mxu0 0
    %122 = vmatprep.subr.bf16.mxu0 0
    %123 = vmatpush2.bf16.msra.mxu0 0
    %124 = vmatprep.mubr.bf16.mxu0 0
    %125 = vmatmul.mubr.bf16.gmra.mxu0 %v43
    %v126 = vpop.f32.mrf.mxu0
    %v127 = vadd.f32 0.0, %v126
    %v128 = vpop.f32.mrf.mxu0
    %v129 = vadd.f32 0.0, %v128
    %v130 = vpop.f32.mrf.mxu0
    %v131 = vpop.f32.mrf.mxu0
    %132 = vdwg.mxu0
    %v135 = vcombine.low %v127, %v129
    %v137 = vunpack.c.l.s4 1983009808
    %v138 = vunpack.c.0.s8 %v137
    %v139 = vlaneseq
    %v140 = vshrl.u32 %v139, 7
    %v141 = vsub.s32 %v138, %v140
    %v142 = vrot.slane %v135, %v141
    %v144 = vadd.f32 %v42, %v142
    %145 = vst [vmem:[#allocation2] sm:$0xf] %v144
    // Predicated region
    $region22: #{fwd.32} parent=1 // pred_check
      %p146 = pneg %p29
    $region23: #{fwd.32} parent=1 // pred_check_branch
      %148 = sbr.rel (%p146) target = $region25
    $region24: #{fwd.32} parent=1 // pred_region
      %v149 = vld [vmem:[#allocation2] sm:$0xf]
      %v150 = vld [vmem:[%s2] sm:$0x3]
      %v152 = vlaneseq
      %v153 = vshrl.u32 %v152, 7
      %v154 = vsub.s32 0, %v153
      %v155 = vrot.slane %v150, %v154
      %v156 = vlaneseq
      %v157 = vshrl.u32 %v156, 7
      %v158 = vsub.s32 1, %v157
      %v159 = vrot.slane %v150, %v158
      %v160 = vcombine.low %v155, %v159
      %v162 = vunpack.c.l.s4 1983009808
      %v163 = vunpack.c.0.s8 %v162
      %v164 = vlaneseq
      %v165 = vshrl.u32 %v164, 7
      %v166 = vsub.s32 %v163, %v165
      %v167 = vrot.slane %v160, %v166
      %v169 = vadd.f32 %v149, %v167
      %170 = vst [vmem:[%s3] sm:$0xf] %v169
    $region25: #{fwd.32} parent=1 // pred_fallthru
      _
    // Predicated region
    $region26: #{fwd.32} parent=1 // pred_check
      _
    $region27: #{fwd.32} parent=1 // pred_check_branch
      %172 = sbr.rel (0) target = $region29
    $region28: #{fwd.32} parent=1 // pred_region
      _
    $region29: #{fwd.32} parent=1 // pred_fallthru
      _
    // Predicated region
    $region30: #{fwd.32} parent=1 // pred_check
      _
    $region31: #{fwd.32} parent=1 // pred_check_branch
      %174 = sbr.rel (0) target = $region33
    $region32: #{fwd.32} parent=1 // pred_region
      _
    $region33: #{fwd.32} parent=1 // pred_fallthru
      _
    %175 = vsyncpa [#allocation4], 1

// kernel: fwd.26
$region0: #{fwd.26}
  #allocation0 [shape = 'u32[]', space=smem, size = 0x4, offset = 0x4, fixed_abs, tag = 'smem constant byte address 0x4 - core index']
  #allocation1 [shape = 'u32[144,128]{1,0:T(1,128)}', space=vmem, size = 0x12000, scoped, tag = 'internal scratch']
  #allocation2 [shape = 'f32[2,256]{1,0:T(2,128)}', space=vmem, size = 0x800, scoped, tag = 'scratch operand']
  %s0 = inlined_call_operand.vmem [shape: f32[2,128], index: 0, kind: input, shape index: {}]
  %s1 = inlined_call_operand.vmem [shape: f32[128,768], index: 1, kind: input, shape index: {}]
  %s2 = inlined_call_operand.vmem [shape: f32[1,768], index: 2, kind: input, shape index: {}]
  %s3 = inlined_call_operand.vmem [shape: f32[2,768], index: 3, kind: output, shape index: {}]
  %s4 = sld [smem:[#allocation0]]
  $region76: #{fwd.26} parent=0
    _
  %s6 = ssub.s32 1, %s4
  %s7 = scalar_select 0, %s6, %s4
  $region1: #{fwd.26} parent=0
    #allocation3 [shape = 'u8[262144]{0}', space=vmem, size = 0x40000, scoped, tag = 'input window, operand 1']
    loop: start=0, step=1, limit=5
    $region2: #{fwd.26} parent=1 // loop_pre_header
      _
    $region3: #{fwd.26} parent=1 // loop_header
      %s9 = sphi 0, %s13
      %p10 = scmp.ge.s32.totalorder %s9, 5
      %s16 = sphi 0, %s35
      %s17 = sphi 0, %s31
      %s18 = sphi 0, %s27
      %s19 = sphi 0, %s16
      %s20 = sphi 0, %s17
      %s21 = sphi 0, %s18
      %s22 = sphi 0, %s19
      %s23 = sphi 0, %s20
      %s24 = sphi 0, %s21
      %s40 = sphi 0, %s42
      %s43 = sphi 0, %s40
      %s44 = sphi 0, %s43
      %s60 = sphi 0, %s44
      %s68 = sphi 0, %s70
      %s71 = sphi 0, %s68
      %s72 = sphi 0, %s71
      %s88 = sphi 0, %s72
      %s94 = sphi 0, %s96
      %s97 = sphi 0, %s94
      %s98 = sphi 0, %s97
      %s114 = sphi 0, %s98
      %s122 = sphi 0, %s124
      %s125 = sphi 0, %s122
      %s126 = sphi 0, %s125
      %s142 = sphi 0, %s126
    $region4: #{fwd.26} parent=1 // loop_header_branch
      %12 = sbr.rel (%p10) target = $region8
    $region5: #{fwd.26} parent=1 // loop_body
      %s14 = ssub.s32 %s9, 1
      %s15 = ssub.s32 %s9, 2
      %s25 = sadd.s32 1, %s18
      %p26 = scmp.ge.s32.totalorder %s25, 1
      %s27 = scalar_select %p26, 0, %s25
      %s28 = sadd.s32 1, %s17
      %s29 = scalar_select %p26, %s28, %s17
      %p30 = scmp.ge.s32.totalorder %s29, 3
      %s31 = scalar_select %p30, 0, %s29
      %s32 = sadd.s32 1, %s16
      %s33 = scalar_select %p30, %s32, %s16
      %p34 = scmp.ge.s32.totalorder %s33, 1
      %s35 = scalar_select %p34, 0, %s33
      %s36 = ssub.s32 %s16, %s35
      %s37 = ssub.s32 %s18, %s27
      %s38 = sor.u32 %s36, %s37
      %p39 = scmp.eq.s32.totalorder %s38, 0
      %s41 = sadd.s32 %s40, 1
      %s42 = scalar_select %p39, %s40, %s41
      %p45 = pneg %p39
      %p46 = scmp.eq.s32.totalorder %s9, 2
      %p47 = por %p45, %p46
      %p48 = scmp.ne.s32.totalorder %s40, %s43
      %p49 = scmp.eq.s32.totalorder %s9, 0
      %p50 = por %p48, %p49
      %p51 = scmp.ne.s32.totalorder %s40, %s43
      %p52 = scmp.eq.s32.totalorder %s14, 2
      %p53 = por %p51, %p52
      %p54 = scmp.ne.s32.totalorder %s43, %s44
      %p55 = scmp.eq.s32.totalorder %s14, 0
      %p56 = por %p54, %p55
      %p57 = scmp.ne.s32.totalorder %s43, %s44
      %p58 = scmp.eq.s32.totalorder %s15, 2
      %p59 = por %p57, %p58
      %p61 = scmp.ne.s32.totalorder %s44, %s60
      %p62 = scmp.eq.s32.totalorder %s15, 0
      %p63 = por %p61, %p62
      %s64 = ssub.s32 %s18, %s27
      %s65 = ssub.s32 %s17, %s31
      %s66 = sor.u32 %s64, %s65
      %p67 = scmp.eq.s32.totalorder %s66, 0
      %s69 = sadd.s32 %s68, 1
      %s70 = scalar_select %p67, %s68, %s69
      %p73 = pneg %p67
      %p74 = scmp.eq.s32.totalorder %s9, 2
      %p75 = por %p73, %p74
      %p76 = scmp.ne.s32.totalorder %s68, %s71
      %p77 = scmp.eq.s32.totalorder %s9, 0
      %p78 = por %p76, %p77
      %p79 = scmp.ne.s32.totalorder %s68, %s71
      %p80 = scmp.eq.s32.totalorder %s14, 2
      %p81 = por %p79, %p80
      %p82 = scmp.ne.s32.totalorder %s71, %s72
      %p83 = scmp.eq.s32.totalorder %s14, 0
      %p84 = por %p82, %p83
      %p85 = scmp.ne.s32.totalorder %s71, %s72
      %p86 = scmp.eq.s32.totalorder %s15, 2
      %p87 = por %p85, %p86
      %p89 = scmp.ne.s32.totalorder %s72, %s88
      %p90 = scmp.eq.s32.totalorder %s15, 0
      %p91 = por %p89, %p90
      %s92 = ssub.s32 %s17, %s31
      %p93 = scmp.eq.s32.totalorder %s92, 0
      %s95 = sadd.s32 %s94, 1
      %s96 = scalar_select %p93, %s94, %s95
      %p99 = pneg %p93
      %p100 = scmp.eq.s32.totalorder %s9, 2
      %p101 = por %p99, %p100
      %p102 = scmp.ne.s32.totalorder %s94, %s97
      %p103 = scmp.eq.s32.totalorder %s9, 0
      %p104 = por %p102, %p103
      %p105 = scmp.ne.s32.totalorder %s94, %s97
      %p106 = scmp.eq.s32.totalorder %s14, 2
      %p107 = por %p105, %p106
      %p108 = scmp.ne.s32.totalorder %s97, %s98
      %p109 = scmp.eq.s32.totalorder %s14, 0
      %p110 = por %p108, %p109
      %p111 = scmp.ne.s32.totalorder %s97, %s98
      %p112 = scmp.eq.s32.totalorder %s15, 2
      %p113 = por %p111, %p112
      %p115 = scmp.ne.s32.totalorder %s98, %s114
      %p116 = scmp.eq.s32.totalorder %s15, 0
      %p117 = por %p115, %p116
      %s118 = ssub.s32 %s16, %s35
      %s119 = ssub.s32 %s17, %s31
      %s120 = sor.u32 %s118, %s119
      %p121 = scmp.eq.s32.totalorder %s120, 0
      %s123 = sadd.s32 %s122, 1
      %s124 = scalar_select %p121, %s122, %s123
      %p127 = pneg %p121
      %p128 = scmp.eq.s32.totalorder %s9, 2
      %p129 = por %p127, %p128
      %p130 = scmp.ne.s32.totalorder %s122, %s125
      %p131 = scmp.eq.s32.totalorder %s9, 0
      %p132 = por %p130, %p131
      %p133 = scmp.ne.s32.totalorder %s122, %s125
      %p134 = scmp.eq.s32.totalorder %s14, 2
      %p135 = por %p133, %p134
      %p136 = scmp.ne.s32.totalorder %s125, %s126
      %p137 = scmp.eq.s32.totalorder %s14, 0
      %p138 = por %p136, %p137
      %p139 = scmp.ne.s32.totalorder %s125, %s126
      %p140 = scmp.eq.s32.totalorder %s15, 2
      %p141 = por %p139, %p140
      %p143 = scmp.ne.s32.totalorder %s126, %s142
      %p144 = scmp.eq.s32.totalorder %s15, 0
      %p145 = por %p143, %p144
      %p146 = scmp.le.s32.totalorder 1, %s9
      %p147 = scmp.lt.s32.totalorder %s9, 4
      %p148 = pnand %p146, %p147
      %p149 = pneg %p148
      // Predicated region
      $region9: #{fwd.26} parent=5 // pred_check
        _
      $region10: #{fwd.26} parent=5 // pred_check_branch
        %151 = sbr.rel (%p148) target = $region12
      $region11: #{fwd.26} parent=5 // pred_region
        %s152 = ssub.s32 %s9, 1
        // Predicated region
        $region13: #{fwd.26} parent=11 // pred_check
          %p153 = pneg %p56
        $region14: #{fwd.26} parent=11 // pred_check_branch
          %155 = sbr.rel (%p153) target = $region16
        $region15: #{fwd.26} parent=11 // pred_region
          %p156 = scmp.lt.s32.totalorder %s19, 0
          %s157 = scalar_select %p156, %s19, 0
          %p158 = scmp.lt.s32.totalorder %s21, 0
          %s159 = scalar_select %p158, %s21, 0
          %s160 = sadd.s32 %s159, %s157
          %s161 = smul.addr %s160, 2
          %s162 = scalar_lea.vmem %s0, %s161
        $region16: #{fwd.26} parent=11 // pred_fallthru
          _
      $region12: #{fwd.26} parent=5 // pred_fallthru
        _
      %p163 = scmp.lt.s32.totalorder %s9, 3
      // Predicated region
      $region17: #{fwd.26} parent=5 // pred_check
        %p164 = pneg %p163
      $region18: #{fwd.26} parent=5 // pred_check_branch
        %166 = sbr.rel (%p164) target = $region20
      $region19: #{fwd.26} parent=5 // pred_region
        // Predicated region
        $region21: #{fwd.26} parent=19 // pred_check
          %p167 = pneg %p78
        $region22: #{fwd.26} parent=19 // pred_check_branch
          %169 = sbr.rel (%p167) target = $region24
        $region23: #{fwd.26} parent=19 // pred_region
          %s170 = sand.u32 %s68, 1
          %s171 = sand.u32 %s68, 1
          %s172 = smul.addr %s171, 256
          %s173 = scalar_lea.vmem [#allocation3], %s172
          %s174 = smul.u32 16, %s18
          %s175 = smul.u32 2, %s17
          %s176 = smul.addr %s174, 6
          %s177 = sadd.s32 %s175, %s176
          %s178 = smul.addr %s177, 8
          %s179 = scalar_lea.vmem %s1, %s178
          // Predicated region
          $region25: #{fwd.26} parent=23 // pred_check
            _
          $region26: #{fwd.26} parent=23 // pred_check_branch
            %181 = sbr.rel (0) target = $region28
          $region27: #{fwd.26} parent=23 // pred_region
            // Predicated region
            $region29: #{fwd.26} parent=27 // pred_check
              _
            $region30: #{fwd.26} parent=27 // pred_check_branch
              %183 = sbr.rel (0) target = $region32
            $region31: #{fwd.26} parent=27 // pred_region
              loop: start=0, step=1, limit=1
              $region33: #{fwd.26} parent=31 // loop_pre_header
                _
              $region34: #{fwd.26} parent=31 // loop_header
                %s185 = sphi 0, %s189
                %p186 = scmp.ge.s32.totalorder %s185, 1
                %s190 = sphi %s179, %s179
                %s191 = sphi %s173, %s173
              $region35: #{fwd.26} parent=31 // loop_header_branch
                %188 = sbr.rel (%p186) target = $region39
              $region36: #{fwd.26} parent=31 // loop_body
                %v192 = vld [vmem:[%s190] sm:$0xff]
                %193 = vst [vmem:[%s191] sm:$0xff] %v192
                %v194 = vld [vmem:[%s190 + $0x8] sm:$0xff]
                %195 = vst [vmem:[%s191 + $0x8] sm:$0xff] %v194
                %v196 = vld [vmem:[%s190 + $0x30] sm:$0xff]
                %197 = vst [vmem:[%s191 + $0x10] sm:$0xff] %v196
                %v198 = vld [vmem:[%s190 + $0x38] sm:$0xff]
                %199 = vst [vmem:[%s191 + $0x18] sm:$0xff] %v198
                %v200 = vld [vmem:[%s190 + $0x60] sm:$0xff]
                %201 = vst [vmem:[%s191 + $0x20] sm:$0xff] %v200
                %v202 = vld [vmem:[%s190 + $0x68] sm:$0xff]
                %203 = vst [vmem:[%s191 + $0x28] sm:$0xff] %v202
                %v204 = vld [vmem:[%s190 + $0x90] sm:$0xff]
                %205 = vst [vmem:[%s191 + $0x30] sm:$0xff] %v204
                %v206 = vld [vmem:[%s190 + $0x98] sm:$0xff]
                %207 = vst [vmem:[%s191 + $0x38] sm:$0xff] %v206
                %v208 = vld [vmem:[%s190 + $0xc0] sm:$0xff]
                %209 = vst [vmem:[%s191 + $0x40] sm:$0xff] %v208
                %v210 = vld [vmem:[%s190 + $0xc8] sm:$0xff]
                %211 = vst [vmem:[%s191 + $0x48] sm:$0xff] %v210
                %v212 = vld [vmem:[%s190 + $0xf0] sm:$0xff]
                %213 = vst [vmem:[%s191 + $0x50] sm:$0xff] %v212
                %v214 = vld [vmem:[%s190 + $0xf8] sm:$0xff]
                %215 = vst [vmem:[%s191 + $0x58] sm:$0xff] %v214
                %v216 = vld [vmem:[%s190 + $0x120] sm:$0xff]
                %217 = vst [vmem:[%s191 + $0x60] sm:$0xff] %v216
                %v218 = vld [vmem:[%s190 + $0x128] sm:$0xff]
                %219 = vst [vmem:[%s191 + $0x68] sm:$0xff] %v218
                %v220 = vld [vmem:[%s190 + $0x150] sm:$0xff]
                %221 = vst [vmem:[%s191 + $0x70] sm:$0xff] %v220
                %v222 = vld [vmem:[%s190 + $0x158] sm:$0xff]
                %223 = vst [vmem:[%s191 + $0x78] sm:$0xff] %v222
                %v224 = vld [vmem:[%s190 + $0x180] sm:$0xff]
                %225 = vst [vmem:[%s191 + $0x80] sm:$0xff] %v224
                %v226 = vld [vmem:[%s190 + $0x188] sm:$0xff]
                %227 = vst [vmem:[%s191 + $0x88] sm:$0xff] %v226
                %v228 = vld [vmem:[%s190 + $0x1b0] sm:$0xff]
                %229 = vst [vmem:[%s191 + $0x90] sm:$0xff] %v228
                %v230 = vld [vmem:[%s190 + $0x1b8] sm:$0xff]
                %231 = vst [vmem:[%s191 + $0x98] sm:$0xff] %v230
                %v232 = vld [vmem:[%s190 + $0x1e0] sm:$0xff]
                %233 = vst [vmem:[%s191 + $0xa0] sm:$0xff] %v232
                %v234 = vld [vmem:[%s190 + $0x1e8] sm:$0xff]
                %235 = vst [vmem:[%s191 + $0xa8] sm:$0xff] %v234
                %v236 = vld [vmem:[%s190 + $0x210] sm:$0xff]
                %237 = vst [vmem:[%s191 + $0xb0] sm:$0xff] %v236
                %v238 = vld [vmem:[%s190 + $0x218] sm:$0xff]
                %239 = vst [vmem:[%s191 + $0xb8] sm:$0xff] %v238
                %v240 = vld [vmem:[%s190 + $0x240] sm:$0xff]
                %241 = vst [vmem:[%s191 + $0xc0] sm:$0xff] %v240
                %v242 = vld [vmem:[%s190 + $0x248] sm:$0xff]
                %243 = vst [vmem:[%s191 + $0xc8] sm:$0xff] %v242
                %v244 = vld [vmem:[%s190 + $0x270] sm:$0xff]
                %245 = vst [vmem:[%s191 + $0xd0] sm:$0xff] %v244
                %v246 = vld [vmem:[%s190 + $0x278] sm:$0xff]
                %247 = vst [vmem:[%s191 + $0xd8] sm:$0xff] %v246
                %v248 = vld [vmem:[%s190 + $0x2a0] sm:$0xff]
                %249 = vst [vmem:[%s191 + $0xe0] sm:$0xff] %v248
                %v250 = vld [vmem:[%s190 + $0x2a8] sm:$0xff]
                %251 = vst [vmem:[%s191 + $0xe8] sm:$0xff] %v250
                %v252 = vld [vmem:[%s190 + $0x2d0] sm:$0xff]
                %253 = vst [vmem:[%s191 + $0xf0] sm:$0xff] %v252
                %v254 = vld [vmem:[%s190 + $0x2d8] sm:$0xff]
                %255 = vst [vmem:[%s191 + $0xf8] sm:$0xff] %v254
              $region37: #{fwd.26} parent=31 // loop_footer
                %s189 = sadd.s32 1, %s185
              $region38: #{fwd.26} parent=31 // loop_footer_branch
                %184 = sbr.rel target = $region34
              $region39: #{fwd.26} parent=31 // loop_exit
                _
            $region32: #{fwd.26} parent=27 // pred_fallthru
              _
            // Predicated region
            $region40: #{fwd.26} parent=27 // pred_check
              _
            $region41: #{fwd.26} parent=27 // pred_check_branch
              %257 = sbr.rel target = $region43
            $region42: #{fwd.26} parent=27 // pred_region
              _
            $region43: #{fwd.26} parent=27 // pred_fallthru
              _
          $region28: #{fwd.26} parent=23 // pred_fallthru
            _
          %258 = vnop
        $region24: #{fwd.26} parent=19 // pred_fallthru
          _
        // Predicated region
        $region44: #{fwd.26} parent=19 // pred_check
          %p259 = pneg %p104
        $region45: #{fwd.26} parent=19 // pred_check_branch
          %261 = sbr.rel (%p259) target = $region47
        $region46: #{fwd.26} parent=19 // pred_region
          %s262 = smul.u32 2, %s17
          %p263 = scmp.lt.s32.totalorder %s262, 5
          %s264 = scalar_select %p263, %s262, 5
          %s265 = scalar_lea.vmem %s2, %s264
          %s266 = smul.u32 2, %s17
        $region47: #{fwd.26} parent=19 // pred_fallthru
          _
      $region20: #{fwd.26} parent=5 // pred_fallthru
        _
      %p267 = scmp.le.s32.totalorder 1, %s9
      %p268 = scmp.lt.s32.totalorder %s9, 4
      %p269 = pnand %p267, %p268
      %p270 = pneg %p269
      // Predicated region
      $region48: #{fwd.26} parent=5 // pred_check
        _
      $region49: #{fwd.26} parent=5 // pred_check_branch
        %272 = sbr.rel (%p269) target = $region51
      $region50: #{fwd.26} parent=5 // pred_region
        %s273 = ssub.s32 %s9, 1
        %s274 = sand.u32 %s71, 1
        %s275 = sand.u32 %s71, 1
        %s276 = smul.addr %s275, 256
        %s277 = scalar_lea.vmem [#allocation3], %s276
        // Predicated region
        $region52: #{fwd.26} parent=50 // pred_check
          %p278 = pneg %p84
        $region53: #{fwd.26} parent=50 // pred_check_branch
          %280 = sbr.rel (%p278) target = $region55
        $region54: #{fwd.26} parent=50 // pred_region
          _
        $region55: #{fwd.26} parent=50 // pred_fallthru
          _
        %p281 = scmp.lt.s32.totalorder %s19, 0
        %s282 = scalar_select %p281, %s19, 0
        %p283 = scmp.lt.s32.totalorder %s21, 0
        %s284 = scalar_select %p283, %s21, 0
        %s285 = sadd.s32 %s284, %s282
        %s286 = smul.addr %s285, 2
        %s287 = scalar_lea.vmem %s0, %s286
        %p288 = pneg %p56
        %p289 = pneg %p53
        %s290 = sand.u32 %s71, 1
        %s291 = sand.u32 %s71, 1
        %s292 = smul.addr %s291, 256
        %s293 = scalar_lea.vmem [#allocation3], %s292
        %p294 = pneg %p84
        %p295 = pneg %p81
        %s296 = smul.u32 2, %s20
        %p297 = scmp.lt.s32.totalorder %s296, 5
        %s298 = scalar_select %p297, %s296, 5
        %s299 = scalar_lea.vmem %s2, %s298
        %p300 = pneg %p110
        %p301 = pneg %p107
        %p302 = pneg %p138
        %p303 = pneg %p135
        %s304 = smul.u32 2, %s20
        %p305 = scmp.lt.s32.totalorder %s19, 0
        %s306 = scalar_select %p305, %s19, 0
        %p307 = scmp.lt.s32.totalorder %s304, 5
        %s308 = scalar_select %p307, %s304, 5
        %s309 = smul.addr %s306, 6
        %s310 = sadd.s32 %s308, %s309
        %s311 = smul.addr %s310, 2
        %s312 = scalar_lea.vmem %s3, %s311
        %p313 = scmp.lt.s32.totalorder %s19, 0
        %s314 = scalar_select %p313, %s19, 0
        %p315 = scmp.lt.s32.totalorder %s21, 0
        %s316 = scalar_select %p315, %s21, 0
        %s317 = sadd.s32 %s316, %s314
        %s318 = smul.addr %s317, 2
        %s319 = scalar_lea.vmem %s0, %s318
        %s320 = smul.u32 16, %s21
        %s321 = smul.u32 2, %s20
        %s322 = smul.u32 2, %s20
        %p323 = scmp.lt.s32.totalorder %s322, 5
        %s324 = scalar_select %p323, %s322, 5
        %s325 = scalar_lea.vmem %s2, %s324
        %s326 = smul.u32 2, %s20
        %s327 = smul.u32 2, %s20
        %p328 = scmp.lt.s32.totalorder %s19, 0
        %s329 = scalar_select %p328, %s19, 0
        %p330 = scmp.lt.s32.totalorder %s327, 5
        %s331 = scalar_select %p330, %s327, 5
        %s332 = smul.addr %s329, 6
        %s333 = sadd.s32 %s331, %s332
        %s334 = smul.addr %s333, 2
        %s335 = scalar_lea.vmem %s3, %s334
        %s336 = smul.u32 2, %s20
        %p338 = scmp.eq.s32.totalorder %s21, 0
        // Predicated region
        $region56: #{fwd.26} parent=50 // pred_check
          %p339 = pneg %p338
        $region57: #{fwd.26} parent=50 // pred_check_branch
          %341 = sbr.rel (%p339) target = $region59
        $region58: #{fwd.26} parent=50 // pred_region
          %342 = vst [vmem:[#allocation2] sm:$0xf] 0.0
        $region59: #{fwd.26} parent=50 // pred_fallthru
          _
        %v343 = vld [vmem:[%s319] sm:$0x3]
        %v344 = vxor.u32 %v343, 2147483648
        %v345 = vmul.f32 %v344, 1.442695
        %v346 = vpow.pop %v345
        %v347 = vadd.f32 %v346, 1.0
        %v348 = vrcp.pop %v347
        %v349 = vmul.f32 1.0, %v348
        %v350 = vmul.f32 %v343, %v349
        %v351 = vld [vmem:[#allocation2] sm:$0xf]
        %v352 = vpack.c.bf16 %v350, %v350
        %v353 = vld [vmem:[%s277] sm:$0xff]
        %v354 = vld [vmem:[%s277 + $0x8] sm:$0xff]
        %v355 = vld [vmem:[%s277 + $0x10] sm:$0xff]
        %v356 = vld [vmem:[%s277 + $0x18] sm:$0xff]
        %v357 = vld [vmem:[%s277 + $0x20] sm:$0xff]
        %v358 = vld [vmem:[%s277 + $0x28] sm:$0xff]
        %v359 = vld [vmem:[%s277 + $0x30] sm:$0xff]
        %v360 = vld [vmem:[%s277 + $0x38] sm:$0xff]
        %v361 = vld [vmem:[%s277 + $0x40] sm:$0xff]
        %v362 = vld [vmem:[%s277 + $0x48] sm:$0xff]
        %v363 = vld [vmem:[%s277 + $0x50] sm:$0xff]
        %v364 = vld [vmem:[%s277 + $0x58] sm:$0xff]
        %v365 = vld [vmem:[%s277 + $0x60] sm:$0xff]
        %v366 = vld [vmem:[%s277 + $0x68] sm:$0xff]
        %v367 = vld [vmem:[%s277 + $0x70] sm:$0xff]
        %v368 = vld [vmem:[%s277 + $0x78] sm:$0xff]
        %v369 = vld [vmem:[%s277 + $0x80] sm:$0xff]
        %v370 = vld [vmem:[%s277 + $0x88] sm:$0xff]
        %v371 = vld [vmem:[%s277 + $0x90] sm:$0xff]
        %v372 = vld [vmem:[%s277 + $0x98] sm:$0xff]
        %v373 = vld [vmem:[%s277 + $0xa0] sm:$0xff]
        %v374 = vld [vmem:[%s277 + $0xa8] sm:$0xff]
        %v375 = vld [vmem:[%s277 + $0xb0] sm:$0xff]
        %v376 = vld [vmem:[%s277 + $0xb8] sm:$0xff]
        %v377 = vld [vmem:[%s277 + $0xc0] sm:$0xff]
        %v378 = vld [vmem:[%s277 + $0xc8] sm:$0xff]
        %v379 = vld [vmem:[%s277 + $0xd0] sm:$0xff]
        %v380 = vld [vmem:[%s277 + $0xd8] sm:$0xff]
        %v381 = vld [vmem:[%s277 + $0xe0] sm:$0xff]
        %v382 = vld [vmem:[%s277 + $0xe8] sm:$0xff]
        %v383 = vld [vmem:[%s277 + $0xf0] sm:$0xff]
        %v384 = vld [vmem:[%s277 + $0xf8] sm:$0xff]
        %v385 = vpack.c.bf16 %v355, %v353
        %v386 = vpack.c.bf16 %v356, %v354
        %v387 = vpack.c.bf16 %v359, %v357
        %v388 = vpack.c.bf16 %v360, %v358
        %v389 = vpack.c.bf16 %v363, %v361
        %v390 = vpack.c.bf16 %v364, %v362
        %v391 = vpack.c.bf16 %v367, %v365
        %v392 = vpack.c.bf16 %v368, %v366
        %v393 = vpack.c.bf16 %v371, %v369
        %v394 = vpack.c.bf16 %v372, %v370
        %v395 = vpack.c.bf16 %v375, %v373
        %v396 = vpack.c.bf16 %v376, %v374
        %v397 = vpack.c.bf16 %v379, %v377
        %v398 = vpack.c.bf16 %v380, %v378
        %v399 = vpack.c.bf16 %v383, %v381
        %v400 = vpack.c.bf16 %v384, %v382
        %401 = vmatprep.subr.bf16.mxu0 %v400
        %402 = vmatpush1.bf16.msra.mxu0 %v399
        %403 = vmatprep.subr.bf16.mxu0 %v398
        %404 = vmatpush1.bf16.msra.mxu0 %v397
        %405 = vmatprep.subr.bf16.mxu0 %v396
        %406 = vmatpush1.bf16.msra.mxu0 %v395
        %407 = vmatprep.subr.bf16.mxu0 %v394
        %408 = vmatpush1.bf16.msra.mxu0 %v393
        %409 = vmatprep.subr.bf16.mxu0 %v392
        %410 = vmatpush1.bf16.msra.mxu0 %v391
        %411 = vmatprep.subr.bf16.mxu0 %v390
        %412 = vmatpush1.bf16.msra.mxu0 %v389
        %413 = vmatprep.subr.bf16.mxu0 %v388
        %414 = vmatpush1.bf16.msra.mxu0 %v387
        %415 = vmatprep.subr.bf16.mxu0 %v386
        %416 = vmatpush1.bf16.msra.mxu0 %v385
        %417 = vmatprep.subr.bf16.mxu0 0
        %418 = vmatpush2.bf16.msra.mxu0 0
        %419 = vmatprep.subr.bf16.mxu0 0
        %420 = vmatpush2.bf16.msra.mxu0 0
        %421 = vmatprep.subr.bf16.mxu0 0
        %422 = vmatpush2.bf16.msra.mxu0 0
        %423 = vmatprep.subr.bf16.mxu0 0
        %424 = vmatpush2.bf16.msra.mxu0 0
        %425 = vmatprep.subr.bf16.mxu0 0
        %426 = vmatpush2.bf16.msra.mxu0 0
        %427 = vmatprep.subr.bf16.mxu0 0
        %428 = vmatpush2.bf16.msra.mxu0 0
        %429 = vmatprep.subr.bf16.mxu0 0
        %430 = vmatpush2.bf16.msra.mxu0 0
        %431 = vmatprep.subr.bf16.mxu0 0
        %432 = vmatpush2.bf16.msra.mxu0 0
        %433 = vmatprep.mubr.bf16.mxu0 0
        %434 = vmatmul.mubr.bf16.gmra.mxu0 %v352
        %v435 = vpop.f32.mrf.mxu0
        %v436 = vadd.f32 0.0, %v435
        %v437 = vpop.f32.mrf.mxu0
        %v438 = vadd.f32 0.0, %v437
        %v439 = vpop.f32.mrf.mxu0
        %v440 = vpop.f32.mrf.mxu0
        %441 = vdwg.mxu0
        %v444 = vcombine.low %v436, %v438
        %v446 = vunpack.c.l.s4 1983009808
        %v447 = vunpack.c.0.s8 %v446
        %v448 = vlaneseq
        %v449 = vshrl.u32 %v448, 7
        %v450 = vsub.s32 %v447, %v449
        %v451 = vrot.slane %v444, %v450
        %v453 = vadd.f32 %v351, %v451
        %454 = vst [vmem:[#allocation2] sm:$0xf] %v453
        // Predicated region
        $region60: #{fwd.26} parent=50 // pred_check
          %p455 = pneg %p338
        $region61: #{fwd.26} parent=50 // pred_check_branch
          %457 = sbr.rel (%p455) target = $region63
        $region62: #{fwd.26} parent=50 // pred_region
          %v458 = vld [vmem:[#allocation2] sm:$0xf]
          %v459 = vld [vmem:[%s325] sm:$0x3]
          %v461 = vlaneseq
          %v462 = vshrl.u32 %v461, 7
          %v463 = vsub.s32 0, %v462
          %v464 = vrot.slane %v459, %v463
          %v465 = vlaneseq
          %v466 = vshrl.u32 %v465, 7
          %v467 = vsub.s32 1, %v466
          %v468 = vrot.slane %v459, %v467
          %v469 = vcombine.low %v464, %v468
          %v471 = vunpack.c.l.s4 1983009808
          %v472 = vunpack.c.0.s8 %v471
          %v473 = vlaneseq
          %v474 = vshrl.u32 %v473, 7
          %v475 = vsub.s32 %v472, %v474
          %v476 = vrot.slane %v469, %v475
          %v478 = vadd.f32 %v458, %v476
          %479 = vst [vmem:[%s335] sm:$0xf] %v478
        $region63: #{fwd.26} parent=50 // pred_fallthru
          _
        %s480 = smul.u32 2, %s20
        %p481 = scmp.lt.s32.totalorder %s19, 0
        %s482 = scalar_select %p481, %s19, 0
        %p483 = scmp.lt.s32.totalorder %s480, 5
        %s484 = scalar_select %p483, %s480, 5
        %s485 = smul.addr %s482, 6
        %s486 = sadd.s32 %s484, %s485
        %s487 = smul.addr %s486, 2
        %s488 = scalar_lea.vmem %s3, %s487
        // Predicated region
        $region64: #{fwd.26} parent=50 // pred_check
          %p489 = pneg %p135
        $region65: #{fwd.26} parent=50 // pred_check_branch
          %491 = sbr.rel (%p489) target = $region67
        $region66: #{fwd.26} parent=50 // pred_region
          %s492 = smul.u32 2, %s20
        $region67: #{fwd.26} parent=50 // pred_fallthru
          _
      $region51: #{fwd.26} parent=5 // pred_fallthru
        _
      %p493 = scmp.le.s32.totalorder 2, %s9
      // Predicated region
      $region68: #{fwd.26} parent=5 // pred_check
        %p494 = pneg %p493
      $region69: #{fwd.26} parent=5 // pred_check_branch
        %496 = sbr.rel (%p494) target = $region71
      $region70: #{fwd.26} parent=5 // pred_region
        %s497 = ssub.s32 %s9, 2
        // Predicated region
        $region72: #{fwd.26} parent=70 // pred_check
          %p498 = pneg %p141
        $region73: #{fwd.26} parent=70 // pred_check_branch
          %500 = sbr.rel (%p498) target = $region75
        $region74: #{fwd.26} parent=70 // pred_region
          %s501 = smul.u32 2, %s23
          %p502 = scmp.lt.s32.totalorder %s22, 0
          %s503 = scalar_select %p502, %s22, 0
          %p504 = scmp.lt.s32.totalorder %s501, 5
          %s505 = scalar_select %p504, %s501, 5
          %s506 = smul.addr %s503, 6
          %s507 = sadd.s32 %s505, %s506
          %s508 = smul.addr %s507, 2
          %s509 = scalar_lea.vmem %s3, %s508
        $region75: #{fwd.26} parent=70 // pred_fallthru
          _
      $region71: #{fwd.26} parent=5 // pred_fallthru
        _
    $region6: #{fwd.26} parent=1 // loop_footer
      %s13 = sadd.s32 1, %s9
    $region7: #{fwd.26} parent=1 // loop_footer_branch
      %8 = sbr.rel target = $region3
    $region8: #{fwd.26} parent=1 // loop_exit
      _

// kernel: fwd.17
$region0: #{fwd.17}
  #allocation0 [shape = 'u32[]', space=smem, size = 0x4, offset = 0x4, fixed_abs, tag = 'smem constant byte address 0x4 - core index']
  #allocation1 [shape = 'u32[144,128]{1,0:T(1,128)}', space=vmem, size = 0x12000, scoped, tag = 'internal scratch']
  #allocation2 [shape = 'f32[128,128]{1,0:T(8,128)}', space=vmem, size = 0x10000, scoped, tag = 'scratch operand']
  %s0 = inlined_call_operand.vmem [shape: f32[128,16], index: 0, kind: input, shape index: {}]
  %s1 = inlined_call_operand.vmem [shape: f32[16,128], index: 1, kind: input, shape index: {}]
  %s2 = inlined_call_operand.vmem [shape: f32[1,128], index: 2, kind: input, shape index: {}]
  %s3 = inlined_call_operand.vmem [shape: f32[128,128], index: 3, kind: output, shape index: {}]
  %s4 = sld [smem:[#allocation0]]
  $region30: #{fwd.17} parent=0
    _
  %s6 = ssub.s32 1, %s4
  %s7 = scalar_select 0, %s6, %s4
  // Predicated region
  $region2: #{fwd.17} parent=0 // pred_check
    _
  $region3: #{fwd.17} parent=0 // pred_check_branch
    %9 = sbr.rel (0) target = $region5
  $region4: #{fwd.17} parent=0 // pred_region
    _
  $region5: #{fwd.17} parent=0 // pred_fallthru
    _
  // Predicated region
  $region6: #{fwd.17} parent=0 // pred_check
    _
  $region7: #{fwd.17} parent=0 // pred_check_branch
    %11 = sbr.rel (0) target = $region9
  $region8: #{fwd.17} parent=0 // pred_region
    _
  $region9: #{fwd.17} parent=0 // pred_fallthru
    _
  // Predicated region
  $region10: #{fwd.17} parent=0 // pred_check
    _
  $region11: #{fwd.17} parent=0 // pred_check_branch
    %13 = sbr.rel (0) target = $region13
  $region12: #{fwd.17} parent=0 // pred_region
    _
  $region13: #{fwd.17} parent=0 // pred_fallthru
    _
  %p15 = scmp.eq.s32.totalorder 0, 0
  // Predicated region
  $region14: #{fwd.17} parent=0 // pred_check
    %p16 = pneg %p15
  $region15: #{fwd.17} parent=0 // pred_check_branch
    %18 = sbr.rel (%p16) target = $region17
  $region16: #{fwd.17} parent=0 // pred_region
    %19 = vst [vmem:[#allocation2] sm:$0xff] 0.0
    %20 = vst [vmem:[#allocation2 + $0x8] sm:$0xff] 0.0
    %21 = vst [vmem:[#allocation2 + $0x10] sm:$0xff] 0.0
    %22 = vst [vmem:[#allocation2 + $0x18] sm:$0xff] 0.0
    %23 = vst [vmem:[#allocation2 + $0x20] sm:$0xff] 0.0
    %24 = vst [vmem:[#allocation2 + $0x28] sm:$0xff] 0.0
    %25 = vst [vmem:[#allocation2 + $0x30] sm:$0xff] 0.0
    %26 = vst [vmem:[#allocation2 + $0x38] sm:$0xff] 0.0
    %27 = vst [vmem:[#allocation2 + $0x40] sm:$0xff] 0.0
    %28 = vst [vmem:[#allocation2 + $0x48] sm:$0xff] 0.0
    %29 = vst [vmem:[#allocation2 + $0x50] sm:$0xff] 0.0
    %30 = vst [vmem:[#allocation2 + $0x58] sm:$0xff] 0.0
    %31 = vst [vmem:[#allocation2 + $0x60] sm:$0xff] 0.0
    %32 = vst [vmem:[#allocation2 + $0x68] sm:$0xff] 0.0
    %33 = vst [vmem:[#allocation2 + $0x70] sm:$0xff] 0.0
    %34 = vst [vmem:[#allocation2 + $0x78] sm:$0xff] 0.0
  $region17: #{fwd.17} parent=0 // pred_fallthru
    _
  %v35 = vld [vmem:[%s0] sm:$0xff]
  %v36 = vld [vmem:[%s0 + $0x8] sm:$0xff]
  %v37 = vld [vmem:[%s0 + $0x10] sm:$0xff]
  %v38 = vld [vmem:[%s0 + $0x18] sm:$0xff]
  %v39 = vld [vmem:[%s0 + $0x20] sm:$0xff]
  %v40 = vld [vmem:[%s0 + $0x28] sm:$0xff]
  %v41 = vld [vmem:[%s0 + $0x30] sm:$0xff]
  %v42 = vld [vmem:[%s0 + $0x38] sm:$0xff]
  %v43 = vld [vmem:[%s0 + $0x40] sm:$0xff]
  %v44 = vld [vmem:[%s0 + $0x48] sm:$0xff]
  %v45 = vld [vmem:[%s0 + $0x50] sm:$0xff]
  %v46 = vld [vmem:[%s0 + $0x58] sm:$0xff]
  %v47 = vld [vmem:[%s0 + $0x60] sm:$0xff]
  %v48 = vld [vmem:[%s0 + $0x68] sm:$0xff]
  %v49 = vld [vmem:[%s0 + $0x70] sm:$0xff]
  %v50 = vld [vmem:[%s0 + $0x78] sm:$0xff]
  %v51 = vld [vmem:[#allocation2] sm:$0xff]
  %v52 = vld [vmem:[#allocation2 + $0x8] sm:$0xff]
  %v53 = vld [vmem:[#allocation2 + $0x10] sm:$0xff]
  %v54 = vld [vmem:[#allocation2 + $0x18] sm:$0xff]
  %v55 = vld [vmem:[#allocation2 + $0x20] sm:$0xff]
  %v56 = vld [vmem:[#allocation2 + $0x28] sm:$0xff]
  %v57 = vld [vmem:[#allocation2 + $0x30] sm:$0xff]
  %v58 = vld [vmem:[#allocation2 + $0x38] sm:$0xff]
  %v59 = vld [vmem:[#allocation2 + $0x40] sm:$0xff]
  %v60 = vld [vmem:[#allocation2 + $0x48] sm:$0xff]
  %v61 = vld [vmem:[#allocation2 + $0x50] sm:$0xff]
  %v62 = vld [vmem:[#allocation2 + $0x58] sm:$0xff]
  %v63 = vld [vmem:[#allocation2 + $0x60] sm:$0xff]
  %v64 = vld [vmem:[#allocation2 + $0x68] sm:$0xff]
  %v65 = vld [vmem:[#allocation2 + $0x70] sm:$0xff]
  %v66 = vld [vmem:[#allocation2 + $0x78] sm:$0xff]
  %v67 = vpack.c.bf16 %v36, %v35
  %v68 = vpack.c.bf16 %v38, %v37
  %v69 = vpack.c.bf16 %v40, %v39
  %v70 = vpack.c.bf16 %v42, %v41
  %v71 = vpack.c.bf16 %v44, %v43
  %v72 = vpack.c.bf16 %v46, %v45
  %v73 = vpack.c.bf16 %v48, %v47
  %v74 = vpack.c.bf16 %v50, %v49
  %v75 = vld [vmem:[%s1] sm:$0xff]
  %v76 = vld [vmem:[%s1 + $0x8] sm:$0xff]
  %v77 = vpack.c.bf16 %v76, %v75
  %vm78 = vcmask 130048
  %v80 = vsel %vm78, %v67, 0
  %v83 = vsel %vm78, %v68, 0
  %v86 = vsel %vm78, %v69, 0
  %v89 = vsel %vm78, %v70, 0
  %v92 = vsel %vm78, %v71, 0
  %v95 = vsel %vm78, %v72, 0
  %v98 = vsel %vm78, %v73, 0
  %v101 = vsel %vm78, %v74, 0
  %103 = vmatprep.subr.bf16.mxu0 0
  %104 = vmatpush1.bf16.msra.mxu0 0
  %105 = vmatprep.subr.bf16.mxu0 0
  %106 = vmatpush1.bf16.msra.mxu0 0
  %107 = vmatprep.subr.bf16.mxu0 0
  %108 = vmatpush1.bf16.msra.mxu0 0
  %109 = vmatprep.subr.bf16.mxu0 0
  %110 = vmatpush1.bf16.msra.mxu0 0
  %111 = vmatprep.subr.bf16.mxu0 0
  %112 = vmatpush1.bf16.msra.mxu0 0
  %113 = vmatprep.subr.bf16.mxu0 0
  %114 = vmatpush1.bf16.msra.mxu0 0
  %115 = vmatprep.subr.bf16.mxu0 0
  %116 = vmatpush1.bf16.msra.mxu0 0
  %117 = vmatprep.subr.bf16.mxu0 0
  %118 = vmatpush1.bf16.msra.mxu0 %v77
  %119 = vmatprep.subr.bf16.mxu0 0
  %120 = vmatpush2.bf16.msra.mxu0 0
  %121 = vmatprep.subr.bf16.mxu0 0
  %122 = vmatpush2.bf16.msra.mxu0 0
  %123 = vmatprep.subr.bf16.mxu0 0
  %124 = vmatpush2.bf16.msra.mxu0 0
  %125 = vmatprep.subr.bf16.mxu0 0
  %126 = vmatpush2.bf16.msra.mxu0 0
  %127 = vmatprep.subr.bf16.mxu0 0
  %128 = vmatpush2.bf16.msra.mxu0 0
  %129 = vmatprep.subr.bf16.mxu0 0
  %130 = vmatpush2.bf16.msra.mxu0 0
  %131 = vmatprep.subr.bf16.mxu0 0
  %132 = vmatpush2.bf16.msra.mxu0 0
  %133 = vmatprep.subr.bf16.mxu0 0
  %134 = vmatpush2.bf16.msra.mxu0 0
  %135 = vmatprep.mubr.bf16.mxu0 0
  %136 = vmatmul.mubr.bf16.gmra.mxu0 %v80
  %v137 = vpop.f32.mrf.mxu0
  %v138 = vadd.f32 0.0, %v137
  %v139 = vpop.f32.mrf.mxu0
  %v140 = vpop.f32.mrf.mxu0
  %v141 = vadd.f32 0.0, %v140
  %v142 = vpop.f32.mrf.mxu0
  %143 = vmatprep.mubr.bf16.mxu0 0
  %144 = vmatmul.mubr.bf16.gmra.mxu0 %v83
  %v145 = vpop.f32.mrf.mxu0
  %v146 = vadd.f32 0.0, %v145
  %v147 = vpop.f32.mrf.mxu0
  %v148 = vpop.f32.mrf.mxu0
  %v149 = vadd.f32 0.0, %v148
  %v150 = vpop.f32.mrf.mxu0
  %151 = vmatprep.mubr.bf16.mxu0 0
  %152 = vmatmul.mubr.bf16.gmra.mxu0 %v86
  %v153 = vpop.f32.mrf.mxu0
  %v154 = vadd.f32 0.0, %v153
  %v155 = vpop.f32.mrf.mxu0
  %v156 = vpop.f32.mrf.mxu0
  %v157 = vadd.f32 0.0, %v156
  %v158 = vpop.f32.mrf.mxu0
  %159 = vmatprep.mubr.bf16.mxu0 0
  %160 = vmatmul.mubr.bf16.gmra.mxu0 %v89
  %v161 = vpop.f32.mrf.mxu0
  %v162 = vadd.f32 0.0, %v161
  %v163 = vpop.f32.mrf.mxu0
  %v164 = vpop.f32.mrf.mxu0
  %v165 = vadd.f32 0.0, %v164
  %v166 = vpop.f32.mrf.mxu0
  %167 = vmatprep.mubr.bf16.mxu0 0
  %168 = vmatmul.mubr.bf16.gmra.mxu0 %v92
  %v169 = vpop.f32.mrf.mxu0
  %v170 = vadd.f32 0.0, %v169
  %v171 = vpop.f32.mrf.mxu0
  %v172 = vpop.f32.mrf.mxu0
  %v173 = vadd.f32 0.0, %v172
  %v174 = vpop.f32.mrf.mxu0
  %175 = vmatprep.mubr.bf16.mxu0 0
  %176 = vmatmul.mubr.bf16.gmra.mxu0 %v95
  %v177 = vpop.f32.mrf.mxu0
  %v178 = vadd.f32 0.0, %v177
  %v179 = vpop.f32.mrf.mxu0
  %v180 = vpop.f32.mrf.mxu0
  %v181 = vadd.f32 0.0, %v180
  %v182 = vpop.f32.mrf.mxu0
  %183 = vmatprep.mubr.bf16.mxu0 0
  %184 = vmatmul.mubr.bf16.gmra.mxu0 %v98
  %v185 = vpop.f32.mrf.mxu0
  %v186 = vadd.f32 0.0, %v185
  %v187 = vpop.f32.mrf.mxu0
  %v188 = vpop.f32.mrf.mxu0
  %v189 = vadd.f32 0.0, %v188
  %v190 = vpop.f32.mrf.mxu0
  %191 = vmatprep.mubr.bf16.mxu0 0
  %192 = vmatmul.mubr.bf16.gmra.mxu0 %v101
  %v193 = vpop.f32.mrf.mxu0
  %v194 = vadd.f32 0.0, %v193
  %v195 = vpop.f32.mrf.mxu0
  %v196 = vpop.f32.mrf.mxu0
  %v197 = vadd.f32 0.0, %v196
  %v198 = vpop.f32.mrf.mxu0
  %199 = vdwg.mxu0
  %v200 = vadd.f32 %v51, %v138
  %v201 = vadd.f32 %v52, %v141
  %v202 = vadd.f32 %v53, %v146
  %v203 = vadd.f32 %v54, %v149
  %v204 = vadd.f32 %v55, %v154
  %v205 = vadd.f32 %v56, %v157
  %v206 = vadd.f32 %v57, %v162
  %v207 = vadd.f32 %v58, %v165
  %v208 = vadd.f32 %v59, %v170
  %v209 = vadd.f32 %v60, %v173
  %v210 = vadd.f32 %v61, %v178
  %v211 = vadd.f32 %v62, %v181
  %v212 = vadd.f32 %v63, %v186
  %v213 = vadd.f32 %v64, %v189
  %v214 = vadd.f32 %v65, %v194
  %v215 = vadd.f32 %v66, %v197
  %216 = vst [vmem:[#allocation2] sm:$0xff] %v200
  %217 = vst [vmem:[#allocation2 + $0x8] sm:$0xff] %v201
  %218 = vst [vmem:[#allocation2 + $0x10] sm:$0xff] %v202
  %219 = vst [vmem:[#allocation2 + $0x18] sm:$0xff] %v203
  %220 = vst [vmem:[#allocation2 + $0x20] sm:$0xff] %v204
  %221 = vst [vmem:[#allocation2 + $0x28] sm:$0xff] %v205
  %222 = vst [vmem:[#allocation2 + $0x30] sm:$0xff] %v206
  %223 = vst [vmem:[#allocation2 + $0x38] sm:$0xff] %v207
  %224 = vst [vmem:[#allocation2 + $0x40] sm:$0xff] %v208
  %225 = vst [vmem:[#allocation2 + $0x48] sm:$0xff] %v209
  %226 = vst [vmem:[#allocation2 + $0x50] sm:$0xff] %v210
  %227 = vst [vmem:[#allocation2 + $0x58] sm:$0xff] %v211
  %228 = vst [vmem:[#allocation2 + $0x60] sm:$0xff] %v212
  %229 = vst [vmem:[#allocation2 + $0x68] sm:$0xff] %v213
  %230 = vst [vmem:[#allocation2 + $0x70] sm:$0xff] %v214
  %231 = vst [vmem:[#allocation2 + $0x78] sm:$0xff] %v215
  // Predicated region
  $region18: #{fwd.17} parent=0 // pred_check
    %p232 = pneg %p15
  $region19: #{fwd.17} parent=0 // pred_check_branch
    %234 = sbr.rel (%p232) target = $region21
  $region20: #{fwd.17} parent=0 // pred_region
    %v235 = vld [vmem:[#allocation2] sm:$0xff]
    %v236 = vld [vmem:[#allocation2 + $0x8] sm:$0xff]
    %v237 = vld [vmem:[#allocation2 + $0x10] sm:$0xff]
    %v238 = vld [vmem:[#allocation2 + $0x18] sm:$0xff]
    %v239 = vld [vmem:[#allocation2 + $0x20] sm:$0xff]
    %v240 = vld [vmem:[#allocation2 + $0x28] sm:$0xff]
    %v241 = vld [vmem:[#allocation2 + $0x30] sm:$0xff]
    %v242 = vld [vmem:[#allocation2 + $0x38] sm:$0xff]
    %v243 = vld [vmem:[#allocation2 + $0x40] sm:$0xff]
    %v244 = vld [vmem:[#allocation2 + $0x48] sm:$0xff]
    %v245 = vld [vmem:[#allocation2 + $0x50] sm:$0xff]
    %v246 = vld [vmem:[#allocation2 + $0x58] sm:$0xff]
    %v247 = vld [vmem:[#allocation2 + $0x60] sm:$0xff]
    %v248 = vld [vmem:[#allocation2 + $0x68] sm:$0xff]
    %v249 = vld [vmem:[#allocation2 + $0x70] sm:$0xff]
    %v250 = vld [vmem:[#allocation2 + $0x78] sm:$0xff]
    %v251 = vld [vmem:[%s2] sm:$0x1]
    %v253 = vlaneseq
    %v254 = vshrl.u32 %v253, 7
    %v255 = vsub.s32 0, %v254
    %v256 = vrot.slane %v251, %v255
    %v258 = vadd.f32 %v235, %v256
    %v259 = vadd.f32 %v236, %v256
    %v260 = vadd.f32 %v237, %v256
    %v261 = vadd.f32 %v238, %v256
    %v262 = vadd.f32 %v239, %v256
    %v263 = vadd.f32 %v240, %v256
    %v264 = vadd.f32 %v241, %v256
    %v265 = vadd.f32 %v242, %v256
    %v266 = vadd.f32 %v243, %v256
    %v267 = vadd.f32 %v244, %v256
    %v268 = vadd.f32 %v245, %v256
    %v269 = vadd.f32 %v246, %v256
    %v270 = vadd.f32 %v247, %v256
    %v271 = vadd.f32 %v248, %v256
    %v272 = vadd.f32 %v249, %v256
    %v273 = vadd.f32 %v250, %v256
    %274 = vst [vmem:[%s3] sm:$0xff] %v258
    %275 = vst [vmem:[%s3 + $0x8] sm:$0xff] %v259
    %276 = vst [vmem:[%s3 + $0x10] sm:$0xff] %v260
    %277 = vst [vmem:[%s3 + $0x18] sm:$0xff] %v261
    %278 = vst [vmem:[%s3 + $0x20] sm:$0xff] %v262
    %279 = vst [vmem:[%s3 + $0x28] sm:$0xff] %v263
    %280 = vst [vmem:[%s3 + $0x30] sm:$0xff] %v264
    %281 = vst [vmem:[%s3 + $0x38] sm:$0xff] %v265
    %282 = vst [vmem:[%s3 + $0x40] sm:$0xff] %v266
    %283 = vst [vmem:[%s3 + $0x48] sm:$0xff] %v267
    %284 = vst [vmem:[%s3 + $0x50] sm:$0xff] %v268
    %285 = vst [vmem:[%s3 + $0x58] sm:$0xff] %v269
    %286 = vst [vmem:[%s3 + $0x60] sm:$0xff] %v270
    %287 = vst [vmem:[%s3 + $0x68] sm:$0xff] %v271
    %288 = vst [vmem:[%s3 + $0x70] sm:$0xff] %v272
    %289 = vst [vmem:[%s3 + $0x78] sm:$0xff] %v273
  $region21: #{fwd.17} parent=0 // pred_fallthru
    _
  // Predicated region
  $region22: #{fwd.17} parent=0 // pred_check
    _
  $region23: #{fwd.17} parent=0 // pred_check_branch
    %291 = sbr.rel (0) target = $region25
  $region24: #{fwd.17} parent=0 // pred_region
    _
  $region25: #{fwd.17} parent=0 // pred_fallthru
    _
  // Predicated region
  $region26: #{fwd.17} parent=0 // pred_check
    _
  $region27: #{fwd.17} parent=0 // pred_check_branch
    %293 = sbr.rel (0) target = $region29
  $region28: #{fwd.17} parent=0 // pred_region
    _
  $region29: #{fwd.17} parent=0 // pred_fallthru
    _

// kernel: fwd.21
$region0: #{fwd.21}
  #allocation0 [shape = 'u32[]', space=smem, size = 0x4, offset = 0x4, fixed_abs, tag = 'smem constant byte address 0x4 - core index']
  #allocation1 [shape = 'u32[144,128]{1,0:T(1,128)}', space=vmem, size = 0x12000, scoped, tag = 'internal scratch']
  #allocation2 [shape = 'bf16[64,128]{1,0:T(8,128)(2,1)}', space=vmem, size = 0x4000, scoped, tag = 'scratch operand']
  %s0 = inlined_call_operand.vmem [shape: f32[2,64,128], index: 0, kind: input, shape index: {}]
  %s1 = inlined_call_operand.vmem [shape: f32[2,1,128], index: 1, kind: input, shape index: {}]
  %s2 = inlined_call_operand.vmem [shape: f32[2,1,128], index: 2, kind: input, shape index: {}]
  %s3 = inlined_call_operand.vmem [shape: f32[128,384], index: 3, kind: input, shape index: {}]
  %s4 = inlined_call_operand.vmem [shape: f32[1,384], index: 4, kind: input, shape index: {}]
  %s5 = inlined_call_operand.vmem [shape: f32[2,64,384], index: 5, kind: output, shape index: {}]
  %s6 = sld [smem:[#allocation0]]
  $region129: #{fwd.21} parent=0
    _
  %s8 = ssub.s32 1, %s6
  %s9 = scalar_select 0, %s8, %s6
  $region1: #{fwd.21} parent=0
    #allocation3 [shape = 'u8[131072]{0}', space=vmem, size = 0x20000, scoped, tag = 'input window, operand 3']
    #allocation4 [shape = 'u8[65536]{0}', space=vmem, size = 0x10000, scoped, tag = 'output window, operand 0']
    loop: start=0, step=1, limit=8
    $region2: #{fwd.21} parent=1 // loop_pre_header
      _
    $region3: #{fwd.21} parent=1 // loop_header
      %s11 = sphi 0, %s15
      %p12 = scmp.ge.s32.totalorder %s11, 8
      %s18 = sphi 0, %s37
      %s19 = sphi 0, %s33
      %s20 = sphi 0, %s29
      %s21 = sphi 0, %s18
      %s22 = sphi 0, %s19
      %s23 = sphi 0, %s20
      %s24 = sphi 0, %s21
      %s25 = sphi 0, %s22
      %s26 = sphi 0, %s23
      %s42 = sphi 0, %s44
      %s45 = sphi 0, %s42
      %s46 = sphi 0, %s45
      %s62 = sphi 0, %s46
      %s68 = sphi 0, %s70
      %s71 = sphi 0, %s68
      %s72 = sphi 0, %s71
      %s88 = sphi 0, %s72
      %s94 = sphi 0, %s96
      %s97 = sphi 0, %s94
      %s98 = sphi 0, %s97
      %s114 = sphi 0, %s98
      %s120 = sphi 0, %s122
      %s123 = sphi 0, %s120
      %s124 = sphi 0, %s123
      %s140 = sphi 0, %s124
      %s146 = sphi 0, %s148
      %s149 = sphi 0, %s146
      %s150 = sphi 0, %s149
      %s166 = sphi 0, %s150
      %s176 = sphi 0, %s178
      %s179 = sphi 0, %s176
      %s180 = sphi 0, %s179
      %s196 = sphi 0, %s180
    $region4: #{fwd.21} parent=1 // loop_header_branch
      %14 = sbr.rel (%p12) target = $region8
    $region5: #{fwd.21} parent=1 // loop_body
      %s16 = ssub.s32 %s11, 1
      %s17 = ssub.s32 %s11, 2
      %s27 = sadd.s32 1, %s20
      %p28 = scmp.ge.s32.totalorder %s27, 3
      %s29 = scalar_select %p28, 0, %s27
      %s30 = sadd.s32 1, %s19
      %s31 = scalar_select %p28, %s30, %s19
      %p32 = scmp.ge.s32.totalorder %s31, 1
      %s33 = scalar_select %p32, 0, %s31
      %s34 = sadd.s32 1, %s18
      %s35 = scalar_select %p32, %s34, %s18
      %p36 = scmp.ge.s32.totalorder %s35, 2
      %s37 = scalar_select %p36, 0, %s35
      %s38 = ssub.s32 %s18, %s37
      %s39 = ssub.s32 %s19, %s33
      %s40 = sor.u32 %s38, %s39
      %p41 = scmp.eq.s32.totalorder %s40, 0
      %s43 = sadd.s32 %s42, 1
      %s44 = scalar_select %p41, %s42, %s43
      %p47 = pneg %p41
      %p48 = scmp.eq.s32.totalorder %s11, 5
      %p49 = por %p47, %p48
      %p50 = scmp.ne.s32.totalorder %s42, %s45
      %p51 = scmp.eq.s32.totalorder %s11, 0
      %p52 = por %p50, %p51
      %p53 = scmp.ne.s32.totalorder %s42, %s45
      %p54 = scmp.eq.s32.totalorder %s16, 5
      %p55 = por %p53, %p54
      %p56 = scmp.ne.s32.totalorder %s45, %s46
      %p57 = scmp.eq.s32.totalorder %s16, 0
      %p58 = por %p56, %p57
      %p59 = scmp.ne.s32.totalorder %s45, %s46
      %p60 = scmp.eq.s32.totalorder %s17, 5
      %p61 = por %p59, %p60
      %p63 = scmp.ne.s32.totalorder %s46, %s62
      %p64 = scmp.eq.s32.totalorder %s17, 0
      %p65 = por %p63, %p64
      %s66 = ssub.s32 %s18, %s37
      %p67 = scmp.eq.s32.totalorder %s66, 0
      %s69 = sadd.s32 %s68, 1
      %s70 = scalar_select %p67, %s68, %s69
      %p73 = pneg %p67
      %p74 = scmp.eq.s32.totalorder %s11, 5
      %p75 = por %p73, %p74
      %p76 = scmp.ne.s32.totalorder %s68, %s71
      %p77 = scmp.eq.s32.totalorder %s11, 0
      %p78 = por %p76, %p77
      %p79 = scmp.ne.s32.totalorder %s68, %s71
      %p80 = scmp.eq.s32.totalorder %s16, 5
      %p81 = por %p79, %p80
      %p82 = scmp.ne.s32.totalorder %s71, %s72
      %p83 = scmp.eq.s32.totalorder %s16, 0
      %p84 = por %p82, %p83
      %p85 = scmp.ne.s32.totalorder %s71, %s72
      %p86 = scmp.eq.s32.totalorder %s17, 5
      %p87 = por %p85, %p86
      %p89 = scmp.ne.s32.totalorder %s72, %s88
      %p90 = scmp.eq.s32.totalorder %s17, 0
      %p91 = por %p89, %p90
      %s92 = ssub.s32 %s18, %s37
      %p93 = scmp.eq.s32.totalorder %s92, 0
      %s95 = sadd.s32 %s94, 1
      %s96 = scalar_select %p93, %s94, %s95
      %p99 = pneg %p93
      %p100 = scmp.eq.s32.totalorder %s11, 5
      %p101 = por %p99, %p100
      %p102 = scmp.ne.s32.totalorder %s94, %s97
      %p103 = scmp.eq.s32.totalorder %s11, 0
      %p104 = por %p102, %p103
      %p105 = scmp.ne.s32.totalorder %s94, %s97
      %p106 = scmp.eq.s32.totalorder %s16, 5
      %p107 = por %p105, %p106
      %p108 = scmp.ne.s32.totalorder %s97, %s98
      %p109 = scmp.eq.s32.totalorder %s16, 0
      %p110 = por %p108, %p109
      %p111 = scmp.ne.s32.totalorder %s97, %s98
      %p112 = scmp.eq.s32.totalorder %s17, 5
      %p113 = por %p111, %p112
      %p115 = scmp.ne.s32.totalorder %s98, %s114
      %p116 = scmp.eq.s32.totalorder %s17, 0
      %p117 = por %p115, %p116
      %s118 = ssub.s32 %s20, %s29
      %p119 = scmp.eq.s32.totalorder %s118, 0
      %s121 = sadd.s32 %s120, 1
      %s122 = scalar_select %p119, %s120, %s121
      %p125 = pneg %p119
      %p126 = scmp.eq.s32.totalorder %s11, 5
      %p127 = por %p125, %p126
      %p128 = scmp.ne.s32.totalorder %s120, %s123
      %p129 = scmp.eq.s32.totalorder %s11, 0
      %p130 = por %p128, %p129
      %p131 = scmp.ne.s32.totalorder %s120, %s123
      %p132 = scmp.eq.s32.totalorder %s16, 5
      %p133 = por %p131, %p132
      %p134 = scmp.ne.s32.totalorder %s123, %s124
      %p135 = scmp.eq.s32.totalorder %s16, 0
      %p136 = por %p134, %p135
      %p137 = scmp.ne.s32.totalorder %s123, %s124
      %p138 = scmp.eq.s32.totalorder %s17, 5
      %p139 = por %p137, %p138
      %p141 = scmp.ne.s32.totalorder %s124, %s140
      %p142 = scmp.eq.s32.totalorder %s17, 0
      %p143 = por %p141, %p142
      %s144 = ssub.s32 %s20, %s29
      %p145 = scmp.eq.s32.totalorder %s144, 0
      %s147 = sadd.s32 %s146, 1
      %s148 = scalar_select %p145, %s146, %s147
      %p151 = pneg %p145
      %p152 = scmp.eq.s32.totalorder %s11, 5
      %p153 = por %p151, %p152
      %p154 = scmp.ne.s32.totalorder %s146, %s149
      %p155 = scmp.eq.s32.totalorder %s11, 0
      %p156 = por %p154, %p155
      %p157 = scmp.ne.s32.totalorder %s146, %s149
      %p158 = scmp.eq.s32.totalorder %s16, 5
      %p159 = por %p157, %p158
      %p160 = scmp.ne.s32.totalorder %s149, %s150
      %p161 = scmp.eq.s32.totalorder %s16, 0
      %p162 = por %p160, %p161
      %p163 = scmp.ne.s32.totalorder %s149, %s150
      %p164 = scmp.eq.s32.totalorder %s17, 5
      %p165 = por %p163, %p164
      %p167 = scmp.ne.s32.totalorder %s150, %s166
      %p168 = scmp.eq.s32.totalorder %s17, 0
      %p169 = por %p167, %p168
      %s170 = ssub.s32 %s18, %s37
      %s171 = ssub.s32 %s19, %s33
      %s172 = sor.u32 %s170, %s171
      %s173 = ssub.s32 %s20, %s29
      %s174 = sor.u32 %s172, %s173
      %p175 = scmp.eq.s32.totalorder %s174, 0
      %s177 = sadd.s32 %s176, 1
      %s178 = scalar_select %p175, %s176, %s177
      %p181 = pneg %p175
      %p182 = scmp.eq.s32.totalorder %s11, 5
      %p183 = por %p181, %p182
      %p184 = scmp.ne.s32.totalorder %s176, %s179
      %p185 = scmp.eq.s32.totalorder %s11, 0
      %p186 = por %p184, %p185
      %p187 = scmp.ne.s32.totalorder %s176, %s179
      %p188 = scmp.eq.s32.totalorder %s16, 5
      %p189 = por %p187, %p188
      %p190 = scmp.ne.s32.totalorder %s179, %s180
      %p191 = scmp.eq.s32.totalorder %s16, 0
      %p192 = por %p190, %p191
      %p193 = scmp.ne.s32.totalorder %s179, %s180
      %p194 = scmp.eq.s32.totalorder %s17, 5
      %p195 = por %p193, %p194
      %p197 = scmp.ne.s32.totalorder %s180, %s196
      %p198 = scmp.eq.s32.totalorder %s17, 0
      %p199 = por %p197, %p198
      %p200 = scmp.le.s32.totalorder 1, %s11
      %p201 = scmp.lt.s32.totalorder %s11, 7
      %p202 = pnand %p200, %p201
      %p203 = pneg %p202
      // Predicated region
      $region9: #{fwd.21} parent=5 // pred_check
        _
      $region10: #{fwd.21} parent=5 // pred_check_branch
        %205 = sbr.rel (%p202) target = $region12
      $region11: #{fwd.21} parent=5 // pred_region
        %s206 = ssub.s32 %s11, 1
      $region12: #{fwd.21} parent=5 // pred_fallthru
        _
      %p207 = scmp.lt.s32.totalorder %s11, 6
      // Predicated region
      $region13: #{fwd.21} parent=5 // pred_check
        %p208 = pneg %p207
      $region14: #{fwd.21} parent=5 // pred_check_branch
        %210 = sbr.rel (%p208) target = $region16
      $region15: #{fwd.21} parent=5 // pred_region
        // Predicated region
        $region17: #{fwd.21} parent=15 // pred_check
          %p211 = pneg %p52
        $region18: #{fwd.21} parent=15 // pred_check_branch
          %213 = sbr.rel (%p211) target = $region20
        $region19: #{fwd.21} parent=15 // pred_region
          %s214 = smul.u32 8, %s19
          %p215 = scmp.lt.s32.totalorder %s18, 1
          %s216 = scalar_select %p215, %s18, 1
          %p217 = scmp.lt.s32.totalorder %s214, 7
          %s218 = scalar_select %p217, %s214, 7
          %s219 = smul.addr %s216, 8
          %s220 = sadd.s32 %s218, %s219
          %s221 = smul.addr %s220, 8
          %s222 = scalar_lea.vmem %s0, %s221
          %s223 = smul.u32 8, %s19
        $region20: #{fwd.21} parent=15 // pred_fallthru
          _
        // Predicated region
        $region21: #{fwd.21} parent=15 // pred_check
          %p224 = pneg %p78
        $region22: #{fwd.21} parent=15 // pred_check_branch
          %226 = sbr.rel (%p224) target = $region24
        $region23: #{fwd.21} parent=15 // pred_region
          %p227 = scmp.lt.s32.totalorder %s18, 1
          %s228 = scalar_select %p227, %s18, 1
          %s229 = scalar_lea.vmem %s1, %s228
        $region24: #{fwd.21} parent=15 // pred_fallthru
          _
        // Predicated region
        $region25: #{fwd.21} parent=15 // pred_check
          %p230 = pneg %p104
        $region26: #{fwd.21} parent=15 // pred_check_branch
          %232 = sbr.rel (%p230) target = $region28
        $region27: #{fwd.21} parent=15 // pred_region
          %p233 = scmp.lt.s32.totalorder %s18, 1
          %s234 = scalar_select %p233, %s18, 1
          %s235 = scalar_lea.vmem %s2, %s234
        $region28: #{fwd.21} parent=15 // pred_fallthru
          _
        // Predicated region
        $region29: #{fwd.21} parent=15 // pred_check
          %p236 = pneg %p130
        $region30: #{fwd.21} parent=15 // pred_check_branch
          %238 = sbr.rel (%p236) target = $region32
        $region31: #{fwd.21} parent=15 // pred_region
          %s239 = sand.u32 %s120, 1
          %s240 = sand.u32 %s120, 1
          %s241 = smul.addr %s240, 128
          %s242 = scalar_lea.vmem [#allocation3], %s241
          %s243 = smul.addr %s20, 8
          %s244 = scalar_lea.vmem %s3, %s243
          // Predicated region
          $region33: #{fwd.21} parent=31 // pred_check
            _
          $region34: #{fwd.21} parent=31 // pred_check_branch
            %246 = sbr.rel (0) target = $region36
          $region35: #{fwd.21} parent=31 // pred_region
            // Predicated region
            $region37: #{fwd.21} parent=35 // pred_check
              _
            $region38: #{fwd.21} parent=35 // pred_check_branch
              %248 = sbr.rel (0) target = $region40
            $region39: #{fwd.21} parent=35 // pred_region
              // Predicated region
              $region52: #{fwd.21} parent=39 // pred_check
                _
              $region53: #{fwd.21} parent=39 // pred_check_branch
                %294 = sbr.rel (0) target = $region55
              $region54: #{fwd.21} parent=39 // pred_region
                loop: start=0, step=1, limit=1
                $region56: #{fwd.21} parent=54 // loop_pre_header
                  _
                $region57: #{fwd.21} parent=54 // loop_header
                  %s296 = sphi 0, %s300
                  %p297 = scmp.ge.s32.totalorder %s296, 1
                  %s301 = sphi %s244, %s244
                  %s302 = sphi %s242, %s242
                $region58: #{fwd.21} parent=54 // loop_header_branch
                  %299 = sbr.rel (%p297) target = $region62
                $region59: #{fwd.21} parent=54 // loop_body
                  %v303 = vld [vmem:[%s301] sm:$0xff]
                  %304 = vst [vmem:[%s302] sm:$0xff] %v303
                  %v305 = vld [vmem:[%s301 + $0x18] sm:$0xff]
                  %306 = vst [vmem:[%s302 + $0x8] sm:$0xff] %v305
                  %v307 = vld [vmem:[%s301 + $0x30] sm:$0xff]
                  %308 = vst [vmem:[%s302 + $0x10] sm:$0xff] %v307
                  %v309 = vld [vmem:[%s301 + $0x48] sm:$0xff]
                  %310 = vst [vmem:[%s302 + $0x18] sm:$0xff] %v309
                  %v311 = vld [vmem:[%s301 + $0x60] sm:$0xff]
                  %312 = vst [vmem:[%s302 + $0x20] sm:$0xff] %v311
                  %v313 = vld [vmem:[%s301 + $0x78] sm:$0xff]
                  %314 = vst [vmem:[%s302 + $0x28] sm:$0xff] %v313
                  %v315 = vld [vmem:[%s301 + $0x90] sm:$0xff]
                  %316 = vst [vmem:[%s302 + $0x30] sm:$0xff] %v315
                  %v317 = vld [vmem:[%s301 + $0xa8] sm:$0xff]
                  %318 = vst [vmem:[%s302 + $0x38] sm:$0xff] %v317
                  %v319 = vld [vmem:[%s301 + $0xc0] sm:$0xff]
                  %320 = vst [vmem:[%s302 + $0x40] sm:$0xff] %v319
                  %v321 = vld [vmem:[%s301 + $0xd8] sm:$0xff]
                  %322 = vst [vmem:[%s302 + $0x48] sm:$0xff] %v321
                  %v323 = vld [vmem:[%s301 + $0xf0] sm:$0xff]
                  %324 = vst [vmem:[%s302 + $0x50] sm:$0xff] %v323
                  %v325 = vld [vmem:[%s301 + $0x108] sm:$0xff]
                  %326 = vst [vmem:[%s302 + $0x58] sm:$0xff] %v325
                  %v327 = vld [vmem:[%s301 + $0x120] sm:$0xff]
                  %328 = vst [vmem:[%s302 + $0x60] sm:$0xff] %v327
                  %v329 = vld [vmem:[%s301 + $0x138] sm:$0xff]
                  %330 = vst [vmem:[%s302 + $0x68] sm:$0xff] %v329
                  %v331 = vld [vmem:[%s301 + $0x150] sm:$0xff]
                  %332 = vst [vmem:[%s302 + $0x70] sm:$0xff] %v331
                  %v333 = vld [vmem:[%s301 + $0x168] sm:$0xff]
                  %334 = vst [vmem:[%s302 + $0x78] sm:$0xff] %v333
                $region60: #{fwd.21} parent=54 // loop_footer
                  %s300 = sadd.s32 1, %s296
                $region61: #{fwd.21} parent=54 // loop_footer_branch
                  %295 = sbr.rel target = $region57
                $region62: #{fwd.21} parent=54 // loop_exit
                  _
              $region55: #{fwd.21} parent=39 // pred_fallthru
                _
              // Predicated region
              $region63: #{fwd.21} parent=39 // pred_check
                _
              $region64: #{fwd.21} parent=39 // pred_check_branch
                %336 = sbr.rel target = $region66
              $region65: #{fwd.21} parent=39 // pred_region
                _
              $region66: #{fwd.21} parent=39 // pred_fallthru
                _
            $region40: #{fwd.21} parent=35 // pred_fallthru
              _
            // Predicated region
            $region41: #{fwd.21} parent=35 // pred_check
              _
            $region42: #{fwd.21} parent=35 // pred_check_branch
              %250 = sbr.rel target = $region44
            $region43: #{fwd.21} parent=35 // pred_region
              %s252 = ssub.s32 256, 1
              loop: start=0, step=1, limit=1
              $region45: #{fwd.21} parent=43 // loop_pre_header
                _
              $region46: #{fwd.21} parent=43 // loop_header
                %s254 = sphi 0, %s258
                %p255 = scmp.ge.s32.totalorder %s254, 1
                %s259 = sphi %s244, %s244
                %s260 = sphi %s242, %s242
              $region47: #{fwd.21} parent=43 // loop_header_branch
                %257 = sbr.rel (%p255) target = $region51
              $region48: #{fwd.21} parent=43 // loop_body
                %v261 = vld [vmem:[%s259] sm:%s252]
                %262 = vst [vmem:[%s260] sm:%s252] %v261
                %v263 = vld [vmem:[%s259 + $0x18] sm:%s252]
                %264 = vst [vmem:[%s260 + $0x8] sm:%s252] %v263
                %v265 = vld [vmem:[%s259 + $0x30] sm:%s252]
                %266 = vst [vmem:[%s260 + $0x10] sm:%s252] %v265
                %v267 = vld [vmem:[%s259 + $0x48] sm:%s252]
                %268 = vst [vmem:[%s260 + $0x18] sm:%s252] %v267
                %v269 = vld [vmem:[%s259 + $0x60] sm:%s252]
                %270 = vst [vmem:[%s260 + $0x20] sm:%s252] %v269
                %v271 = vld [vmem:[%s259 + $0x78] sm:%s252]
                %272 = vst [vmem:[%s260 + $0x28] sm:%s252] %v271
                %v273 = vld [vmem:[%s259 + $0x90] sm:%s252]
                %274 = vst [vmem:[%s260 + $0x30] sm:%s252] %v273
                %v275 = vld [vmem:[%s259 + $0xa8] sm:%s252]
                %276 = vst [vmem:[%s260 + $0x38] sm:%s252] %v275
                %v277 = vld [vmem:[%s259 + $0xc0] sm:%s252]
                %278 = vst [vmem:[%s260 + $0x40] sm:%s252] %v277
                %v279 = vld [vmem:[%s259 + $0xd8] sm:%s252]
                %280 = vst [vmem:[%s260 + $0x48] sm:%s252] %v279
                %v281 = vld [vmem:[%s259 + $0xf0] sm:%s252]
                %282 = vst [vmem:[%s260 + $0x50] sm:%s252] %v281
                %v283 = vld [vmem:[%s259 + $0x108] sm:%s252]
                %284 = vst [vmem:[%s260 + $0x58] sm:%s252] %v283
                %v285 = vld [vmem:[%s259 + $0x120] sm:%s252]
                %286 = vst [vmem:[%s260 + $0x60] sm:%s252] %v285
                %v287 = vld [vmem:[%s259 + $0x138] sm:%s252]
                %288 = vst [vmem:[%s260 + $0x68] sm:%s252] %v287
                %v289 = vld [vmem:[%s259 + $0x150] sm:%s252]
                %290 = vst [vmem:[%s260 + $0x70] sm:%s252] %v289
                %v291 = vld [vmem:[%s259 + $0x168] sm:%s252]
                %292 = vst [vmem:[%s260 + $0x78] sm:%s252] %v291
              $region49: #{fwd.21} parent=43 // loop_footer
                %s258 = sadd.s32 1, %s254
              $region50: #{fwd.21} parent=43 // loop_footer_branch
                %253 = sbr.rel target = $region46
              $region51: #{fwd.21} parent=43 // loop_exit
                _
            $region44: #{fwd.21} parent=35 // pred_fallthru
              _
          $region36: #{fwd.21} parent=31 // pred_fallthru
            _
          %337 = vnop
        $region32: #{fwd.21} parent=15 // pred_fallthru
          _
        // Predicated region
        $region67: #{fwd.21} parent=15 // pred_check
          %p338 = pneg %p156
        $region68: #{fwd.21} parent=15 // pred_check_branch
          %340 = sbr.rel (%p338) target = $region70
        $region69: #{fwd.21} parent=15 // pred_region
          %p341 = scmp.lt.s32.totalorder %s20, 2
          %s342 = scalar_select %p341, %s20, 2
          %s343 = scalar_lea.vmem %s4, %s342
        $region70: #{fwd.21} parent=15 // pred_fallthru
          _
      $region16: #{fwd.21} parent=5 // pred_fallthru
        _
      %p344 = scmp.le.s32.totalorder 1, %s11
      %p345 = scmp.lt.s32.totalorder %s11, 7
      %p346 = pnand %p344, %p345
      %p347 = pneg %p346
      // Predicated region
      $region71: #{fwd.21} parent=5 // pred_check
        _
      $region72: #{fwd.21} parent=5 // pred_check_branch
        %349 = sbr.rel (%p346) target = $region74
      $region73: #{fwd.21} parent=5 // pred_region
        %s350 = ssub.s32 %s11, 1
        %s351 = sand.u32 %s123, 1
        %s352 = sand.u32 %s123, 1
        %s353 = smul.addr %s352, 128
        %s354 = scalar_lea.vmem [#allocation3], %s353
        // Predicated region
        $region75: #{fwd.21} parent=73 // pred_check
          %p355 = pneg %p136
        $region76: #{fwd.21} parent=73 // pred_check_branch
          %357 = sbr.rel (%p355) target = $region78
        $region77: #{fwd.21} parent=73 // pred_region
          _
        $region78: #{fwd.21} parent=73 // pred_fallthru
          _
        %s358 = smul.u32 8, %s22
        %p359 = scmp.lt.s32.totalorder %s21, 1
        %s360 = scalar_select %p359, %s21, 1
        %p361 = scmp.lt.s32.totalorder %s358, 7
        %s362 = scalar_select %p361, %s358, 7
        %s363 = smul.addr %s360, 8
        %s364 = sadd.s32 %s362, %s363
        %s365 = smul.addr %s364, 8
        %s366 = scalar_lea.vmem %s0, %s365
        %p367 = pneg %p58
        %p368 = pneg %p55
        %p369 = scmp.lt.s32.totalorder %s21, 1
        %s370 = scalar_select %p369, %s21, 1
        %s371 = scalar_lea.vmem %s1, %s370
        %p372 = pneg %p84
        %p373 = pneg %p81
        %p374 = scmp.lt.s32.totalorder %s21, 1
        %s375 = scalar_select %p374, %s21, 1
        %s376 = scalar_lea.vmem %s2, %s375
        %p377 = pneg %p110
        %p378 = pneg %p107
        %s379 = sand.u32 %s123, 1
        %s380 = sand.u32 %s123, 1
        %s381 = smul.addr %s380, 128
        %s382 = scalar_lea.vmem [#allocation3], %s381
        %p383 = pneg %p136
        %p384 = pneg %p133
        %p385 = scmp.lt.s32.totalorder %s23, 2
        %s386 = scalar_select %p385, %s23, 2
        %s387 = scalar_lea.vmem %s4, %s386
        %p388 = pneg %p162
        %p389 = pneg %p159
        %p390 = pneg %p192
        %p391 = pneg %p189
        %s392 = sand.u32 %s179, 1
        %s393 = sand.u32 %s179, 1
        %s394 = smul.addr %s393, 64
        %s395 = scalar_lea.vmem [#allocation4], %s394
        %s396 = smul.u32 8, %s22
        %p397 = scmp.lt.s32.totalorder %s21, 1
        %s398 = scalar_select %p397, %s21, 1
        %p399 = scmp.lt.s32.totalorder %s396, 7
        %s400 = scalar_select %p399, %s396, 7
        %s401 = smul.addr %s398, 8
        %s402 = sadd.s32 %s400, %s401
        %s403 = smul.addr %s402, 8
        %s404 = scalar_lea.vmem %s0, %s403
        %s405 = smul.u32 8, %s22
        %p406 = scmp.lt.s32.totalorder %s21, 1
        %s407 = scalar_select %p406, %s21, 1
        %s408 = scalar_lea.vmem %s1, %s407
        %p409 = scmp.lt.s32.totalorder %s21, 1
        %s410 = scalar_select %p409, %s21, 1
        %s411 = scalar_lea.vmem %s2, %s410
        %p412 = scmp.lt.s32.totalorder %s23, 2
        %s413 = scalar_select %p412, %s23, 2
        %s414 = scalar_lea.vmem %s4, %s413
        %s415 = smul.u32 8, %s22
        %p417 = scmp.eq.s32.totalorder %s23, 0
        // Predicated region
        $region79: #{fwd.21} parent=73 // pred_check
          %p418 = pneg %p417
        $region80: #{fwd.21} parent=73 // pred_check_branch
          %420 = sbr.rel (%p418) target = $region82
        $region81: #{fwd.21} parent=73 // pred_region
          %v421 = vld [vmem:[%s404] sm:$0xff]
          %v422 = vld [vmem:[%s404 + $0x8] sm:$0xff]
          %v423 = vld [vmem:[%s404 + $0x10] sm:$0xff]
          %v424 = vld [vmem:[%s404 + $0x18] sm:$0xff]
          %v425 = vld [vmem:[%s404 + $0x20] sm:$0xff]
          %v426 = vld [vmem:[%s404 + $0x28] sm:$0xff]
          %v427 = vld [vmem:[%s404 + $0x30] sm:$0xff]
          %v428 = vld [vmem:[%s404 + $0x38] sm:$0xff]
          %429 = vadd.xlane.f32.xlu0 %v421
          %v430 = vpop.xlane.xlu0 %429
          %431 = vadd.xlane.f32.xlu0 %v422
          %v432 = vpop.xlane.xlu0 %431
          %433 = vadd.xlane.f32.xlu0 %v423
          %v434 = vpop.xlane.xlu0 %433
          %435 = vadd.xlane.f32.xlu0 %v424
          %v436 = vpop.xlane.xlu0 %435
          %437 = vadd.xlane.f32.xlu0 %v425
          %v438 = vpop.xlane.xlu0 %437
          %439 = vadd.xlane.f32.xlu0 %v426
          %v440 = vpop.xlane.xlu0 %439
          %441 = vadd.xlane.f32.xlu0 %v427
          %v442 = vpop.xlane.xlu0 %441
          %443 = vadd.xlane.f32.xlu0 %v428
          %v444 = vpop.xlane.xlu0 %443
          %v445 = vrcp.pop 128.0
          %v446 = vmul.f32 %v430, %v445
          %v447 = vmul.f32 %v432, %v445
          %v448 = vmul.f32 %v434, %v445
          %v449 = vmul.f32 %v436, %v445
          %v450 = vmul.f32 %v438, %v445
          %v451 = vmul.f32 %v440, %v445
          %v452 = vmul.f32 %v442, %v445
          %v453 = vmul.f32 %v444, %v445
          %v454 = vsub.f32 %v421, %v446
          %v455 = vsub.f32 %v422, %v447
          %v456 = vsub.f32 %v423, %v448
          %v457 = vsub.f32 %v424, %v449
          %v458 = vsub.f32 %v425, %v450
          %v459 = vsub.f32 %v426, %v451
          %v460 = vsub.f32 %v427, %v452
          %v461 = vsub.f32 %v428, %v453
          %v462 = vmul.f32 %v454, %v454
          %v463 = vmul.f32 %v455, %v455
          %v464 = vmul.f32 %v456, %v456
          %v465 = vmul.f32 %v457, %v457
          %v466 = vmul.f32 %v458, %v458
          %v467 = vmul.f32 %v459, %v459
          %v468 = vmul.f32 %v460, %v460
          %v469 = vmul.f32 %v461, %v461
          %470 = vadd.xlane.f32.xlu0 %v462
          %v471 = vpop.xlane.xlu0 %470
          %472 = vadd.xlane.f32.xlu0 %v463
          %v473 = vpop.xlane.xlu0 %472
          %474 = vadd.xlane.f32.xlu0 %v464
          %v475 = vpop.xlane.xlu0 %474
          %476 = vadd.xlane.f32.xlu0 %v465
          %v477 = vpop.xlane.xlu0 %476
          %478 = vadd.xlane.f32.xlu0 %v466
          %v479 = vpop.xlane.xlu0 %478
          %480 = vadd.xlane.f32.xlu0 %v467
          %v481 = vpop.xlane.xlu0 %480
          %482 = vadd.xlane.f32.xlu0 %v468
          %v483 = vpop.xlane.xlu0 %482
          %484 = vadd.xlane.f32.xlu0 %v469
          %v485 = vpop.xlane.xlu0 %484
          %v486 = vmul.f32 %v471, %v445
          %v487 = vmul.f32 %v473, %v445
          %v488 = vmul.f32 %v475, %v445
          %v489 = vmul.f32 %v477, %v445
          %v490 = vmul.f32 %v479, %v445
          %v491 = vmul.f32 %v481, %v445
          %v492 = vmul.f32 %v483, %v445
          %v493 = vmul.f32 %v485, %v445
          %v494 = vadd.f32 %v486, 1e-06
          %v495 = vadd.f32 %v487, 1e-06
          %v496 = vadd.f32 %v488, 1e-06
          %v497 = vadd.f32 %v489, 1e-06
          %v498 = vadd.f32 %v490, 1e-06
          %v499 = vadd.f32 %v491, 1e-06
          %v500 = vadd.f32 %v492, 1e-06
          %v501 = vadd.f32 %v493, 1e-06
          %v502 = vrsqrt.pop %v494
          %v503 = vrsqrt.pop %v495
          %v504 = vrsqrt.pop %v496
          %v505 = vrsqrt.pop %v497
          %v506 = vrsqrt.pop %v498
          %v507 = vrsqrt.pop %v499
          %v508 = vrsqrt.pop %v500
          %v509 = vrsqrt.pop %v501
          %v510 = vmul.f32 %v454, %v502
          %v511 = vmul.f32 %v455, %v503
          %v512 = vmul.f32 %v456, %v504
          %v513 = vmul.f32 %v457, %v505
          %v514 = vmul.f32 %v458, %v506
          %v515 = vmul.f32 %v459, %v507
          %v516 = vmul.f32 %v460, %v508
          %v517 = vmul.f32 %v461, %v509
          %v518 = vld [vmem:[%s411] sm:$0x1]
          %v519 = vadd.f32 %v518, 1.0
          %v521 = vlaneseq
          %v522 = vshrl.u32 %v521, 7
          %v523 = vsub.s32 0, %v522
          %v524 = vrot.slane %v519, %v523
          %v526 = vmul.f32 %v510, %v524
          %v527 = vmul.f32 %v511, %v524
          %v528 = vmul.f32 %v512, %v524
          %v529 = vmul.f32 %v513, %v524
          %v530 = vmul.f32 %v514, %v524
          %v531 = vmul.f32 %v515, %v524
          %v532 = vmul.f32 %v516, %v524
          %v533 = vmul.f32 %v517, %v524
          %v534 = vld [vmem:[%s408] sm:$0x1]
          %v536 = vlaneseq
          %v537 = vshrl.u32 %v536, 7
          %v538 = vsub.s32 0, %v537
          %v539 = vrot.slane %v534, %v538
          %v541 = vadd.f32 %v526, %v539
          %v542 = vadd.f32 %v527, %v539
          %v543 = vadd.f32 %v528, %v539
          %v544 = vadd.f32 %v529, %v539
          %v545 = vadd.f32 %v530, %v539
          %v546 = vadd.f32 %v531, %v539
          %v547 = vadd.f32 %v532, %v539
          %v548 = vadd.f32 %v533, %v539
          %v549 = vpack.c.bf16 %v542, %v541
          %v550 = vpack.c.bf16 %v544, %v543
          %v551 = vpack.c.bf16 %v546, %v545
          %v552 = vpack.c.bf16 %v548, %v547
          %v557 = vunpack.c.l.b16 %v549
          %v558 = vunpack.c.h.b16 %v549
          %v559 = vunpack.c.l.b16 %v550
          %v560 = vunpack.c.h.b16 %v550
          %v561 = vunpack.c.l.b16 %v551
          %v562 = vunpack.c.h.b16 %v551
          %v563 = vunpack.c.l.b16 %v552
          %v564 = vunpack.c.h.b16 %v552
          %v565 = vpack.c.b16 %v557, %v557
          %v566 = vpack.c.b16 %v558, %v558
          %v567 = vpack.c.b16 %v559, %v559
          %v568 = vpack.c.b16 %v560, %v560
          %v569 = vpack.c.b16 %v561, %v561
          %v570 = vpack.c.b16 %v562, %v562
          %v571 = vpack.c.b16 %v563, %v563
          %v572 = vpack.c.b16 %v564, %v564
          %581 = vst [vmem:[#allocation2] sm:$0xf] %v565
          %582 = vst [vmem:[#allocation2 + $0x4] sm:$0xf] %v566
          %583 = vst [vmem:[#allocation2 + $0x8] sm:$0xf] %v567
          %584 = vst [vmem:[#allocation2 + $0xc] sm:$0xf] %v568
          %585 = vst [vmem:[#allocation2 + $0x10] sm:$0xf] %v569
          %586 = vst [vmem:[#allocation2 + $0x14] sm:$0xf] %v570
          %587 = vst [vmem:[#allocation2 + $0x18] sm:$0xf] %v571
          %588 = vst [vmem:[#allocation2 + $0x1c] sm:$0xf] %v572
        $region82: #{fwd.21} parent=73 // pred_fallthru
          _
        %v589 = vld [vmem:[#allocation2] sm:$0xf]
        %v590 = vld [vmem:[#allocation2 + $0x4] sm:$0xf]
        %v591 = vld [vmem:[#allocation2 + $0x8] sm:$0xf]
        %v592 = vld [vmem:[#allocation2 + $0xc] sm:$0xf]
        %v593 = vld [vmem:[#allocation2 + $0x10] sm:$0xf]
        %v594 = vld [vmem:[#allocation2 + $0x14] sm:$0xf]
        %v595 = vld [vmem:[#allocation2 + $0x18] sm:$0xf]
        %v596 = vld [vmem:[#allocation2 + $0x1c] sm:$0xf]
        %v597 = vld [vmem:[%s354] sm:$0xff]
        %v598 = vld [vmem:[%s354 + $0x8] sm:$0xff]
        %v599 = vld [vmem:[%s354 + $0x10] sm:$0xff]
        %v600 = vld [vmem:[%s354 + $0x18] sm:$0xff]
        %v601 = vld [vmem:[%s354 + $0x20] sm:$0xff]
        %v602 = vld [vmem:[%s354 + $0x28] sm:$0xff]
        %v603 = vld [vmem:[%s354 + $0x30] sm:$0xff]
        %v604 = vld [vmem:[%s354 + $0x38] sm:$0xff]
        %v605 = vld [vmem:[%s354 + $0x40] sm:$0xff]
        %v606 = vld [vmem:[%s354 + $0x48] sm:$0xff]
        %v607 = vld [vmem:[%s354 + $0x50] sm:$0xff]
        %v608 = vld [vmem:[%s354 + $0x58] sm:$0xff]
        %v609 = vld [vmem:[%s354 + $0x60] sm:$0xff]
        %v610 = vld [vmem:[%s354 + $0x68] sm:$0xff]
        %v611 = vld [vmem:[%s354 + $0x70] sm:$0xff]
        %v612 = vld [vmem:[%s354 + $0x78] sm:$0xff]
        %v613 = vpack.c.bf16 %v598, %v597
        %v614 = vpack.c.bf16 %v600, %v599
        %v615 = vpack.c.bf16 %v602, %v601
        %v616 = vpack.c.bf16 %v604, %v603
        %v617 = vpack.c.bf16 %v606, %v605
        %v618 = vpack.c.bf16 %v608, %v607
        %v619 = vpack.c.bf16 %v610, %v609
        %v620 = vpack.c.bf16 %v612, %v611
        %v621 = vld [vmem:[%s414] sm:$0x1]
        %v623 = vlaneseq
        %v624 = vshrl.u32 %v623, 7
        %v625 = vsub.s32 0, %v624
        %v626 = vrot.slane %v621, %v625
        %v636 = vunpack.c.l.b16 %v589
        %v637 = vunpack.c.l.b16 %v590
        %v638 = vunpack.c.l.b16 %v591
        %v639 = vunpack.c.l.b16 %v592
        %v640 = vunpack.c.l.b16 %v593
        %v641 = vunpack.c.l.b16 %v594
        %v642 = vunpack.c.l.b16 %v595
        %v643 = vunpack.c.l.b16 %v596
        %v644 = vpack.c.b16 %v637, %v636
        %v645 = vpack.c.b16 %v639, %v638
        %v646 = vpack.c.b16 %v641, %v640
        %v647 = vpack.c.b16 %v643, %v642
        %652 = vmatprep.subr.bf16.mxu0 0
        %653 = vmatpush1.bf16.msra.mxu0 %v620
        %654 = vmatprep.subr.bf16.mxu0 0
        %655 = vmatpush1.bf16.msra.mxu0 %v619
        %656 = vmatprep.subr.bf16.mxu0 0
        %657 = vmatpush1.bf16.msra.mxu0 %v618
        %658 = vmatprep.subr.bf16.mxu0 0
        %659 = vmatpush1.bf16.msra.mxu0 %v617
        %660 = vmatprep.subr.bf16.mxu0 0
        %661 = vmatpush1.bf16.msra.mxu0 %v616
        %662 = vmatprep.subr.bf16.mxu0 0
        %663 = vmatpush1.bf16.msra.mxu0 %v615
        %664 = vmatprep.subr.bf16.mxu0 0
        %665 = vmatpush1.bf16.msra.mxu0 %v614
        %666 = vmatprep.subr.bf16.mxu0 0
        %667 = vmatpush1.bf16.msra.mxu0 %v613
        %668 = vmatprep.subr.bf16.mxu0 0
        %669 = vmatpush2.bf16.msra.mxu0 0
        %670 = vmatprep.subr.bf16.mxu0 0
        %671 = vmatpush2.bf16.msra.mxu0 0
        %672 = vmatprep.subr.bf16.mxu0 0
        %673 = vmatpush2.bf16.msra.mxu0 0
        %674 = vmatprep.subr.bf16.mxu0 0
        %675 = vmatpush2.bf16.msra.mxu0 0
        %676 = vmatprep.subr.bf16.mxu0 0
        %677 = vmatpush2.bf16.msra.mxu0 0
        %678 = vmatprep.subr.bf16.mxu0 0
        %679 = vmatpush2.bf16.msra.mxu0 0
        %680 = vmatprep.subr.bf16.mxu0 0
        %681 = vmatpush2.bf16.msra.mxu0 0
        %682 = vmatprep.subr.bf16.mxu0 0
        %683 = vmatpush2.bf16.msra.mxu0 0
        %684 = vmatprep.mubr.bf16.mxu0 0
        %685 = vmatmul.mubr.bf16.gmra.mxu0 %v644
        %v686 = vpop.f32.mrf.mxu0
        %v687 = vadd.f32 %v626, %v686
        %v688 = vpop.f32.mrf.mxu0
        %v689 = vpop.f32.mrf.mxu0
        %v690 = vadd.f32 %v626, %v689
        %v691 = vpop.f32.mrf.mxu0
        %692 = vmatprep.mubr.bf16.mxu0 0
        %693 = vmatmul.mubr.bf16.gmra.mxu0 %v645
        %v694 = vpop.f32.mrf.mxu0
        %v695 = vadd.f32 %v626, %v694
        %v696 = vpop.f32.mrf.mxu0
        %v697 = vpop.f32.mrf.mxu0
        %v698 = vadd.f32 %v626, %v697
        %v699 = vpop.f32.mrf.mxu0
        %700 = vmatprep.mubr.bf16.mxu0 0
        %701 = vmatmul.mubr.bf16.gmra.mxu0 %v646
        %v702 = vpop.f32.mrf.mxu0
        %v703 = vadd.f32 %v626, %v702
        %v704 = vpop.f32.mrf.mxu0
        %v705 = vpop.f32.mrf.mxu0
        %v706 = vadd.f32 %v626, %v705
        %v707 = vpop.f32.mrf.mxu0
        %708 = vmatprep.mubr.bf16.mxu0 0
        %709 = vmatmul.mubr.bf16.gmra.mxu0 %v647
        %v710 = vpop.f32.mrf.mxu0
        %v711 = vadd.f32 %v626, %v710
        %v712 = vpop.f32.mrf.mxu0
        %v713 = vpop.f32.mrf.mxu0
        %v714 = vadd.f32 %v626, %v713
        %v715 = vpop.f32.mrf.mxu0
        %716 = vdwg.mxu0
        %717 = vst [vmem:[%s395] sm:$0xff] %v687
        %718 = vst [vmem:[%s395 + $0x8] sm:$0xff] %v690
        %719 = vst [vmem:[%s395 + $0x10] sm:$0xff] %v695
        %720 = vst [vmem:[%s395 + $0x18] sm:$0xff] %v698
        %721 = vst [vmem:[%s395 + $0x20] sm:$0xff] %v703
        %722 = vst [vmem:[%s395 + $0x28] sm:$0xff] %v706
        %723 = vst [vmem:[%s395 + $0x30] sm:$0xff] %v711
        %724 = vst [vmem:[%s395 + $0x38] sm:$0xff] %v714
        %s725 = sand.u32 %s179, 1
        %s726 = sand.u32 %s179, 1
        %s727 = smul.addr %s726, 64
        %s728 = scalar_lea.vmem [#allocation4], %s727
        // Predicated region
        $region83: #{fwd.21} parent=73 // pred_check
          %p729 = pneg %p189
        $region84: #{fwd.21} parent=73 // pred_check_branch
          %731 = sbr.rel (%p729) target = $region86
        $region85: #{fwd.21} parent=73 // pred_region
          %s732 = smul.u32 8, %s22
          %s733 = smul.addr %s732, 3
          %s734 = sadd.s32 %s23, %s733
          %s735 = smul.addr %s21, 24
          %s736 = sadd.s32 %s734, %s735
          %s737 = smul.addr %s736, 8
          %s738 = scalar_lea.vmem %s5, %s737
          // Predicated region
          $region87: #{fwd.21} parent=85 // pred_check
            _
          $region88: #{fwd.21} parent=85 // pred_check_branch
            %740 = sbr.rel (0) target = $region90
          $region89: #{fwd.21} parent=85 // pred_region
            // Predicated region
            $region91: #{fwd.21} parent=89 // pred_check
              _
            $region92: #{fwd.21} parent=89 // pred_check_branch
              %742 = sbr.rel (0) target = $region94
            $region93: #{fwd.21} parent=89 // pred_region
              // Predicated region
              $region106: #{fwd.21} parent=93 // pred_check
                _
              $region107: #{fwd.21} parent=93 // pred_check_branch
                %772 = sbr.rel (0) target = $region109
              $region108: #{fwd.21} parent=93 // pred_region
                loop: start=0, step=1, limit=1
                $region110: #{fwd.21} parent=108 // loop_pre_header
                  _
                $region111: #{fwd.21} parent=108 // loop_header
                  %s774 = sphi 0, %s778
                  %p775 = scmp.ge.s32.totalorder %s774, 1
                  %s779 = sphi %s728, %s728
                  %s780 = sphi %s738, %s738
                $region112: #{fwd.21} parent=108 // loop_header_branch
                  %777 = sbr.rel (%p775) target = $region116
                $region113: #{fwd.21} parent=108 // loop_body
                  %v781 = vld [vmem:[%s779] sm:$0xff]
                  %782 = vst [vmem:[%s780] sm:$0xff] %v781
                  %v783 = vld [vmem:[%s779 + $0x8] sm:$0xff]
                  %784 = vst [vmem:[%s780 + $0x18] sm:$0xff] %v783
                  %v785 = vld [vmem:[%s779 + $0x10] sm:$0xff]
                  %786 = vst [vmem:[%s780 + $0x30] sm:$0xff] %v785
                  %v787 = vld [vmem:[%s779 + $0x18] sm:$0xff]
                  %788 = vst [vmem:[%s780 + $0x48] sm:$0xff] %v787
                  %v789 = vld [vmem:[%s779 + $0x20] sm:$0xff]
                  %790 = vst [vmem:[%s780 + $0x60] sm:$0xff] %v789
                  %v791 = vld [vmem:[%s779 + $0x28] sm:$0xff]
                  %792 = vst [vmem:[%s780 + $0x78] sm:$0xff] %v791
                  %v793 = vld [vmem:[%s779 + $0x30] sm:$0xff]
                  %794 = vst [vmem:[%s780 + $0x90] sm:$0xff] %v793
                  %v795 = vld [vmem:[%s779 + $0x38] sm:$0xff]
                  %796 = vst [vmem:[%s780 + $0xa8] sm:$0xff] %v795
                $region114: #{fwd.21} parent=108 // loop_footer
                  %s778 = sadd.s32 1, %s774
                $region115: #{fwd.21} parent=108 // loop_footer_branch
                  %773 = sbr.rel target = $region111
                $region116: #{fwd.21} parent=108 // loop_exit
                  _
              $region109: #{fwd.21} parent=93 // pred_fallthru
                _
              // Predicated region
              $region117: #{fwd.21} parent=93 // pred_check
                _
              $region118: #{fwd.21} parent=93 // pred_check_branch
                %798 = sbr.rel target = $region120
              $region119: #{fwd.21} parent=93 // pred_region
                _
              $region120: #{fwd.21} parent=93 // pred_fallthru
                _
            $region94: #{fwd.21} parent=89 // pred_fallthru
              _
            // Predicated region
            $region95: #{fwd.21} parent=89 // pred_check
              _
            $region96: #{fwd.21} parent=89 // pred_check_branch
              %744 = sbr.rel target = $region98
            $region97: #{fwd.21} parent=89 // pred_region
              %s746 = ssub.s32 256, 1
              loop: start=0, step=1, limit=1
              $region99: #{fwd.21} parent=97 // loop_pre_header
                _
              $region100: #{fwd.21} parent=97 // loop_header
                %s748 = sphi 0, %s752
                %p749 = scmp.ge.s32.totalorder %s748, 1
                %s753 = sphi %s728, %s728
                %s754 = sphi %s738, %s738
              $region101: #{fwd.21} parent=97 // loop_header_branch
                %751 = sbr.rel (%p749) target = $region105
              $region102: #{fwd.21} parent=97 // loop_body
                %v755 = vld [vmem:[%s753] sm:%s746]
                %756 = vst [vmem:[%s754] sm:%s746] %v755
                %v757 = vld [vmem:[%s753 + $0x8] sm:%s746]
                %758 = vst [vmem:[%s754 + $0x18] sm:%s746] %v757
                %v759 = vld [vmem:[%s753 + $0x10] sm:%s746]
                %760 = vst [vmem:[%s754 + $0x30] sm:%s746] %v759
                %v761 = vld [vmem:[%s753 + $0x18] sm:%s746]
                %762 = vst [vmem:[%s754 + $0x48] sm:%s746] %v761
                %v763 = vld [vmem:[%s753 + $0x20] sm:%s746]
                %764 = vst [vmem:[%s754 + $0x60] sm:%s746] %v763
                %v765 = vld [vmem:[%s753 + $0x28] sm:%s746]
                %766 = vst [vmem:[%s754 + $0x78] sm:%s746] %v765
                %v767 = vld [vmem:[%s753 + $0x30] sm:%s746]
                %768 = vst [vmem:[%s754 + $0x90] sm:%s746] %v767
                %v769 = vld [vmem:[%s753 + $0x38] sm:%s746]
                %770 = vst [vmem:[%s754 + $0xa8] sm:%s746] %v769
              $region103: #{fwd.21} parent=97 // loop_footer
                %s752 = sadd.s32 1, %s748
              $region104: #{fwd.21} parent=97 // loop_footer_branch
                %747 = sbr.rel target = $region100
              $region105: #{fwd.21} parent=97 // loop_exit
                _
            $region98: #{fwd.21} parent=89 // pred_fallthru
              _
          $region90: #{fwd.21} parent=85 // pred_fallthru
            _
          %799 = vnop
        $region86: #{fwd.21} parent=73 // pred_fallthru
          _
      $region74: #{fwd.21} parent=5 // pred_fallthru
        _
      %p800 = scmp.le.s32.totalorder 2, %s11
      // Predicated region
      $region121: #{fwd.21} parent=5 // pred_check
        %p801 = pneg %p800
      $region122: #{fwd.21} parent=5 // pred_check_branch
        %803 = sbr.rel (%p801) target = $region124
      $region123: #{fwd.21} parent=5 // pred_region
        %s804 = ssub.s32 %s11, 2
        // Predicated region
        $region125: #{fwd.21} parent=123 // pred_check
          %p805 = pneg %p195
        $region126: #{fwd.21} parent=123 // pred_check_branch
          %807 = sbr.rel (%p805) target = $region128
        $region127: #{fwd.21} parent=123 // pred_region
          %s808 = sand.u32 %s180, 1
          %s809 = sand.u32 %s180, 1
          %s810 = smul.addr %s809, 64
          %s811 = scalar_lea.vmem [#allocation4], %s810
        $region128: #{fwd.21} parent=123 // pred_fallthru
          _
      $region124: #{fwd.21} parent=5 // pred_fallthru
        _
    $region6: #{fwd.21} parent=1 // loop_footer
      %s15 = sadd.s32 1, %s11
    $region7: #{fwd.21} parent=1 // loop_footer_branch
      %10 = sbr.rel target = $region3
    $region8: #{fwd.21} parent=1 // loop_exit
      _

// kernel: fwd.23
$region0: #{fwd.23}
  #allocation0 [shape = 'u32[]', space=smem, size = 0x4, offset = 0x4, fixed_abs, tag = 'smem constant byte address 0x4 - core index']
  #allocation1 [shape = 'u32[144,128]{1,0:T(1,128)}', space=vmem, size = 0x12000, scoped, tag = 'internal scratch']
  #allocation2 [shape = 'f32[64,128]{1,0:T(8,128)}', space=vmem, size = 0x8000, scoped, tag = 'scratch operand']
  %s0 = inlined_call_operand.vmem [shape: f32[2,64,128], index: 0, kind: input, shape index: {}]
  %s1 = inlined_call_operand.vmem [shape: f32[128,128], index: 1, kind: input, shape index: {}]
  %s2 = inlined_call_operand.vmem [shape: f32[1,128], index: 2, kind: input, shape index: {}]
  %s3 = inlined_call_operand.vmem [shape: f32[2,1,128], index: 3, kind: input, shape index: {}]
  %s4 = inlined_call_operand.vmem [shape: f32[2,64,128], index: 4, kind: input, shape index: {}]
  %s5 = inlined_call_operand.vmem [shape: f32[2,64,128], index: 5, kind: output, shape index: {}]
  %s6 = sld [smem:[#allocation0]]
  $region61: #{fwd.23} parent=0
    _
  %s8 = ssub.s32 1, %s6
  %s9 = scalar_select 0, %s8, %s6
  loop: start=0, step=1, limit=4
  $region2: #{fwd.23} parent=0 // loop_pre_header
    _
  $region3: #{fwd.23} parent=0 // loop_header
    %s11 = sphi 0, %s15
    %p12 = scmp.ge.s32.totalorder %s11, 4
    %s18 = sphi 0, %s44
    %s19 = sphi 0, %s40
    %s20 = sphi 0, %s36
    %s21 = sphi 0, %s32
    %s22 = sphi 0, %s18
    %s23 = sphi 0, %s19
    %s24 = sphi 0, %s20
    %s25 = sphi 0, %s21
    %s26 = sphi 0, %s22
    %s27 = sphi 0, %s23
    %s28 = sphi 0, %s24
    %s29 = sphi 0, %s25
    %s51 = sphi 0, %s53
    %s54 = sphi 0, %s51
    %s55 = sphi 0, %s54
    %s71 = sphi 0, %s55
    %s79 = sphi 0, %s81
    %s82 = sphi 0, %s79
    %s83 = sphi 0, %s82
    %s99 = sphi 0, %s83
    %s105 = sphi 0, %s107
    %s108 = sphi 0, %s105
    %s109 = sphi 0, %s108
    %s125 = sphi 0, %s109
    %s133 = sphi 0, %s135
    %s136 = sphi 0, %s133
    %s137 = sphi 0, %s136
    %s153 = sphi 0, %s137
    %s163 = sphi 0, %s165
    %s166 = sphi 0, %s163
    %s167 = sphi 0, %s166
    %s183 = sphi 0, %s167
    %s193 = sphi 0, %s195
    %s196 = sphi 0, %s193
    %s197 = sphi 0, %s196
    %s213 = sphi 0, %s197
  $region4: #{fwd.23} parent=0 // loop_header_branch
    %14 = sbr.rel (%p12) target = $region8
  $region5: #{fwd.23} parent=0 // loop_body
    %s16 = ssub.s32 %s11, 1
    %s17 = ssub.s32 %s11, 2
    %s30 = sadd.s32 1, %s21
    %p31 = scmp.ge.s32.totalorder %s30, 1
    %s32 = scalar_select %p31, 0, %s30
    %s33 = sadd.s32 1, %s20
    %s34 = scalar_select %p31, %s33, %s20
    %p35 = scmp.ge.s32.totalorder %s34, 1
    %s36 = scalar_select %p35, 0, %s34
    %s37 = sadd.s32 1, %s19
    %s38 = scalar_select %p35, %s37, %s19
    %p39 = scmp.ge.s32.totalorder %s38, 1
    %s40 = scalar_select %p39, 0, %s38
    %s41 = sadd.s32 1, %s18
    %s42 = scalar_select %p39, %s41, %s18
    %p43 = scmp.ge.s32.totalorder %s42, 2
    %s44 = scalar_select %p43, 0, %s42
    %s45 = ssub.s32 %s18, %s44
    %s46 = ssub.s32 %s19, %s40
    %s47 = sor.u32 %s45, %s46
    %s48 = ssub.s32 %s21, %s32
    %s49 = sor.u32 %s47, %s48
    %p50 = scmp.eq.s32.totalorder %s49, 0
    %s52 = sadd.s32 %s51, 1
    %s53 = scalar_select %p50, %s51, %s52
    %p56 = pneg %p50
    %p57 = scmp.eq.s32.totalorder %s11, 1
    %p58 = por %p56, %p57
    %p59 = scmp.ne.s32.totalorder %s51, %s54
    %p60 = scmp.eq.s32.totalorder %s11, 0
    %p61 = por %p59, %p60
    %p62 = scmp.ne.s32.totalorder %s51, %s54
    %p63 = scmp.eq.s32.totalorder %s16, 1
    %p64 = por %p62, %p63
    %p65 = scmp.ne.s32.totalorder %s54, %s55
    %p66 = scmp.eq.s32.totalorder %s16, 0
    %p67 = por %p65, %p66
    %p68 = scmp.ne.s32.totalorder %s54, %s55
    %p69 = scmp.eq.s32.totalorder %s17, 1
    %p70 = por %p68, %p69
    %p72 = scmp.ne.s32.totalorder %s55, %s71
    %p73 = scmp.eq.s32.totalorder %s17, 0
    %p74 = por %p72, %p73
    %s75 = ssub.s32 %s21, %s32
    %s76 = ssub.s32 %s20, %s36
    %s77 = sor.u32 %s75, %s76
    %p78 = scmp.eq.s32.totalorder %s77, 0
    %s80 = sadd.s32 %s79, 1
    %s81 = scalar_select %p78, %s79, %s80
    %p84 = pneg %p78
    %p85 = scmp.eq.s32.totalorder %s11, 1
    %p86 = por %p84, %p85
    %p87 = scmp.ne.s32.totalorder %s79, %s82
    %p88 = scmp.eq.s32.totalorder %s11, 0
    %p89 = por %p87, %p88
    %p90 = scmp.ne.s32.totalorder %s79, %s82
    %p91 = scmp.eq.s32.totalorder %s16, 1
    %p92 = por %p90, %p91
    %p93 = scmp.ne.s32.totalorder %s82, %s83
    %p94 = scmp.eq.s32.totalorder %s16, 0
    %p95 = por %p93, %p94
    %p96 = scmp.ne.s32.totalorder %s82, %s83
    %p97 = scmp.eq.s32.totalorder %s17, 1
    %p98 = por %p96, %p97
    %p100 = scmp.ne.s32.totalorder %s83, %s99
    %p101 = scmp.eq.s32.totalorder %s17, 0
    %p102 = por %p100, %p101
    %s103 = ssub.s32 %s20, %s36
    %p104 = scmp.eq.s32.totalorder %s103, 0
    %s106 = sadd.s32 %s105, 1
    %s107 = scalar_select %p104, %s105, %s106
    %p110 = pneg %p104
    %p111 = scmp.eq.s32.totalorder %s11, 1
    %p112 = por %p110, %p111
    %p113 = scmp.ne.s32.totalorder %s105, %s108
    %p114 = scmp.eq.s32.totalorder %s11, 0
    %p115 = por %p113, %p114
    %p116 = scmp.ne.s32.totalorder %s105, %s108
    %p117 = scmp.eq.s32.totalorder %s16, 1
    %p118 = por %p116, %p117
    %p119 = scmp.ne.s32.totalorder %s108, %s109
    %p120 = scmp.eq.s32.totalorder %s16, 0
    %p121 = por %p119, %p120
    %p122 = scmp.ne.s32.totalorder %s108, %s109
    %p123 = scmp.eq.s32.totalorder %s17, 1
    %p124 = por %p122, %p123
    %p126 = scmp.ne.s32.totalorder %s109, %s125
    %p127 = scmp.eq.s32.totalorder %s17, 0
    %p128 = por %p126, %p127
    %s129 = ssub.s32 %s18, %s44
    %s130 = ssub.s32 %s20, %s36
    %s131 = sor.u32 %s129, %s130
    %p132 = scmp.eq.s32.totalorder %s131, 0
    %s134 = sadd.s32 %s133, 1
    %s135 = scalar_select %p132, %s133, %s134
    %p138 = pneg %p132
    %p139 = scmp.eq.s32.totalorder %s11, 1
    %p140 = por %p138, %p139
    %p141 = scmp.ne.s32.totalorder %s133, %s136
    %p142 = scmp.eq.s32.totalorder %s11, 0
    %p143 = por %p141, %p142
    %p144 = scmp.ne.s32.totalorder %s133, %s136
    %p145 = scmp.eq.s32.totalorder %s16, 1
    %p146 = por %p144, %p145
    %p147 = scmp.ne.s32.totalorder %s136, %s137
    %p148 = scmp.eq.s32.totalorder %s16, 0
    %p149 = por %p147, %p148
    %p150 = scmp.ne.s32.totalorder %s136, %s137
    %p151 = scmp.eq.s32.totalorder %s17, 1
    %p152 = por %p150, %p151
    %p154 = scmp.ne.s32.totalorder %s137, %s153
    %p155 = scmp.eq.s32.totalorder %s17, 0
    %p156 = por %p154, %p155
    %s157 = ssub.s32 %s18, %s44
    %s158 = ssub.s32 %s19, %s40
    %s159 = sor.u32 %s157, %s158
    %s160 = ssub.s32 %s20, %s36
    %s161 = sor.u32 %s159, %s160
    %p162 = scmp.eq.s32.totalorder %s161, 0
    %s164 = sadd.s32 %s163, 1
    %s165 = scalar_select %p162, %s163, %s164
    %p168 = pneg %p162
    %p169 = scmp.eq.s32.totalorder %s11, 1
    %p170 = por %p168, %p169
    %p171 = scmp.ne.s32.totalorder %s163, %s166
    %p172 = scmp.eq.s32.totalorder %s11, 0
    %p173 = por %p171, %p172
    %p174 = scmp.ne.s32.totalorder %s163, %s166
    %p175 = scmp.eq.s32.totalorder %s16, 1
    %p176 = por %p174, %p175
    %p177 = scmp.ne.s32.totalorder %s166, %s167
    %p178 = scmp.eq.s32.totalorder %s16, 0
    %p179 = por %p177, %p178
    %p180 = scmp.ne.s32.totalorder %s166, %s167
    %p181 = scmp.eq.s32.totalorder %s17, 1
    %p182 = por %p180, %p181
    %p184 = scmp.ne.s32.totalorder %s167, %s183
    %p185 = scmp.eq.s32.totalorder %s17, 0
    %p186 = por %p184, %p185
    %s187 = ssub.s32 %s18, %s44
    %s188 = ssub.s32 %s19, %s40
    %s189 = sor.u32 %s187, %s188
    %s190 = ssub.s32 %s20, %s36
    %s191 = sor.u32 %s189, %s190
    %p192 = scmp.eq.s32.totalorder %s191, 0
    %s194 = sadd.s32 %s193, 1
    %s195 = scalar_select %p192, %s193, %s194
    %p198 = pneg %p192
    %p199 = scmp.eq.s32.totalorder %s11, 1
    %p200 = por %p198, %p199
    %p201 = scmp.ne.s32.totalorder %s193, %s196
    %p202 = scmp.eq.s32.totalorder %s11, 0
    %p203 = por %p201, %p202
    %p204 = scmp.ne.s32.totalorder %s193, %s196
    %p205 = scmp.eq.s32.totalorder %s16, 1
    %p206 = por %p204, %p205
    %p207 = scmp.ne.s32.totalorder %s196, %s197
    %p208 = scmp.eq.s32.totalorder %s16, 0
    %p209 = por %p207, %p208
    %p210 = scmp.ne.s32.totalorder %s196, %s197
    %p211 = scmp.eq.s32.totalorder %s17, 1
    %p212 = por %p210, %p211
    %p214 = scmp.ne.s32.totalorder %s197, %s213
    %p215 = scmp.eq.s32.totalorder %s17, 0
    %p216 = por %p214, %p215
    %p217 = scmp.le.s32.totalorder 1, %s11
    %p218 = scmp.lt.s32.totalorder %s11, 3
    %p219 = pnand %p217, %p218
    %p220 = pneg %p219
    // Predicated region
    $region9: #{fwd.23} parent=5 // pred_check
      _
    $region10: #{fwd.23} parent=5 // pred_check_branch
      %222 = sbr.rel (%p219) target = $region12
    $region11: #{fwd.23} parent=5 // pred_region
      %s223 = ssub.s32 %s11, 1
      // Predicated region
      $region13: #{fwd.23} parent=11 // pred_check
        %p224 = pneg %p95
      $region14: #{fwd.23} parent=11 // pred_check_branch
        %226 = sbr.rel (%p224) target = $region16
      $region15: #{fwd.23} parent=11 // pred_region
        %s227 = smul.u32 16, %s25
        %p228 = scmp.lt.s32.totalorder %s227, 15
        %s229 = scalar_select %p228, %s227, 15
        %p230 = scmp.lt.s32.totalorder %s24, 0
        %s231 = scalar_select %p230, %s24, 0
        %s232 = sadd.s32 %s231, %s229
        %s233 = smul.addr %s232, 8
        %s234 = scalar_lea.vmem %s1, %s233
        %s235 = smul.u32 16, %s25
      $region16: #{fwd.23} parent=11 // pred_fallthru
        _
      // Predicated region
      $region17: #{fwd.23} parent=11 // pred_check
        %p236 = pneg %p121
      $region18: #{fwd.23} parent=11 // pred_check_branch
        %238 = sbr.rel (%p236) target = $region20
      $region19: #{fwd.23} parent=11 // pred_region
        %p239 = scmp.lt.s32.totalorder %s24, 0
        %s240 = scalar_select %p239, %s24, 0
        %s241 = scalar_lea.vmem %s2, %s240
      $region20: #{fwd.23} parent=11 // pred_fallthru
        _
    $region12: #{fwd.23} parent=5 // pred_fallthru
      _
    %p242 = scmp.lt.s32.totalorder %s11, 2
    // Predicated region
    $region21: #{fwd.23} parent=5 // pred_check
      %p243 = pneg %p242
    $region22: #{fwd.23} parent=5 // pred_check_branch
      %245 = sbr.rel (%p243) target = $region24
    $region23: #{fwd.23} parent=5 // pred_region
      // Predicated region
      $region25: #{fwd.23} parent=23 // pred_check
        %p246 = pneg %p61
      $region26: #{fwd.23} parent=23 // pred_check_branch
        %248 = sbr.rel (%p246) target = $region28
      $region27: #{fwd.23} parent=23 // pred_region
        %s249 = smul.u32 8, %s19
        %p250 = scmp.lt.s32.totalorder %s18, 1
        %s251 = scalar_select %p250, %s18, 1
        %p252 = scmp.lt.s32.totalorder %s249, 7
        %s253 = scalar_select %p252, %s249, 7
        %p254 = scmp.lt.s32.totalorder %s21, 0
        %s255 = scalar_select %p254, %s21, 0
        %s256 = sadd.s32 %s255, %s253
        %s257 = smul.addr %s251, 8
        %s258 = sadd.s32 %s256, %s257
        %s259 = smul.addr %s258, 8
        %s260 = scalar_lea.vmem %s0, %s259
        %s261 = smul.u32 8, %s19
      $region28: #{fwd.23} parent=23 // pred_fallthru
        _
      // Predicated region
      $region29: #{fwd.23} parent=23 // pred_check
        %p262 = pneg %p143
      $region30: #{fwd.23} parent=23 // pred_check_branch
        %264 = sbr.rel (%p262) target = $region32
      $region31: #{fwd.23} parent=23 // pred_region
        %p265 = scmp.lt.s32.totalorder %s18, 1
        %s266 = scalar_select %p265, %s18, 1
        %p267 = scmp.lt.s32.totalorder %s20, 0
        %s268 = scalar_select %p267, %s20, 0
        %s269 = sadd.s32 %s268, %s266
        %s270 = scalar_lea.vmem %s3, %s269
      $region32: #{fwd.23} parent=23 // pred_fallthru
        _
      // Predicated region
      $region33: #{fwd.23} parent=23 // pred_check
        %p271 = pneg %p173
      $region34: #{fwd.23} parent=23 // pred_check_branch
        %273 = sbr.rel (%p271) target = $region36
      $region35: #{fwd.23} parent=23 // pred_region
        %s274 = smul.u32 8, %s19
        %p275 = scmp.lt.s32.totalorder %s18, 1
        %s276 = scalar_select %p275, %s18, 1
        %p277 = scmp.lt.s32.totalorder %s274, 7
        %s278 = scalar_select %p277, %s274, 7
        %p279 = scmp.lt.s32.totalorder %s20, 0
        %s280 = scalar_select %p279, %s20, 0
        %s281 = sadd.s32 %s280, %s278
        %s282 = smul.addr %s276, 8
        %s283 = sadd.s32 %s281, %s282
        %s284 = smul.addr %s283, 8
        %s285 = scalar_lea.vmem %s4, %s284
        %s286 = smul.u32 8, %s19
      $region36: #{fwd.23} parent=23 // pred_fallthru
        _
    $region24: #{fwd.23} parent=5 // pred_fallthru
      _
    %p287 = scmp.le.s32.totalorder 1, %s11
    %p288 = scmp.lt.s32.totalorder %s11, 3
    %p289 = pnand %p287, %p288
    %p290 = pneg %p289
    // Predicated region
    $region37: #{fwd.23} parent=5 // pred_check
      _
    $region38: #{fwd.23} parent=5 // pred_check_branch
      %292 = sbr.rel (%p289) target = $region40
    $region39: #{fwd.23} parent=5 // pred_region
      %s293 = ssub.s32 %s11, 1
      %s294 = smul.u32 8, %s23
      %p295 = scmp.lt.s32.totalorder %s22, 1
      %s296 = scalar_select %p295, %s22, 1
      %p297 = scmp.lt.s32.totalorder %s294, 7
      %s298 = scalar_select %p297, %s294, 7
      %p299 = scmp.lt.s32.totalorder %s25, 0
      %s300 = scalar_select %p299, %s25, 0
      %s301 = sadd.s32 %s300, %s298
      %s302 = smul.addr %s296, 8
      %s303 = sadd.s32 %s301, %s302
      %s304 = smul.addr %s303, 8
      %s305 = scalar_lea.vmem %s0, %s304
      %p306 = pneg %p67
      %p307 = pneg %p64
      %s308 = smul.u32 16, %s25
      %p309 = scmp.lt.s32.totalorder %s308, 15
      %s310 = scalar_select %p309, %s308, 15
      %p311 = scmp.lt.s32.totalorder %s24, 0
      %s312 = scalar_select %p311, %s24, 0
      %s313 = sadd.s32 %s312, %s310
      %s314 = smul.addr %s313, 8
      %s315 = scalar_lea.vmem %s1, %s314
      %p316 = pneg %p95
      %p317 = pneg %p92
      %p318 = scmp.lt.s32.totalorder %s24, 0
      %s319 = scalar_select %p318, %s24, 0
      %s320 = scalar_lea.vmem %s2, %s319
      %p321 = pneg %p121
      %p322 = pneg %p118
      %p323 = scmp.lt.s32.totalorder %s22, 1
      %s324 = scalar_select %p323, %s22, 1
      %p325 = scmp.lt.s32.totalorder %s24, 0
      %s326 = scalar_select %p325, %s24, 0
      %s327 = sadd.s32 %s326, %s324
      %s328 = scalar_lea.vmem %s3, %s327
      %p329 = pneg %p149
      %p330 = pneg %p146
      %s331 = smul.u32 8, %s23
      %p332 = scmp.lt.s32.totalorder %s22, 1
      %s333 = scalar_select %p332, %s22, 1
      %p334 = scmp.lt.s32.totalorder %s331, 7
      %s335 = scalar_select %p334, %s331, 7
      %p336 = scmp.lt.s32.totalorder %s24, 0
      %s337 = scalar_select %p336, %s24, 0
      %s338 = sadd.s32 %s337, %s335
      %s339 = smul.addr %s333, 8
      %s340 = sadd.s32 %s338, %s339
      %s341 = smul.addr %s340, 8
      %s342 = scalar_lea.vmem %s4, %s341
      %p343 = pneg %p179
      %p344 = pneg %p176
      %p345 = pneg %p209
      %p346 = pneg %p206
      %s347 = smul.u32 8, %s23
      %p348 = scmp.lt.s32.totalorder %s22, 1
      %s349 = scalar_select %p348, %s22, 1
      %p350 = scmp.lt.s32.totalorder %s347, 7
      %s351 = scalar_select %p350, %s347, 7
      %p352 = scmp.lt.s32.totalorder %s24, 0
      %s353 = scalar_select %p352, %s24, 0
      %s354 = sadd.s32 %s353, %s351
      %s355 = smul.addr %s349, 8
      %s356 = sadd.s32 %s354, %s355
      %s357 = smul.addr %s356, 8
      %s358 = scalar_lea.vmem %s5, %s357
      %s359 = smul.u32 8, %s23
      %p360 = scmp.lt.s32.totalorder %s22, 1
      %s361 = scalar_select %p360, %s22, 1
      %p362 = scmp.lt.s32.totalorder %s359, 7
      %s363 = scalar_select %p362, %s359, 7
      %p364 = scmp.lt.s32.totalorder %s25, 0
      %s365 = scalar_select %p364, %s25, 0
      %s366 = sadd.s32 %s365, %s363
      %s367 = smul.addr %s361, 8
      %s368 = sadd.s32 %s366, %s367
      %s369 = smul.addr %s368, 8
      %s370 = scalar_lea.vmem %s0, %s369
      %s371 = smul.u32 8, %s23
      %s372 = smul.u32 16, %s25
      %p373 = scmp.lt.s32.totalorder %s372, 15
      %s374 = scalar_select %p373, %s372, 15
      %p375 = scmp.lt.s32.totalorder %s24, 0
      %s376 = scalar_select %p375, %s24, 0
      %s377 = sadd.s32 %s376, %s374
      %s378 = smul.addr %s377, 8
      %s379 = scalar_lea.vmem %s1, %s378
      %s380 = smul.u32 16, %s25
      %p381 = scmp.lt.s32.totalorder %s24, 0
      %s382 = scalar_select %p381, %s24, 0
      %s383 = scalar_lea.vmem %s2, %s382
      %p384 = scmp.lt.s32.totalorder %s22, 1
      %s385 = scalar_select %p384, %s22, 1
      %p386 = scmp.lt.s32.totalorder %s24, 0
      %s387 = scalar_select %p386, %s24, 0
      %s388 = sadd.s32 %s387, %s385
      %s389 = scalar_lea.vmem %s3, %s388
      %s390 = smul.u32 8, %s23
      %p391 = scmp.lt.s32.totalorder %s22, 1
      %s392 = scalar_select %p391, %s22, 1
      %p393 = scmp.lt.s32.totalorder %s390, 7
      %s394 = scalar_select %p393, %s390, 7
      %p395 = scmp.lt.s32.totalorder %s24, 0
      %s396 = scalar_select %p395, %s24, 0
      %s397 = sadd.s32 %s396, %s394
      %s398 = smul.addr %s392, 8
      %s399 = sadd.s32 %s397, %s398
      %s400 = smul.addr %s399, 8
      %s401 = scalar_lea.vmem %s4, %s400
      %s402 = smul.u32 8, %s23
      %s403 = smul.u32 8, %s23
      %p404 = scmp.lt.s32.totalorder %s22, 1
      %s405 = scalar_select %p404, %s22, 1
      %p406 = scmp.lt.s32.totalorder %s403, 7
      %s407 = scalar_select %p406, %s403, 7
      %p408 = scmp.lt.s32.totalorder %s24, 0
      %s409 = scalar_select %p408, %s24, 0
      %s410 = sadd.s32 %s409, %s407
      %s411 = smul.addr %s405, 8
      %s412 = sadd.s32 %s410, %s411
      %s413 = smul.addr %s412, 8
      %s414 = scalar_lea.vmem %s5, %s413
      %s415 = smul.u32 8, %s23
      %p417 = scmp.eq.s32.totalorder %s25, 0
      // Predicated region
      $region41: #{fwd.23} parent=39 // pred_check
        %p418 = pneg %p417
      $region42: #{fwd.23} parent=39 // pred_check_branch
        %420 = sbr.rel (%p418) target = $region44
      $region43: #{fwd.23} parent=39 // pred_region
        %421 = vst [vmem:[#allocation2] sm:$0xff] 0.0
        %422 = vst [vmem:[#allocation2 + $0x8] sm:$0xff] 0.0
        %423 = vst [vmem:[#allocation2 + $0x10] sm:$0xff] 0.0
        %424 = vst [vmem:[#allocation2 + $0x18] sm:$0xff] 0.0
        %425 = vst [vmem:[#allocation2 + $0x20] sm:$0xff] 0.0
        %426 = vst [vmem:[#allocation2 + $0x28] sm:$0xff] 0.0
        %427 = vst [vmem:[#allocation2 + $0x30] sm:$0xff] 0.0
        %428 = vst [vmem:[#allocation2 + $0x38] sm:$0xff] 0.0
      $region44: #{fwd.23} parent=39 // pred_fallthru
        _
      %v429 = vld [vmem:[#allocation2] sm:$0xff]
      %v430 = vld [vmem:[#allocation2 + $0x8] sm:$0xff]
      %v431 = vld [vmem:[#allocation2 + $0x10] sm:$0xff]
      %v432 = vld [vmem:[#allocation2 + $0x18] sm:$0xff]
      %v433 = vld [vmem:[#allocation2 + $0x20] sm:$0xff]
      %v434 = vld [vmem:[#allocation2 + $0x28] sm:$0xff]
      %v435 = vld [vmem:[#allocation2 + $0x30] sm:$0xff]
      %v436 = vld [vmem:[#allocation2 + $0x38] sm:$0xff]
      %v437 = vld [vmem:[%s370] sm:$0xff]
      %v438 = vld [vmem:[%s370 + $0x8] sm:$0xff]
      %v439 = vld [vmem:[%s370 + $0x10] sm:$0xff]
      %v440 = vld [vmem:[%s370 + $0x18] sm:$0xff]
      %v441 = vld [vmem:[%s370 + $0x20] sm:$0xff]
      %v442 = vld [vmem:[%s370 + $0x28] sm:$0xff]
      %v443 = vld [vmem:[%s370 + $0x30] sm:$0xff]
      %v444 = vld [vmem:[%s370 + $0x38] sm:$0xff]
      %v445 = vpack.c.bf16 %v438, %v437
      %v446 = vpack.c.bf16 %v440, %v439
      %v447 = vpack.c.bf16 %v442, %v441
      %v448 = vpack.c.bf16 %v444, %v443
      %v449 = vld [vmem:[%s379] sm:$0xff]
      %v450 = vld [vmem:[%s379 + $0x8] sm:$0xff]
      %v451 = vld [vmem:[%s379 + $0x10] sm:$0xff]
      %v452 = vld [vmem:[%s379 + $0x18] sm:$0xff]
      %v453 = vld [vmem:[%s379 + $0x20] sm:$0xff]
      %v454 = vld [vmem:[%s379 + $0x28] sm:$0xff]
      %v455 = vld [vmem:[%s379 + $0x30] sm:$0xff]
      %v456 = vld [vmem:[%s379 + $0x38] sm:$0xff]
      %v457 = vld [vmem:[%s379 + $0x40] sm:$0xff]
      %v458 = vld [vmem:[%s379 + $0x48] sm:$0xff]
      %v459 = vld [vmem:[%s379 + $0x50] sm:$0xff]
      %v460 = vld [vmem:[%s379 + $0x58] sm:$0xff]
      %v461 = vld [vmem:[%s379 + $0x60] sm:$0xff]
      %v462 = vld [vmem:[%s379 + $0x68] sm:$0xff]
      %v463 = vld [vmem:[%s379 + $0x70] sm:$0xff]
      %v464 = vld [vmem:[%s379 + $0x78] sm:$0xff]
      %v465 = vpack.c.bf16 %v450, %v449
      %v466 = vpack.c.bf16 %v452, %v451
      %v467 = vpack.c.bf16 %v454, %v453
      %v468 = vpack.c.bf16 %v456, %v455
      %v469 = vpack.c.bf16 %v458, %v457
      %v470 = vpack.c.bf16 %v460, %v459
      %v471 = vpack.c.bf16 %v462, %v461
      %v472 = vpack.c.bf16 %v464, %v463
      %473 = vmatprep.subr.bf16.mxu0 0
      %474 = vmatpush1.bf16.msra.mxu0 %v472
      %475 = vmatprep.subr.bf16.mxu0 0
      %476 = vmatpush1.bf16.msra.mxu0 %v471
      %477 = vmatprep.subr.bf16.mxu0 0
      %478 = vmatpush1.bf16.msra.mxu0 %v470
      %479 = vmatprep.subr.bf16.mxu0 0
      %480 = vmatpush1.bf16.msra.mxu0 %v469
      %481 = vmatprep.subr.bf16.mxu0 0
      %482 = vmatpush1.bf16.msra.mxu0 %v468
      %483 = vmatprep.subr.bf16.mxu0 0
      %484 = vmatpush1.bf16.msra.mxu0 %v467
      %485 = vmatprep.subr.bf16.mxu0 0
      %486 = vmatpush1.bf16.msra.mxu0 %v466
      %487 = vmatprep.subr.bf16.mxu0 0
      %488 = vmatpush1.bf16.msra.mxu0 %v465
      %489 = vmatprep.subr.bf16.mxu0 0
      %490 = vmatpush2.bf16.msra.mxu0 0
      %491 = vmatprep.subr.bf16.mxu0 0
      %492 = vmatpush2.bf16.msra.mxu0 0
      %493 = vmatprep.subr.bf16.mxu0 0
      %494 = vmatpush2.bf16.msra.mxu0 0
      %495 = vmatprep.subr.bf16.mxu0 0
      %496 = vmatpush2.bf16.msra.mxu0 0
      %497 = vmatprep.subr.bf16.mxu0 0
      %498 = vmatpush2.bf16.msra.mxu0 0
      %499 = vmatprep.subr.bf16.mxu0 0
      %500 = vmatpush2.bf16.msra.mxu0 0
      %501 = vmatprep.subr.bf16.mxu0 0
      %502 = vmatpush2.bf16.msra.mxu0 0
      %503 = vmatprep.subr.bf16.mxu0 0
      %504 = vmatpush2.bf16.msra.mxu0 0
      %505 = vmatprep.mubr.bf16.mxu0 0
      %506 = vmatmul.mubr.bf16.gmra.mxu0 %v445
      %v507 = vpop.f32.mrf.mxu0
      %v508 = vadd.f32 0.0, %v507
      %v509 = vpop.f32.mrf.mxu0
      %v510 = vpop.f32.mrf.mxu0
      %v511 = vadd.f32 0.0, %v510
      %v512 = vpop.f32.mrf.mxu0
      %513 = vmatprep.mubr.bf16.mxu0 0
      %514 = vmatmul.mubr.bf16.gmra.mxu0 %v446
      %v515 = vpop.f32.mrf.mxu0
      %v516 = vadd.f32 0.0, %v515
      %v517 = vpop.f32.mrf.mxu0
      %v518 = vpop.f32.mrf.mxu0
      %v519 = vadd.f32 0.0, %v518
      %v520 = vpop.f32.mrf.mxu0
      %521 = vmatprep.mubr.bf16.mxu0 0
      %522 = vmatmul.mubr.bf16.gmra.mxu0 %v447
      %v523 = vpop.f32.mrf.mxu0
      %v524 = vadd.f32 0.0, %v523
      %v525 = vpop.f32.mrf.mxu0
      %v526 = vpop.f32.mrf.mxu0
      %v527 = vadd.f32 0.0, %v526
      %v528 = vpop.f32.mrf.mxu0
      %529 = vmatprep.mubr.bf16.mxu0 0
      %530 = vmatmul.mubr.bf16.gmra.mxu0 %v448
      %v531 = vpop.f32.mrf.mxu0
      %v532 = vadd.f32 0.0, %v531
      %v533 = vpop.f32.mrf.mxu0
      %v534 = vpop.f32.mrf.mxu0
      %v535 = vadd.f32 0.0, %v534
      %v536 = vpop.f32.mrf.mxu0
      %537 = vdwg.mxu0
      %v538 = vadd.f32 %v429, %v508
      %v539 = vadd.f32 %v430, %v511
      %v540 = vadd.f32 %v431, %v516
      %v541 = vadd.f32 %v432, %v519
      %v542 = vadd.f32 %v433, %v524
      %v543 = vadd.f32 %v434, %v527
      %v544 = vadd.f32 %v435, %v532
      %v545 = vadd.f32 %v436, %v535
      %546 = vst [vmem:[#allocation2] sm:$0xff] %v538
      %547 = vst [vmem:[#allocation2 + $0x8] sm:$0xff] %v539
      %548 = vst [vmem:[#allocation2 + $0x10] sm:$0xff] %v540
      %549 = vst [vmem:[#allocation2 + $0x18] sm:$0xff] %v541
      %550 = vst [vmem:[#allocation2 + $0x20] sm:$0xff] %v542
      %551 = vst [vmem:[#allocation2 + $0x28] sm:$0xff] %v543
      %552 = vst [vmem:[#allocation2 + $0x30] sm:$0xff] %v544
      %553 = vst [vmem:[#allocation2 + $0x38] sm:$0xff] %v545
      // Predicated region
      $region45: #{fwd.23} parent=39 // pred_check
        %p554 = pneg %p417
      $region46: #{fwd.23} parent=39 // pred_check_branch
        %556 = sbr.rel (%p554) target = $region48
      $region47: #{fwd.23} parent=39 // pred_region
        %v557 = vld [vmem:[%s401] sm:$0xff]
        %v558 = vld [vmem:[%s401 + $0x8] sm:$0xff]
        %v559 = vld [vmem:[%s401 + $0x10] sm:$0xff]
        %v560 = vld [vmem:[%s401 + $0x18] sm:$0xff]
        %v561 = vld [vmem:[%s401 + $0x20] sm:$0xff]
        %v562 = vld [vmem:[%s401 + $0x28] sm:$0xff]
        %v563 = vld [vmem:[%s401 + $0x30] sm:$0xff]
        %v564 = vld [vmem:[%s401 + $0x38] sm:$0xff]
        %v565 = vld [vmem:[%s389] sm:$0x1]
        %v566 = vld [vmem:[#allocation2] sm:$0xff]
        %v567 = vld [vmem:[#allocation2 + $0x8] sm:$0xff]
        %v568 = vld [vmem:[#allocation2 + $0x10] sm:$0xff]
        %v569 = vld [vmem:[#allocation2 + $0x18] sm:$0xff]
        %v570 = vld [vmem:[#allocation2 + $0x20] sm:$0xff]
        %v571 = vld [vmem:[#allocation2 + $0x28] sm:$0xff]
        %v572 = vld [vmem:[#allocation2 + $0x30] sm:$0xff]
        %v573 = vld [vmem:[#allocation2 + $0x38] sm:$0xff]
        %v574 = vld [vmem:[%s383] sm:$0x1]
        %v576 = vlaneseq
        %v577 = vshrl.u32 %v576, 7
        %v578 = vsub.s32 0, %v577
        %v579 = vrot.slane %v574, %v578
        %v581 = vadd.f32 %v566, %v579
        %v582 = vadd.f32 %v567, %v579
        %v583 = vadd.f32 %v568, %v579
        %v584 = vadd.f32 %v569, %v579
        %v585 = vadd.f32 %v570, %v579
        %v586 = vadd.f32 %v571, %v579
        %v587 = vadd.f32 %v572, %v579
        %v588 = vadd.f32 %v573, %v579
        %v590 = vlaneseq
        %v591 = vshrl.u32 %v590, 7
        %v592 = vsub.s32 0, %v591
        %v593 = vrot.slane %v565, %v592
        %v595 = vmul.f32 %v593, %v581
        %v596 = vmul.f32 %v593, %v582
        %v597 = vmul.f32 %v593, %v583
        %v598 = vmul.f32 %v593, %v584
        %v599 = vmul.f32 %v593, %v585
        %v600 = vmul.f32 %v593, %v586
        %v601 = vmul.f32 %v593, %v587
        %v602 = vmul.f32 %v593, %v588
        %v603 = vadd.f32 %v557, %v595
        %v604 = vadd.f32 %v558, %v596
        %v605 = vadd.f32 %v559, %v597
        %v606 = vadd.f32 %v560, %v598
        %v607 = vadd.f32 %v561, %v599
        %v608 = vadd.f32 %v562, %v600
        %v609 = vadd.f32 %v563, %v601
        %v610 = vadd.f32 %v564, %v602
        %611 = vst [vmem:[%s414] sm:$0xff] %v603
        %612 = vst [vmem:[%s414 + $0x8] sm:$0xff] %v604
        %613 = vst [vmem:[%s414 + $0x10] sm:$0xff] %v605
        %614 = vst [vmem:[%s414 + $0x18] sm:$0xff] %v606
        %615 = vst [vmem:[%s414 + $0x20] sm:$0xff] %v607
        %616 = vst [vmem:[%s414 + $0x28] sm:$0xff] %v608
        %617 = vst [vmem:[%s414 + $0x30] sm:$0xff] %v609
        %618 = vst [vmem:[%s414 + $0x38] sm:$0xff] %v610
      $region48: #{fwd.23} parent=39 // pred_fallthru
        _
      %s619 = smul.u32 8, %s23
      %p620 = scmp.lt.s32.totalorder %s22, 1
      %s621 = scalar_select %p620, %s22, 1
      %p622 = scmp.lt.s32.totalorder %s619, 7
      %s623 = scalar_select %p622, %s619, 7
      %p624 = scmp.lt.s32.totalorder %s24, 0
      %s625 = scalar_select %p624, %s24, 0
      %s626 = sadd.s32 %s625, %s623
      %s627 = smul.addr %s621, 8
      %s628 = sadd.s32 %s626, %s627
      %s629 = smul.addr %s628, 8
      %s630 = scalar_lea.vmem %s5, %s629
      // Predicated region
      $region49: #{fwd.23} parent=39 // pred_check
        %p631 = pneg %p206
      $region50: #{fwd.23} parent=39 // pred_check_branch
        %633 = sbr.rel (%p631) target = $region52
      $region51: #{fwd.23} parent=39 // pred_region
        %s634 = smul.u32 8, %s23
      $region52: #{fwd.23} parent=39 // pred_fallthru
        _
    $region40: #{fwd.23} parent=5 // pred_fallthru
      _
    %p635 = scmp.le.s32.totalorder 2, %s11
    // Predicated region
    $region53: #{fwd.23} parent=5 // pred_check
      %p636 = pneg %p635
    $region54: #{fwd.23} parent=5 // pred_check_branch
      %638 = sbr.rel (%p636) target = $region56
    $region55: #{fwd.23} parent=5 // pred_region
      %s639 = ssub.s32 %s11, 2
      // Predicated region
      $region57: #{fwd.23} parent=55 // pred_check
        %p640 = pneg %p212
      $region58: #{fwd.23} parent=55 // pred_check_branch
        %642 = sbr.rel (%p640) target = $region60
      $region59: #{fwd.23} parent=55 // pred_region
        %s643 = smul.u32 8, %s27
        %p644 = scmp.lt.s32.totalorder %s26, 1
        %s645 = scalar_select %p644, %s26, 1
        %p646 = scmp.lt.s32.totalorder %s643, 7
        %s647 = scalar_select %p646, %s643, 7
        %p648 = scmp.lt.s32.totalorder %s28, 0
        %s649 = scalar_select %p648, %s28, 0
        %s650 = sadd.s32 %s649, %s647
        %s651 = smul.addr %s645, 8
        %s652 = sadd.s32 %s650, %s651
        %s653 = smul.addr %s652, 8
        %s654 = scalar_lea.vmem %s5, %s653
      $region60: #{fwd.23} parent=55 // pred_fallthru
        _
    $region56: #{fwd.23} parent=5 // pred_fallthru
      _
  $region6: #{fwd.23} parent=0 // loop_footer
    %s15 = sadd.s32 1, %s11
  $region7: #{fwd.23} parent=0 // loop_footer_branch
    %10 = sbr.rel target = $region3
  $region8: #{fwd.23} parent=0 // loop_exit
    _

// kernel: fwd.22
$region0: #{fwd.22}
  #allocation0 [shape = 'u32[]', space=smem, size = 0x4, offset = 0x4, fixed_abs, tag = 'smem constant byte address 0x4 - core index']
  #allocation1 [shape = 'u32[144,128]{1,0:T(1,128)}', space=vmem, size = 0x12000, scoped, tag = 'internal scratch']
  %s0 = inlined_call_operand.vmem [shape: f32[2,64,384], index: 0, kind: input, shape index: {}, may-alias: {0,1,2}]
  %s1 = inlined_call_operand.vmem [shape: f32[2,64,384], index: 1, kind: input, shape index: {}, may-alias: {0,1,2}]
  %s2 = inlined_call_operand.vmem [shape: f32[2,64,384], index: 2, kind: input, shape index: {}, may-alias: {0,1,2}]
  %s3 = inlined_call_operand.vmem [shape: f32[2,64,128], index: 3, kind: output, shape index: {}]
  %s4 = sld [smem:[#allocation0]]
  $region159: #{fwd.22} parent=0
    _
  %s6 = ssub.s32 1, %s4
  %s7 = scalar_select 0, %s6, %s4
  $region1: #{fwd.22} parent=0
    #allocation2 [shape = 'u8[65536]{0}', space=vmem, size = 0x10000, scoped, tag = 'input window, operand 0']
    #allocation3 [shape = 'u8[65536]{0}', space=vmem, size = 0x10000, scoped, tag = 'input window, operand 1']
    #allocation4 [shape = 'u8[65536]{0}', space=vmem, size = 0x10000, scoped, tag = 'input window, operand 2']
    loop: start=0, step=1, limit=4
    $region2: #{fwd.22} parent=1 // loop_pre_header
      _
    $region3: #{fwd.22} parent=1 // loop_header
      %s9 = sphi 0, %s13
      %p10 = scmp.ge.s32.totalorder %s9, 4
      %s19 = sphi 0, %s21
      %s22 = sphi 0, %s19
      %s23 = sphi 0, %s22
      %s39 = sphi 0, %s23
      %s45 = sphi 0, %s47
      %s48 = sphi 0, %s45
      %s49 = sphi 0, %s48
      %s65 = sphi 0, %s49
      %s71 = sphi 0, %s73
      %s74 = sphi 0, %s71
      %s75 = sphi 0, %s74
      %s91 = sphi 0, %s75
      %s97 = sphi 0, %s99
      %s100 = sphi 0, %s97
      %s101 = sphi 0, %s100
      %s117 = sphi 0, %s101
    $region4: #{fwd.22} parent=1 // loop_header_branch
      %12 = sbr.rel (%p10) target = $region8
    $region5: #{fwd.22} parent=1 // loop_body
      %s14 = ssub.s32 %s9, 1
      %s15 = ssub.s32 %s9, 2
      %s16 = sadd.s32 %s9, 1
      %s17 = ssub.s32 %s9, %s16
      %p18 = scmp.eq.s32.totalorder %s17, 0
      %s20 = sadd.s32 %s19, 1
      %s21 = scalar_select %p18, %s19, %s20
      %p24 = pneg %p18
      %p25 = scmp.eq.s32.totalorder %s9, 1
      %p26 = por %p24, %p25
      %p27 = scmp.ne.s32.totalorder %s19, %s22
      %p28 = scmp.eq.s32.totalorder %s9, 0
      %p29 = por %p27, %p28
      %p30 = scmp.ne.s32.totalorder %s19, %s22
      %p31 = scmp.eq.s32.totalorder %s14, 1
      %p32 = por %p30, %p31
      %p33 = scmp.ne.s32.totalorder %s22, %s23
      %p34 = scmp.eq.s32.totalorder %s14, 0
      %p35 = por %p33, %p34
      %p36 = scmp.ne.s32.totalorder %s22, %s23
      %p37 = scmp.eq.s32.totalorder %s15, 1
      %p38 = por %p36, %p37
      %p40 = scmp.ne.s32.totalorder %s23, %s39
      %p41 = scmp.eq.s32.totalorder %s15, 0
      %p42 = por %p40, %p41
      %s43 = ssub.s32 %s9, %s16
      %p44 = scmp.eq.s32.totalorder %s43, 0
      %s46 = sadd.s32 %s45, 1
      %s47 = scalar_select %p44, %s45, %s46
      %p50 = pneg %p44
      %p51 = scmp.eq.s32.totalorder %s9, 1
      %p52 = por %p50, %p51
      %p53 = scmp.ne.s32.totalorder %s45, %s48
      %p54 = scmp.eq.s32.totalorder %s9, 0
      %p55 = por %p53, %p54
      %p56 = scmp.ne.s32.totalorder %s45, %s48
      %p57 = scmp.eq.s32.totalorder %s14, 1
      %p58 = por %p56, %p57
      %p59 = scmp.ne.s32.totalorder %s48, %s49
      %p60 = scmp.eq.s32.totalorder %s14, 0
      %p61 = por %p59, %p60
      %p62 = scmp.ne.s32.totalorder %s48, %s49
      %p63 = scmp.eq.s32.totalorder %s15, 1
      %p64 = por %p62, %p63
      %p66 = scmp.ne.s32.totalorder %s49, %s65
      %p67 = scmp.eq.s32.totalorder %s15, 0
      %p68 = por %p66, %p67
      %s69 = ssub.s32 %s9, %s16
      %p70 = scmp.eq.s32.totalorder %s69, 0
      %s72 = sadd.s32 %s71, 1
      %s73 = scalar_select %p70, %s71, %s72
      %p76 = pneg %p70
      %p77 = scmp.eq.s32.totalorder %s9, 1
      %p78 = por %p76, %p77
      %p79 = scmp.ne.s32.totalorder %s71, %s74
      %p80 = scmp.eq.s32.totalorder %s9, 0
      %p81 = por %p79, %p80
      %p82 = scmp.ne.s32.totalorder %s71, %s74
      %p83 = scmp.eq.s32.totalorder %s14, 1
      %p84 = por %p82, %p83
      %p85 = scmp.ne.s32.totalorder %s74, %s75
      %p86 = scmp.eq.s32.totalorder %s14, 0
      %p87 = por %p85, %p86
      %p88 = scmp.ne.s32.totalorder %s74, %s75
      %p89 = scmp.eq.s32.totalorder %s15, 1
      %p90 = por %p88, %p89
      %p92 = scmp.ne.s32.totalorder %s75, %s91
      %p93 = scmp.eq.s32.totalorder %s15, 0
      %p94 = por %p92, %p93
      %s95 = ssub.s32 %s9, %s16
      %p96 = scmp.eq.s32.totalorder %s95, 0
      %s98 = sadd.s32 %s97, 1
      %s99 = scalar_select %p96, %s97, %s98
      %p102 = pneg %p96
      %p103 = scmp.eq.s32.totalorder %s9, 1
      %p104 = por %p102, %p103
      %p105 = scmp.ne.s32.totalorder %s97, %s100
      %p106 = scmp.eq.s32.totalorder %s9, 0
      %p107 = por %p105, %p106
      %p108 = scmp.ne.s32.totalorder %s97, %s100
      %p109 = scmp.eq.s32.totalorder %s14, 1
      %p110 = por %p108, %p109
      %p111 = scmp.ne.s32.totalorder %s100, %s101
      %p112 = scmp.eq.s32.totalorder %s14, 0
      %p113 = por %p111, %p112
      %p114 = scmp.ne.s32.totalorder %s100, %s101
      %p115 = scmp.eq.s32.totalorder %s15, 1
      %p116 = por %p114, %p115
      %p118 = scmp.ne.s32.totalorder %s101, %s117
      %p119 = scmp.eq.s32.totalorder %s15, 0
      %p120 = por %p118, %p119
      %p121 = scmp.le.s32.totalorder 1, %s9
      %p122 = scmp.lt.s32.totalorder %s9, 3
      %p123 = pnand %p121, %p122
      %p124 = pneg %p123
      // Predicated region
      $region9: #{fwd.22} parent=5 // pred_check
        _
      $region10: #{fwd.22} parent=5 // pred_check_branch
        %126 = sbr.rel (%p123) target = $region12
      $region11: #{fwd.22} parent=5 // pred_region
        %s127 = ssub.s32 %s9, 1
      $region12: #{fwd.22} parent=5 // pred_fallthru
        _
      %p128 = scmp.lt.s32.totalorder %s9, 2
      // Predicated region
      $region13: #{fwd.22} parent=5 // pred_check
        %p129 = pneg %p128
      $region14: #{fwd.22} parent=5 // pred_check_branch
        %131 = sbr.rel (%p129) target = $region16
      $region15: #{fwd.22} parent=5 // pred_region
        // Predicated region
        $region17: #{fwd.22} parent=15 // pred_check
          %p132 = pneg %p29
        $region18: #{fwd.22} parent=15 // pred_check_branch
          %134 = sbr.rel (%p132) target = $region20
        $region19: #{fwd.22} parent=15 // pred_region
          %s135 = sand.u32 %s19, 1
          %s136 = sand.u32 %s19, 1
          %s137 = smul.addr %s136, 64
          %s138 = scalar_lea.vmem [#allocation2], %s137
          %s139 = smul.addr %s9, 24
          %s140 = smul.addr %s139, 8
          %s141 = scalar_lea.vmem %s0, %s140
          // Predicated region
          $region21: #{fwd.22} parent=19 // pred_check
            _
          $region22: #{fwd.22} parent=19 // pred_check_branch
            %143 = sbr.rel (0) target = $region24
          $region23: #{fwd.22} parent=19 // pred_region
            // Predicated region
            $region25: #{fwd.22} parent=23 // pred_check
              _
            $region26: #{fwd.22} parent=23 // pred_check_branch
              %145 = sbr.rel (0) target = $region28
            $region27: #{fwd.22} parent=23 // pred_region
              // Predicated region
              $region40: #{fwd.22} parent=27 // pred_check
                _
              $region41: #{fwd.22} parent=27 // pred_check_branch
                %175 = sbr.rel (0) target = $region43
              $region42: #{fwd.22} parent=27 // pred_region
                loop: start=0, step=1, limit=1
                $region44: #{fwd.22} parent=42 // loop_pre_header
                  _
                $region45: #{fwd.22} parent=42 // loop_header
                  %s177 = sphi 0, %s181
                  %p178 = scmp.ge.s32.totalorder %s177, 1
                  %s182 = sphi %s141, %s141
                  %s183 = sphi %s138, %s138
                $region46: #{fwd.22} parent=42 // loop_header_branch
                  %180 = sbr.rel (%p178) target = $region50
                $region47: #{fwd.22} parent=42 // loop_body
                  %v184 = vld [vmem:[%s182] sm:$0xff]
                  %185 = vst [vmem:[%s183] sm:$0xff] %v184
                  %v186 = vld [vmem:[%s182 + $0x18] sm:$0xff]
                  %187 = vst [vmem:[%s183 + $0x8] sm:$0xff] %v186
                  %v188 = vld [vmem:[%s182 + $0x30] sm:$0xff]
                  %189 = vst [vmem:[%s183 + $0x10] sm:$0xff] %v188
                  %v190 = vld [vmem:[%s182 + $0x48] sm:$0xff]
                  %191 = vst [vmem:[%s183 + $0x18] sm:$0xff] %v190
                  %v192 = vld [vmem:[%s182 + $0x60] sm:$0xff]
                  %193 = vst [vmem:[%s183 + $0x20] sm:$0xff] %v192
                  %v194 = vld [vmem:[%s182 + $0x78] sm:$0xff]
                  %195 = vst [vmem:[%s183 + $0x28] sm:$0xff] %v194
                  %v196 = vld [vmem:[%s182 + $0x90] sm:$0xff]
                  %197 = vst [vmem:[%s183 + $0x30] sm:$0xff] %v196
                  %v198 = vld [vmem:[%s182 + $0xa8] sm:$0xff]
                  %199 = vst [vmem:[%s183 + $0x38] sm:$0xff] %v198
                $region48: #{fwd.22} parent=42 // loop_footer
                  %s181 = sadd.s32 1, %s177
                $region49: #{fwd.22} parent=42 // loop_footer_branch
                  %176 = sbr.rel target = $region45
                $region50: #{fwd.22} parent=42 // loop_exit
                  _
              $region43: #{fwd.22} parent=27 // pred_fallthru
                _
              // Predicated region
              $region51: #{fwd.22} parent=27 // pred_check
                _
              $region52: #{fwd.22} parent=27 // pred_check_branch
                %201 = sbr.rel target = $region54
              $region53: #{fwd.22} parent=27 // pred_region
                _
              $region54: #{fwd.22} parent=27 // pred_fallthru
                _
            $region28: #{fwd.22} parent=23 // pred_fallthru
              _
            // Predicated region
            $region29: #{fwd.22} parent=23 // pred_check
              _
            $region30: #{fwd.22} parent=23 // pred_check_branch
              %147 = sbr.rel target = $region32
            $region31: #{fwd.22} parent=23 // pred_region
              %s149 = ssub.s32 256, 1
              loop: start=0, step=1, limit=1
              $region33: #{fwd.22} parent=31 // loop_pre_header
                _
              $region34: #{fwd.22} parent=31 // loop_header
                %s151 = sphi 0, %s155
                %p152 = scmp.ge.s32.totalorder %s151, 1
                %s156 = sphi %s141, %s141
                %s157 = sphi %s138, %s138
              $region35: #{fwd.22} parent=31 // loop_header_branch
                %154 = sbr.rel (%p152) target = $region39
              $region36: #{fwd.22} parent=31 // loop_body
                %v158 = vld [vmem:[%s156] sm:%s149]
                %159 = vst [vmem:[%s157] sm:%s149] %v158
                %v160 = vld [vmem:[%s156 + $0x18] sm:%s149]
                %161 = vst [vmem:[%s157 + $0x8] sm:%s149] %v160
                %v162 = vld [vmem:[%s156 + $0x30] sm:%s149]
                %163 = vst [vmem:[%s157 + $0x10] sm:%s149] %v162
                %v164 = vld [vmem:[%s156 + $0x48] sm:%s149]
                %165 = vst [vmem:[%s157 + $0x18] sm:%s149] %v164
                %v166 = vld [vmem:[%s156 + $0x60] sm:%s149]
                %167 = vst [vmem:[%s157 + $0x20] sm:%s149] %v166
                %v168 = vld [vmem:[%s156 + $0x78] sm:%s149]
                %169 = vst [vmem:[%s157 + $0x28] sm:%s149] %v168
                %v170 = vld [vmem:[%s156 + $0x90] sm:%s149]
                %171 = vst [vmem:[%s157 + $0x30] sm:%s149] %v170
                %v172 = vld [vmem:[%s156 + $0xa8] sm:%s149]
                %173 = vst [vmem:[%s157 + $0x38] sm:%s149] %v172
              $region37: #{fwd.22} parent=31 // loop_footer
                %s155 = sadd.s32 1, %s151
              $region38: #{fwd.22} parent=31 // loop_footer_branch
                %150 = sbr.rel target = $region34
              $region39: #{fwd.22} parent=31 // loop_exit
                _
            $region32: #{fwd.22} parent=23 // pred_fallthru
              _
          $region24: #{fwd.22} parent=19 // pred_fallthru
            _
          %202 = vnop
        $region20: #{fwd.22} parent=15 // pred_fallthru
          _
        // Predicated region
        $region55: #{fwd.22} parent=15 // pred_check
          %p203 = pneg %p55
        $region56: #{fwd.22} parent=15 // pred_check_branch
          %205 = sbr.rel (%p203) target = $region58
        $region57: #{fwd.22} parent=15 // pred_region
          %s206 = sand.u32 %s45, 1
          %s207 = sand.u32 %s45, 1
          %s208 = smul.addr %s207, 64
          %s209 = scalar_lea.vmem [#allocation3], %s208
          %s210 = smul.addr %s9, 24
          %s211 = sadd.s32 1, %s210
          %s212 = smul.addr %s211, 8
          %s213 = scalar_lea.vmem %s1, %s212
          // Predicated region
          $region59: #{fwd.22} parent=57 // pred_check
            _
          $region60: #{fwd.22} parent=57 // pred_check_branch
            %215 = sbr.rel (0) target = $region62
          $region61: #{fwd.22} parent=57 // pred_region
            // Predicated region
            $region63: #{fwd.22} parent=61 // pred_check
              _
            $region64: #{fwd.22} parent=61 // pred_check_branch
              %217 = sbr.rel (0) target = $region66
            $region65: #{fwd.22} parent=61 // pred_region
              // Predicated region
              $region78: #{fwd.22} parent=65 // pred_check
                _
              $region79: #{fwd.22} parent=65 // pred_check_branch
                %247 = sbr.rel (0) target = $region81
              $region80: #{fwd.22} parent=65 // pred_region
                loop: start=0, step=1, limit=1
                $region82: #{fwd.22} parent=80 // loop_pre_header
                  _
                $region83: #{fwd.22} parent=80 // loop_header
                  %s249 = sphi 0, %s253
                  %p250 = scmp.ge.s32.totalorder %s249, 1
                  %s254 = sphi %s213, %s213
                  %s255 = sphi %s209, %s209
                $region84: #{fwd.22} parent=80 // loop_header_branch
                  %252 = sbr.rel (%p250) target = $region88
                $region85: #{fwd.22} parent=80 // loop_body
                  %v256 = vld [vmem:[%s254] sm:$0xff]
                  %257 = vst [vmem:[%s255] sm:$0xff] %v256
                  %v258 = vld [vmem:[%s254 + $0x18] sm:$0xff]
                  %259 = vst [vmem:[%s255 + $0x8] sm:$0xff] %v258
                  %v260 = vld [vmem:[%s254 + $0x30] sm:$0xff]
                  %261 = vst [vmem:[%s255 + $0x10] sm:$0xff] %v260
                  %v262 = vld [vmem:[%s254 + $0x48] sm:$0xff]
                  %263 = vst [vmem:[%s255 + $0x18] sm:$0xff] %v262
                  %v264 = vld [vmem:[%s254 + $0x60] sm:$0xff]
                  %265 = vst [vmem:[%s255 + $0x20] sm:$0xff] %v264
                  %v266 = vld [vmem:[%s254 + $0x78] sm:$0xff]
                  %267 = vst [vmem:[%s255 + $0x28] sm:$0xff] %v266
                  %v268 = vld [vmem:[%s254 + $0x90] sm:$0xff]
                  %269 = vst [vmem:[%s255 + $0x30] sm:$0xff] %v268
                  %v270 = vld [vmem:[%s254 + $0xa8] sm:$0xff]
                  %271 = vst [vmem:[%s255 + $0x38] sm:$0xff] %v270
                $region86: #{fwd.22} parent=80 // loop_footer
                  %s253 = sadd.s32 1, %s249
                $region87: #{fwd.22} parent=80 // loop_footer_branch
                  %248 = sbr.rel target = $region83
                $region88: #{fwd.22} parent=80 // loop_exit
                  _
              $region81: #{fwd.22} parent=65 // pred_fallthru
                _
              // Predicated region
              $region89: #{fwd.22} parent=65 // pred_check
                _
              $region90: #{fwd.22} parent=65 // pred_check_branch
                %273 = sbr.rel target = $region92
              $region91: #{fwd.22} parent=65 // pred_region
                _
              $region92: #{fwd.22} parent=65 // pred_fallthru
                _
            $region66: #{fwd.22} parent=61 // pred_fallthru
              _
            // Predicated region
            $region67: #{fwd.22} parent=61 // pred_check
              _
            $region68: #{fwd.22} parent=61 // pred_check_branch
              %219 = sbr.rel target = $region70
            $region69: #{fwd.22} parent=61 // pred_region
              %s221 = ssub.s32 256, 1
              loop: start=0, step=1, limit=1
              $region71: #{fwd.22} parent=69 // loop_pre_header
                _
              $region72: #{fwd.22} parent=69 // loop_header
                %s223 = sphi 0, %s227
                %p224 = scmp.ge.s32.totalorder %s223, 1
                %s228 = sphi %s213, %s213
                %s229 = sphi %s209, %s209
              $region73: #{fwd.22} parent=69 // loop_header_branch
                %226 = sbr.rel (%p224) target = $region77
              $region74: #{fwd.22} parent=69 // loop_body
                %v230 = vld [vmem:[%s228] sm:%s221]
                %231 = vst [vmem:[%s229] sm:%s221] %v230
                %v232 = vld [vmem:[%s228 + $0x18] sm:%s221]
                %233 = vst [vmem:[%s229 + $0x8] sm:%s221] %v232
                %v234 = vld [vmem:[%s228 + $0x30] sm:%s221]
                %235 = vst [vmem:[%s229 + $0x10] sm:%s221] %v234
                %v236 = vld [vmem:[%s228 + $0x48] sm:%s221]
                %237 = vst [vmem:[%s229 + $0x18] sm:%s221] %v236
                %v238 = vld [vmem:[%s228 + $0x60] sm:%s221]
                %239 = vst [vmem:[%s229 + $0x20] sm:%s221] %v238
                %v240 = vld [vmem:[%s228 + $0x78] sm:%s221]
                %241 = vst [vmem:[%s229 + $0x28] sm:%s221] %v240
                %v242 = vld [vmem:[%s228 + $0x90] sm:%s221]
                %243 = vst [vmem:[%s229 + $0x30] sm:%s221] %v242
                %v244 = vld [vmem:[%s228 + $0xa8] sm:%s221]
                %245 = vst [vmem:[%s229 + $0x38] sm:%s221] %v244
              $region75: #{fwd.22} parent=69 // loop_footer
                %s227 = sadd.s32 1, %s223
              $region76: #{fwd.22} parent=69 // loop_footer_branch
                %222 = sbr.rel target = $region72
              $region77: #{fwd.22} parent=69 // loop_exit
                _
            $region70: #{fwd.22} parent=61 // pred_fallthru
              _
          $region62: #{fwd.22} parent=57 // pred_fallthru
            _
          %274 = vnop
        $region58: #{fwd.22} parent=15 // pred_fallthru
          _
        // Predicated region
        $region93: #{fwd.22} parent=15 // pred_check
          %p275 = pneg %p81
        $region94: #{fwd.22} parent=15 // pred_check_branch
          %277 = sbr.rel (%p275) target = $region96
        $region95: #{fwd.22} parent=15 // pred_region
          %s278 = sand.u32 %s71, 1
          %s279 = sand.u32 %s71, 1
          %s280 = smul.addr %s279, 64
          %s281 = scalar_lea.vmem [#allocation4], %s280
          %s282 = smul.addr %s9, 24
          %s283 = sadd.s32 2, %s282
          %s284 = smul.addr %s283, 8
          %s285 = scalar_lea.vmem %s2, %s284
          // Predicated region
          $region97: #{fwd.22} parent=95 // pred_check
            _
          $region98: #{fwd.22} parent=95 // pred_check_branch
            %287 = sbr.rel (0) target = $region100
          $region99: #{fwd.22} parent=95 // pred_region
            // Predicated region
            $region101: #{fwd.22} parent=99 // pred_check
              _
            $region102: #{fwd.22} parent=99 // pred_check_branch
              %289 = sbr.rel (0) target = $region104
            $region103: #{fwd.22} parent=99 // pred_region
              // Predicated region
              $region116: #{fwd.22} parent=103 // pred_check
                _
              $region117: #{fwd.22} parent=103 // pred_check_branch
                %319 = sbr.rel (0) target = $region119
              $region118: #{fwd.22} parent=103 // pred_region
                loop: start=0, step=1, limit=1
                $region120: #{fwd.22} parent=118 // loop_pre_header
                  _
                $region121: #{fwd.22} parent=118 // loop_header
                  %s321 = sphi 0, %s325
                  %p322 = scmp.ge.s32.totalorder %s321, 1
                  %s326 = sphi %s285, %s285
                  %s327 = sphi %s281, %s281
                $region122: #{fwd.22} parent=118 // loop_header_branch
                  %324 = sbr.rel (%p322) target = $region126
                $region123: #{fwd.22} parent=118 // loop_body
                  %v328 = vld [vmem:[%s326] sm:$0xff]
                  %329 = vst [vmem:[%s327] sm:$0xff] %v328
                  %v330 = vld [vmem:[%s326 + $0x18] sm:$0xff]
                  %331 = vst [vmem:[%s327 + $0x8] sm:$0xff] %v330
                  %v332 = vld [vmem:[%s326 + $0x30] sm:$0xff]
                  %333 = vst [vmem:[%s327 + $0x10] sm:$0xff] %v332
                  %v334 = vld [vmem:[%s326 + $0x48] sm:$0xff]
                  %335 = vst [vmem:[%s327 + $0x18] sm:$0xff] %v334
                  %v336 = vld [vmem:[%s326 + $0x60] sm:$0xff]
                  %337 = vst [vmem:[%s327 + $0x20] sm:$0xff] %v336
                  %v338 = vld [vmem:[%s326 + $0x78] sm:$0xff]
                  %339 = vst [vmem:[%s327 + $0x28] sm:$0xff] %v338
                  %v340 = vld [vmem:[%s326 + $0x90] sm:$0xff]
                  %341 = vst [vmem:[%s327 + $0x30] sm:$0xff] %v340
                  %v342 = vld [vmem:[%s326 + $0xa8] sm:$0xff]
                  %343 = vst [vmem:[%s327 + $0x38] sm:$0xff] %v342
                $region124: #{fwd.22} parent=118 // loop_footer
                  %s325 = sadd.s32 1, %s321
                $region125: #{fwd.22} parent=118 // loop_footer_branch
                  %320 = sbr.rel target = $region121
                $region126: #{fwd.22} parent=118 // loop_exit
                  _
              $region119: #{fwd.22} parent=103 // pred_fallthru
                _
              // Predicated region
              $region127: #{fwd.22} parent=103 // pred_check
                _
              $region128: #{fwd.22} parent=103 // pred_check_branch
                %345 = sbr.rel target = $region130
              $region129: #{fwd.22} parent=103 // pred_region
                _
              $region130: #{fwd.22} parent=103 // pred_fallthru
                _
            $region104: #{fwd.22} parent=99 // pred_fallthru
              _
            // Predicated region
            $region105: #{fwd.22} parent=99 // pred_check
              _
            $region106: #{fwd.22} parent=99 // pred_check_branch
              %291 = sbr.rel target = $region108
            $region107: #{fwd.22} parent=99 // pred_region
              %s293 = ssub.s32 256, 1
              loop: start=0, step=1, limit=1
              $region109: #{fwd.22} parent=107 // loop_pre_header
                _
              $region110: #{fwd.22} parent=107 // loop_header
                %s295 = sphi 0, %s299
                %p296 = scmp.ge.s32.totalorder %s295, 1
                %s300 = sphi %s285, %s285
                %s301 = sphi %s281, %s281
              $region111: #{fwd.22} parent=107 // loop_header_branch
                %298 = sbr.rel (%p296) target = $region115
              $region112: #{fwd.22} parent=107 // loop_body
                %v302 = vld [vmem:[%s300] sm:%s293]
                %303 = vst [vmem:[%s301] sm:%s293] %v302
                %v304 = vld [vmem:[%s300 + $0x18] sm:%s293]
                %305 = vst [vmem:[%s301 + $0x8] sm:%s293] %v304
                %v306 = vld [vmem:[%s300 + $0x30] sm:%s293]
                %307 = vst [vmem:[%s301 + $0x10] sm:%s293] %v306
                %v308 = vld [vmem:[%s300 + $0x48] sm:%s293]
                %309 = vst [vmem:[%s301 + $0x18] sm:%s293] %v308
                %v310 = vld [vmem:[%s300 + $0x60] sm:%s293]
                %311 = vst [vmem:[%s301 + $0x20] sm:%s293] %v310
                %v312 = vld [vmem:[%s300 + $0x78] sm:%s293]
                %313 = vst [vmem:[%s301 + $0x28] sm:%s293] %v312
                %v314 = vld [vmem:[%s300 + $0x90] sm:%s293]
                %315 = vst [vmem:[%s301 + $0x30] sm:%s293] %v314
                %v316 = vld [vmem:[%s300 + $0xa8] sm:%s293]
                %317 = vst [vmem:[%s301 + $0x38] sm:%s293] %v316
              $region113: #{fwd.22} parent=107 // loop_footer
                %s299 = sadd.s32 1, %s295
              $region114: #{fwd.22} parent=107 // loop_footer_branch
                %294 = sbr.rel target = $region110
              $region115: #{fwd.22} parent=107 // loop_exit
                _
            $region108: #{fwd.22} parent=99 // pred_fallthru
              _
          $region100: #{fwd.22} parent=95 // pred_fallthru
            _
          %346 = vnop
        $region96: #{fwd.22} parent=15 // pred_fallthru
          _
      $region16: #{fwd.22} parent=5 // pred_fallthru
        _
      %p347 = scmp.le.s32.totalorder 1, %s9
      %p348 = scmp.lt.s32.totalorder %s9, 3
      %p349 = pnand %p347, %p348
      %p350 = pneg %p349
      // Predicated region
      $region131: #{fwd.22} parent=5 // pred_check
        _
      $region132: #{fwd.22} parent=5 // pred_check_branch
        %352 = sbr.rel (%p349) target = $region134
      $region133: #{fwd.22} parent=5 // pred_region
        %s353 = ssub.s32 %s9, 1
        %s354 = sand.u32 %s22, 1
        %s355 = sand.u32 %s22, 1
        %s356 = smul.addr %s355, 64
        %s357 = scalar_lea.vmem [#allocation2], %s356
        // Predicated region
        $region135: #{fwd.22} parent=133 // pred_check
          %p358 = pneg %p35
        $region136: #{fwd.22} parent=133 // pred_check_branch
          %360 = sbr.rel (%p358) target = $region138
        $region137: #{fwd.22} parent=133 // pred_region
          _
        $region138: #{fwd.22} parent=133 // pred_fallthru
          _
        %s361 = sand.u32 %s48, 1
        %s362 = sand.u32 %s48, 1
        %s363 = smul.addr %s362, 64
        %s364 = scalar_lea.vmem [#allocation3], %s363
        // Predicated region
        $region139: #{fwd.22} parent=133 // pred_check
          %p365 = pneg %p61
        $region140: #{fwd.22} parent=133 // pred_check_branch
          %367 = sbr.rel (%p365) target = $region142
        $region141: #{fwd.22} parent=133 // pred_region
          _
        $region142: #{fwd.22} parent=133 // pred_fallthru
          _
        %s368 = sand.u32 %s74, 1
        %s369 = sand.u32 %s74, 1
        %s370 = smul.addr %s369, 64
        %s371 = scalar_lea.vmem [#allocation4], %s370
        // Predicated region
        $region143: #{fwd.22} parent=133 // pred_check
          %p372 = pneg %p87
        $region144: #{fwd.22} parent=133 // pred_check_branch
          %374 = sbr.rel (%p372) target = $region146
        $region145: #{fwd.22} parent=133 // pred_region
          _
        $region146: #{fwd.22} parent=133 // pred_fallthru
          _
        %s375 = sand.u32 %s22, 1
        %s376 = sand.u32 %s22, 1
        %s377 = smul.addr %s376, 64
        %s378 = scalar_lea.vmem [#allocation2], %s377
        %p379 = pneg %p35
        %p380 = pneg %p32
        %s381 = sand.u32 %s48, 1
        %s382 = sand.u32 %s48, 1
        %s383 = smul.addr %s382, 64
        %s384 = scalar_lea.vmem [#allocation3], %s383
        %p385 = pneg %p61
        %p386 = pneg %p58
        %s387 = sand.u32 %s74, 1
        %s388 = sand.u32 %s74, 1
        %s389 = smul.addr %s388, 64
        %s390 = scalar_lea.vmem [#allocation4], %s389
        %p391 = pneg %p87
        %p392 = pneg %p84
        %p393 = pneg %p113
        %p394 = pneg %p110
        %p395 = scmp.lt.s32.totalorder %s14, 1
        %s396 = scalar_select %p395, %s14, 1
        %s397 = smul.addr %s396, 8
        %s398 = smul.addr %s397, 8
        %s399 = scalar_lea.vmem %s3, %s398
        %p400 = scmp.lt.s32.totalorder %s14, 1
        %s401 = scalar_select %p400, %s14, 1
        %s402 = smul.addr %s401, 8
        %s403 = smul.addr %s402, 8
        %s404 = scalar_lea.vmem %s3, %s403
        %v406 = vld [vmem:[%s357] sm:$0xff]
        %v407 = vld [vmem:[%s357 + $0x8] sm:$0xff]
        %v408 = vld [vmem:[%s357 + $0x10] sm:$0xff]
        %v409 = vld [vmem:[%s357 + $0x18] sm:$0xff]
        %v410 = vld [vmem:[%s357 + $0x20] sm:$0xff]
        %v411 = vld [vmem:[%s357 + $0x28] sm:$0xff]
        %v412 = vld [vmem:[%s357 + $0x30] sm:$0xff]
        %v413 = vld [vmem:[%s357 + $0x38] sm:$0xff]
        %v414 = vld [vmem:[%s364] sm:$0xff]
        %v415 = vld [vmem:[%s364 + $0x8] sm:$0xff]
        %v416 = vld [vmem:[%s364 + $0x10] sm:$0xff]
        %v417 = vld [vmem:[%s364 + $0x18] sm:$0xff]
        %v418 = vld [vmem:[%s364 + $0x20] sm:$0xff]
        %v419 = vld [vmem:[%s364 + $0x28] sm:$0xff]
        %v420 = vld [vmem:[%s364 + $0x30] sm:$0xff]
        %v421 = vld [vmem:[%s364 + $0x38] sm:$0xff]
        %v422 = vld [vmem:[%s371] sm:$0xff]
        %v423 = vld [vmem:[%s371 + $0x8] sm:$0xff]
        %v424 = vld [vmem:[%s371 + $0x10] sm:$0xff]
        %v425 = vld [vmem:[%s371 + $0x18] sm:$0xff]
        %v426 = vld [vmem:[%s371 + $0x20] sm:$0xff]
        %v427 = vld [vmem:[%s371 + $0x28] sm:$0xff]
        %v428 = vld [vmem:[%s371 + $0x30] sm:$0xff]
        %v429 = vld [vmem:[%s371 + $0x38] sm:$0xff]
        %v430 = vmul.f32 %v406, 0.17677669
        %v431 = vmul.f32 %v407, 0.17677669
        %v432 = vmul.f32 %v408, 0.17677669
        %v433 = vmul.f32 %v409, 0.17677669
        %v434 = vmul.f32 %v410, 0.17677669
        %v435 = vmul.f32 %v411, 0.17677669
        %v436 = vmul.f32 %v412, 0.17677669
        %v437 = vmul.f32 %v413, 0.17677669
        %v438 = vpack.c.bf16 %v431, %v430
        %v439 = vpack.c.bf16 %v433, %v432
        %v440 = vpack.c.bf16 %v435, %v434
        %v441 = vpack.c.bf16 %v437, %v436
        %v442 = vpack.c.bf16 %v415, %v414
        %v443 = vpack.c.bf16 %v417, %v416
        %v444 = vpack.c.bf16 %v419, %v418
        %v445 = vpack.c.bf16 %v421, %v420
        %v446 = vpack.c.bf16 %v423, %v422
        %v447 = vpack.c.bf16 %v425, %v424
        %v448 = vpack.c.bf16 %v427, %v426
        %v449 = vpack.c.bf16 %v429, %v428
        %vm450 = vcmask 261120
        %v452 = vsel %vm450, %v438, 0
        %v455 = vsel %vm450, %v439, 0
        %v458 = vsel %vm450, %v440, 0
        %v461 = vsel %vm450, %v441, 0
        %v464 = vsel %vm450, %v442, 0
        %v467 = vsel %vm450, %v443, 0
        %v470 = vsel %vm450, %v444, 0
        %v473 = vsel %vm450, %v445, 0
        %475 = vmatprep.subr.bf16.mxu0 0
        %476 = vmatpush1.bf16.xpose.msra.mxu0 0
        %477 = vmatprep.subr.bf16.mxu0 0
        %478 = vmatpush1.bf16.xpose.msra.mxu0 0
        %479 = vmatprep.subr.bf16.mxu0 0
        %480 = vmatpush1.bf16.xpose.msra.mxu0 0
        %481 = vmatprep.subr.bf16.mxu0 0
        %482 = vmatpush1.bf16.xpose.msra.mxu0 0
        %483 = vmatprep.subr.bf16.mxu0 0
        %484 = vmatpush1.bf16.xpose.msra.mxu0 %v473
        %485 = vmatprep.subr.bf16.mxu0 0
        %486 = vmatpush1.bf16.xpose.msra.mxu0 %v470
        %487 = vmatprep.subr.bf16.mxu0 0
        %488 = vmatpush1.bf16.xpose.msra.mxu0 %v467
        %489 = vmatprep.subr.bf16.mxu0 0
        %490 = vmatpush1.bf16.xpose.msra.mxu0 %v464
        %491 = vmatprep.subr.bf16.mxu0 0
        %492 = vmatpush2.bf16.xpose.msra.mxu0 0
        %493 = vmatprep.subr.bf16.mxu0 0
        %494 = vmatpush2.bf16.xpose.msra.mxu0 0
        %495 = vmatprep.subr.bf16.mxu0 0
        %496 = vmatpush2.bf16.xpose.msra.mxu0 0
        %497 = vmatprep.subr.bf16.mxu0 0
        %498 = vmatpush2.bf16.xpose.msra.mxu0 0
        %499 = vmatprep.subr.bf16.mxu0 0
        %500 = vmatpush2.bf16.xpose.msra.mxu0 0
        %501 = vmatprep.subr.bf16.mxu0 0
        %502 = vmatpush2.bf16.xpose.msra.mxu0 0
        %503 = vmatprep.subr.bf16.mxu0 0
        %504 = vmatpush2.bf16.xpose.msra.mxu0 0
        %505 = vmatprep.subr.bf16.mxu0 0
        %506 = vmatpush2.bf16.xpose.msra.mxu0 0
        %507 = vmatprep.mubr.bf16.mxu0 0
        %508 = vmatmul.mubr.bf16.gmra.mxu0 %v452
        %v509 = vpop.f32.mrf.mxu0
        %v510 = vadd.f32 0.0, %v509
        %v511 = vpop.f32.mrf.mxu0
        %v512 = vpop.f32.mrf.mxu0
        %v513 = vadd.f32 0.0, %v512
        %v514 = vpop.f32.mrf.mxu0
        %515 = vmatprep.mubr.bf16.mxu0 0
        %516 = vmatmul.mubr.bf16.gmra.mxu0 %v455
        %v517 = vpop.f32.mrf.mxu0
        %v518 = vadd.f32 0.0, %v517
        %v519 = vpop.f32.mrf.mxu0
        %v520 = vpop.f32.mrf.mxu0
        %v521 = vadd.f32 0.0, %v520
        %v522 = vpop.f32.mrf.mxu0
        %523 = vmatprep.mubr.bf16.mxu0 0
        %524 = vmatmul.mubr.bf16.gmra.mxu0 %v458
        %v525 = vpop.f32.mrf.mxu0
        %v526 = vadd.f32 0.0, %v525
        %v527 = vpop.f32.mrf.mxu0
        %v528 = vpop.f32.mrf.mxu0
        %v529 = vadd.f32 0.0, %v528
        %v530 = vpop.f32.mrf.mxu0
        %531 = vmatprep.mubr.bf16.mxu0 0
        %532 = vmatmul.mubr.bf16.gmra.mxu0 %v461
        %v533 = vpop.f32.mrf.mxu0
        %v534 = vadd.f32 0.0, %v533
        %v535 = vpop.f32.mrf.mxu0
        %v536 = vpop.f32.mrf.mxu0
        %v537 = vadd.f32 0.0, %v536
        %v538 = vpop.f32.mrf.mxu0
        %539 = vdwg.mxu0
        %vm540 = vcmask 523264
        %v541 = vsel %vm540, %v510, -inf
        %542 = vmax.xlane.f32.xlu0 %v541
        %v543 = vpop.xlane.xlu0 %542
        %v544 = vsel %vm540, %v513, -inf
        %545 = vmax.xlane.f32.xlu0 %v544
        %v546 = vpop.xlane.xlu0 %545
        %v547 = vsel %vm540, %v518, -inf
        %548 = vmax.xlane.f32.xlu0 %v547
        %v549 = vpop.xlane.xlu0 %548
        %v550 = vsel %vm540, %v521, -inf
        %551 = vmax.xlane.f32.xlu0 %v550
        %v552 = vpop.xlane.xlu0 %551
        %v553 = vsel %vm540, %v526, -inf
        %554 = vmax.xlane.f32.xlu0 %v553
        %v555 = vpop.xlane.xlu0 %554
        %v556 = vsel %vm540, %v529, -inf
        %557 = vmax.xlane.f32.xlu0 %v556
        %v558 = vpop.xlane.xlu0 %557
        %v559 = vsel %vm540, %v534, -inf
        %560 = vmax.xlane.f32.xlu0 %v559
        %v561 = vpop.xlane.xlu0 %560
        %v562 = vsel %vm540, %v537, -inf
        %563 = vmax.xlane.f32.xlu0 %v562
        %v564 = vpop.xlane.xlu0 %563
        %v565 = vsub.f32 %v510, %v543
        %v566 = vsub.f32 %v513, %v546
        %v567 = vsub.f32 %v518, %v549
        %v568 = vsub.f32 %v521, %v552
        %v569 = vsub.f32 %v526, %v555
        %v570 = vsub.f32 %v529, %v558
        %v571 = vsub.f32 %v534, %v561
        %v572 = vsub.f32 %v537, %v564
        %v573 = vmul.f32 %v565, 1.442695
        %v574 = vpow.pop %v573
        %v575 = vmul.f32 %v566, 1.442695
        %v576 = vpow.pop %v575
        %v577 = vmul.f32 %v567, 1.442695
        %v578 = vpow.pop %v577
        %v579 = vmul.f32 %v568, 1.442695
        %v580 = vpow.pop %v579
        %v581 = vmul.f32 %v569, 1.442695
        %v582 = vpow.pop %v581
        %v583 = vmul.f32 %v570, 1.442695
        %v584 = vpow.pop %v583
        %v585 = vmul.f32 %v571, 1.442695
        %v586 = vpow.pop %v585
        %v587 = vmul.f32 %v572, 1.442695
        %v588 = vpow.pop %v587
        %v589 = vsel %vm540, %v574, 0.0
        %590 = vadd.xlane.f32.xlu0 %v589
        %v591 = vpop.xlane.xlu0 %590
        %v592 = vsel %vm540, %v576, 0.0
        %593 = vadd.xlane.f32.xlu0 %v592
        %v594 = vpop.xlane.xlu0 %593
        %v595 = vsel %vm540, %v578, 0.0
        %596 = vadd.xlane.f32.xlu0 %v595
        %v597 = vpop.xlane.xlu0 %596
        %v598 = vsel %vm540, %v580, 0.0
        %599 = vadd.xlane.f32.xlu0 %v598
        %v600 = vpop.xlane.xlu0 %599
        %v601 = vsel %vm540, %v582, 0.0
        %602 = vadd.xlane.f32.xlu0 %v601
        %v603 = vpop.xlane.xlu0 %602
        %v604 = vsel %vm540, %v584, 0.0
        %605 = vadd.xlane.f32.xlu0 %v604
        %v606 = vpop.xlane.xlu0 %605
        %v607 = vsel %vm540, %v586, 0.0
        %608 = vadd.xlane.f32.xlu0 %v607
        %v609 = vpop.xlane.xlu0 %608
        %v610 = vsel %vm540, %v588, 0.0
        %611 = vadd.xlane.f32.xlu0 %v610
        %v612 = vpop.xlane.xlu0 %611
        %v613 = vrcp.pop %v591
        %v614 = vrcp.pop %v594
        %v615 = vrcp.pop %v597
        %v616 = vrcp.pop %v600
        %v617 = vrcp.pop %v603
        %v618 = vrcp.pop %v606
        %v619 = vrcp.pop %v609
        %v620 = vrcp.pop %v612
        %v621 = vmul.f32 %v574, %v613
        %v622 = vmul.f32 %v576, %v614
        %v623 = vmul.f32 %v578, %v615
        %v624 = vmul.f32 %v580, %v616
        %v625 = vmul.f32 %v582, %v617
        %v626 = vmul.f32 %v584, %v618
        %v627 = vmul.f32 %v586, %v619
        %v628 = vmul.f32 %v588, %v620
        %v629 = vpack.c.bf16 %v622, %v621
        %v630 = vpack.c.bf16 %v624, %v623
        %v631 = vpack.c.bf16 %v626, %v625
        %v632 = vpack.c.bf16 %v628, %v627
        %v634 = vsel %vm540, %v629, 0
        %v637 = vsel %vm540, %v630, 0
        %v640 = vsel %vm540, %v631, 0
        %v643 = vsel %vm540, %v632, 0
        %645 = vmatprep.subr.bf16.mxu0 0
        %646 = vmatpush1.bf16.msra.mxu0 0
        %647 = vmatprep.subr.bf16.mxu0 0
        %648 = vmatpush1.bf16.msra.mxu0 0
        %649 = vmatprep.subr.bf16.mxu0 0
        %650 = vmatpush1.bf16.msra.mxu0 0
        %651 = vmatprep.subr.bf16.mxu0 0
        %652 = vmatpush1.bf16.msra.mxu0 0
        %653 = vmatprep.subr.bf16.mxu0 0
        %654 = vmatpush1.bf16.msra.mxu0 %v449
        %655 = vmatprep.subr.bf16.mxu0 0
        %656 = vmatpush1.bf16.msra.mxu0 %v448
        %657 = vmatprep.subr.bf16.mxu0 0
        %658 = vmatpush1.bf16.msra.mxu0 %v447
        %659 = vmatprep.subr.bf16.mxu0 0
        %660 = vmatpush1.bf16.msra.mxu0 %v446
        %661 = vmatprep.subr.bf16.mxu0 0
        %662 = vmatpush2.bf16.msra.mxu0 0
        %663 = vmatprep.subr.bf16.mxu0 0
        %664 = vmatpush2.bf16.msra.mxu0 0
        %665 = vmatprep.subr.bf16.mxu0 0
        %666 = vmatpush2.bf16.msra.mxu0 0
        %667 = vmatprep.subr.bf16.mxu0 0
        %668 = vmatpush2.bf16.msra.mxu0 0
        %669 = vmatprep.subr.bf16.mxu0 0
        %670 = vmatpush2.bf16.msra.mxu0 0
        %671 = vmatprep.subr.bf16.mxu0 0
        %672 = vmatpush2.bf16.msra.mxu0 0
        %673 = vmatprep.subr.bf16.mxu0 0
        %674 = vmatpush2.bf16.msra.mxu0 0
        %675 = vmatprep.subr.bf16.mxu0 0
        %676 = vmatpush2.bf16.msra.mxu0 0
        %677 = vmatprep.mubr.bf16.mxu0 0
        %678 = vmatmul.mubr.bf16.gmra.mxu0 %v634
        %v679 = vpop.f32.mrf.mxu0
        %v680 = vadd.f32 0.0, %v679
        %v681 = vpop.f32.mrf.mxu0
        %v682 = vpop.f32.mrf.mxu0
        %v683 = vadd.f32 0.0, %v682
        %v684 = vpop.f32.mrf.mxu0
        %685 = vmatprep.mubr.bf16.mxu0 0
        %686 = vmatmul.mubr.bf16.gmra.mxu0 %v637
        %v687 = vpop.f32.mrf.mxu0
        %v688 = vadd.f32 0.0, %v687
        %v689 = vpop.f32.mrf.mxu0
        %v690 = vpop.f32.mrf.mxu0
        %v691 = vadd.f32 0.0, %v690
        %v692 = vpop.f32.mrf.mxu0
        %693 = vmatprep.mubr.bf16.mxu0 0
        %694 = vmatmul.mubr.bf16.gmra.mxu0 %v640
        %v695 = vpop.f32.mrf.mxu0
        %v696 = vadd.f32 0.0, %v695
        %v697 = vpop.f32.mrf.mxu0
        %v698 = vpop.f32.mrf.mxu0
        %v699 = vadd.f32 0.0, %v698
        %v700 = vpop.f32.mrf.mxu0
        %701 = vmatprep.mubr.bf16.mxu0 0
        %702 = vmatmul.mubr.bf16.gmra.mxu0 %v643
        %v703 = vpop.f32.mrf.mxu0
        %v704 = vadd.f32 0.0, %v703
        %v705 = vpop.f32.mrf.mxu0
        %v706 = vpop.f32.mrf.mxu0
        %v707 = vadd.f32 0.0, %v706
        %v708 = vpop.f32.mrf.mxu0
        %709 = vdwg.mxu0
        %710 = vst.msk [vmem:[%s404] sm:$0xff] %vm450, %v680
        %711 = vst.msk [vmem:[%s404 + $0x8] sm:$0xff] %vm450, %v683
        %712 = vst.msk [vmem:[%s404 + $0x10] sm:$0xff] %vm450, %v688
        %713 = vst.msk [vmem:[%s404 + $0x18] sm:$0xff] %vm450, %v691
        %714 = vst.msk [vmem:[%s404 + $0x20] sm:$0xff] %vm450, %v696
        %715 = vst.msk [vmem:[%s404 + $0x28] sm:$0xff] %vm450, %v699
        %716 = vst.msk [vmem:[%s404 + $0x30] sm:$0xff] %vm450, %v704
        %717 = vst.msk [vmem:[%s404 + $0x38] sm:$0xff] %vm450, %v707
        %722 = vrot.lane.b32.xlu0 %v438, 96
        %v723 = vpop.permute.xlu0 %722
        %724 = vrot.lane.b32.xlu0 %v439, 96
        %v725 = vpop.permute.xlu0 %724
        %726 = vrot.lane.b32.xlu0 %v440, 96
        %v727 = vpop.permute.xlu0 %726
        %728 = vrot.lane.b32.xlu0 %v441, 96
        %v729 = vpop.permute.xlu0 %728
        %734 = vrot.lane.b32.xlu0 %v442, 96
        %v735 = vpop.permute.xlu0 %734
        %736 = vrot.lane.b32.xlu0 %v443, 96
        %v737 = vpop.permute.xlu0 %736
        %738 = vrot.lane.b32.xlu0 %v444, 96
        %v739 = vpop.permute.xlu0 %738
        %740 = vrot.lane.b32.xlu0 %v445, 96
        %v741 = vpop.permute.xlu0 %740
        %v743 = vsel %vm450, %v723, 0
        %v746 = vsel %vm450, %v725, 0
        %v749 = vsel %vm450, %v727, 0
        %v752 = vsel %vm450, %v729, 0
        %v755 = vsel %vm450, %v735, 0
        %v758 = vsel %vm450, %v737, 0
        %v761 = vsel %vm450, %v739, 0
        %v764 = vsel %vm450, %v741, 0
        %766 = vmatprep.subr.bf16.mxu0 0
        %767 = vmatpush1.bf16.xpose.msra.mxu0 0
        %768 = vmatprep.subr.bf16.mxu0 0
        %769 = vmatpush1.bf16.xpose.msra.mxu0 0
        %770 = vmatprep.subr.bf16.mxu0 0
        %771 = vmatpush1.bf16.xpose.msra.mxu0 0
        %772 = vmatprep.subr.bf16.mxu0 0
        %773 = vmatpush1.bf16.xpose.msra.mxu0 0
        %774 = vmatprep.subr.bf16.mxu0 0
        %775 = vmatpush1.bf16.xpose.msra.mxu0 %v764
        %776 = vmatprep.subr.bf16.mxu0 0
        %777 = vmatpush1.bf16.xpose.msra.mxu0 %v761
        %778 = vmatprep.subr.bf16.mxu0 0
        %779 = vmatpush1.bf16.xpose.msra.mxu0 %v758
        %780 = vmatprep.subr.bf16.mxu0 0
        %781 = vmatpush1.bf16.xpose.msra.mxu0 %v755
        %782 = vmatprep.subr.bf16.mxu0 0
        %783 = vmatpush2.bf16.xpose.msra.mxu0 0
        %784 = vmatprep.subr.bf16.mxu0 0
        %785 = vmatpush2.bf16.xpose.msra.mxu0 0
        %786 = vmatprep.subr.bf16.mxu0 0
        %787 = vmatpush2.bf16.xpose.msra.mxu0 0
        %788 = vmatprep.subr.bf16.mxu0 0
        %789 = vmatpush2.bf16.xpose.msra.mxu0 0
        %790 = vmatprep.subr.bf16.mxu0 0
        %791 = vmatpush2.bf16.xpose.msra.mxu0 0
        %792 = vmatprep.subr.bf16.mxu0 0
        %793 = vmatpush2.bf16.xpose.msra.mxu0 0
        %794 = vmatprep.subr.bf16.mxu0 0
        %795 = vmatpush2.bf16.xpose.msra.mxu0 0
        %796 = vmatprep.subr.bf16.mxu0 0
        %797 = vmatpush2.bf16.xpose.msra.mxu0 0
        %798 = vmatprep.mubr.bf16.mxu0 0
        %799 = vmatmul.mubr.bf16.gmra.mxu0 %v743
        %v800 = vpop.f32.mrf.mxu0
        %v801 = vadd.f32 0.0, %v800
        %v802 = vpop.f32.mrf.mxu0
        %v803 = vpop.f32.mrf.mxu0
        %v804 = vadd.f32 0.0, %v803
        %v805 = vpop.f32.mrf.mxu0
        %806 = vmatprep.mubr.bf16.mxu0 0
        %807 = vmatmul.mubr.bf16.gmra.mxu0 %v746
        %v808 = vpop.f32.mrf.mxu0
        %v809 = vadd.f32 0.0, %v808
        %v810 = vpop.f32.mrf.mxu0
        %v811 = vpop.f32.mrf.mxu0
        %v812 = vadd.f32 0.0, %v811
        %v813 = vpop.f32.mrf.mxu0
        %814 = vmatprep.mubr.bf16.mxu0 0
        %815 = vmatmul.mubr.bf16.gmra.mxu0 %v749
        %v816 = vpop.f32.mrf.mxu0
        %v817 = vadd.f32 0.0, %v816
        %v818 = vpop.f32.mrf.mxu0
        %v819 = vpop.f32.mrf.mxu0
        %v820 = vadd.f32 0.0, %v819
        %v821 = vpop.f32.mrf.mxu0
        %822 = vmatprep.mubr.bf16.mxu0 0
        %823 = vmatmul.mubr.bf16.gmra.mxu0 %v752
        %v824 = vpop.f32.mrf.mxu0
        %v825 = vadd.f32 0.0, %v824
        %v826 = vpop.f32.mrf.mxu0
        %v827 = vpop.f32.mrf.mxu0
        %v828 = vadd.f32 0.0, %v827
        %v829 = vpop.f32.mrf.mxu0
        %830 = vdwg.mxu0
        %v831 = vsel %vm540, %v801, -inf
        %832 = vmax.xlane.f32.xlu0 %v831
        %v833 = vpop.xlane.xlu0 %832
        %v834 = vsel %vm540, %v804, -inf
        %835 = vmax.xlane.f32.xlu0 %v834
        %v836 = vpop.xlane.xlu0 %835
        %v837 = vsel %vm540, %v809, -inf
        %838 = vmax.xlane.f32.xlu0 %v837
        %v839 = vpop.xlane.xlu0 %838
        %v840 = vsel %vm540, %v812, -inf
        %841 = vmax.xlane.f32.xlu0 %v840
        %v842 = vpop.xlane.xlu0 %841
        %v843 = vsel %vm540, %v817, -inf
        %844 = vmax.xlane.f32.xlu0 %v843
        %v845 = vpop.xlane.xlu0 %844
        %v846 = vsel %vm540, %v820, -inf
        %847 = vmax.xlane.f32.xlu0 %v846
        %v848 = vpop.xlane.xlu0 %847
        %v849 = vsel %vm540, %v825, -inf
        %850 = vmax.xlane.f32.xlu0 %v849
        %v851 = vpop.xlane.xlu0 %850
        %v852 = vsel %vm540, %v828, -inf
        %853 = vmax.xlane.f32.xlu0 %v852
        %v854 = vpop.xlane.xlu0 %853
        %v855 = vsub.f32 %v801, %v833
        %v856 = vsub.f32 %v804, %v836
        %v857 = vsub.f32 %v809, %v839
        %v858 = vsub.f32 %v812, %v842
        %v859 = vsub.f32 %v817, %v845
        %v860 = vsub.f32 %v820, %v848
        %v861 = vsub.f32 %v825, %v851
        %v862 = vsub.f32 %v828, %v854
        %v863 = vmul.f32 %v855, 1.442695
        %v864 = vpow.pop %v863
        %v865 = vmul.f32 %v856, 1.442695
        %v866 = vpow.pop %v865
        %v867 = vmul.f32 %v857, 1.442695
        %v868 = vpow.pop %v867
        %v869 = vmul.f32 %v858, 1.442695
        %v870 = vpow.pop %v869
        %v871 = vmul.f32 %v859, 1.442695
        %v872 = vpow.pop %v871
        %v873 = vmul.f32 %v860, 1.442695
        %v874 = vpow.pop %v873
        %v875 = vmul.f32 %v861, 1.442695
        %v876 = vpow.pop %v875
        %v877 = vmul.f32 %v862, 1.442695
        %v878 = vpow.pop %v877
        %v879 = vsel %vm540, %v864, 0.0
        %880 = vadd.xlane.f32.xlu0 %v879
        %v881 = vpop.xlane.xlu0 %880
        %v882 = vsel %vm540, %v866, 0.0
        %883 = vadd.xlane.f32.xlu0 %v882
        %v884 = vpop.xlane.xlu0 %883
        %v885 = vsel %vm540, %v868, 0.0
        %886 = vadd.xlane.f32.xlu0 %v885
        %v887 = vpop.xlane.xlu0 %886
        %v888 = vsel %vm540, %v870, 0.0
        %889 = vadd.xlane.f32.xlu0 %v888
        %v890 = vpop.xlane.xlu0 %889
        %v891 = vsel %vm540, %v872, 0.0
        %892 = vadd.xlane.f32.xlu0 %v891
        %v893 = vpop.xlane.xlu0 %892
        %v894 = vsel %vm540, %v874, 0.0
        %895 = vadd.xlane.f32.xlu0 %v894
        %v896 = vpop.xlane.xlu0 %895
        %v897 = vsel %vm540, %v876, 0.0
        %898 = vadd.xlane.f32.xlu0 %v897
        %v899 = vpop.xlane.xlu0 %898
        %v900 = vsel %vm540, %v878, 0.0
        %901 = vadd.xlane.f32.xlu0 %v900
        %v902 = vpop.xlane.xlu0 %901
        %v903 = vrcp.pop %v881
        %v904 = vrcp.pop %v884
        %v905 = vrcp.pop %v887
        %v906 = vrcp.pop %v890
        %v907 = vrcp.pop %v893
        %v908 = vrcp.pop %v896
        %v909 = vrcp.pop %v899
        %v910 = vrcp.pop %v902
        %v911 = vmul.f32 %v864, %v903
        %v912 = vmul.f32 %v866, %v904
        %v913 = vmul.f32 %v868, %v905
        %v914 = vmul.f32 %v870, %v906
        %v915 = vmul.f32 %v872, %v907
        %v916 = vmul.f32 %v874, %v908
        %v917 = vmul.f32 %v876, %v909
        %v918 = vmul.f32 %v878, %v910
        %v919 = vpack.c.bf16 %v912, %v911
        %v920 = vpack.c.bf16 %v914, %v913
        %v921 = vpack.c.bf16 %v916, %v915
        %v922 = vpack.c.bf16 %v918, %v917
        %927 = vrot.lane.b32.xlu0 %v446, 96
        %v928 = vpop.permute.xlu0 %927
        %929 = vrot.lane.b32.xlu0 %v447, 96
        %v930 = vpop.permute.xlu0 %929
        %931 = vrot.lane.b32.xlu0 %v448, 96
        %v932 = vpop.permute.xlu0 %931
        %933 = vrot.lane.b32.xlu0 %v449, 96
        %v934 = vpop.permute.xlu0 %933
        %v940 = vsel %vm540, %v919, 0
        %v943 = vsel %vm540, %v920, 0
        %v946 = vsel %vm540, %v921, 0
        %v949 = vsel %vm540, %v922, 0
        %951 = vmatprep.subr.bf16.mxu0 0
        %952 = vmatpush1.bf16.msra.mxu0 0
        %953 = vmatprep.subr.bf16.mxu0 0
        %954 = vmatpush1.bf16.msra.mxu0 0
        %955 = vmatprep.subr.bf16.mxu0 0
        %956 = vmatpush1.bf16.msra.mxu0 0
        %957 = vmatprep.subr.bf16.mxu0 0
        %958 = vmatpush1.bf16.msra.mxu0 0
        %959 = vmatprep.subr.bf16.mxu0 0
        %960 = vmatpush1.bf16.msra.mxu0 %v934
        %961 = vmatprep.subr.bf16.mxu0 0
        %962 = vmatpush1.bf16.msra.mxu0 %v932
        %963 = vmatprep.subr.bf16.mxu0 0
        %964 = vmatpush1.bf16.msra.mxu0 %v930
        %965 = vmatprep.subr.bf16.mxu0 0
        %966 = vmatpush1.bf16.msra.mxu0 %v928
        %967 = vmatprep.subr.bf16.mxu0 0
        %968 = vmatpush2.bf16.msra.mxu0 0
        %969 = vmatprep.subr.bf16.mxu0 0
        %970 = vmatpush2.bf16.msra.mxu0 0
        %971 = vmatprep.subr.bf16.mxu0 0
        %972 = vmatpush2.bf16.msra.mxu0 0
        %973 = vmatprep.subr.bf16.mxu0 0
        %974 = vmatpush2.bf16.msra.mxu0 0
        %975 = vmatprep.subr.bf16.mxu0 0
        %976 = vmatpush2.bf16.msra.mxu0 0
        %977 = vmatprep.subr.bf16.mxu0 0
        %978 = vmatpush2.bf16.msra.mxu0 0
        %979 = vmatprep.subr.bf16.mxu0 0
        %980 = vmatpush2.bf16.msra.mxu0 0
        %981 = vmatprep.subr.bf16.mxu0 0
        %982 = vmatpush2.bf16.msra.mxu0 0
        %983 = vmatprep.mubr.bf16.mxu0 0
        %984 = vmatmul.mubr.bf16.gmra.mxu0 %v940
        %v985 = vpop.f32.mrf.mxu0
        %v986 = vadd.f32 0.0, %v985
        %v987 = vpop.f32.mrf.mxu0
        %v988 = vpop.f32.mrf.mxu0
        %v989 = vadd.f32 0.0, %v988
        %v990 = vpop.f32.mrf.mxu0
        %991 = vmatprep.mubr.bf16.mxu0 0
        %992 = vmatmul.mubr.bf16.gmra.mxu0 %v943
        %v993 = vpop.f32.mrf.mxu0
        %v994 = vadd.f32 0.0, %v993
        %v995 = vpop.f32.mrf.mxu0
        %v996 = vpop.f32.mrf.mxu0
        %v997 = vadd.f32 0.0, %v996
        %v998 = vpop.f32.mrf.mxu0
        %999 = vmatprep.mubr.bf16.mxu0 0
        %1000 = vmatmul.mubr.bf16.gmra.mxu0 %v946
        %v1001 = vpop.f32.mrf.mxu0
        %v1002 = vadd.f32 0.0, %v1001
        %v1003 = vpop.f32.mrf.mxu0
        %v1004 = vpop.f32.mrf.mxu0
        %v1005 = vadd.f32 0.0, %v1004
        %v1006 = vpop.f32.mrf.mxu0
        %1007 = vmatprep.mubr.bf16.mxu0 0
        %1008 = vmatmul.mubr.bf16.gmra.mxu0 %v949
        %v1009 = vpop.f32.mrf.mxu0
        %v1010 = vadd.f32 0.0, %v1009
        %v1011 = vpop.f32.mrf.mxu0
        %v1012 = vpop.f32.mrf.mxu0
        %v1013 = vadd.f32 0.0, %v1012
        %v1014 = vpop.f32.mrf.mxu0
        %1015 = vdwg.mxu0
        %1024 = vrot.lane.b32.xlu0 %v986, 32
        %v1025 = vpop.permute.xlu0 %1024
        %1026 = vrot.lane.b32.xlu0 %v989, 32
        %v1027 = vpop.permute.xlu0 %1026
        %1028 = vrot.lane.b32.xlu0 %v994, 32
        %v1029 = vpop.permute.xlu0 %1028
        %1030 = vrot.lane.b32.xlu0 %v997, 32
        %v1031 = vpop.permute.xlu0 %1030
        %1032 = vrot.lane.b32.xlu0 %v1002, 32
        %v1033 = vpop.permute.xlu0 %1032
        %1034 = vrot.lane.b32.xlu0 %v1005, 32
        %v1035 = vpop.permute.xlu0 %1034
        %1036 = vrot.lane.b32.xlu0 %v1010, 32
        %v1037 = vpop.permute.xlu0 %1036
        %1038 = vrot.lane.b32.xlu0 %v1013, 32
        %v1039 = vpop.permute.xlu0 %1038
        %vm1048 = vcmask 523520
        %1049 = vst.msk [vmem:[%s404] sm:$0xff] %vm1048, %v1025
        %1050 = vst.msk [vmem:[%s404 + $0x8] sm:$0xff] %vm1048, %v1027
        %1051 = vst.msk [vmem:[%s404 + $0x10] sm:$0xff] %vm1048, %v1029
        %1052 = vst.msk [vmem:[%s404 + $0x18] sm:$0xff] %vm1048, %v1031
        %1053 = vst.msk [vmem:[%s404 + $0x20] sm:$0xff] %vm1048, %v1033
        %1054 = vst.msk [vmem:[%s404 + $0x28] sm:$0xff] %vm1048, %v1035
        %1055 = vst.msk [vmem:[%s404 + $0x30] sm:$0xff] %vm1048, %v1037
        %1056 = vst.msk [vmem:[%s404 + $0x38] sm:$0xff] %vm1048, %v1039
        %1057 = vrot.lane.b32.xlu0 %v438, 64
        %v1058 = vpop.permute.xlu0 %1057
        %1059 = vrot.lane.b32.xlu0 %v439, 64
        %v1060 = vpop.permute.xlu0 %1059
        %1061 = vrot.lane.b32.xlu0 %v440, 64
        %v1062 = vpop.permute.xlu0 %1061
        %1063 = vrot.lane.b32.xlu0 %v441, 64
        %v1064 = vpop.permute.xlu0 %1063
        %1065 = vrot.lane.b32.xlu0 %v442, 64
        %v1066 = vpop.permute.xlu0 %1065
        %1067 = vrot.lane.b32.xlu0 %v443, 64
        %v1068 = vpop.permute.xlu0 %1067
        %1069 = vrot.lane.b32.xlu0 %v444, 64
        %v1070 = vpop.permute.xlu0 %1069
        %1071 = vrot.lane.b32.xlu0 %v445, 64
        %v1072 = vpop.permute.xlu0 %1071
        %v1074 = vsel %vm450, %v1058, 0
        %v1077 = vsel %vm450, %v1060, 0
        %v1080 = vsel %vm450, %v1062, 0
        %v1083 = vsel %vm450, %v1064, 0
        %v1086 = vsel %vm450, %v1066, 0
        %v1089 = vsel %vm450, %v1068, 0
        %v1092 = vsel %vm450, %v1070, 0
        %v1095 = vsel %vm450, %v1072, 0
        %1097 = vmatprep.subr.bf16.mxu0 0
        %1098 = vmatpush1.bf16.xpose.msra.mxu0 0
        %1099 = vmatprep.subr.bf16.mxu0 0
        %1100 = vmatpush1.bf16.xpose.msra.mxu0 0
        %1101 = vmatprep.subr.bf16.mxu0 0
        %1102 = vmatpush1.bf16.xpose.msra.mxu0 0
        %1103 = vmatprep.subr.bf16.mxu0 0
        %1104 = vmatpush1.bf16.xpose.msra.mxu0 0
        %1105 = vmatprep.subr.bf16.mxu0 0
        %1106 = vmatpush1.bf16.xpose.msra.mxu0 %v1095
        %1107 = vmatprep.subr.bf16.mxu0 0
        %1108 = vmatpush1.bf16.xpose.msra.mxu0 %v1092
        %1109 = vmatprep.subr.bf16.mxu0 0
        %1110 = vmatpush1.bf16.xpose.msra.mxu0 %v1089
        %1111 = vmatprep.subr.bf16.mxu0 0
        %1112 = vmatpush1.bf16.xpose.msra.mxu0 %v1086
        %1113 = vmatprep.subr.bf16.mxu0 0
        %1114 = vmatpush2.bf16.xpose.msra.mxu0 0
        %1115 = vmatprep.subr.bf16.mxu0 0
        %1116 = vmatpush2.bf16.xpose.msra.mxu0 0
        %1117 = vmatprep.subr.bf16.mxu0 0
        %1118 = vmatpush2.bf16.xpose.msra.mxu0 0
        %1119 = vmatprep.subr.bf16.mxu0 0
        %1120 = vmatpush2.bf16.xpose.msra.mxu0 0
        %1121 = vmatprep.subr.bf16.mxu0 0
        %1122 = vmatpush2.bf16.xpose.msra.mxu0 0
        %1123 = vmatprep.subr.bf16.mxu0 0
        %1124 = vmatpush2.bf16.xpose.msra.mxu0 0
        %1125 = vmatprep.subr.bf16.mxu0 0
        %1126 = vmatpush2.bf16.xpose.msra.mxu0 0
        %1127 = vmatprep.subr.bf16.mxu0 0
        %1128 = vmatpush2.bf16.xpose.msra.mxu0 0
        %1129 = vmatprep.mubr.bf16.mxu0 0
        %1130 = vmatmul.mubr.bf16.gmra.mxu0 %v1074
        %v1131 = vpop.f32.mrf.mxu0
        %v1132 = vadd.f32 0.0, %v1131
        %v1133 = vpop.f32.mrf.mxu0
        %v1134 = vpop.f32.mrf.mxu0
        %v1135 = vadd.f32 0.0, %v1134
        %v1136 = vpop.f32.mrf.mxu0
        %1137 = vmatprep.mubr.bf16.mxu0 0
        %1138 = vmatmul.mubr.bf16.gmra.mxu0 %v1077
        %v1139 = vpop.f32.mrf.mxu0
        %v1140 = vadd.f32 0.0, %v1139
        %v1141 = vpop.f32.mrf.mxu0
        %v1142 = vpop.f32.mrf.mxu0
        %v1143 = vadd.f32 0.0, %v1142
        %v1144 = vpop.f32.mrf.mxu0
        %1145 = vmatprep.mubr.bf16.mxu0 0
        %1146 = vmatmul.mubr.bf16.gmra.mxu0 %v1080
        %v1147 = vpop.f32.mrf.mxu0
        %v1148 = vadd.f32 0.0, %v1147
        %v1149 = vpop.f32.mrf.mxu0
        %v1150 = vpop.f32.mrf.mxu0
        %v1151 = vadd.f32 0.0, %v1150
        %v1152 = vpop.f32.mrf.mxu0
        %1153 = vmatprep.mubr.bf16.mxu0 0
        %1154 = vmatmul.mubr.bf16.gmra.mxu0 %v1083
        %v1155 = vpop.f32.mrf.mxu0
        %v1156 = vadd.f32 0.0, %v1155
        %v1157 = vpop.f32.mrf.mxu0
        %v1158 = vpop.f32.mrf.mxu0
        %v1159 = vadd.f32 0.0, %v1158
        %v1160 = vpop.f32.mrf.mxu0
        %1161 = vdwg.mxu0
        %v1162 = vsel %vm540, %v1132, -inf
        %1163 = vmax.xlane.f32.xlu0 %v1162
        %v1164 = vpop.xlane.xlu0 %1163
        %v1165 = vsel %vm540, %v1135, -inf
        %1166 = vmax.xlane.f32.xlu0 %v1165
        %v1167 = vpop.xlane.xlu0 %1166
        %v1168 = vsel %vm540, %v1140, -inf
        %1169 = vmax.xlane.f32.xlu0 %v1168
        %v1170 = vpop.xlane.xlu0 %1169
        %v1171 = vsel %vm540, %v1143, -inf
        %1172 = vmax.xlane.f32.xlu0 %v1171
        %v1173 = vpop.xlane.xlu0 %1172
        %v1174 = vsel %vm540, %v1148, -inf
        %1175 = vmax.xlane.f32.xlu0 %v1174
        %v1176 = vpop.xlane.xlu0 %1175
        %v1177 = vsel %vm540, %v1151, -inf
        %1178 = vmax.xlane.f32.xlu0 %v1177
        %v1179 = vpop.xlane.xlu0 %1178
        %v1180 = vsel %vm540, %v1156, -inf
        %1181 = vmax.xlane.f32.xlu0 %v1180
        %v1182 = vpop.xlane.xlu0 %1181
        %v1183 = vsel %vm540, %v1159, -inf
        %1184 = vmax.xlane.f32.xlu0 %v1183
        %v1185 = vpop.xlane.xlu0 %1184
        %v1186 = vsub.f32 %v1132, %v1164
        %v1187 = vsub.f32 %v1135, %v1167
        %v1188 = vsub.f32 %v1140, %v1170
        %v1189 = vsub.f32 %v1143, %v1173
        %v1190 = vsub.f32 %v1148, %v1176
        %v1191 = vsub.f32 %v1151, %v1179
        %v1192 = vsub.f32 %v1156, %v1182
        %v1193 = vsub.f32 %v1159, %v1185
        %v1194 = vmul.f32 %v1186, 1.442695
        %v1195 = vpow.pop %v1194
        %v1196 = vmul.f32 %v1187, 1.442695
        %v1197 = vpow.pop %v1196
        %v1198 = vmul.f32 %v1188, 1.442695
        %v1199 = vpow.pop %v1198
        %v1200 = vmul.f32 %v1189, 1.442695
        %v1201 = vpow.pop %v1200
        %v1202 = vmul.f32 %v1190, 1.442695
        %v1203 = vpow.pop %v1202
        %v1204 = vmul.f32 %v1191, 1.442695
        %v1205 = vpow.pop %v1204
        %v1206 = vmul.f32 %v1192, 1.442695
        %v1207 = vpow.pop %v1206
        %v1208 = vmul.f32 %v1193, 1.442695
        %v1209 = vpow.pop %v1208
        %v1210 = vsel %vm540, %v1195, 0.0
        %1211 = vadd.xlane.f32.xlu0 %v1210
        %v1212 = vpop.xlane.xlu0 %1211
        %v1213 = vsel %vm540, %v1197, 0.0
        %1214 = vadd.xlane.f32.xlu0 %v1213
        %v1215 = vpop.xlane.xlu0 %1214
        %v1216 = vsel %vm540, %v1199, 0.0
        %1217 = vadd.xlane.f32.xlu0 %v1216
        %v1218 = vpop.xlane.xlu0 %1217
        %v1219 = vsel %vm540, %v1201, 0.0
        %1220 = vadd.xlane.f32.xlu0 %v1219
        %v1221 = vpop.xlane.xlu0 %1220
        %v1222 = vsel %vm540, %v1203, 0.0
        %1223 = vadd.xlane.f32.xlu0 %v1222
        %v1224 = vpop.xlane.xlu0 %1223
        %v1225 = vsel %vm540, %v1205, 0.0
        %1226 = vadd.xlane.f32.xlu0 %v1225
        %v1227 = vpop.xlane.xlu0 %1226
        %v1228 = vsel %vm540, %v1207, 0.0
        %1229 = vadd.xlane.f32.xlu0 %v1228
        %v1230 = vpop.xlane.xlu0 %1229
        %v1231 = vsel %vm540, %v1209, 0.0
        %1232 = vadd.xlane.f32.xlu0 %v1231
        %v1233 = vpop.xlane.xlu0 %1232
        %v1234 = vrcp.pop %v1212
        %v1235 = vrcp.pop %v1215
        %v1236 = vrcp.pop %v1218
        %v1237 = vrcp.pop %v1221
        %v1238 = vrcp.pop %v1224
        %v1239 = vrcp.pop %v1227
        %v1240 = vrcp.pop %v1230
        %v1241 = vrcp.pop %v1233
        %v1242 = vmul.f32 %v1195, %v1234
        %v1243 = vmul.f32 %v1197, %v1235
        %v1244 = vmul.f32 %v1199, %v1236
        %v1245 = vmul.f32 %v1201, %v1237
        %v1246 = vmul.f32 %v1203, %v1238
        %v1247 = vmul.f32 %v1205, %v1239
        %v1248 = vmul.f32 %v1207, %v1240
        %v1249 = vmul.f32 %v1209, %v1241
        %v1250 = vpack.c.bf16 %v1243, %v1242
        %v1251 = vpack.c.bf16 %v1245, %v1244
        %v1252 = vpack.c.bf16 %v1247, %v1246
        %v1253 = vpack.c.bf16 %v1249, %v1248
        %1254 = vrot.lane.b32.xlu0 %v446, 64
        %v1255 = vpop.permute.xlu0 %1254
        %1256 = vrot.lane.b32.xlu0 %v447, 64
        %v1257 = vpop.permute.xlu0 %1256
        %1258 = vrot.lane.b32.xlu0 %v448, 64
        %v1259 = vpop.permute.xlu0 %1258
        %1260 = vrot.lane.b32.xlu0 %v449, 64
        %v1261 = vpop.permute.xlu0 %1260
        %v1267 = vsel %vm540, %v1250, 0
        %v1270 = vsel %vm540, %v1251, 0
        %v1273 = vsel %vm540, %v1252, 0
        %v1276 = vsel %vm540, %v1253, 0
        %1278 = vmatprep.subr.bf16.mxu0 0
        %1279 = vmatpush1.bf16.msra.mxu0 0
        %1280 = vmatprep.subr.bf16.mxu0 0
        %1281 = vmatpush1.bf16.msra.mxu0 0
        %1282 = vmatprep.subr.bf16.mxu0 0
        %1283 = vmatpush1.bf16.msra.mxu0 0
        %1284 = vmatprep.subr.bf16.mxu0 0
        %1285 = vmatpush1.bf16.msra.mxu0 0
        %1286 = vmatprep.subr.bf16.mxu0 0
        %1287 = vmatpush1.bf16.msra.mxu0 %v1261
        %1288 = vmatprep.subr.bf16.mxu0 0
        %1289 = vmatpush1.bf16.msra.mxu0 %v1259
        %1290 = vmatprep.subr.bf16.mxu0 0
        %1291 = vmatpush1.bf16.msra.mxu0 %v1257
        %1292 = vmatprep.subr.bf16.mxu0 0
        %1293 = vmatpush1.bf16.msra.mxu0 %v1255
        %1294 = vmatprep.subr.bf16.mxu0 0
        %1295 = vmatpush2.bf16.msra.mxu0 0
        %1296 = vmatprep.subr.bf16.mxu0 0
        %1297 = vmatpush2.bf16.msra.mxu0 0
        %1298 = vmatprep.subr.bf16.mxu0 0
        %1299 = vmatpush2.bf16.msra.mxu0 0
        %1300 = vmatprep.subr.bf16.mxu0 0
        %1301 = vmatpush2.bf16.msra.mxu0 0
        %1302 = vmatprep.subr.bf16.mxu0 0
        %1303 = vmatpush2.bf16.msra.mxu0 0
        %1304 = vmatprep.subr.bf16.mxu0 0
        %1305 = vmatpush2.bf16.msra.mxu0 0
        %1306 = vmatprep.subr.bf16.mxu0 0
        %1307 = vmatpush2.bf16.msra.mxu0 0
        %1308 = vmatprep.subr.bf16.mxu0 0
        %1309 = vmatpush2.bf16.msra.mxu0 0
        %1310 = vmatprep.mubr.bf16.mxu0 0
        %1311 = vmatmul.mubr.bf16.gmra.mxu0 %v1267
        %v1312 = vpop.f32.mrf.mxu0
        %v1313 = vadd.f32 0.0, %v1312
        %v1314 = vpop.f32.mrf.mxu0
        %v1315 = vpop.f32.mrf.mxu0
        %v1316 = vadd.f32 0.0, %v1315
        %v1317 = vpop.f32.mrf.mxu0
        %1318 = vmatprep.mubr.bf16.mxu0 0
        %1319 = vmatmul.mubr.bf16.gmra.mxu0 %v1270
        %v1320 = vpop.f32.mrf.mxu0
        %v1321 = vadd.f32 0.0, %v1320
        %v1322 = vpop.f32.mrf.mxu0
        %v1323 = vpop.f32.mrf.mxu0
        %v1324 = vadd.f32 0.0, %v1323
        %v1325 = vpop.f32.mrf.mxu0
        %1326 = vmatprep.mubr.bf16.mxu0 0
        %1327 = vmatmul.mubr.bf16.gmra.mxu0 %v1273
        %v1328 = vpop.f32.mrf.mxu0
        %v1329 = vadd.f32 0.0, %v1328
        %v1330 = vpop.f32.mrf.mxu0
        %v1331 = vpop.f32.mrf.mxu0
        %v1332 = vadd.f32 0.0, %v1331
        %v1333 = vpop.f32.mrf.mxu0
        %1334 = vmatprep.mubr.bf16.mxu0 0
        %1335 = vmatmul.mubr.bf16.gmra.mxu0 %v1276
        %v1336 = vpop.f32.mrf.mxu0
        %v1337 = vadd.f32 0.0, %v1336
        %v1338 = vpop.f32.mrf.mxu0
        %v1339 = vpop.f32.mrf.mxu0
        %v1340 = vadd.f32 0.0, %v1339
        %v1341 = vpop.f32.mrf.mxu0
        %1342 = vdwg.mxu0
        %1351 = vrot.lane.b32.xlu0 %v1313, 64
        %v1352 = vpop.permute.xlu0 %1351
        %1353 = vrot.lane.b32.xlu0 %v1316, 64
        %v1354 = vpop.permute.xlu0 %1353
        %1355 = vrot.lane.b32.xlu0 %v1321, 64
        %v1356 = vpop.permute.xlu0 %1355
        %1357 = vrot.lane.b32.xlu0 %v1324, 64
        %v1358 = vpop.permute.xlu0 %1357
        %1359 = vrot.lane.b32.xlu0 %v1329, 64
        %v1360 = vpop.permute.xlu0 %1359
        %1361 = vrot.lane.b32.xlu0 %v1332, 64
        %v1362 = vpop.permute.xlu0 %1361
        %1363 = vrot.lane.b32.xlu0 %v1337, 64
        %v1364 = vpop.permute.xlu0 %1363
        %1365 = vrot.lane.b32.xlu0 %v1340, 64
        %v1366 = vpop.permute.xlu0 %1365
        %vm1375 = vcmask 785920
        %1376 = vst.msk [vmem:[%s404] sm:$0xff] %vm1375, %v1352
        %1377 = vst.msk [vmem:[%s404 + $0x8] sm:$0xff] %vm1375, %v1354
        %1378 = vst.msk [vmem:[%s404 + $0x10] sm:$0xff] %vm1375, %v1356
        %1379 = vst.msk [vmem:[%s404 + $0x18] sm:$0xff] %vm1375, %v1358
        %1380 = vst.msk [vmem:[%s404 + $0x20] sm:$0xff] %vm1375, %v1360
        %1381 = vst.msk [vmem:[%s404 + $0x28] sm:$0xff] %vm1375, %v1362
        %1382 = vst.msk [vmem:[%s404 + $0x30] sm:$0xff] %vm1375, %v1364
        %1383 = vst.msk [vmem:[%s404 + $0x38] sm:$0xff] %vm1375, %v1366
        %1384 = vrot.lane.b32.xlu0 %v438, 32
        %v1385 = vpop.permute.xlu0 %1384
        %1386 = vrot.lane.b32.xlu0 %v439, 32
        %v1387 = vpop.permute.xlu0 %1386
        %1388 = vrot.lane.b32.xlu0 %v440, 32
        %v1389 = vpop.permute.xlu0 %1388
        %1390 = vrot.lane.b32.xlu0 %v441, 32
        %v1391 = vpop.permute.xlu0 %1390
        %1392 = vrot.lane.b32.xlu0 %v442, 32
        %v1393 = vpop.permute.xlu0 %1392
        %1394 = vrot.lane.b32.xlu0 %v443, 32
        %v1395 = vpop.permute.xlu0 %1394
        %1396 = vrot.lane.b32.xlu0 %v444, 32
        %v1397 = vpop.permute.xlu0 %1396
        %1398 = vrot.lane.b32.xlu0 %v445, 32
        %v1399 = vpop.permute.xlu0 %1398
        %v1401 = vsel %vm450, %v1385, 0
        %v1404 = vsel %vm450, %v1387, 0
        %v1407 = vsel %vm450, %v1389, 0
        %v1410 = vsel %vm450, %v1391, 0
        %v1413 = vsel %vm450, %v1393, 0
        %v1416 = vsel %vm450, %v1395, 0
        %v1419 = vsel %vm450, %v1397, 0
        %v1422 = vsel %vm450, %v1399, 0
        %1424 = vmatprep.subr.bf16.mxu0 0
        %1425 = vmatpush1.bf16.xpose.msra.mxu0 0
        %1426 = vmatprep.subr.bf16.mxu0 0
        %1427 = vmatpush1.bf16.xpose.msra.mxu0 0
        %1428 = vmatprep.subr.bf16.mxu0 0
        %1429 = vmatpush1.bf16.xpose.msra.mxu0 0
        %1430 = vmatprep.subr.bf16.mxu0 0
        %1431 = vmatpush1.bf16.xpose.msra.mxu0 0
        %1432 = vmatprep.subr.bf16.mxu0 0
        %1433 = vmatpush1.bf16.xpose.msra.mxu0 %v1422
        %1434 = vmatprep.subr.bf16.mxu0 0
        %1435 = vmatpush1.bf16.xpose.msra.mxu0 %v1419
        %1436 = vmatprep.subr.bf16.mxu0 0
        %1437 = vmatpush1.bf16.xpose.msra.mxu0 %v1416
        %1438 = vmatprep.subr.bf16.mxu0 0
        %1439 = vmatpush1.bf16.xpose.msra.mxu0 %v1413
        %1440 = vmatprep.subr.bf16.mxu0 0
        %1441 = vmatpush2.bf16.xpose.msra.mxu0 0
        %1442 = vmatprep.subr.bf16.mxu0 0
        %1443 = vmatpush2.bf16.xpose.msra.mxu0 0
        %1444 = vmatprep.subr.bf16.mxu0 0
        %1445 = vmatpush2.bf16.xpose.msra.mxu0 0
        %1446 = vmatprep.subr.bf16.mxu0 0
        %1447 = vmatpush2.bf16.xpose.msra.mxu0 0
        %1448 = vmatprep.subr.bf16.mxu0 0
        %1449 = vmatpush2.bf16.xpose.msra.mxu0 0
        %1450 = vmatprep.subr.bf16.mxu0 0
        %1451 = vmatpush2.bf16.xpose.msra.mxu0 0
        %1452 = vmatprep.subr.bf16.mxu0 0
        %1453 = vmatpush2.bf16.xpose.msra.mxu0 0
        %1454 = vmatprep.subr.bf16.mxu0 0
        %1455 = vmatpush2.bf16.xpose.msra.mxu0 0
        %1456 = vmatprep.mubr.bf16.mxu0 0
        %1457 = vmatmul.mubr.bf16.gmra.mxu0 %v1401
        %v1458 = vpop.f32.mrf.mxu0
        %v1459 = vadd.f32 0.0, %v1458
        %v1460 = vpop.f32.mrf.mxu0
        %v1461 = vpop.f32.mrf.mxu0
        %v1462 = vadd.f32 0.0, %v1461
        %v1463 = vpop.f32.mrf.mxu0
        %1464 = vmatprep.mubr.bf16.mxu0 0
        %1465 = vmatmul.mubr.bf16.gmra.mxu0 %v1404
        %v1466 = vpop.f32.mrf.mxu0
        %v1467 = vadd.f32 0.0, %v1466
        %v1468 = vpop.f32.mrf.mxu0
        %v1469 = vpop.f32.mrf.mxu0
        %v1470 = vadd.f32 0.0, %v1469
        %v1471 = vpop.f32.mrf.mxu0
        %1472 = vmatprep.mubr.bf16.mxu0 0
        %1473 = vmatmul.mubr.bf16.gmra.mxu0 %v1407
        %v1474 = vpop.f32.mrf.mxu0
        %v1475 = vadd.f32 0.0, %v1474
        %v1476 = vpop.f32.mrf.mxu0
        %v1477 = vpop.f32.mrf.mxu0
        %v1478 = vadd.f32 0.0, %v1477
        %v1479 = vpop.f32.mrf.mxu0
        %1480 = vmatprep.mubr.bf16.mxu0 0
        %1481 = vmatmul.mubr.bf16.gmra.mxu0 %v1410
        %v1482 = vpop.f32.mrf.mxu0
        %v1483 = vadd.f32 0.0, %v1482
        %v1484 = vpop.f32.mrf.mxu0
        %v1485 = vpop.f32.mrf.mxu0
        %v1486 = vadd.f32 0.0, %v1485
        %v1487 = vpop.f32.mrf.mxu0
        %1488 = vdwg.mxu0
        %v1489 = vsel %vm540, %v1459, -inf
        %1490 = vmax.xlane.f32.xlu0 %v1489
        %v1491 = vpop.xlane.xlu0 %1490
        %v1492 = vsel %vm540, %v1462, -inf
        %1493 = vmax.xlane.f32.xlu0 %v1492
        %v1494 = vpop.xlane.xlu0 %1493
        %v1495 = vsel %vm540, %v1467, -inf
        %1496 = vmax.xlane.f32.xlu0 %v1495
        %v1497 = vpop.xlane.xlu0 %1496
        %v1498 = vsel %vm540, %v1470, -inf
        %1499 = vmax.xlane.f32.xlu0 %v1498
        %v1500 = vpop.xlane.xlu0 %1499
        %v1501 = vsel %vm540, %v1475, -inf
        %1502 = vmax.xlane.f32.xlu0 %v1501
        %v1503 = vpop.xlane.xlu0 %1502
        %v1504 = vsel %vm540, %v1478, -inf
        %1505 = vmax.xlane.f32.xlu0 %v1504
        %v1506 = vpop.xlane.xlu0 %1505
        %v1507 = vsel %vm540, %v1483, -inf
        %1508 = vmax.xlane.f32.xlu0 %v1507
        %v1509 = vpop.xlane.xlu0 %1508
        %v1510 = vsel %vm540, %v1486, -inf
        %1511 = vmax.xlane.f32.xlu0 %v1510
        %v1512 = vpop.xlane.xlu0 %1511
        %v1513 = vsub.f32 %v1459, %v1491
        %v1514 = vsub.f32 %v1462, %v1494
        %v1515 = vsub.f32 %v1467, %v1497
        %v1516 = vsub.f32 %v1470, %v1500
        %v1517 = vsub.f32 %v1475, %v1503
        %v1518 = vsub.f32 %v1478, %v1506
        %v1519 = vsub.f32 %v1483, %v1509
        %v1520 = vsub.f32 %v1486, %v1512
        %v1521 = vmul.f32 %v1513, 1.442695
        %v1522 = vpow.pop %v1521
        %v1523 = vmul.f32 %v1514, 1.442695
        %v1524 = vpow.pop %v1523
        %v1525 = vmul.f32 %v1515, 1.442695
        %v1526 = vpow.pop %v1525
        %v1527 = vmul.f32 %v1516, 1.442695
        %v1528 = vpow.pop %v1527
        %v1529 = vmul.f32 %v1517, 1.442695
        %v1530 = vpow.pop %v1529
        %v1531 = vmul.f32 %v1518, 1.442695
        %v1532 = vpow.pop %v1531
        %v1533 = vmul.f32 %v1519, 1.442695
        %v1534 = vpow.pop %v1533
        %v1535 = vmul.f32 %v1520, 1.442695
        %v1536 = vpow.pop %v1535
        %v1537 = vsel %vm540, %v1522, 0.0
        %1538 = vadd.xlane.f32.xlu0 %v1537
        %v1539 = vpop.xlane.xlu0 %1538
        %v1540 = vsel %vm540, %v1524, 0.0
        %1541 = vadd.xlane.f32.xlu0 %v1540
        %v1542 = vpop.xlane.xlu0 %1541
        %v1543 = vsel %vm540, %v1526, 0.0
        %1544 = vadd.xlane.f32.xlu0 %v1543
        %v1545 = vpop.xlane.xlu0 %1544
        %v1546 = vsel %vm540, %v1528, 0.0
        %1547 = vadd.xlane.f32.xlu0 %v1546
        %v1548 = vpop.xlane.xlu0 %1547
        %v1549 = vsel %vm540, %v1530, 0.0
        %1550 = vadd.xlane.f32.xlu0 %v1549
        %v1551 = vpop.xlane.xlu0 %1550
        %v1552 = vsel %vm540, %v1532, 0.0
        %1553 = vadd.xlane.f32.xlu0 %v1552
        %v1554 = vpop.xlane.xlu0 %1553
        %v1555 = vsel %vm540, %v1534, 0.0
        %1556 = vadd.xlane.f32.xlu0 %v1555
        %v1557 = vpop.xlane.xlu0 %1556
        %v1558 = vsel %vm540, %v1536, 0.0
        %1559 = vadd.xlane.f32.xlu0 %v1558
        %v1560 = vpop.xlane.xlu0 %1559
        %v1561 = vrcp.pop %v1539
        %v1562 = vrcp.pop %v1542
        %v1563 = vrcp.pop %v1545
        %v1564 = vrcp.pop %v1548
        %v1565 = vrcp.pop %v1551
        %v1566 = vrcp.pop %v1554
        %v1567 = vrcp.pop %v1557
        %v1568 = vrcp.pop %v1560
        %v1569 = vmul.f32 %v1522, %v1561
        %v1570 = vmul.f32 %v1524, %v1562
        %v1571 = vmul.f32 %v1526, %v1563
        %v1572 = vmul.f32 %v1528, %v1564
        %v1573 = vmul.f32 %v1530, %v1565
        %v1574 = vmul.f32 %v1532, %v1566
        %v1575 = vmul.f32 %v1534, %v1567
        %v1576 = vmul.f32 %v1536, %v1568
        %v1577 = vpack.c.bf16 %v1570, %v1569
        %v1578 = vpack.c.bf16 %v1572, %v1571
        %v1579 = vpack.c.bf16 %v1574, %v1573
        %v1580 = vpack.c.bf16 %v1576, %v1575
        %1581 = vrot.lane.b32.xlu0 %v446, 32
        %v1582 = vpop.permute.xlu0 %1581
        %1583 = vrot.lane.b32.xlu0 %v447, 32
        %v1584 = vpop.permute.xlu0 %1583
        %1585 = vrot.lane.b32.xlu0 %v448, 32
        %v1586 = vpop.permute.xlu0 %1585
        %1587 = vrot.lane.b32.xlu0 %v449, 32
        %v1588 = vpop.permute.xlu0 %1587
        %v1594 = vsel %vm540, %v1577, 0
        %v1597 = vsel %vm540, %v1578, 0
        %v1600 = vsel %vm540, %v1579, 0
        %v1603 = vsel %vm540, %v1580, 0
        %1605 = vmatprep.subr.bf16.mxu0 0
        %1606 = vmatpush1.bf16.msra.mxu0 0
        %1607 = vmatprep.subr.bf16.mxu0 0
        %1608 = vmatpush1.bf16.msra.mxu0 0
        %1609 = vmatprep.subr.bf16.mxu0 0
        %1610 = vmatpush1.bf16.msra.mxu0 0
        %1611 = vmatprep.subr.bf16.mxu0 0
        %1612 = vmatpush1.bf16.msra.mxu0 0
        %1613 = vmatprep.subr.bf16.mxu0 0
        %1614 = vmatpush1.bf16.msra.mxu0 %v1588
        %1615 = vmatprep.subr.bf16.mxu0 0
        %1616 = vmatpush1.bf16.msra.mxu0 %v1586
        %1617 = vmatprep.subr.bf16.mxu0 0
        %1618 = vmatpush1.bf16.msra.mxu0 %v1584
        %1619 = vmatprep.subr.bf16.mxu0 0
        %1620 = vmatpush1.bf16.msra.mxu0 %v1582
        %1621 = vmatprep.subr.bf16.mxu0 0
        %1622 = vmatpush2.bf16.msra.mxu0 0
        %1623 = vmatprep.subr.bf16.mxu0 0
        %1624 = vmatpush2.bf16.msra.mxu0 0
        %1625 = vmatprep.subr.bf16.mxu0 0
        %1626 = vmatpush2.bf16.msra.mxu0 0
        %1627 = vmatprep.subr.bf16.mxu0 0
        %1628 = vmatpush2.bf16.msra.mxu0 0
        %1629 = vmatprep.subr.bf16.mxu0 0
        %1630 = vmatpush2.bf16.msra.mxu0 0
        %1631 = vmatprep.subr.bf16.mxu0 0
        %1632 = vmatpush2.bf16.msra.mxu0 0
        %1633 = vmatprep.subr.bf16.mxu0 0
        %1634 = vmatpush2.bf16.msra.mxu0 0
        %1635 = vmatprep.subr.bf16.mxu0 0
        %1636 = vmatpush2.bf16.msra.mxu0 0
        %1637 = vmatprep.mubr.bf16.mxu0 0
        %1638 = vmatmul.mubr.bf16.gmra.mxu0 %v1594
        %v1639 = vpop.f32.mrf.mxu0
        %v1640 = vadd.f32 0.0, %v1639
        %v1641 = vpop.f32.mrf.mxu0
        %v1642 = vpop.f32.mrf.mxu0
        %v1643 = vadd.f32 0.0, %v1642
        %v1644 = vpop.f32.mrf.mxu0
        %1645 = vmatprep.mubr.bf16.mxu0 0
        %1646 = vmatmul.mubr.bf16.gmra.mxu0 %v1597
        %v1647 = vpop.f32.mrf.mxu0
        %v1648 = vadd.f32 0.0, %v1647
        %v1649 = vpop.f32.mrf.mxu0
        %v1650 = vpop.f32.mrf.mxu0
        %v1651 = vadd.f32 0.0, %v1650
        %v1652 = vpop.f32.mrf.mxu0
        %1653 = vmatprep.mubr.bf16.mxu0 0
        %1654 = vmatmul.mubr.bf16.gmra.mxu0 %v1600
        %v1655 = vpop.f32.mrf.mxu0
        %v1656 = vadd.f32 0.0, %v1655
        %v1657 = vpop.f32.mrf.mxu0
        %v1658 = vpop.f32.mrf.mxu0
        %v1659 = vadd.f32 0.0, %v1658
        %v1660 = vpop.f32.mrf.mxu0
        %1661 = vmatprep.mubr.bf16.mxu0 0
        %1662 = vmatmul.mubr.bf16.gmra.mxu0 %v1603
        %v1663 = vpop.f32.mrf.mxu0
        %v1664 = vadd.f32 0.0, %v1663
        %v1665 = vpop.f32.mrf.mxu0
        %v1666 = vpop.f32.mrf.mxu0
        %v1667 = vadd.f32 0.0, %v1666
        %v1668 = vpop.f32.mrf.mxu0
        %1669 = vdwg.mxu0
        %1678 = vrot.lane.b32.xlu0 %v1640, 96
        %v1679 = vpop.permute.xlu0 %1678
        %1680 = vrot.lane.b32.xlu0 %v1643, 96
        %v1681 = vpop.permute.xlu0 %1680
        %1682 = vrot.lane.b32.xlu0 %v1648, 96
        %v1683 = vpop.permute.xlu0 %1682
        %1684 = vrot.lane.b32.xlu0 %v1651, 96
        %v1685 = vpop.permute.xlu0 %1684
        %1686 = vrot.lane.b32.xlu0 %v1656, 96
        %v1687 = vpop.permute.xlu0 %1686
        %1688 = vrot.lane.b32.xlu0 %v1659, 96
        %v1689 = vpop.permute.xlu0 %1688
        %1690 = vrot.lane.b32.xlu0 %v1664, 96
        %v1691 = vpop.permute.xlu0 %1690
        %1692 = vrot.lane.b32.xlu0 %v1667, 96
        %v1693 = vpop.permute.xlu0 %1692
        %vm1702 = vcmask 1048320
        %1703 = vst.msk [vmem:[%s404] sm:$0xff] %vm1702, %v1679
        %1704 = vst.msk [vmem:[%s404 + $0x8] sm:$0xff] %vm1702, %v1681
        %1705 = vst.msk [vmem:[%s404 + $0x10] sm:$0xff] %vm1702, %v1683
        %1706 = vst.msk [vmem:[%s404 + $0x18] sm:$0xff] %vm1702, %v1685
        %1707 = vst.msk [vmem:[%s404 + $0x20] sm:$0xff] %vm1702, %v1687
        %1708 = vst.msk [vmem:[%s404 + $0x28] sm:$0xff] %vm1702, %v1689
        %1709 = vst.msk [vmem:[%s404 + $0x30] sm:$0xff] %vm1702, %v1691
        %1710 = vst.msk [vmem:[%s404 + $0x38] sm:$0xff] %vm1702, %v1693
        %p1711 = scmp.lt.s32.totalorder %s14, 1
        %s1712 = scalar_select %p1711, %s14, 1
        %s1713 = smul.addr %s1712, 8
        %s1714 = smul.addr %s1713, 8
        %s1715 = scalar_lea.vmem %s3, %s1714
        // Predicated region
        $region147: #{fwd.22} parent=133 // pred_check
          %p1716 = pneg %p110
        $region148: #{fwd.22} parent=133 // pred_check_branch
          %1718 = sbr.rel (%p1716) target = $region150
        $region149: #{fwd.22} parent=133 // pred_region
          _
        $region150: #{fwd.22} parent=133 // pred_fallthru
          _
      $region134: #{fwd.22} parent=5 // pred_fallthru
        _
      %p1719 = scmp.le.s32.totalorder 2, %s9
      // Predicated region
      $region151: #{fwd.22} parent=5 // pred_check
        %p1720 = pneg %p1719
      $region152: #{fwd.22} parent=5 // pred_check_branch
        %1722 = sbr.rel (%p1720) target = $region154
      $region153: #{fwd.22} parent=5 // pred_region
        %s1723 = ssub.s32 %s9, 2
        // Predicated region
        $region155: #{fwd.22} parent=153 // pred_check
          %p1724 = pneg %p116
        $region156: #{fwd.22} parent=153 // pred_check_branch
          %1726 = sbr.rel (%p1724) target = $region158
        $region157: #{fwd.22} parent=153 // pred_region
          %p1727 = scmp.lt.s32.totalorder %s15, 1
          %s1728 = scalar_select %p1727, %s15, 1
          %s1729 = smul.addr %s1728, 8
          %s1730 = smul.addr %s1729, 8
          %s1731 = scalar_lea.vmem %s3, %s1730
        $region158: #{fwd.22} parent=153 // pred_fallthru
          _
      $region154: #{fwd.22} parent=5 // pred_fallthru
        _
    $region6: #{fwd.22} parent=1 // loop_footer
      %s13 = sadd.s32 1, %s9
    $region7: #{fwd.22} parent=1 // loop_footer_branch
      %8 = sbr.rel target = $region3
    $region8: #{fwd.22} parent=1 // loop_exit
      _

// kernel: fwd.24
$region0: #{fwd.24}
  #allocation0 [shape = 'u32[]', space=smem, size = 0x4, offset = 0x4, fixed_abs, tag = 'smem constant byte address 0x4 - core index']
  #allocation1 [shape = 'u32[144,128]{1,0:T(1,128)}', space=vmem, size = 0x12000, scoped, tag = 'internal scratch']
  #allocation2 [shape = 'bf16[64,128]{1,0:T(8,128)(2,1)}', space=vmem, size = 0x4000, scoped, tag = 'scratch operand']
  %s0 = inlined_call_operand.vmem [shape: f32[2,64,128], index: 0, kind: input, shape index: {}]
  %s1 = inlined_call_operand.vmem [shape: f32[2,1,128], index: 1, kind: input, shape index: {}]
  %s2 = inlined_call_operand.vmem [shape: f32[2,1,128], index: 2, kind: input, shape index: {}]
  %s3 = inlined_call_operand.vmem [shape: f32[128,512], index: 3, kind: input, shape index: {}]
  %s4 = inlined_call_operand.vmem [shape: f32[1,512], index: 4, kind: input, shape index: {}]
  %s5 = inlined_call_operand.vmem [shape: f32[2,64,512], index: 5, kind: output, shape index: {}]
  %s6 = sld [smem:[#allocation0]]
  $region99: #{fwd.24} parent=0
    _
  %s8 = ssub.s32 1, %s6
  %s9 = scalar_select 0, %s8, %s6
  $region1: #{fwd.24} parent=0
    #allocation3 [shape = 'u8[262144]{0}', space=vmem, size = 0x40000, scoped, tag = 'input window, operand 3']
    #allocation4 [shape = 'u8[131072]{0}', space=vmem, size = 0x20000, scoped, tag = 'output window, operand 0']
    loop: start=0, step=1, limit=6
    $region2: #{fwd.24} parent=1 // loop_pre_header
      _
    $region3: #{fwd.24} parent=1 // loop_header
      %s11 = sphi 0, %s15
      %p12 = scmp.ge.s32.totalorder %s11, 6
      %s18 = sphi 0, %s37
      %s19 = sphi 0, %s33
      %s20 = sphi 0, %s29
      %s21 = sphi 0, %s18
      %s22 = sphi 0, %s19
      %s23 = sphi 0, %s20
      %s24 = sphi 0, %s21
      %s25 = sphi 0, %s22
      %s26 = sphi 0, %s23
      %s42 = sphi 0, %s44
      %s45 = sphi 0, %s42
      %s46 = sphi 0, %s45
      %s62 = sphi 0, %s46
      %s68 = sphi 0, %s70
      %s71 = sphi 0, %s68
      %s72 = sphi 0, %s71
      %s88 = sphi 0, %s72
      %s94 = sphi 0, %s96
      %s97 = sphi 0, %s94
      %s98 = sphi 0, %s97
      %s114 = sphi 0, %s98
      %s120 = sphi 0, %s122
      %s123 = sphi 0, %s120
      %s124 = sphi 0, %s123
      %s140 = sphi 0, %s124
      %s146 = sphi 0, %s148
      %s149 = sphi 0, %s146
      %s150 = sphi 0, %s149
      %s166 = sphi 0, %s150
      %s176 = sphi 0, %s178
      %s179 = sphi 0, %s176
      %s180 = sphi 0, %s179
      %s196 = sphi 0, %s180
    $region4: #{fwd.24} parent=1 // loop_header_branch
      %14 = sbr.rel (%p12) target = $region8
    $region5: #{fwd.24} parent=1 // loop_body
      %s16 = ssub.s32 %s11, 1
      %s17 = ssub.s32 %s11, 2
      %s27 = sadd.s32 1, %s20
      %p28 = scmp.ge.s32.totalorder %s27, 2
      %s29 = scalar_select %p28, 0, %s27
      %s30 = sadd.s32 1, %s19
      %s31 = scalar_select %p28, %s30, %s19
      %p32 = scmp.ge.s32.totalorder %s31, 1
      %s33 = scalar_select %p32, 0, %s31
      %s34 = sadd.s32 1, %s18
      %s35 = scalar_select %p32, %s34, %s18
      %p36 = scmp.ge.s32.totalorder %s35, 2
      %s37 = scalar_select %p36, 0, %s35
      %s38 = ssub.s32 %s18, %s37
      %s39 = ssub.s32 %s19, %s33
      %s40 = sor.u32 %s38, %s39
      %p41 = scmp.eq.s32.totalorder %s40, 0
      %s43 = sadd.s32 %s42, 1
      %s44 = scalar_select %p41, %s42, %s43
      %p47 = pneg %p41
      %p48 = scmp.eq.s32.totalorder %s11, 3
      %p49 = por %p47, %p48
      %p50 = scmp.ne.s32.totalorder %s42, %s45
      %p51 = scmp.eq.s32.totalorder %s11, 0
      %p52 = por %p50, %p51
      %p53 = scmp.ne.s32.totalorder %s42, %s45
      %p54 = scmp.eq.s32.totalorder %s16, 3
      %p55 = por %p53, %p54
      %p56 = scmp.ne.s32.totalorder %s45, %s46
      %p57 = scmp.eq.s32.totalorder %s16, 0
      %p58 = por %p56, %p57
      %p59 = scmp.ne.s32.totalorder %s45, %s46
      %p60 = scmp.eq.s32.totalorder %s17, 3
      %p61 = por %p59, %p60
      %p63 = scmp.ne.s32.totalorder %s46, %s62
      %p64 = scmp.eq.s32.totalorder %s17, 0
      %p65 = por %p63, %p64
      %s66 = ssub.s32 %s18, %s37
      %p67 = scmp.eq.s32.totalorder %s66, 0
      %s69 = sadd.s32 %s68, 1
      %s70 = scalar_select %p67, %s68, %s69
      %p73 = pneg %p67
      %p74 = scmp.eq.s32.totalorder %s11, 3
      %p75 = por %p73, %p74
      %p76 = scmp.ne.s32.totalorder %s68, %s71
      %p77 = scmp.eq.s32.totalorder %s11, 0
      %p78 = por %p76, %p77
      %p79 = scmp.ne.s32.totalorder %s68, %s71
      %p80 = scmp.eq.s32.totalorder %s16, 3
      %p81 = por %p79, %p80
      %p82 = scmp.ne.s32.totalorder %s71, %s72
      %p83 = scmp.eq.s32.totalorder %s16, 0
      %p84 = por %p82, %p83
      %p85 = scmp.ne.s32.totalorder %s71, %s72
      %p86 = scmp.eq.s32.totalorder %s17, 3
      %p87 = por %p85, %p86
      %p89 = scmp.ne.s32.totalorder %s72, %s88
      %p90 = scmp.eq.s32.totalorder %s17, 0
      %p91 = por %p89, %p90
      %s92 = ssub.s32 %s18, %s37
      %p93 = scmp.eq.s32.totalorder %s92, 0
      %s95 = sadd.s32 %s94, 1
      %s96 = scalar_select %p93, %s94, %s95
      %p99 = pneg %p93
      %p100 = scmp.eq.s32.totalorder %s11, 3
      %p101 = por %p99, %p100
      %p102 = scmp.ne.s32.totalorder %s94, %s97
      %p103 = scmp.eq.s32.totalorder %s11, 0
      %p104 = por %p102, %p103
      %p105 = scmp.ne.s32.totalorder %s94, %s97
      %p106 = scmp.eq.s32.totalorder %s16, 3
      %p107 = por %p105, %p106
      %p108 = scmp.ne.s32.totalorder %s97, %s98
      %p109 = scmp.eq.s32.totalorder %s16, 0
      %p110 = por %p108, %p109
      %p111 = scmp.ne.s32.totalorder %s97, %s98
      %p112 = scmp.eq.s32.totalorder %s17, 3
      %p113 = por %p111, %p112
      %p115 = scmp.ne.s32.totalorder %s98, %s114
      %p116 = scmp.eq.s32.totalorder %s17, 0
      %p117 = por %p115, %p116
      %s118 = ssub.s32 %s20, %s29
      %p119 = scmp.eq.s32.totalorder %s118, 0
      %s121 = sadd.s32 %s120, 1
      %s122 = scalar_select %p119, %s120, %s121
      %p125 = pneg %p119
      %p126 = scmp.eq.s32.totalorder %s11, 3
      %p127 = por %p125, %p126
      %p128 = scmp.ne.s32.totalorder %s120, %s123
      %p129 = scmp.eq.s32.totalorder %s11, 0
      %p130 = por %p128, %p129
      %p131 = scmp.ne.s32.totalorder %s120, %s123
      %p132 = scmp.eq.s32.totalorder %s16, 3
      %p133 = por %p131, %p132
      %p134 = scmp.ne.s32.totalorder %s123, %s124
      %p135 = scmp.eq.s32.totalorder %s16, 0
      %p136 = por %p134, %p135
      %p137 = scmp.ne.s32.totalorder %s123, %s124
      %p138 = scmp.eq.s32.totalorder %s17, 3
      %p139 = por %p137, %p138
      %p141 = scmp.ne.s32.totalorder %s124, %s140
      %p142 = scmp.eq.s32.totalorder %s17, 0
      %p143 = por %p141, %p142
      %s144 = ssub.s32 %s20, %s29
      %p145 = scmp.eq.s32.totalorder %s144, 0
      %s147 = sadd.s32 %s146, 1
      %s148 = scalar_select %p145, %s146, %s147
      %p151 = pneg %p145
      %p152 = scmp.eq.s32.totalorder %s11, 3
      %p153 = por %p151, %p152
      %p154 = scmp.ne.s32.totalorder %s146, %s149
      %p155 = scmp.eq.s32.totalorder %s11, 0
      %p156 = por %p154, %p155
      %p157 = scmp.ne.s32.totalorder %s146, %s149
      %p158 = scmp.eq.s32.totalorder %s16, 3
      %p159 = por %p157, %p158
      %p160 = scmp.ne.s32.totalorder %s149, %s150
      %p161 = scmp.eq.s32.totalorder %s16, 0
      %p162 = por %p160, %p161
      %p163 = scmp.ne.s32.totalorder %s149, %s150
      %p164 = scmp.eq.s32.totalorder %s17, 3
      %p165 = por %p163, %p164
      %p167 = scmp.ne.s32.totalorder %s150, %s166
      %p168 = scmp.eq.s32.totalorder %s17, 0
      %p169 = por %p167, %p168
      %s170 = ssub.s32 %s18, %s37
      %s171 = ssub.s32 %s19, %s33
      %s172 = sor.u32 %s170, %s171
      %s173 = ssub.s32 %s20, %s29
      %s174 = sor.u32 %s172, %s173
      %p175 = scmp.eq.s32.totalorder %s174, 0
      %s177 = sadd.s32 %s176, 1
      %s178 = scalar_select %p175, %s176, %s177
      %p181 = pneg %p175
      %p182 = scmp.eq.s32.totalorder %s11, 3
      %p183 = por %p181, %p182
      %p184 = scmp.ne.s32.totalorder %s176, %s179
      %p185 = scmp.eq.s32.totalorder %s11, 0
      %p186 = por %p184, %p185
      %p187 = scmp.ne.s32.totalorder %s176, %s179
      %p188 = scmp.eq.s32.totalorder %s16, 3
      %p189 = por %p187, %p188
      %p190 = scmp.ne.s32.totalorder %s179, %s180
      %p191 = scmp.eq.s32.totalorder %s16, 0
      %p192 = por %p190, %p191
      %p193 = scmp.ne.s32.totalorder %s179, %s180
      %p194 = scmp.eq.s32.totalorder %s17, 3
      %p195 = por %p193, %p194
      %p197 = scmp.ne.s32.totalorder %s180, %s196
      %p198 = scmp.eq.s32.totalorder %s17, 0
      %p199 = por %p197, %p198
      %p200 = scmp.le.s32.totalorder 1, %s11
      %p201 = scmp.lt.s32.totalorder %s11, 5
      %p202 = pnand %p200, %p201
      %p203 = pneg %p202
      // Predicated region
      $region9: #{fwd.24} parent=5 // pred_check
        _
      $region10: #{fwd.24} parent=5 // pred_check_branch
        %205 = sbr.rel (%p202) target = $region12
      $region11: #{fwd.24} parent=5 // pred_region
        %s206 = ssub.s32 %s11, 1
      $region12: #{fwd.24} parent=5 // pred_fallthru
        _
      %p207 = scmp.lt.s32.totalorder %s11, 4
      // Predicated region
      $region13: #{fwd.24} parent=5 // pred_check
        %p208 = pneg %p207
      $region14: #{fwd.24} parent=5 // pred_check_branch
        %210 = sbr.rel (%p208) target = $region16
      $region15: #{fwd.24} parent=5 // pred_region
        // Predicated region
        $region17: #{fwd.24} parent=15 // pred_check
          %p211 = pneg %p52
        $region18: #{fwd.24} parent=15 // pred_check_branch
          %213 = sbr.rel (%p211) target = $region20
        $region19: #{fwd.24} parent=15 // pred_region
          %s214 = smul.u32 8, %s19
          %p215 = scmp.lt.s32.totalorder %s18, 1
          %s216 = scalar_select %p215, %s18, 1
          %p217 = scmp.lt.s32.totalorder %s214, 7
          %s218 = scalar_select %p217, %s214, 7
          %s219 = smul.addr %s216, 8
          %s220 = sadd.s32 %s218, %s219
          %s221 = smul.addr %s220, 8
          %s222 = scalar_lea.vmem %s0, %s221
          %s223 = smul.u32 8, %s19
        $region20: #{fwd.24} parent=15 // pred_fallthru
          _
        // Predicated region
        $region21: #{fwd.24} parent=15 // pred_check
          %p224 = pneg %p78
        $region22: #{fwd.24} parent=15 // pred_check_branch
          %226 = sbr.rel (%p224) target = $region24
        $region23: #{fwd.24} parent=15 // pred_region
          %p227 = scmp.lt.s32.totalorder %s18, 1
          %s228 = scalar_select %p227, %s18, 1
          %s229 = scalar_lea.vmem %s1, %s228
        $region24: #{fwd.24} parent=15 // pred_fallthru
          _
        // Predicated region
        $region25: #{fwd.24} parent=15 // pred_check
          %p230 = pneg %p104
        $region26: #{fwd.24} parent=15 // pred_check_branch
          %232 = sbr.rel (%p230) target = $region28
        $region27: #{fwd.24} parent=15 // pred_region
          %p233 = scmp.lt.s32.totalorder %s18, 1
          %s234 = scalar_select %p233, %s18, 1
          %s235 = scalar_lea.vmem %s2, %s234
        $region28: #{fwd.24} parent=15 // pred_fallthru
          _
        // Predicated region
        $region29: #{fwd.24} parent=15 // pred_check
          %p236 = pneg %p130
        $region30: #{fwd.24} parent=15 // pred_check_branch
          %238 = sbr.rel (%p236) target = $region32
        $region31: #{fwd.24} parent=15 // pred_region
          %s239 = sand.u32 %s120, 1
          %s240 = sand.u32 %s120, 1
          %s241 = smul.addr %s240, 256
          %s242 = scalar_lea.vmem [#allocation3], %s241
          %s243 = smul.u32 2, %s20
          %s244 = smul.addr %s243, 8
          %s245 = scalar_lea.vmem %s3, %s244
          // Predicated region
          $region33: #{fwd.24} parent=31 // pred_check
            _
          $region34: #{fwd.24} parent=31 // pred_check_branch
            %247 = sbr.rel (0) target = $region36
          $region35: #{fwd.24} parent=31 // pred_region
            // Predicated region
            $region37: #{fwd.24} parent=35 // pred_check
              _
            $region38: #{fwd.24} parent=35 // pred_check_branch
              %249 = sbr.rel (0) target = $region40
            $region39: #{fwd.24} parent=35 // pred_region
              loop: start=0, step=1, limit=1
              $region41: #{fwd.24} parent=39 // loop_pre_header
                _
              $region42: #{fwd.24} parent=39 // loop_header
                %s251 = sphi 0, %s255
                %p252 = scmp.ge.s32.totalorder %s251, 1
                %s256 = sphi %s245, %s245
                %s257 = sphi %s242, %s242
              $region43: #{fwd.24} parent=39 // loop_header_branch
                %254 = sbr.rel (%p252) target = $region47
              $region44: #{fwd.24} parent=39 // loop_body
                %v258 = vld [vmem:[%s256] sm:$0xff]
                %259 = vst [vmem:[%s257] sm:$0xff] %v258
                %v260 = vld [vmem:[%s256 + $0x8] sm:$0xff]
                %261 = vst [vmem:[%s257 + $0x8] sm:$0xff] %v260
                %v262 = vld [vmem:[%s256 + $0x20] sm:$0xff]
                %263 = vst [vmem:[%s257 + $0x10] sm:$0xff] %v262
                %v264 = vld [vmem:[%s256 + $0x28] sm:$0xff]
                %265 = vst [vmem:[%s257 + $0x18] sm:$0xff] %v264
                %v266 = vld [vmem:[%s256 + $0x40] sm:$0xff]
                %267 = vst [vmem:[%s257 + $0x20] sm:$0xff] %v266
                %v268 = vld [vmem:[%s256 + $0x48] sm:$0xff]
                %269 = vst [vmem:[%s257 + $0x28] sm:$0xff] %v268
                %v270 = vld [vmem:[%s256 + $0x60] sm:$0xff]
                %271 = vst [vmem:[%s257 + $0x30] sm:$0xff] %v270
                %v272 = vld [vmem:[%s256 + $0x68] sm:$0xff]
                %273 = vst [vmem:[%s257 + $0x38] sm:$0xff] %v272
                %v274 = vld [vmem:[%s256 + $0x80] sm:$0xff]
                %275 = vst [vmem:[%s257 + $0x40] sm:$0xff] %v274
                %v276 = vld [vmem:[%s256 + $0x88] sm:$0xff]
                %277 = vst [vmem:[%s257 + $0x48] sm:$0xff] %v276
                %v278 = vld [vmem:[%s256 + $0xa0] sm:$0xff]
                %279 = vst [vmem:[%s257 + $0x50] sm:$0xff] %v278
                %v280 = vld [vmem:[%s256 + $0xa8] sm:$0xff]
                %281 = vst [vmem:[%s257 + $0x58] sm:$0xff] %v280
                %v282 = vld [vmem:[%s256 + $0xc0] sm:$0xff]
                %283 = vst [vmem:[%s257 + $0x60] sm:$0xff] %v282
                %v284 = vld [vmem:[%s256 + $0xc8] sm:$0xff]
                %285 = vst [vmem:[%s257 + $0x68] sm:$0xff] %v284
                %v286 = vld [vmem:[%s256 + $0xe0] sm:$0xff]
                %287 = vst [vmem:[%s257 + $0x70] sm:$0xff] %v286
                %v288 = vld [vmem:[%s256 + $0xe8] sm:$0xff]
                %289 = vst [vmem:[%s257 + $0x78] sm:$0xff] %v288
                %v290 = vld [vmem:[%s256 + $0x100] sm:$0xff]
                %291 = vst [vmem:[%s257 + $0x80] sm:$0xff] %v290
                %v292 = vld [vmem:[%s256 + $0x108] sm:$0xff]
                %293 = vst [vmem:[%s257 + $0x88] sm:$0xff] %v292
                %v294 = vld [vmem:[%s256 + $0x120] sm:$0xff]
                %295 = vst [vmem:[%s257 + $0x90] sm:$0xff] %v294
                %v296 = vld [vmem:[%s256 + $0x128] sm:$0xff]
                %297 = vst [vmem:[%s257 + $0x98] sm:$0xff] %v296
                %v298 = vld [vmem:[%s256 + $0x140] sm:$0xff]
                %299 = vst [vmem:[%s257 + $0xa0] sm:$0xff] %v298
                %v300 = vld [vmem:[%s256 + $0x148] sm:$0xff]
                %301 = vst [vmem:[%s257 + $0xa8] sm:$0xff] %v300
                %v302 = vld [vmem:[%s256 + $0x160] sm:$0xff]
                %303 = vst [vmem:[%s257 + $0xb0] sm:$0xff] %v302
                %v304 = vld [vmem:[%s256 + $0x168] sm:$0xff]
                %305 = vst [vmem:[%s257 + $0xb8] sm:$0xff] %v304
                %v306 = vld [vmem:[%s256 + $0x180] sm:$0xff]
                %307 = vst [vmem:[%s257 + $0xc0] sm:$0xff] %v306
                %v308 = vld [vmem:[%s256 + $0x188] sm:$0xff]
                %309 = vst [vmem:[%s257 + $0xc8] sm:$0xff] %v308
                %v310 = vld [vmem:[%s256 + $0x1a0] sm:$0xff]
                %311 = vst [vmem:[%s257 + $0xd0] sm:$0xff] %v310
                %v312 = vld [vmem:[%s256 + $0x1a8] sm:$0xff]
                %313 = vst [vmem:[%s257 + $0xd8] sm:$0xff] %v312
                %v314 = vld [vmem:[%s256 + $0x1c0] sm:$0xff]
                %315 = vst [vmem:[%s257 + $0xe0] sm:$0xff] %v314
                %v316 = vld [vmem:[%s256 + $0x1c8] sm:$0xff]
                %317 = vst [vmem:[%s257 + $0xe8] sm:$0xff] %v316
                %v318 = vld [vmem:[%s256 + $0x1e0] sm:$0xff]
                %319 = vst [vmem:[%s257 + $0xf0] sm:$0xff] %v318
                %v320 = vld [vmem:[%s256 + $0x1e8] sm:$0xff]
                %321 = vst [vmem:[%s257 + $0xf8] sm:$0xff] %v320
              $region45: #{fwd.24} parent=39 // loop_footer
                %s255 = sadd.s32 1, %s251
              $region46: #{fwd.24} parent=39 // loop_footer_branch
                %250 = sbr.rel target = $region42
              $region47: #{fwd.24} parent=39 // loop_exit
                _
            $region40: #{fwd.24} parent=35 // pred_fallthru
              _
            // Predicated region
            $region48: #{fwd.24} parent=35 // pred_check
              _
            $region49: #{fwd.24} parent=35 // pred_check_branch
              %323 = sbr.rel target = $region51
            $region50: #{fwd.24} parent=35 // pred_region
              _
            $region51: #{fwd.24} parent=35 // pred_fallthru
              _
          $region36: #{fwd.24} parent=31 // pred_fallthru
            _
          %324 = vnop
        $region32: #{fwd.24} parent=15 // pred_fallthru
          _
        // Predicated region
        $region52: #{fwd.24} parent=15 // pred_check
          %p325 = pneg %p156
        $region53: #{fwd.24} parent=15 // pred_check_branch
          %327 = sbr.rel (%p325) target = $region55
        $region54: #{fwd.24} parent=15 // pred_region
          %s328 = smul.u32 2, %s20
          %p329 = scmp.lt.s32.totalorder %s328, 3
          %s330 = scalar_select %p329, %s328, 3
          %s331 = scalar_lea.vmem %s4, %s330
          %s332 = smul.u32 2, %s20
        $region55: #{fwd.24} parent=15 // pred_fallthru
          _
      $region16: #{fwd.24} parent=5 // pred_fallthru
        _
      %p333 = scmp.le.s32.totalorder 1, %s11
      %p334 = scmp.lt.s32.totalorder %s11, 5
      %p335 = pnand %p333, %p334
      %p336 = pneg %p335
      // Predicated region
      $region56: #{fwd.24} parent=5 // pred_check
        _
      $region57: #{fwd.24} parent=5 // pred_check_branch
        %338 = sbr.rel (%p335) target = $region59
      $region58: #{fwd.24} parent=5 // pred_region
        %s339 = ssub.s32 %s11, 1
        %s340 = sand.u32 %s123, 1
        %s341 = sand.u32 %s123, 1
        %s342 = smul.addr %s341, 256
        %s343 = scalar_lea.vmem [#allocation3], %s342
        // Predicated region
        $region60: #{fwd.24} parent=58 // pred_check
          %p344 = pneg %p136
        $region61: #{fwd.24} parent=58 // pred_check_branch
          %346 = sbr.rel (%p344) target = $region63
        $region62: #{fwd.24} parent=58 // pred_region
          _
        $region63: #{fwd.24} parent=58 // pred_fallthru
          _
        %s347 = smul.u32 8, %s22
        %p348 = scmp.lt.s32.totalorder %s21, 1
        %s349 = scalar_select %p348, %s21, 1
        %p350 = scmp.lt.s32.totalorder %s347, 7
        %s351 = scalar_select %p350, %s347, 7
        %s352 = smul.addr %s349, 8
        %s353 = sadd.s32 %s351, %s352
        %s354 = smul.addr %s353, 8
        %s355 = scalar_lea.vmem %s0, %s354
        %p356 = pneg %p58
        %p357 = pneg %p55
        %p358 = scmp.lt.s32.totalorder %s21, 1
        %s359 = scalar_select %p358, %s21, 1
        %s360 = scalar_lea.vmem %s1, %s359
        %p361 = pneg %p84
        %p362 = pneg %p81
        %p363 = scmp.lt.s32.totalorder %s21, 1
        %s364 = scalar_select %p363, %s21, 1
        %s365 = scalar_lea.vmem %s2, %s364
        %p366 = pneg %p110
        %p367 = pneg %p107
        %s368 = sand.u32 %s123, 1
        %s369 = sand.u32 %s123, 1
        %s370 = smul.addr %s369, 256
        %s371 = scalar_lea.vmem [#allocation3], %s370
        %p372 = pneg %p136
        %p373 = pneg %p133
        %s374 = smul.u32 2, %s23
        %p375 = scmp.lt.s32.totalorder %s374, 3
        %s376 = scalar_select %p375, %s374, 3
        %s377 = scalar_lea.vmem %s4, %s376
        %p378 = pneg %p162
        %p379 = pneg %p159
        %p380 = pneg %p192
        %p381 = pneg %p189
        %s382 = sand.u32 %s179, 1
        %s383 = sand.u32 %s179, 1
        %s384 = smul.addr %s383, 128
        %s385 = scalar_lea.vmem [#allocation4], %s384
        %s386 = smul.u32 8, %s22
        %p387 = scmp.lt.s32.totalorder %s21, 1
        %s388 = scalar_select %p387, %s21, 1
        %p389 = scmp.lt.s32.totalorder %s386, 7
        %s390 = scalar_select %p389, %s386, 7
        %s391 = smul.addr %s388, 8
        %s392 = sadd.s32 %s390, %s391
        %s393 = smul.addr %s392, 8
        %s394 = scalar_lea.vmem %s0, %s393
        %s395 = smul.u32 8, %s22
        %p396 = scmp.lt.s32.totalorder %s21, 1
        %s397 = scalar_select %p396, %s21, 1
        %s398 = scalar_lea.vmem %s1, %s397
        %p399 = scmp.lt.s32.totalorder %s21, 1
        %s400 = scalar_select %p399, %s21, 1
        %s401 = scalar_lea.vmem %s2, %s400
        %s402 = smul.u32 2, %s23
        %s403 = smul.u32 2, %s23
        %p404 = scmp.lt.s32.totalorder %s403, 3
        %s405 = scalar_select %p404, %s403, 3
        %s406 = scalar_lea.vmem %s4, %s405
        %s407 = smul.u32 2, %s23
        %s408 = smul.u32 8, %s22
        %s409 = smul.u32 2, %s23
        %p411 = scmp.eq.s32.totalorder %s23, 0
        // Predicated region
        $region64: #{fwd.24} parent=58 // pred_check
          %p412 = pneg %p411
        $region65: #{fwd.24} parent=58 // pred_check_branch
          %414 = sbr.rel (%p412) target = $region67
        $region66: #{fwd.24} parent=58 // pred_region
          %v415 = vld [vmem:[%s394] sm:$0xff]
          %v416 = vld [vmem:[%s394 + $0x8] sm:$0xff]
          %v417 = vld [vmem:[%s394 + $0x10] sm:$0xff]
          %v418 = vld [vmem:[%s394 + $0x18] sm:$0xff]
          %v419 = vld [vmem:[%s394 + $0x20] sm:$0xff]
          %v420 = vld [vmem:[%s394 + $0x28] sm:$0xff]
          %v421 = vld [vmem:[%s394 + $0x30] sm:$0xff]
          %v422 = vld [vmem:[%s394 + $0x38] sm:$0xff]
          %423 = vadd.xlane.f32.xlu0 %v415
          %v424 = vpop.xlane.xlu0 %423
          %425 = vadd.xlane.f32.xlu0 %v416
          %v426 = vpop.xlane.xlu0 %425
          %427 = vadd.xlane.f32.xlu0 %v417
          %v428 = vpop.xlane.xlu0 %427
          %429 = vadd.xlane.f32.xlu0 %v418
          %v430 = vpop.xlane.xlu0 %429
          %431 = vadd.xlane.f32.xlu0 %v419
          %v432 = vpop.xlane.xlu0 %431
          %433 = vadd.xlane.f32.xlu0 %v420
          %v434 = vpop.xlane.xlu0 %433
          %435 = vadd.xlane.f32.xlu0 %v421
          %v436 = vpop.xlane.xlu0 %435
          %437 = vadd.xlane.f32.xlu0 %v422
          %v438 = vpop.xlane.xlu0 %437
          %v439 = vrcp.pop 128.0
          %v440 = vmul.f32 %v424, %v439
          %v441 = vmul.f32 %v426, %v439
          %v442 = vmul.f32 %v428, %v439
          %v443 = vmul.f32 %v430, %v439
          %v444 = vmul.f32 %v432, %v439
          %v445 = vmul.f32 %v434, %v439
          %v446 = vmul.f32 %v436, %v439
          %v447 = vmul.f32 %v438, %v439
          %v448 = vsub.f32 %v415, %v440
          %v449 = vsub.f32 %v416, %v441
          %v450 = vsub.f32 %v417, %v442
          %v451 = vsub.f32 %v418, %v443
          %v452 = vsub.f32 %v419, %v444
          %v453 = vsub.f32 %v420, %v445
          %v454 = vsub.f32 %v421, %v446
          %v455 = vsub.f32 %v422, %v447
          %v456 = vmul.f32 %v448, %v448
          %v457 = vmul.f32 %v449, %v449
          %v458 = vmul.f32 %v450, %v450
          %v459 = vmul.f32 %v451, %v451
          %v460 = vmul.f32 %v452, %v452
          %v461 = vmul.f32 %v453, %v453
          %v462 = vmul.f32 %v454, %v454
          %v463 = vmul.f32 %v455, %v455
          %464 = vadd.xlane.f32.xlu0 %v456
          %v465 = vpop.xlane.xlu0 %464
          %466 = vadd.xlane.f32.xlu0 %v457
          %v467 = vpop.xlane.xlu0 %466
          %468 = vadd.xlane.f32.xlu0 %v458
          %v469 = vpop.xlane.xlu0 %468
          %470 = vadd.xlane.f32.xlu0 %v459
          %v471 = vpop.xlane.xlu0 %470
          %472 = vadd.xlane.f32.xlu0 %v460
          %v473 = vpop.xlane.xlu0 %472
          %474 = vadd.xlane.f32.xlu0 %v461
          %v475 = vpop.xlane.xlu0 %474
          %476 = vadd.xlane.f32.xlu0 %v462
          %v477 = vpop.xlane.xlu0 %476
          %478 = vadd.xlane.f32.xlu0 %v463
          %v479 = vpop.xlane.xlu0 %478
          %v480 = vmul.f32 %v465, %v439
          %v481 = vmul.f32 %v467, %v439
          %v482 = vmul.f32 %v469, %v439
          %v483 = vmul.f32 %v471, %v439
          %v484 = vmul.f32 %v473, %v439
          %v485 = vmul.f32 %v475, %v439
          %v486 = vmul.f32 %v477, %v439
          %v487 = vmul.f32 %v479, %v439
          %v488 = vadd.f32 %v480, 1e-06
          %v489 = vadd.f32 %v481, 1e-06
          %v490 = vadd.f32 %v482, 1e-06
          %v491 = vadd.f32 %v483, 1e-06
          %v492 = vadd.f32 %v484, 1e-06
          %v493 = vadd.f32 %v485, 1e-06
          %v494 = vadd.f32 %v486, 1e-06
          %v495 = vadd.f32 %v487, 1e-06
          %v496 = vrsqrt.pop %v488
          %v497 = vrsqrt.pop %v489
          %v498 = vrsqrt.pop %v490
          %v499 = vrsqrt.pop %v491
          %v500 = vrsqrt.pop %v492
          %v501 = vrsqrt.pop %v493
          %v502 = vrsqrt.pop %v494
          %v503 = vrsqrt.pop %v495
          %v504 = vmul.f32 %v448, %v496
          %v505 = vmul.f32 %v449, %v497
          %v506 = vmul.f32 %v450, %v498
          %v507 = vmul.f32 %v451, %v499
          %v508 = vmul.f32 %v452, %v500
          %v509 = vmul.f32 %v453, %v501
          %v510 = vmul.f32 %v454, %v502
          %v511 = vmul.f32 %v455, %v503
          %v512 = vld [vmem:[%s401] sm:$0x1]
          %v513 = vadd.f32 %v512, 1.0
          %v515 = vlaneseq
          %v516 = vshrl.u32 %v515, 7
          %v517 = vsub.s32 0, %v516
          %v518 = vrot.slane %v513, %v517
          %v520 = vmul.f32 %v504, %v518
          %v521 = vmul.f32 %v505, %v518
          %v522 = vmul.f32 %v506, %v518
          %v523 = vmul.f32 %v507, %v518
          %v524 = vmul.f32 %v508, %v518
          %v525 = vmul.f32 %v509, %v518
          %v526 = vmul.f32 %v510, %v518
          %v527 = vmul.f32 %v511, %v518
          %v528 = vld [vmem:[%s398] sm:$0x1]
          %v530 = vlaneseq
          %v531 = vshrl.u32 %v530, 7
          %v532 = vsub.s32 0, %v531
          %v533 = vrot.slane %v528, %v532
          %v535 = vadd.f32 %v520, %v533
          %v536 = vadd.f32 %v521, %v533
          %v537 = vadd.f32 %v522, %v533
          %v538 = vadd.f32 %v523, %v533
          %v539 = vadd.f32 %v524, %v533
          %v540 = vadd.f32 %v525, %v533
          %v541 = vadd.f32 %v526, %v533
          %v542 = vadd.f32 %v527, %v533
          %v543 = vpack.c.bf16 %v536, %v535
          %v544 = vpack.c.bf16 %v538, %v537
          %v545 = vpack.c.bf16 %v540, %v539
          %v546 = vpack.c.bf16 %v542, %v541
          %v551 = vunpack.c.l.b16 %v543
          %v552 = vunpack.c.h.b16 %v543
          %v553 = vunpack.c.l.b16 %v544
          %v554 = vunpack.c.h.b16 %v544
          %v555 = vunpack.c.l.b16 %v545
          %v556 = vunpack.c.h.b16 %v545
          %v557 = vunpack.c.l.b16 %v546
          %v558 = vunpack.c.h.b16 %v546
          %v559 = vpack.c.b16 %v551, %v551
          %v560 = vpack.c.b16 %v552, %v552
          %v561 = vpack.c.b16 %v553, %v553
          %v562 = vpack.c.b16 %v554, %v554
          %v563 = vpack.c.b16 %v555, %v555
          %v564 = vpack.c.b16 %v556, %v556
          %v565 = vpack.c.b16 %v557, %v557
          %v566 = vpack.c.b16 %v558, %v558
          %575 = vst [vmem:[#allocation2] sm:$0xf] %v559
          %576 = vst [vmem:[#allocation2 + $0x4] sm:$0xf] %v560
          %577 = vst [vmem:[#allocation2 + $0x8] sm:$0xf] %v561
          %578 = vst [vmem:[#allocation2 + $0xc] sm:$0xf] %v562
          %579 = vst [vmem:[#allocation2 + $0x10] sm:$0xf] %v563
          %580 = vst [vmem:[#allocation2 + $0x14] sm:$0xf] %v564
          %581 = vst [vmem:[#allocation2 + $0x18] sm:$0xf] %v565
          %582 = vst [vmem:[#allocation2 + $0x1c] sm:$0xf] %v566
        $region67: #{fwd.24} parent=58 // pred_fallthru
          _
        %v583 = vld [vmem:[#allocation2] sm:$0xf]
        %v584 = vld [vmem:[#allocation2 + $0x4] sm:$0xf]
        %v585 = vld [vmem:[#allocation2 + $0x8] sm:$0xf]
        %v586 = vld [vmem:[#allocation2 + $0xc] sm:$0xf]
        %v587 = vld [vmem:[#allocation2 + $0x10] sm:$0xf]
        %v588 = vld [vmem:[#allocation2 + $0x14] sm:$0xf]
        %v589 = vld [vmem:[#allocation2 + $0x18] sm:$0xf]
        %v590 = vld [vmem:[#allocation2 + $0x1c] sm:$0xf]
        %v591 = vld [vmem:[%s343] sm:$0xff]
        %v592 = vld [vmem:[%s343 + $0x8] sm:$0xff]
        %v593 = vld [vmem:[%s343 + $0x10] sm:$0xff]
        %v594 = vld [vmem:[%s343 + $0x18] sm:$0xff]
        %v595 = vld [vmem:[%s343 + $0x20] sm:$0xff]
        %v596 = vld [vmem:[%s343 + $0x28] sm:$0xff]
        %v597 = vld [vmem:[%s343 + $0x30] sm:$0xff]
        %v598 = vld [vmem:[%s343 + $0x38] sm:$0xff]
        %v599 = vld [vmem:[%s343 + $0x40] sm:$0xff]
        %v600 = vld [vmem:[%s343 + $0x48] sm:$0xff]
        %v601 = vld [vmem:[%s343 + $0x50] sm:$0xff]
        %v602 = vld [vmem:[%s343 + $0x58] sm:$0xff]
        %v603 = vld [vmem:[%s343 + $0x60] sm:$0xff]
        %v604 = vld [vmem:[%s343 + $0x68] sm:$0xff]
        %v605 = vld [vmem:[%s343 + $0x70] sm:$0xff]
        %v606 = vld [vmem:[%s343 + $0x78] sm:$0xff]
        %v607 = vld [vmem:[%s343 + $0x80] sm:$0xff]
        %v608 = vld [vmem:[%s343 + $0x88] sm:$0xff]
        %v609 = vld [vmem:[%s343 + $0x90] sm:$0xff]
        %v610 = vld [vmem:[%s343 + $0x98] sm:$0xff]
        %v611 = vld [vmem:[%s343 + $0xa0] sm:$0xff]
        %v612 = vld [vmem:[%s343 + $0xa8] sm:$0xff]
        %v613 = vld [vmem:[%s343 + $0xb0] sm:$0xff]
        %v614 = vld [vmem:[%s343 + $0xb8] sm:$0xff]
        %v615 = vld [vmem:[%s343 + $0xc0] sm:$0xff]
        %v616 = vld [vmem:[%s343 + $0xc8] sm:$0xff]
        %v617 = vld [vmem:[%s343 + $0xd0] sm:$0xff]
        %v618 = vld [vmem:[%s343 + $0xd8] sm:$0xff]
        %v619 = vld [vmem:[%s343 + $0xe0] sm:$0xff]
        %v620 = vld [vmem:[%s343 + $0xe8] sm:$0xff]
        %v621 = vld [vmem:[%s343 + $0xf0] sm:$0xff]
        %v622 = vld [vmem:[%s343 + $0xf8] sm:$0xff]
        %v623 = vpack.c.bf16 %v593, %v591
        %v624 = vpack.c.bf16 %v594, %v592
        %v625 = vpack.c.bf16 %v597, %v595
        %v626 = vpack.c.bf16 %v598, %v596
        %v627 = vpack.c.bf16 %v601, %v599
        %v628 = vpack.c.bf16 %v602, %v600
        %v629 = vpack.c.bf16 %v605, %v603
        %v630 = vpack.c.bf16 %v606, %v604
        %v631 = vpack.c.bf16 %v609, %v607
        %v632 = vpack.c.bf16 %v610, %v608
        %v633 = vpack.c.bf16 %v613, %v611
        %v634 = vpack.c.bf16 %v614, %v612
        %v635 = vpack.c.bf16 %v617, %v615
        %v636 = vpack.c.bf16 %v618, %v616
        %v637 = vpack.c.bf16 %v621, %v619
        %v638 = vpack.c.bf16 %v622, %v620
        %v639 = vld [vmem:[%s406] sm:$0x3]
        %v641 = vlaneseq
        %v642 = vshrl.u32 %v641, 7
        %v643 = vsub.s32 0, %v642
        %v644 = vrot.slane %v639, %v643
        %v645 = vlaneseq
        %v646 = vshrl.u32 %v645, 7
        %v647 = vsub.s32 1, %v646
        %v648 = vrot.slane %v639, %v647
        %v659 = vunpack.c.l.b16 %v583
        %v660 = vunpack.c.l.b16 %v584
        %v661 = vunpack.c.l.b16 %v585
        %v662 = vunpack.c.l.b16 %v586
        %v663 = vunpack.c.l.b16 %v587
        %v664 = vunpack.c.l.b16 %v588
        %v665 = vunpack.c.l.b16 %v589
        %v666 = vunpack.c.l.b16 %v590
        %v667 = vpack.c.b16 %v660, %v659
        %v668 = vpack.c.b16 %v662, %v661
        %v669 = vpack.c.b16 %v664, %v663
        %v670 = vpack.c.b16 %v666, %v665
        %675 = vmatprep.subr.bf16.mxu0 %v638
        %676 = vmatpush1.bf16.msra.mxu0 %v637
        %677 = vmatprep.subr.bf16.mxu0 %v636
        %678 = vmatpush1.bf16.msra.mxu0 %v635
        %679 = vmatprep.subr.bf16.mxu0 %v634
        %680 = vmatpush1.bf16.msra.mxu0 %v633
        %681 = vmatprep.subr.bf16.mxu0 %v632
        %682 = vmatpush1.bf16.msra.mxu0 %v631
        %683 = vmatprep.subr.bf16.mxu0 %v630
        %684 = vmatpush1.bf16.msra.mxu0 %v629
        %685 = vmatprep.subr.bf16.mxu0 %v628
        %686 = vmatpush1.bf16.msra.mxu0 %v627
        %687 = vmatprep.subr.bf16.mxu0 %v626
        %688 = vmatpush1.bf16.msra.mxu0 %v625
        %689 = vmatprep.subr.bf16.mxu0 %v624
        %690 = vmatpush1.bf16.msra.mxu0 %v623
        %691 = vmatprep.subr.bf16.mxu0 0
        %692 = vmatpush2.bf16.msra.mxu0 0
        %693 = vmatprep.subr.bf16.mxu0 0
        %694 = vmatpush2.bf16.msra.mxu0 0
        %695 = vmatprep.subr.bf16.mxu0 0
        %696 = vmatpush2.bf16.msra.mxu0 0
        %697 = vmatprep.subr.bf16.mxu0 0
        %698 = vmatpush2.bf16.msra.mxu0 0
        %699 = vmatprep.subr.bf16.mxu0 0
        %700 = vmatpush2.bf16.msra.mxu0 0
        %701 = vmatprep.subr.bf16.mxu0 0
        %702 = vmatpush2.bf16.msra.mxu0 0
        %703 = vmatprep.subr.bf16.mxu0 0
        %704 = vmatpush2.bf16.msra.mxu0 0
        %705 = vmatprep.subr.bf16.mxu0 0
        %706 = vmatpush2.bf16.msra.mxu0 0
        %707 = vmatprep.mubr.bf16.mxu0 0
        %708 = vmatmul.mubr.bf16.gmra.mxu0 %v667
        %v709 = vpop.f32.mrf.mxu0
        %v710 = vadd.f32 %v644, %v709
        %v711 = vpop.f32.mrf.mxu0
        %v712 = vadd.f32 %v648, %v711
        %v713 = vpop.f32.mrf.mxu0
        %v714 = vadd.f32 %v644, %v713
        %v715 = vpop.f32.mrf.mxu0
        %v716 = vadd.f32 %v648, %v715
        %717 = vmatprep.mubr.bf16.mxu0 0
        %718 = vmatmul.mubr.bf16.gmra.mxu0 %v668
        %v719 = vpop.f32.mrf.mxu0
        %v720 = vadd.f32 %v644, %v719
        %v721 = vpop.f32.mrf.mxu0
        %v722 = vadd.f32 %v648, %v721
        %v723 = vpop.f32.mrf.mxu0
        %v724 = vadd.f32 %v644, %v723
        %v725 = vpop.f32.mrf.mxu0
        %v726 = vadd.f32 %v648, %v725
        %727 = vmatprep.mubr.bf16.mxu0 0
        %728 = vmatmul.mubr.bf16.gmra.mxu0 %v669
        %v729 = vpop.f32.mrf.mxu0
        %v730 = vadd.f32 %v644, %v729
        %v731 = vpop.f32.mrf.mxu0
        %v732 = vadd.f32 %v648, %v731
        %v733 = vpop.f32.mrf.mxu0
        %v734 = vadd.f32 %v644, %v733
        %v735 = vpop.f32.mrf.mxu0
        %v736 = vadd.f32 %v648, %v735
        %737 = vmatprep.mubr.bf16.mxu0 0
        %738 = vmatmul.mubr.bf16.gmra.mxu0 %v670
        %v739 = vpop.f32.mrf.mxu0
        %v740 = vadd.f32 %v644, %v739
        %v741 = vpop.f32.mrf.mxu0
        %v742 = vadd.f32 %v648, %v741
        %v743 = vpop.f32.mrf.mxu0
        %v744 = vadd.f32 %v644, %v743
        %v745 = vpop.f32.mrf.mxu0
        %v746 = vadd.f32 %v648, %v745
        %747 = vdwg.mxu0
        %v748 = vmul.f32 %v710, 0.5
        %v749 = vmul.f32 %v712, 0.5
        %v750 = vmul.f32 %v714, 0.5
        %v751 = vmul.f32 %v716, 0.5
        %v752 = vmul.f32 %v720, 0.5
        %v753 = vmul.f32 %v722, 0.5
        %v754 = vmul.f32 %v724, 0.5
        %v755 = vmul.f32 %v726, 0.5
        %v756 = vmul.f32 %v730, 0.5
        %v757 = vmul.f32 %v732, 0.5
        %v758 = vmul.f32 %v734, 0.5
        %v759 = vmul.f32 %v736, 0.5
        %v760 = vmul.f32 %v740, 0.5
        %v761 = vmul.f32 %v742, 0.5
        %v762 = vmul.f32 %v744, 0.5
        %v763 = vmul.f32 %v746, 0.5
        %v764 = vmul.f32 %v710, 0.044715
        %v765 = vmul.f32 %v712, 0.044715
        %v766 = vmul.f32 %v714, 0.044715
        %v767 = vmul.f32 %v716, 0.044715
        %v768 = vmul.f32 %v720, 0.044715
        %v769 = vmul.f32 %v722, 0.044715
        %v770 = vmul.f32 %v724, 0.044715
        %v771 = vmul.f32 %v726, 0.044715
        %v772 = vmul.f32 %v730, 0.044715
        %v773 = vmul.f32 %v732, 0.044715
        %v774 = vmul.f32 %v734, 0.044715
        %v775 = vmul.f32 %v736, 0.044715
        %v776 = vmul.f32 %v740, 0.044715
        %v777 = vmul.f32 %v742, 0.044715
        %v778 = vmul.f32 %v744, 0.044715
        %v779 = vmul.f32 %v746, 0.044715
        %v780 = vmul.f32 %v764, %v710
        %v781 = vmul.f32 %v765, %v712
        %v782 = vmul.f32 %v766, %v714
        %v783 = vmul.f32 %v767, %v716
        %v784 = vmul.f32 %v768, %v720
        %v785 = vmul.f32 %v769, %v722
        %v786 = vmul.f32 %v770, %v724
        %v787 = vmul.f32 %v771, %v726
        %v788 = vmul.f32 %v772, %v730
        %v789 = vmul.f32 %v773, %v732
        %v790 = vmul.f32 %v774, %v734
        %v791 = vmul.f32 %v775, %v736
        %v792 = vmul.f32 %v776, %v740
        %v793 = vmul.f32 %v777, %v742
        %v794 = vmul.f32 %v778, %v744
        %v795 = vmul.f32 %v779, %v746
        %v796 = vmul.f32 %v780, %v710
        %v797 = vmul.f32 %v781, %v712
        %v798 = vmul.f32 %v782, %v714
        %v799 = vmul.f32 %v783, %v716
        %v800 = vmul.f32 %v784, %v720
        %v801 = vmul.f32 %v785, %v722
        %v802 = vmul.f32 %v786, %v724
        %v803 = vmul.f32 %v787, %v726
        %v804 = vmul.f32 %v788, %v730
        %v805 = vmul.f32 %v789, %v732
        %v806 = vmul.f32 %v790, %v734
        %v807 = vmul.f32 %v791, %v736
        %v808 = vmul.f32 %v792, %v740
        %v809 = vmul.f32 %v793, %v742
        %v810 = vmul.f32 %v794, %v744
        %v811 = vmul.f32 %v795, %v746
        %v812 = vadd.f32 %v710, %v796
        %v813 = vadd.f32 %v712, %v797
        %v814 = vadd.f32 %v714, %v798
        %v815 = vadd.f32 %v716, %v799
        %v816 = vadd.f32 %v720, %v800
        %v817 = vadd.f32 %v722, %v801
        %v818 = vadd.f32 %v724, %v802
        %v819 = vadd.f32 %v726, %v803
        %v820 = vadd.f32 %v730, %v804
        %v821 = vadd.f32 %v732, %v805
        %v822 = vadd.f32 %v734, %v806
        %v823 = vadd.f32 %v736, %v807
        %v824 = vadd.f32 %v740, %v808
        %v825 = vadd.f32 %v742, %v809
        %v826 = vadd.f32 %v744, %v810
        %v827 = vadd.f32 %v746, %v811
        %v828 = vmul.f32 %v812, 0.7978846
        %v829 = vmul.f32 %v813, 0.7978846
        %v830 = vmul.f32 %v814, 0.7978846
        %v831 = vmul.f32 %v815, 0.7978846
        %v832 = vmul.f32 %v816, 0.7978846
        %v833 = vmul.f32 %v817, 0.7978846
        %v834 = vmul.f32 %v818, 0.7978846
        %v835 = vmul.f32 %v819, 0.7978846
        %v836 = vmul.f32 %v820, 0.7978846
        %v837 = vmul.f32 %v821, 0.7978846
        %v838 = vmul.f32 %v822, 0.7978846
        %v839 = vmul.f32 %v823, 0.7978846
        %v840 = vmul.f32 %v824, 0.7978846
        %v841 = vmul.f32 %v825, 0.7978846
        %v842 = vmul.f32 %v826, 0.7978846
        %v843 = vmul.f32 %v827, 0.7978846
        %v844 = vtanh.pop %v828
        %v845 = vtanh.pop %v829
        %v846 = vtanh.pop %v830
        %v847 = vtanh.pop %v831
        %v848 = vtanh.pop %v832
        %v849 = vtanh.pop %v833
        %v850 = vtanh.pop %v834
        %v851 = vtanh.pop %v835
        %v852 = vtanh.pop %v836
        %v853 = vtanh.pop %v837
        %v854 = vtanh.pop %v838
        %v855 = vtanh.pop %v839
        %v856 = vtanh.pop %v840
        %v857 = vtanh.pop %v841
        %v858 = vtanh.pop %v842
        %v859 = vtanh.pop %v843
        %v860 = vadd.f32 %v844, 1.0
        %v861 = vadd.f32 %v845, 1.0
        %v862 = vadd.f32 %v846, 1.0
        %v863 = vadd.f32 %v847, 1.0
        %v864 = vadd.f32 %v848, 1.0
        %v865 = vadd.f32 %v849, 1.0
        %v866 = vadd.f32 %v850, 1.0
        %v867 = vadd.f32 %v851, 1.0
        %v868 = vadd.f32 %v852, 1.0
        %v869 = vadd.f32 %v853, 1.0
        %v870 = vadd.f32 %v854, 1.0
        %v871 = vadd.f32 %v855, 1.0
        %v872 = vadd.f32 %v856, 1.0
        %v873 = vadd.f32 %v857, 1.0
        %v874 = vadd.f32 %v858, 1.0
        %v875 = vadd.f32 %v859, 1.0
        %v876 = vmul.f32 %v748, %v860
        %v877 = vmul.f32 %v749, %v861
        %v878 = vmul.f32 %v750, %v862
        %v879 = vmul.f32 %v751, %v863
        %v880 = vmul.f32 %v752, %v864
        %v881 = vmul.f32 %v753, %v865
        %v882 = vmul.f32 %v754, %v866
        %v883 = vmul.f32 %v755, %v867
        %v884 = vmul.f32 %v756, %v868
        %v885 = vmul.f32 %v757, %v869
        %v886 = vmul.f32 %v758, %v870
        %v887 = vmul.f32 %v759, %v871
        %v888 = vmul.f32 %v760, %v872
        %v889 = vmul.f32 %v761, %v873
        %v890 = vmul.f32 %v762, %v874
        %v891 = vmul.f32 %v763, %v875
        %892 = vst [vmem:[%s385] sm:$0xff] %v876
        %893 = vst [vmem:[%s385 + $0x8] sm:$0xff] %v877
        %894 = vst [vmem:[%s385 + $0x10] sm:$0xff] %v878
        %895 = vst [vmem:[%s385 + $0x18] sm:$0xff] %v879
        %896 = vst [vmem:[%s385 + $0x20] sm:$0xff] %v880
        %897 = vst [vmem:[%s385 + $0x28] sm:$0xff] %v881
        %898 = vst [vmem:[%s385 + $0x30] sm:$0xff] %v882
        %899 = vst [vmem:[%s385 + $0x38] sm:$0xff] %v883
        %900 = vst [vmem:[%s385 + $0x40] sm:$0xff] %v884
        %901 = vst [vmem:[%s385 + $0x48] sm:$0xff] %v885
        %902 = vst [vmem:[%s385 + $0x50] sm:$0xff] %v886
        %903 = vst [vmem:[%s385 + $0x58] sm:$0xff] %v887
        %904 = vst [vmem:[%s385 + $0x60] sm:$0xff] %v888
        %905 = vst [vmem:[%s385 + $0x68] sm:$0xff] %v889
        %906 = vst [vmem:[%s385 + $0x70] sm:$0xff] %v890
        %907 = vst [vmem:[%s385 + $0x78] sm:$0xff] %v891
        %s908 = sand.u32 %s179, 1
        %s909 = sand.u32 %s179, 1
        %s910 = smul.addr %s909, 128
        %s911 = scalar_lea.vmem [#allocation4], %s910
        // Predicated region
        $region68: #{fwd.24} parent=58 // pred_check
          %p912 = pneg %p189
        $region69: #{fwd.24} parent=58 // pred_check_branch
          %914 = sbr.rel (%p912) target = $region71
        $region70: #{fwd.24} parent=58 // pred_region
          %s915 = smul.u32 8, %s22
          %s916 = smul.u32 2, %s23
          %s917 = smul.addr %s915, 4
          %s918 = sadd.s32 %s916, %s917
          %s919 = smul.addr %s21, 32
          %s920 = sadd.s32 %s918, %s919
          %s921 = smul.addr %s920, 8
          %s922 = scalar_lea.vmem %s5, %s921
          // Predicated region
          $region72: #{fwd.24} parent=70 // pred_check
            _
          $region73: #{fwd.24} parent=70 // pred_check_branch
            %924 = sbr.rel (0) target = $region75
          $region74: #{fwd.24} parent=70 // pred_region
            // Predicated region
            $region76: #{fwd.24} parent=74 // pred_check
              _
            $region77: #{fwd.24} parent=74 // pred_check_branch
              %926 = sbr.rel (0) target = $region79
            $region78: #{fwd.24} parent=74 // pred_region
              loop: start=0, step=1, limit=1
              $region80: #{fwd.24} parent=78 // loop_pre_header
                _
              $region81: #{fwd.24} parent=78 // loop_header
                %s928 = sphi 0, %s932
                %p929 = scmp.ge.s32.totalorder %s928, 1
                %s933 = sphi %s911, %s911
                %s934 = sphi %s922, %s922
              $region82: #{fwd.24} parent=78 // loop_header_branch
                %931 = sbr.rel (%p929) target = $region86
              $region83: #{fwd.24} parent=78 // loop_body
                %v935 = vld [vmem:[%s933] sm:$0xff]
                %936 = vst [vmem:[%s934] sm:$0xff] %v935
                %v937 = vld [vmem:[%s933 + $0x8] sm:$0xff]
                %938 = vst [vmem:[%s934 + $0x8] sm:$0xff] %v937
                %v939 = vld [vmem:[%s933 + $0x10] sm:$0xff]
                %940 = vst [vmem:[%s934 + $0x20] sm:$0xff] %v939
                %v941 = vld [vmem:[%s933 + $0x18] sm:$0xff]
                %942 = vst [vmem:[%s934 + $0x28] sm:$0xff] %v941
                %v943 = vld [vmem:[%s933 + $0x20] sm:$0xff]
                %944 = vst [vmem:[%s934 + $0x40] sm:$0xff] %v943
                %v945 = vld [vmem:[%s933 + $0x28] sm:$0xff]
                %946 = vst [vmem:[%s934 + $0x48] sm:$0xff] %v945
                %v947 = vld [vmem:[%s933 + $0x30] sm:$0xff]
                %948 = vst [vmem:[%s934 + $0x60] sm:$0xff] %v947
                %v949 = vld [vmem:[%s933 + $0x38] sm:$0xff]
                %950 = vst [vmem:[%s934 + $0x68] sm:$0xff] %v949
                %v951 = vld [vmem:[%s933 + $0x40] sm:$0xff]
                %952 = vst [vmem:[%s934 + $0x80] sm:$0xff] %v951
                %v953 = vld [vmem:[%s933 + $0x48] sm:$0xff]
                %954 = vst [vmem:[%s934 + $0x88] sm:$0xff] %v953
                %v955 = vld [vmem:[%s933 + $0x50] sm:$0xff]
                %956 = vst [vmem:[%s934 + $0xa0] sm:$0xff] %v955
                %v957 = vld [vmem:[%s933 + $0x58] sm:$0xff]
                %958 = vst [vmem:[%s934 + $0xa8] sm:$0xff] %v957
                %v959 = vld [vmem:[%s933 + $0x60] sm:$0xff]
                %960 = vst [vmem:[%s934 + $0xc0] sm:$0xff] %v959
                %v961 = vld [vmem:[%s933 + $0x68] sm:$0xff]
                %962 = vst [vmem:[%s934 + $0xc8] sm:$0xff] %v961
                %v963 = vld [vmem:[%s933 + $0x70] sm:$0xff]
                %964 = vst [vmem:[%s934 + $0xe0] sm:$0xff] %v963
                %v965 = vld [vmem:[%s933 + $0x78] sm:$0xff]
                %966 = vst [vmem:[%s934 + $0xe8] sm:$0xff] %v965
              $region84: #{fwd.24} parent=78 // loop_footer
                %s932 = sadd.s32 1, %s928
              $region85: #{fwd.24} parent=78 // loop_footer_branch
                %927 = sbr.rel target = $region81
              $region86: #{fwd.24} parent=78 // loop_exit
                _
            $region79: #{fwd.24} parent=74 // pred_fallthru
              _
            // Predicated region
            $region87: #{fwd.24} parent=74 // pred_check
              _
            $region88: #{fwd.24} parent=74 // pred_check_branch
              %968 = sbr.rel target = $region90
            $region89: #{fwd.24} parent=74 // pred_region
              _
            $region90: #{fwd.24} parent=74 // pred_fallthru
              _
          $region75: #{fwd.24} parent=70 // pred_fallthru
            _
          %969 = vnop
        $region71: #{fwd.24} parent=58 // pred_fallthru
          _
      $region59: #{fwd.24} parent=5 // pred_fallthru
        _
      %p970 = scmp.le.s32.totalorder 2, %s11
      // Predicated region
      $region91: #{fwd.24} parent=5 // pred_check
        %p971 = pneg %p970
      $region92: #{fwd.24} parent=5 // pred_check_branch
        %973 = sbr.rel (%p971) target = $region94
      $region93: #{fwd.24} parent=5 // pred_region
        %s974 = ssub.s32 %s11, 2
        // Predicated region
        $region95: #{fwd.24} parent=93 // pred_check
          %p975 = pneg %p195
        $region96: #{fwd.24} parent=93 // pred_check_branch
          %977 = sbr.rel (%p975) target = $region98
        $region97: #{fwd.24} parent=93 // pred_region
          %s978 = sand.u32 %s180, 1
          %s979 = sand.u32 %s180, 1
          %s980 = smul.addr %s979, 128
          %s981 = scalar_lea.vmem [#allocation4], %s980
        $region98: #{fwd.24} parent=93 // pred_fallthru
          _
      $region94: #{fwd.24} parent=5 // pred_fallthru
        _
    $region6: #{fwd.24} parent=1 // loop_footer
      %s15 = sadd.s32 1, %s11
    $region7: #{fwd.24} parent=1 // loop_footer_branch
      %10 = sbr.rel target = $region3
    $region8: #{fwd.24} parent=1 // loop_exit
      _

// kernel: fwd.25
$region0: #{fwd.25}
  #allocation0 [shape = 'u32[]', space=smem, size = 0x4, offset = 0x4, fixed_abs, tag = 'smem constant byte address 0x4 - core index']
  #allocation1 [shape = 'u32[144,128]{1,0:T(1,128)}', space=vmem, size = 0x12000, scoped, tag = 'internal scratch']
  #allocation2 [shape = 'f32[64,128]{1,0:T(8,128)}', space=vmem, size = 0x8000, scoped, tag = 'scratch operand']
  %s0 = inlined_call_operand.vmem [shape: f32[2,64,512], index: 0, kind: input, shape index: {}]
  %s1 = inlined_call_operand.vmem [shape: f32[512,128], index: 1, kind: input, shape index: {}]
  %s2 = inlined_call_operand.vmem [shape: f32[1,128], index: 2, kind: input, shape index: {}]
  %s3 = inlined_call_operand.vmem [shape: f32[2,1,128], index: 3, kind: input, shape index: {}]
  %s4 = inlined_call_operand.vmem [shape: f32[2,64,128], index: 4, kind: input, shape index: {}]
  %s5 = inlined_call_operand.vmem [shape: f32[2,64,128], index: 5, kind: output, shape index: {}]
  %s6 = sld [smem:[#allocation0]]
  $region61: #{fwd.25} parent=0
    _
  %s8 = ssub.s32 1, %s6
  %s9 = scalar_select 0, %s8, %s6
  loop: start=0, step=1, limit=4
  $region2: #{fwd.25} parent=0 // loop_pre_header
    _
  $region3: #{fwd.25} parent=0 // loop_header
    %s11 = sphi 0, %s15
    %p12 = scmp.ge.s32.totalorder %s11, 4
    %s18 = sphi 0, %s44
    %s19 = sphi 0, %s40
    %s20 = sphi 0, %s36
    %s21 = sphi 0, %s32
    %s22 = sphi 0, %s18
    %s23 = sphi 0, %s19
    %s24 = sphi 0, %s20
    %s25 = sphi 0, %s21
    %s26 = sphi 0, %s22
    %s27 = sphi 0, %s23
    %s28 = sphi 0, %s24
    %s29 = sphi 0, %s25
    %s51 = sphi 0, %s53
    %s54 = sphi 0, %s51
    %s55 = sphi 0, %s54
    %s71 = sphi 0, %s55
    %s79 = sphi 0, %s81
    %s82 = sphi 0, %s79
    %s83 = sphi 0, %s82
    %s99 = sphi 0, %s83
    %s105 = sphi 0, %s107
    %s108 = sphi 0, %s105
    %s109 = sphi 0, %s108
    %s125 = sphi 0, %s109
    %s133 = sphi 0, %s135
    %s136 = sphi 0, %s133
    %s137 = sphi 0, %s136
    %s153 = sphi 0, %s137
    %s163 = sphi 0, %s165
    %s166 = sphi 0, %s163
    %s167 = sphi 0, %s166
    %s183 = sphi 0, %s167
    %s193 = sphi 0, %s195
    %s196 = sphi 0, %s193
    %s197 = sphi 0, %s196
    %s213 = sphi 0, %s197
  $region4: #{fwd.25} parent=0 // loop_header_branch
    %14 = sbr.rel (%p12) target = $region8
  $region5: #{fwd.25} parent=0 // loop_body
    %s16 = ssub.s32 %s11, 1
    %s17 = ssub.s32 %s11, 2
    %s30 = sadd.s32 1, %s21
    %p31 = scmp.ge.s32.totalorder %s30, 1
    %s32 = scalar_select %p31, 0, %s30
    %s33 = sadd.s32 1, %s20
    %s34 = scalar_select %p31, %s33, %s20
    %p35 = scmp.ge.s32.totalorder %s34, 1
    %s36 = scalar_select %p35, 0, %s34
    %s37 = sadd.s32 1, %s19
    %s38 = scalar_select %p35, %s37, %s19
    %p39 = scmp.ge.s32.totalorder %s38, 1
    %s40 = scalar_select %p39, 0, %s38
    %s41 = sadd.s32 1, %s18
    %s42 = scalar_select %p39, %s41, %s18
    %p43 = scmp.ge.s32.totalorder %s42, 2
    %s44 = scalar_select %p43, 0, %s42
    %s45 = ssub.s32 %s18, %s44
    %s46 = ssub.s32 %s19, %s40
    %s47 = sor.u32 %s45, %s46
    %s48 = ssub.s32 %s21, %s32
    %s49 = sor.u32 %s47, %s48
    %p50 = scmp.eq.s32.totalorder %s49, 0
    %s52 = sadd.s32 %s51, 1
    %s53 = scalar_select %p50, %s51, %s52
    %p56 = pneg %p50
    %p57 = scmp.eq.s32.totalorder %s11, 1
    %p58 = por %p56, %p57
    %p59 = scmp.ne.s32.totalorder %s51, %s54
    %p60 = scmp.eq.s32.totalorder %s11, 0
    %p61 = por %p59, %p60
    %p62 = scmp.ne.s32.totalorder %s51, %s54
    %p63 = scmp.eq.s32.totalorder %s16, 1
    %p64 = por %p62, %p63
    %p65 = scmp.ne.s32.totalorder %s54, %s55
    %p66 = scmp.eq.s32.totalorder %s16, 0
    %p67 = por %p65, %p66
    %p68 = scmp.ne.s32.totalorder %s54, %s55
    %p69 = scmp.eq.s32.totalorder %s17, 1
    %p70 = por %p68, %p69
    %p72 = scmp.ne.s32.totalorder %s55, %s71
    %p73 = scmp.eq.s32.totalorder %s17, 0
    %p74 = por %p72, %p73
    %s75 = ssub.s32 %s21, %s32
    %s76 = ssub.s32 %s20, %s36
    %s77 = sor.u32 %s75, %s76
    %p78 = scmp.eq.s32.totalorder %s77, 0
    %s80 = sadd.s32 %s79, 1
    %s81 = scalar_select %p78, %s79, %s80
    %p84 = pneg %p78
    %p85 = scmp.eq.s32.totalorder %s11, 1
    %p86 = por %p84, %p85
    %p87 = scmp.ne.s32.totalorder %s79, %s82
    %p88 = scmp.eq.s32.totalorder %s11, 0
    %p89 = por %p87, %p88
    %p90 = scmp.ne.s32.totalorder %s79, %s82
    %p91 = scmp.eq.s32.totalorder %s16, 1
    %p92 = por %p90, %p91
    %p93 = scmp.ne.s32.totalorder %s82, %s83
    %p94 = scmp.eq.s32.totalorder %s16, 0
    %p95 = por %p93, %p94
    %p96 = scmp.ne.s32.totalorder %s82, %s83
    %p97 = scmp.eq.s32.totalorder %s17, 1
    %p98 = por %p96, %p97
    %p100 = scmp.ne.s32.totalorder %s83, %s99
    %p101 = scmp.eq.s32.totalorder %s17, 0
    %p102 = por %p100, %p101
    %s103 = ssub.s32 %s20, %s36
    %p104 = scmp.eq.s32.totalorder %s103, 0
    %s106 = sadd.s32 %s105, 1
    %s107 = scalar_select %p104, %s105, %s106
    %p110 = pneg %p104
    %p111 = scmp.eq.s32.totalorder %s11, 1
    %p112 = por %p110, %p111
    %p113 = scmp.ne.s32.totalorder %s105, %s108
    %p114 = scmp.eq.s32.totalorder %s11, 0
    %p115 = por %p113, %p114
    %p116 = scmp.ne.s32.totalorder %s105, %s108
    %p117 = scmp.eq.s32.totalorder %s16, 1
    %p118 = por %p116, %p117
    %p119 = scmp.ne.s32.totalorder %s108, %s109
    %p120 = scmp.eq.s32.totalorder %s16, 0
    %p121 = por %p119, %p120
    %p122 = scmp.ne.s32.totalorder %s108, %s109
    %p123 = scmp.eq.s32.totalorder %s17, 1
    %p124 = por %p122, %p123
    %p126 = scmp.ne.s32.totalorder %s109, %s125
    %p127 = scmp.eq.s32.totalorder %s17, 0
    %p128 = por %p126, %p127
    %s129 = ssub.s32 %s18, %s44
    %s130 = ssub.s32 %s20, %s36
    %s131 = sor.u32 %s129, %s130
    %p132 = scmp.eq.s32.totalorder %s131, 0
    %s134 = sadd.s32 %s133, 1
    %s135 = scalar_select %p132, %s133, %s134
    %p138 = pneg %p132
    %p139 = scmp.eq.s32.totalorder %s11, 1
    %p140 = por %p138, %p139
    %p141 = scmp.ne.s32.totalorder %s133, %s136
    %p142 = scmp.eq.s32.totalorder %s11, 0
    %p143 = por %p141, %p142
    %p144 = scmp.ne.s32.totalorder %s133, %s136
    %p145 = scmp.eq.s32.totalorder %s16, 1
    %p146 = por %p144, %p145
    %p147 = scmp.ne.s32.totalorder %s136, %s137
    %p148 = scmp.eq.s32.totalorder %s16, 0
    %p149 = por %p147, %p148
    %p150 = scmp.ne.s32.totalorder %s136, %s137
    %p151 = scmp.eq.s32.totalorder %s17, 1
    %p152 = por %p150, %p151
    %p154 = scmp.ne.s32.totalorder %s137, %s153
    %p155 = scmp.eq.s32.totalorder %s17, 0
    %p156 = por %p154, %p155
    %s157 = ssub.s32 %s18, %s44
    %s158 = ssub.s32 %s19, %s40
    %s159 = sor.u32 %s157, %s158
    %s160 = ssub.s32 %s20, %s36
    %s161 = sor.u32 %s159, %s160
    %p162 = scmp.eq.s32.totalorder %s161, 0
    %s164 = sadd.s32 %s163, 1
    %s165 = scalar_select %p162, %s163, %s164
    %p168 = pneg %p162
    %p169 = scmp.eq.s32.totalorder %s11, 1
    %p170 = por %p168, %p169
    %p171 = scmp.ne.s32.totalorder %s163, %s166
    %p172 = scmp.eq.s32.totalorder %s11, 0
    %p173 = por %p171, %p172
    %p174 = scmp.ne.s32.totalorder %s163, %s166
    %p175 = scmp.eq.s32.totalorder %s16, 1
    %p176 = por %p174, %p175
    %p177 = scmp.ne.s32.totalorder %s166, %s167
    %p178 = scmp.eq.s32.totalorder %s16, 0
    %p179 = por %p177, %p178
    %p180 = scmp.ne.s32.totalorder %s166, %s167
    %p181 = scmp.eq.s32.totalorder %s17, 1
    %p182 = por %p180, %p181
    %p184 = scmp.ne.s32.totalorder %s167, %s183
    %p185 = scmp.eq.s32.totalorder %s17, 0
    %p186 = por %p184, %p185
    %s187 = ssub.s32 %s18, %s44
    %s188 = ssub.s32 %s19, %s40
    %s189 = sor.u32 %s187, %s188
    %s190 = ssub.s32 %s20, %s36
    %s191 = sor.u32 %s189, %s190
    %p192 = scmp.eq.s32.totalorder %s191, 0
    %s194 = sadd.s32 %s193, 1
    %s195 = scalar_select %p192, %s193, %s194
    %p198 = pneg %p192
    %p199 = scmp.eq.s32.totalorder %s11, 1
    %p200 = por %p198, %p199
    %p201 = scmp.ne.s32.totalorder %s193, %s196
    %p202 = scmp.eq.s32.totalorder %s11, 0
    %p203 = por %p201, %p202
    %p204 = scmp.ne.s32.totalorder %s193, %s196
    %p205 = scmp.eq.s32.totalorder %s16, 1
    %p206 = por %p204, %p205
    %p207 = scmp.ne.s32.totalorder %s196, %s197
    %p208 = scmp.eq.s32.totalorder %s16, 0
    %p209 = por %p207, %p208
    %p210 = scmp.ne.s32.totalorder %s196, %s197
    %p211 = scmp.eq.s32.totalorder %s17, 1
    %p212 = por %p210, %p211
    %p214 = scmp.ne.s32.totalorder %s197, %s213
    %p215 = scmp.eq.s32.totalorder %s17, 0
    %p216 = por %p214, %p215
    %p217 = scmp.le.s32.totalorder 1, %s11
    %p218 = scmp.lt.s32.totalorder %s11, 3
    %p219 = pnand %p217, %p218
    %p220 = pneg %p219
    // Predicated region
    $region9: #{fwd.25} parent=5 // pred_check
      _
    $region10: #{fwd.25} parent=5 // pred_check_branch
      %222 = sbr.rel (%p219) target = $region12
    $region11: #{fwd.25} parent=5 // pred_region
      %s223 = ssub.s32 %s11, 1
      // Predicated region
      $region13: #{fwd.25} parent=11 // pred_check
        %p224 = pneg %p95
      $region14: #{fwd.25} parent=11 // pred_check_branch
        %226 = sbr.rel (%p224) target = $region16
      $region15: #{fwd.25} parent=11 // pred_region
        %s227 = smul.u32 64, %s25
        %p228 = scmp.lt.s32.totalorder %s227, 63
        %s229 = scalar_select %p228, %s227, 63
        %p230 = scmp.lt.s32.totalorder %s24, 0
        %s231 = scalar_select %p230, %s24, 0
        %s232 = sadd.s32 %s231, %s229
        %s233 = smul.addr %s232, 8
        %s234 = scalar_lea.vmem %s1, %s233
        %s235 = smul.u32 64, %s25
      $region16: #{fwd.25} parent=11 // pred_fallthru
        _
      // Predicated region
      $region17: #{fwd.25} parent=11 // pred_check
        %p236 = pneg %p121
      $region18: #{fwd.25} parent=11 // pred_check_branch
        %238 = sbr.rel (%p236) target = $region20
      $region19: #{fwd.25} parent=11 // pred_region
        %p239 = scmp.lt.s32.totalorder %s24, 0
        %s240 = scalar_select %p239, %s24, 0
        %s241 = scalar_lea.vmem %s2, %s240
      $region20: #{fwd.25} parent=11 // pred_fallthru
        _
    $region12: #{fwd.25} parent=5 // pred_fallthru
      _
    %p242 = scmp.lt.s32.totalorder %s11, 2
    // Predicated region
    $region21: #{fwd.25} parent=5 // pred_check
      %p243 = pneg %p242
    $region22: #{fwd.25} parent=5 // pred_check_branch
      %245 = sbr.rel (%p243) target = $region24
    $region23: #{fwd.25} parent=5 // pred_region
      // Predicated region
      $region25: #{fwd.25} parent=23 // pred_check
        %p246 = pneg %p61
      $region26: #{fwd.25} parent=23 // pred_check_branch
        %248 = sbr.rel (%p246) target = $region28
      $region27: #{fwd.25} parent=23 // pred_region
        %s249 = smul.u32 8, %s19
        %s250 = smul.u32 4, %s21
        %p251 = scmp.lt.s32.totalorder %s18, 1
        %s252 = scalar_select %p251, %s18, 1
        %p253 = scmp.lt.s32.totalorder %s249, 7
        %s254 = scalar_select %p253, %s249, 7
        %p255 = scmp.lt.s32.totalorder %s250, 3
        %s256 = scalar_select %p255, %s250, 3
        %s257 = smul.addr %s254, 4
        %s258 = sadd.s32 %s256, %s257
        %s259 = smul.addr %s252, 32
        %s260 = sadd.s32 %s258, %s259
        %s261 = smul.addr %s260, 8
        %s262 = scalar_lea.vmem %s0, %s261
        %s263 = smul.u32 8, %s19
        %s264 = smul.u32 4, %s21
      $region28: #{fwd.25} parent=23 // pred_fallthru
        _
      // Predicated region
      $region29: #{fwd.25} parent=23 // pred_check
        %p265 = pneg %p143
      $region30: #{fwd.25} parent=23 // pred_check_branch
        %267 = sbr.rel (%p265) target = $region32
      $region31: #{fwd.25} parent=23 // pred_region
        %p268 = scmp.lt.s32.totalorder %s18, 1
        %s269 = scalar_select %p268, %s18, 1
        %p270 = scmp.lt.s32.totalorder %s20, 0
        %s271 = scalar_select %p270, %s20, 0
        %s272 = sadd.s32 %s271, %s269
        %s273 = scalar_lea.vmem %s3, %s272
      $region32: #{fwd.25} parent=23 // pred_fallthru
        _
      // Predicated region
      $region33: #{fwd.25} parent=23 // pred_check
        %p274 = pneg %p173
      $region34: #{fwd.25} parent=23 // pred_check_branch
        %276 = sbr.rel (%p274) target = $region36
      $region35: #{fwd.25} parent=23 // pred_region
        %s277 = smul.u32 8, %s19
        %p278 = scmp.lt.s32.totalorder %s18, 1
        %s279 = scalar_select %p278, %s18, 1
        %p280 = scmp.lt.s32.totalorder %s277, 7
        %s281 = scalar_select %p280, %s277, 7
        %p282 = scmp.lt.s32.totalorder %s20, 0
        %s283 = scalar_select %p282, %s20, 0
        %s284 = sadd.s32 %s283, %s281
        %s285 = smul.addr %s279, 8
        %s286 = sadd.s32 %s284, %s285
        %s287 = smul.addr %s286, 8
        %s288 = scalar_lea.vmem %s4, %s287
        %s289 = smul.u32 8, %s19
      $region36: #{fwd.25} parent=23 // pred_fallthru
        _
    $region24: #{fwd.25} parent=5 // pred_fallthru
      _
    %p290 = scmp.le.s32.totalorder 1, %s11
    %p291 = scmp.lt.s32.totalorder %s11, 3
    %p292 = pnand %p290, %p291
    %p293 = pneg %p292
    // Predicated region
    $region37: #{fwd.25} parent=5 // pred_check
      _
    $region38: #{fwd.25} parent=5 // pred_check_branch
      %295 = sbr.rel (%p292) target = $region40
    $region39: #{fwd.25} parent=5 // pred_region
      %s296 = ssub.s32 %s11, 1
      %s297 = smul.u32 8, %s23
      %s298 = smul.u32 4, %s25
      %p299 = scmp.lt.s32.totalorder %s22, 1
      %s300 = scalar_select %p299, %s22, 1
      %p301 = scmp.lt.s32.totalorder %s297, 7
      %s302 = scalar_select %p301, %s297, 7
      %p303 = scmp.lt.s32.totalorder %s298, 3
      %s304 = scalar_select %p303, %s298, 3
      %s305 = smul.addr %s302, 4
      %s306 = sadd.s32 %s304, %s305
      %s307 = smul.addr %s300, 32
      %s308 = sadd.s32 %s306, %s307
      %s309 = smul.addr %s308, 8
      %s310 = scalar_lea.vmem %s0, %s309
      %p311 = pneg %p67
      %p312 = pneg %p64
      %s313 = smul.u32 64, %s25
      %p314 = scmp.lt.s32.totalorder %s313, 63
      %s315 = scalar_select %p314, %s313, 63
      %p316 = scmp.lt.s32.totalorder %s24, 0
      %s317 = scalar_select %p316, %s24, 0
      %s318 = sadd.s32 %s317, %s315
      %s319 = smul.addr %s318, 8
      %s320 = scalar_lea.vmem %s1, %s319
      %p321 = pneg %p95
      %p322 = pneg %p92
      %p323 = scmp.lt.s32.totalorder %s24, 0
      %s324 = scalar_select %p323, %s24, 0
      %s325 = scalar_lea.vmem %s2, %s324
      %p326 = pneg %p121
      %p327 = pneg %p118
      %p328 = scmp.lt.s32.totalorder %s22, 1
      %s329 = scalar_select %p328, %s22, 1
      %p330 = scmp.lt.s32.totalorder %s24, 0
      %s331 = scalar_select %p330, %s24, 0
      %s332 = sadd.s32 %s331, %s329
      %s333 = scalar_lea.vmem %s3, %s332
      %p334 = pneg %p149
      %p335 = pneg %p146
      %s336 = smul.u32 8, %s23
      %p337 = scmp.lt.s32.totalorder %s22, 1
      %s338 = scalar_select %p337, %s22, 1
      %p339 = scmp.lt.s32.totalorder %s336, 7
      %s340 = scalar_select %p339, %s336, 7
      %p341 = scmp.lt.s32.totalorder %s24, 0
      %s342 = scalar_select %p341, %s24, 0
      %s343 = sadd.s32 %s342, %s340
      %s344 = smul.addr %s338, 8
      %s345 = sadd.s32 %s343, %s344
      %s346 = smul.addr %s345, 8
      %s347 = scalar_lea.vmem %s4, %s346
      %p348 = pneg %p179
      %p349 = pneg %p176
      %p350 = pneg %p209
      %p351 = pneg %p206
      %s352 = smul.u32 8, %s23
      %p353 = scmp.lt.s32.totalorder %s22, 1
      %s354 = scalar_select %p353, %s22, 1
      %p355 = scmp.lt.s32.totalorder %s352, 7
      %s356 = scalar_select %p355, %s352, 7
      %p357 = scmp.lt.s32.totalorder %s24, 0
      %s358 = scalar_select %p357, %s24, 0
      %s359 = sadd.s32 %s358, %s356
      %s360 = smul.addr %s354, 8
      %s361 = sadd.s32 %s359, %s360
      %s362 = smul.addr %s361, 8
      %s363 = scalar_lea.vmem %s5, %s362
      %s364 = smul.u32 8, %s23
      %s365 = smul.u32 4, %s25
      %p366 = scmp.lt.s32.totalorder %s22, 1
      %s367 = scalar_select %p366, %s22, 1
      %p368 = scmp.lt.s32.totalorder %s364, 7
      %s369 = scalar_select %p368, %s364, 7
      %p370 = scmp.lt.s32.totalorder %s365, 3
      %s371 = scalar_select %p370, %s365, 3
      %s372 = smul.addr %s369, 4
      %s373 = sadd.s32 %s371, %s372
      %s374 = smul.addr %s367, 32
      %s375 = sadd.s32 %s373, %s374
      %s376 = smul.addr %s375, 8
      %s377 = scalar_lea.vmem %s0, %s376
      %s378 = smul.u32 8, %s23
      %s379 = smul.u32 4, %s25
      %s380 = smul.u32 64, %s25
      %p381 = scmp.lt.s32.totalorder %s380, 63
      %s382 = scalar_select %p381, %s380, 63
      %p383 = scmp.lt.s32.totalorder %s24, 0
      %s384 = scalar_select %p383, %s24, 0
      %s385 = sadd.s32 %s384, %s382
      %s386 = smul.addr %s385, 8
      %s387 = scalar_lea.vmem %s1, %s386
      %s388 = smul.u32 64, %s25
      %p389 = scmp.lt.s32.totalorder %s24, 0
      %s390 = scalar_select %p389, %s24, 0
      %s391 = scalar_lea.vmem %s2, %s390
      %p392 = scmp.lt.s32.totalorder %s22, 1
      %s393 = scalar_select %p392, %s22, 1
      %p394 = scmp.lt.s32.totalorder %s24, 0
      %s395 = scalar_select %p394, %s24, 0
      %s396 = sadd.s32 %s395, %s393
      %s397 = scalar_lea.vmem %s3, %s396
      %s398 = smul.u32 8, %s23
      %p399 = scmp.lt.s32.totalorder %s22, 1
      %s400 = scalar_select %p399, %s22, 1
      %p401 = scmp.lt.s32.totalorder %s398, 7
      %s402 = scalar_select %p401, %s398, 7
      %p403 = scmp.lt.s32.totalorder %s24, 0
      %s404 = scalar_select %p403, %s24, 0
      %s405 = sadd.s32 %s404, %s402
      %s406 = smul.addr %s400, 8
      %s407 = sadd.s32 %s405, %s406
      %s408 = smul.addr %s407, 8
      %s409 = scalar_lea.vmem %s4, %s408
      %s410 = smul.u32 8, %s23
      %s411 = smul.u32 8, %s23
      %p412 = scmp.lt.s32.totalorder %s22, 1
      %s413 = scalar_select %p412, %s22, 1
      %p414 = scmp.lt.s32.totalorder %s411, 7
      %s415 = scalar_select %p414, %s411, 7
      %p416 = scmp.lt.s32.totalorder %s24, 0
      %s417 = scalar_select %p416, %s24, 0
      %s418 = sadd.s32 %s417, %s415
      %s419 = smul.addr %s413, 8
      %s420 = sadd.s32 %s418, %s419
      %s421 = smul.addr %s420, 8
      %s422 = scalar_lea.vmem %s5, %s421
      %s423 = smul.u32 8, %s23
      %p425 = scmp.eq.s32.totalorder %s25, 0
      // Predicated region
      $region41: #{fwd.25} parent=39 // pred_check
        %p426 = pneg %p425
      $region42: #{fwd.25} parent=39 // pred_check_branch
        %428 = sbr.rel (%p426) target = $region44
      $region43: #{fwd.25} parent=39 // pred_region
        %429 = vst [vmem:[#allocation2] sm:$0xff] 0.0
        %430 = vst [vmem:[#allocation2 + $0x8] sm:$0xff] 0.0
        %431 = vst [vmem:[#allocation2 + $0x10] sm:$0xff] 0.0
        %432 = vst [vmem:[#allocation2 + $0x18] sm:$0xff] 0.0
        %433 = vst [vmem:[#allocation2 + $0x20] sm:$0xff] 0.0
        %434 = vst [vmem:[#allocation2 + $0x28] sm:$0xff] 0.0
        %435 = vst [vmem:[#allocation2 + $0x30] sm:$0xff] 0.0
        %436 = vst [vmem:[#allocation2 + $0x38] sm:$0xff] 0.0
      $region44: #{fwd.25} parent=39 // pred_fallthru
        _
      %v437 = vld [vmem:[#allocation2] sm:$0xff]
      %v438 = vld [vmem:[#allocation2 + $0x8] sm:$0xff]
      %v439 = vld [vmem:[#allocation2 + $0x10] sm:$0xff]
      %v440 = vld [vmem:[#allocation2 + $0x18] sm:$0xff]
      %v441 = vld [vmem:[#allocation2 + $0x20] sm:$0xff]
      %v442 = vld [vmem:[#allocation2 + $0x28] sm:$0xff]
      %v443 = vld [vmem:[#allocation2 + $0x30] sm:$0xff]
      %v444 = vld [vmem:[#allocation2 + $0x38] sm:$0xff]
      %v445 = vld [vmem:[%s377] sm:$0xff]
      %v446 = vld [vmem:[%s377 + $0x8] sm:$0xff]
      %v447 = vld [vmem:[%s377 + $0x10] sm:$0xff]
      %v448 = vld [vmem:[%s377 + $0x18] sm:$0xff]
      %v449 = vld [vmem:[%s377 + $0x20] sm:$0xff]
      %v450 = vld [vmem:[%s377 + $0x28] sm:$0xff]
      %v451 = vld [vmem:[%s377 + $0x30] sm:$0xff]
      %v452 = vld [vmem:[%s377 + $0x38] sm:$0xff]
      %v453 = vld [vmem:[%s377 + $0x40] sm:$0xff]
      %v454 = vld [vmem:[%s377 + $0x48] sm:$0xff]
      %v455 = vld [vmem:[%s377 + $0x50] sm:$0xff]
      %v456 = vld [vmem:[%s377 + $0x58] sm:$0xff]
      %v457 = vld [vmem:[%s377 + $0x60] sm:$0xff]
      %v458 = vld [vmem:[%s377 + $0x68] sm:$0xff]
      %v459 = vld [vmem:[%s377 + $0x70] sm:$0xff]
      %v460 = vld [vmem:[%s377 + $0x78] sm:$0xff]
      %v461 = vld [vmem:[%s377 + $0x80] sm:$0xff]
      %v462 = vld [vmem:[%s377 + $0x88] sm:$0xff]
      %v463 = vld [vmem:[%s377 + $0x90] sm:$0xff]
      %v464 = vld [vmem:[%s377 + $0x98] sm:$0xff]
      %v465 = vld [vmem:[%s377 + $0xa0] sm:$0xff]
      %v466 = vld [vmem:[%s377 + $0xa8] sm:$0xff]
      %v467 = vld [vmem:[%s377 + $0xb0] sm:$0xff]
      %v468 = vld [vmem:[%s377 + $0xb8] sm:$0xff]
      %v469 = vld [vmem:[%s377 + $0xc0] sm:$0xff]
      %v470 = vld [vmem:[%s377 + $0xc8] sm:$0xff]
      %v471 = vld [vmem:[%s377 + $0xd0] sm:$0xff]
      %v472 = vld [vmem:[%s377 + $0xd8] sm:$0xff]
      %v473 = vld [vmem:[%s377 + $0xe0] sm:$0xff]
      %v474 = vld [vmem:[%s377 + $0xe8] sm:$0xff]
      %v475 = vld [vmem:[%s377 + $0xf0] sm:$0xff]
      %v476 = vld [vmem:[%s377 + $0xf8] sm:$0xff]
      %v477 = vpack.c.bf16 %v449, %v445
      %v478 = vpack.c.bf16 %v450, %v446
      %v479 = vpack.c.bf16 %v451, %v447
      %v480 = vpack.c.bf16 %v452, %v448
      %v481 = vpack.c.bf16 %v457, %v453
      %v482 = vpack.c.bf16 %v458, %v454
      %v483 = vpack.c.bf16 %v459, %v455
      %v484 = vpack.c.bf16 %v460, %v456
      %v485 = vpack.c.bf16 %v465, %v461
      %v486 = vpack.c.bf16 %v466, %v462
      %v487 = vpack.c.bf16 %v467, %v463
      %v488 = vpack.c.bf16 %v468, %v464
      %v489 = vpack.c.bf16 %v473, %v469
      %v490 = vpack.c.bf16 %v474, %v470
      %v491 = vpack.c.bf16 %v475, %v471
      %v492 = vpack.c.bf16 %v476, %v472
      %v493 = vld [vmem:[%s387] sm:$0xff]
      %v494 = vld [vmem:[%s387 + $0x8] sm:$0xff]
      %v495 = vld [vmem:[%s387 + $0x10] sm:$0xff]
      %v496 = vld [vmem:[%s387 + $0x18] sm:$0xff]
      %v497 = vld [vmem:[%s387 + $0x20] sm:$0xff]
      %v498 = vld [vmem:[%s387 + $0x28] sm:$0xff]
      %v499 = vld [vmem:[%s387 + $0x30] sm:$0xff]
      %v500 = vld [vmem:[%s387 + $0x38] sm:$0xff]
      %v501 = vld [vmem:[%s387 + $0x40] sm:$0xff]
      %v502 = vld [vmem:[%s387 + $0x48] sm:$0xff]
      %v503 = vld [vmem:[%s387 + $0x50] sm:$0xff]
      %v504 = vld [vmem:[%s387 + $0x58] sm:$0xff]
      %v505 = vld [vmem:[%s387 + $0x60] sm:$0xff]
      %v506 = vld [vmem:[%s387 + $0x68] sm:$0xff]
      %v507 = vld [vmem:[%s387 + $0x70] sm:$0xff]
      %v508 = vld [vmem:[%s387 + $0x78] sm:$0xff]
      %v509 = vld [vmem:[%s387 + $0x80] sm:$0xff]
      %v510 = vld [vmem:[%s387 + $0x88] sm:$0xff]
      %v511 = vld [vmem:[%s387 + $0x90] sm:$0xff]
      %v512 = vld [vmem:[%s387 + $0x98] sm:$0xff]
      %v513 = vld [vmem:[%s387 + $0xa0] sm:$0xff]
      %v514 = vld [vmem:[%s387 + $0xa8] sm:$0xff]
      %v515 = vld [vmem:[%s387 + $0xb0] sm:$0xff]
      %v516 = vld [vmem:[%s387 + $0xb8] sm:$0xff]
      %v517 = vld [vmem:[%s387 + $0xc0] sm:$0xff]
      %v518 = vld [vmem:[%s387 + $0xc8] sm:$0xff]
      %v519 = vld [vmem:[%s387 + $0xd0] sm:$0xff]
      %v520 = vld [vmem:[%s387 + $0xd8] sm:$0xff]
      %v521 = vld [vmem:[%s387 + $0xe0] sm:$0xff]
      %v522 = vld [vmem:[%s387 + $0xe8] sm:$0xff]
      %v523 = vld [vmem:[%s387 + $0xf0] sm:$0xff]
      %v524 = vld [vmem:[%s387 + $0xf8] sm:$0xff]
      %v525 = vld [vmem:[%s387 + $0x100] sm:$0xff]
      %v526 = vld [vmem:[%s387 + $0x108] sm:$0xff]
      %v527 = vld [vmem:[%s387 + $0x110] sm:$0xff]
      %v528 = vld [vmem:[%s387 + $0x118] sm:$0xff]
      %v529 = vld [vmem:[%s387 + $0x120] sm:$0xff]
      %v530 = vld [vmem:[%s387 + $0x128] sm:$0xff]
      %v531 = vld [vmem:[%s387 + $0x130] sm:$0xff]
      %v532 = vld [vmem:[%s387 + $0x138] sm:$0xff]
      %v533 = vld [vmem:[%s387 + $0x140] sm:$0xff]
      %v534 = vld [vmem:[%s387 + $0x148] sm:$0xff]
      %v535 = vld [vmem:[%s387 + $0x150] sm:$0xff]
      %v536 = vld [vmem:[%s387 + $0x158] sm:$0xff]
      %v537 = vld [vmem:[%s387 + $0x160] sm:$0xff]
      %v538 = vld [vmem:[%s387 + $0x168] sm:$0xff]
      %v539 = vld [vmem:[%s387 + $0x170] sm:$0xff]
      %v540 = vld [vmem:[%s387 + $0x178] sm:$0xff]
      %v541 = vld [vmem:[%s387 + $0x180] sm:$0xff]
      %v542 = vld [vmem:[%s387 + $0x188] sm:$0xff]
      %v543 = vld [vmem:[%s387 + $0x190] sm:$0xff]
      %v544 = vld [vmem:[%s387 + $0x198] sm:$0xff]
      %v545 = vld [vmem:[%s387 + $0x1a0] sm:$0xff]
      %v546 = vld [vmem:[%s387 + $0x1a8] sm:$0xff]
      %v547 = vld [vmem:[%s387 + $0x1b0] sm:$0xff]
      %v548 = vld [vmem:[%s387 + $0x1b8] sm:$0xff]
      %v549 = vld [vmem:[%s387 + $0x1c0] sm:$0xff]
      %v550 = vld [vmem:[%s387 + $0x1c8] sm:$0xff]
      %v551 = vld [vmem:[%s387 + $0x1d0] sm:$0xff]
      %v552 = vld [vmem:[%s387 + $0x1d8] sm:$0xff]
      %v553 = vld [vmem:[%s387 + $0x1e0] sm:$0xff]
      %v554 = vld [vmem:[%s387 + $0x1e8] sm:$0xff]
      %v555 = vld [vmem:[%s387 + $0x1f0] sm:$0xff]
      %v556 = vld [vmem:[%s387 + $0x1f8] sm:$0xff]
      %v557 = vpack.c.bf16 %v494, %v493
      %v558 = vpack.c.bf16 %v496, %v495
      %v559 = vpack.c.bf16 %v498, %v497
      %v560 = vpack.c.bf16 %v500, %v499
      %v561 = vpack.c.bf16 %v502, %v501
      %v562 = vpack.c.bf16 %v504, %v503
      %v563 = vpack.c.bf16 %v506, %v505
      %v564 = vpack.c.bf16 %v508, %v507
      %v565 = vpack.c.bf16 %v510, %v509
      %v566 = vpack.c.bf16 %v512, %v511
      %v567 = vpack.c.bf16 %v514, %v513
      %v568 = vpack.c.bf16 %v516, %v515
      %v569 = vpack.c.bf16 %v518, %v517
      %v570 = vpack.c.bf16 %v520, %v519
      %v571 = vpack.c.bf16 %v522, %v521
      %v572 = vpack.c.bf16 %v524, %v523
      %v573 = vpack.c.bf16 %v526, %v525
      %v574 = vpack.c.bf16 %v528, %v527
      %v575 = vpack.c.bf16 %v530, %v529
      %v576 = vpack.c.bf16 %v532, %v531
      %v577 = vpack.c.bf16 %v534, %v533
      %v578 = vpack.c.bf16 %v536, %v535
      %v579 = vpack.c.bf16 %v538, %v537
      %v580 = vpack.c.bf16 %v540, %v539
      %v581 = vpack.c.bf16 %v542, %v541
      %v582 = vpack.c.bf16 %v544, %v543
      %v583 = vpack.c.bf16 %v546, %v545
      %v584 = vpack.c.bf16 %v548, %v547
      %v585 = vpack.c.bf16 %v550, %v549
      %v586 = vpack.c.bf16 %v552, %v551
      %v587 = vpack.c.bf16 %v554, %v553
      %v588 = vpack.c.bf16 %v556, %v555
      %589 = vmatprep.subr.bf16.mxu0 0
      %590 = vmatpush1.bf16.msra.mxu0 %v564
      %591 = vmatprep.subr.bf16.mxu0 0
      %592 = vmatpush1.bf16.msra.mxu0 %v563
      %593 = vmatprep.subr.bf16.mxu0 0
      %594 = vmatpush1.bf16.msra.mxu0 %v562
      %595 = vmatprep.subr.bf16.mxu0 0
      %596 = vmatpush1.bf16.msra.mxu0 %v561
      %597 = vmatprep.subr.bf16.mxu0 0
      %598 = vmatpush1.bf16.msra.mxu0 %v560
      %599 = vmatprep.subr.bf16.mxu0 0
      %600 = vmatpush1.bf16.msra.mxu0 %v559
      %601 = vmatprep.subr.bf16.mxu0 0
      %602 = vmatpush1.bf16.msra.mxu0 %v558
      %603 = vmatprep.subr.bf16.mxu0 0
      %604 = vmatpush1.bf16.msra.mxu0 %v557
      %605 = vmatprep.subr.bf16.mxu0 0
      %606 = vmatpush2.bf16.msra.mxu0 %v572
      %607 = vmatprep.subr.bf16.mxu0 0
      %608 = vmatpush2.bf16.msra.mxu0 %v571
      %609 = vmatprep.subr.bf16.mxu0 0
      %610 = vmatpush2.bf16.msra.mxu0 %v570
      %611 = vmatprep.subr.bf16.mxu0 0
      %612 = vmatpush2.bf16.msra.mxu0 %v569
      %613 = vmatprep.subr.bf16.mxu0 0
      %614 = vmatpush2.bf16.msra.mxu0 %v568
      %615 = vmatprep.subr.bf16.mxu0 0
      %616 = vmatpush2.bf16.msra.mxu0 %v567
      %617 = vmatprep.subr.bf16.mxu0 0
      %618 = vmatpush2.bf16.msra.mxu0 %v566
      %619 = vmatprep.subr.bf16.mxu0 0
      %620 = vmatpush2.bf16.msra.mxu0 %v565
      %621 = vmatprep.mubr.bf16.mxu0 %v478
      %622 = vmatmul.mubr.bf16.gmra.mxu0 %v477
      %v623 = vpop.f32.mrf.mxu0
      %v624 = vadd.f32 0.0, %v623
      %v625 = vpop.f32.mrf.mxu0
      %v626 = vpop.f32.mrf.mxu0
      %v627 = vadd.f32 0.0, %v626
      %v628 = vpop.f32.mrf.mxu0
      %629 = vmatprep.mubr.bf16.mxu0 %v482
      %630 = vmatmul.mubr.bf16.gmra.mxu0 %v481
      %v631 = vpop.f32.mrf.mxu0
      %v632 = vadd.f32 0.0, %v631
      %v633 = vpop.f32.mrf.mxu0
      %v634 = vpop.f32.mrf.mxu0
      %v635 = vadd.f32 0.0, %v634
      %v636 = vpop.f32.mrf.mxu0
      %637 = vmatprep.mubr.bf16.mxu0 %v486
      %638 = vmatmul.mubr.bf16.gmra.mxu0 %v485
      %v639 = vpop.f32.mrf.mxu0
      %v640 = vadd.f32 0.0, %v639
      %v641 = vpop.f32.mrf.mxu0
      %v642 = vpop.f32.mrf.mxu0
      %v643 = vadd.f32 0.0, %v642
      %v644 = vpop.f32.mrf.mxu0
      %645 = vmatprep.mubr.bf16.mxu0 %v490
      %646 = vmatmul.mubr.bf16.gmra.mxu0 %v489
      %v647 = vpop.f32.mrf.mxu0
      %v648 = vadd.f32 0.0, %v647
      %v649 = vpop.f32.mrf.mxu0
      %v650 = vpop.f32.mrf.mxu0
      %v651 = vadd.f32 0.0, %v650
      %v652 = vpop.f32.mrf.mxu0
      %653 = vdwg.mxu0
      %654 = vmatprep.subr.bf16.mxu0 0
      %655 = vmatpush1.bf16.msra.mxu0 %v580
      %656 = vmatprep.subr.bf16.mxu0 0
      %657 = vmatpush1.bf16.msra.mxu0 %v579
      %658 = vmatprep.subr.bf16.mxu0 0
      %659 = vmatpush1.bf16.msra.mxu0 %v578
      %660 = vmatprep.subr.bf16.mxu0 0
      %661 = vmatpush1.bf16.msra.mxu0 %v577
      %662 = vmatprep.subr.bf16.mxu0 0
      %663 = vmatpush1.bf16.msra.mxu0 %v576
      %664 = vmatprep.subr.bf16.mxu0 0
      %665 = vmatpush1.bf16.msra.mxu0 %v575
      %666 = vmatprep.subr.bf16.mxu0 0
      %667 = vmatpush1.bf16.msra.mxu0 %v574
      %668 = vmatprep.subr.bf16.mxu0 0
      %669 = vmatpush1.bf16.msra.mxu0 %v573
      %670 = vmatprep.subr.bf16.mxu0 0
      %671 = vmatpush2.bf16.msra.mxu0 %v588
      %672 = vmatprep.subr.bf16.mxu0 0
      %673 = vmatpush2.bf16.msra.mxu0 %v587
      %674 = vmatprep.subr.bf16.mxu0 0
      %675 = vmatpush2.bf16.msra.mxu0 %v586
      %676 = vmatprep.subr.bf16.mxu0 0
      %677 = vmatpush2.bf16.msra.mxu0 %v585
      %678 = vmatprep.subr.bf16.mxu0 0
      %679 = vmatpush2.bf16.msra.mxu0 %v584
      %680 = vmatprep.subr.bf16.mxu0 0
      %681 = vmatpush2.bf16.msra.mxu0 %v583
      %682 = vmatprep.subr.bf16.mxu0 0
      %683 = vmatpush2.bf16.msra.mxu0 %v582
      %684 = vmatprep.subr.bf16.mxu0 0
      %685 = vmatpush2.bf16.msra.mxu0 %v581
      %686 = vmatprep.mubr.bf16.mxu0 %v480
      %687 = vmatmul.mubr.bf16.gmra.mxu0 %v479
      %v688 = vpop.f32.mrf.mxu0
      %v689 = vadd.f32 %v624, %v688
      %v690 = vpop.f32.mrf.mxu0
      %v691 = vpop.f32.mrf.mxu0
      %v692 = vadd.f32 %v627, %v691
      %v693 = vpop.f32.mrf.mxu0
      %694 = vmatprep.mubr.bf16.mxu0 %v484
      %695 = vmatmul.mubr.bf16.gmra.mxu0 %v483
      %v696 = vpop.f32.mrf.mxu0
      %v697 = vadd.f32 %v632, %v696
      %v698 = vpop.f32.mrf.mxu0
      %v699 = vpop.f32.mrf.mxu0
      %v700 = vadd.f32 %v635, %v699
      %v701 = vpop.f32.mrf.mxu0
      %702 = vmatprep.mubr.bf16.mxu0 %v488
      %703 = vmatmul.mubr.bf16.gmra.mxu0 %v487
      %v704 = vpop.f32.mrf.mxu0
      %v705 = vadd.f32 %v640, %v704
      %v706 = vpop.f32.mrf.mxu0
      %v707 = vpop.f32.mrf.mxu0
      %v708 = vadd.f32 %v643, %v707
      %v709 = vpop.f32.mrf.mxu0
      %710 = vmatprep.mubr.bf16.mxu0 %v492
      %711 = vmatmul.mubr.bf16.gmra.mxu0 %v491
      %v712 = vpop.f32.mrf.mxu0
      %v713 = vadd.f32 %v648, %v712
      %v714 = vpop.f32.mrf.mxu0
      %v715 = vpop.f32.mrf.mxu0
      %v716 = vadd.f32 %v651, %v715
      %v717 = vpop.f32.mrf.mxu0
      %718 = vdwg.mxu0
      %v719 = vadd.f32 %v437, %v689
      %v720 = vadd.f32 %v438, %v692
      %v721 = vadd.f32 %v439, %v697
      %v722 = vadd.f32 %v440, %v700
      %v723 = vadd.f32 %v441, %v705
      %v724 = vadd.f32 %v442, %v708
      %v725 = vadd.f32 %v443, %v713
      %v726 = vadd.f32 %v444, %v716
      %727 = vst [vmem:[#allocation2] sm:$0xff] %v719
      %728 = vst [vmem:[#allocation2 + $0x8] sm:$0xff] %v720
      %729 = vst [vmem:[#allocation2 + $0x10] sm:$0xff] %v721
      %730 = vst [vmem:[#allocation2 + $0x18] sm:$0xff] %v722
      %731 = vst [vmem:[#allocation2 + $0x20] sm:$0xff] %v723
      %732 = vst [vmem:[#allocation2 + $0x28] sm:$0xff] %v724
      %733 = vst [vmem:[#allocation2 + $0x30] sm:$0xff] %v725
      %734 = vst [vmem:[#allocation2 + $0x38] sm:$0xff] %v726
      // Predicated region
      $region45: #{fwd.25} parent=39 // pred_check
        %p735 = pneg %p425
      $region46: #{fwd.25} parent=39 // pred_check_branch
        %737 = sbr.rel (%p735) target = $region48
      $region47: #{fwd.25} parent=39 // pred_region
        %v738 = vld [vmem:[%s409] sm:$0xff]
        %v739 = vld [vmem:[%s409 + $0x8] sm:$0xff]
        %v740 = vld [vmem:[%s409 + $0x10] sm:$0xff]
        %v741 = vld [vmem:[%s409 + $0x18] sm:$0xff]
        %v742 = vld [vmem:[%s409 + $0x20] sm:$0xff]
        %v743 = vld [vmem:[%s409 + $0x28] sm:$0xff]
        %v744 = vld [vmem:[%s409 + $0x30] sm:$0xff]
        %v745 = vld [vmem:[%s409 + $0x38] sm:$0xff]
        %v746 = vld [vmem:[%s397] sm:$0x1]
        %v747 = vld [vmem:[#allocation2] sm:$0xff]
        %v748 = vld [vmem:[#allocation2 + $0x8] sm:$0xff]
        %v749 = vld [vmem:[#allocation2 + $0x10] sm:$0xff]
        %v750 = vld [vmem:[#allocation2 + $0x18] sm:$0xff]
        %v751 = vld [vmem:[#allocation2 + $0x20] sm:$0xff]
        %v752 = vld [vmem:[#allocation2 + $0x28] sm:$0xff]
        %v753 = vld [vmem:[#allocation2 + $0x30] sm:$0xff]
        %v754 = vld [vmem:[#allocation2 + $0x38] sm:$0xff]
        %v755 = vld [vmem:[%s391] sm:$0x1]
        %v757 = vlaneseq
        %v758 = vshrl.u32 %v757, 7
        %v759 = vsub.s32 0, %v758
        %v760 = vrot.slane %v755, %v759
        %v762 = vadd.f32 %v747, %v760
        %v763 = vadd.f32 %v748, %v760
        %v764 = vadd.f32 %v749, %v760
        %v765 = vadd.f32 %v750, %v760
        %v766 = vadd.f32 %v751, %v760
        %v767 = vadd.f32 %v752, %v760
        %v768 = vadd.f32 %v753, %v760
        %v769 = vadd.f32 %v754, %v760
        %v771 = vlaneseq
        %v772 = vshrl.u32 %v771, 7
        %v773 = vsub.s32 0, %v772
        %v774 = vrot.slane %v746, %v773
        %v776 = vmul.f32 %v774, %v762
        %v777 = vmul.f32 %v774, %v763
        %v778 = vmul.f32 %v774, %v764
        %v779 = vmul.f32 %v774, %v765
        %v780 = vmul.f32 %v774, %v766
        %v781 = vmul.f32 %v774, %v767
        %v782 = vmul.f32 %v774, %v768
        %v783 = vmul.f32 %v774, %v769
        %v784 = vadd.f32 %v738, %v776
        %v785 = vadd.f32 %v739, %v777
        %v786 = vadd.f32 %v740, %v778
        %v787 = vadd.f32 %v741, %v779
        %v788 = vadd.f32 %v742, %v780
        %v789 = vadd.f32 %v743, %v781
        %v790 = vadd.f32 %v744, %v782
        %v791 = vadd.f32 %v745, %v783
        %792 = vst [vmem:[%s422] sm:$0xff] %v784
        %793 = vst [vmem:[%s422 + $0x8] sm:$0xff] %v785
        %794 = vst [vmem:[%s422 + $0x10] sm:$0xff] %v786
        %795 = vst [vmem:[%s422 + $0x18] sm:$0xff] %v787
        %796 = vst [vmem:[%s422 + $0x20] sm:$0xff] %v788
        %797 = vst [vmem:[%s422 + $0x28] sm:$0xff] %v789
        %798 = vst [vmem:[%s422 + $0x30] sm:$0xff] %v790
        %799 = vst [vmem:[%s422 + $0x38] sm:$0xff] %v791
      $region48: #{fwd.25} parent=39 // pred_fallthru
        _
      %s800 = smul.u32 8, %s23
      %p801 = scmp.lt.s32.totalorder %s22, 1
      %s802 = scalar_select %p801, %s22, 1
      %p803 = scmp.lt.s32.totalorder %s800, 7
      %s804 = scalar_select %p803, %s800, 7
      %p805 = scmp.lt.s32.totalorder %s24, 0
      %s806 = scalar_select %p805, %s24, 0
      %s807 = sadd.s32 %s806, %s804
      %s808 = smul.addr %s802, 8
      %s809 = sadd.s32 %s807, %s808
      %s810 = smul.addr %s809, 8
      %s811 = scalar_lea.vmem %s5, %s810
      // Predicated region
      $region49: #{fwd.25} parent=39 // pred_check
        %p812 = pneg %p206
      $region50: #{fwd.25} parent=39 // pred_check_branch
        %814 = sbr.rel (%p812) target = $region52
      $region51: #{fwd.25} parent=39 // pred_region
        %s815 = smul.u32 8, %s23
      $region52: #{fwd.25} parent=39 // pred_fallthru
        _
    $region40: #{fwd.25} parent=5 // pred_fallthru
      _
    %p816 = scmp.le.s32.totalorder 2, %s11
    // Predicated region
    $region53: #{fwd.25} parent=5 // pred_check
      %p817 = pneg %p816
    $region54: #{fwd.25} parent=5 // pred_check_branch
      %819 = sbr.rel (%p817) target = $region56
    $region55: #{fwd.25} parent=5 // pred_region
      %s820 = ssub.s32 %s11, 2
      // Predicated region
      $region57: #{fwd.25} parent=55 // pred_check
        %p821 = pneg %p212
      $region58: #{fwd.25} parent=55 // pred_check_branch
        %823 = sbr.rel (%p821) target = $region60
      $region59: #{fwd.25} parent=55 // pred_region
        %s824 = smul.u32 8, %s27
        %p825 = scmp.lt.s32.totalorder %s26, 1
        %s826 = scalar_select %p825, %s26, 1
        %p827 = scmp.lt.s32.totalorder %s824, 7
        %s828 = scalar_select %p827, %s824, 7
        %p829 = scmp.lt.s32.totalorder %s28, 0
        %s830 = scalar_select %p829, %s28, 0
        %s831 = sadd.s32 %s830, %s828
        %s832 = smul.addr %s826, 8
        %s833 = sadd.s32 %s831, %s832
        %s834 = smul.addr %s833, 8
        %s835 = scalar_lea.vmem %s5, %s834
      $region60: #{fwd.25} parent=55 // pred_fallthru
        _
    $region56: #{fwd.25} parent=5 // pred_fallthru
      _
  $region6: #{fwd.25} parent=0 // loop_footer
    %s15 = sadd.s32 1, %s11
  $region7: #{fwd.25} parent=0 // loop_footer_branch
    %10 = sbr.rel target = $region3
  $region8: #{fwd.25} parent=0 // loop_exit
    _

// kernel: fwd.33
$region0: #{fwd.33}
  #allocation0 [shape = 'u32[]', space=smem, size = 0x4, offset = 0x4, fixed_abs, tag = 'smem constant byte address 0x4 - core index']
  #allocation1 [shape = 'u32[144,128]{1,0:T(1,128)}', space=vmem, size = 0x12000, scoped, tag = 'internal scratch']
  #allocation2 [shape = 'bf16[64,128]{1,0:T(8,128)(2,1)}', space=vmem, size = 0x4000, scoped, tag = 'scratch operand']
  %s0 = inlined_call_operand.vmem [shape: f32[2,64,128], index: 0, kind: input, shape index: {}]
  %s1 = inlined_call_operand.vmem [shape: f32[2,1,128], index: 1, kind: input, shape index: {}]
  %s2 = inlined_call_operand.vmem [shape: f32[2,1,128], index: 2, kind: input, shape index: {}]
  %s3 = inlined_call_operand.vmem [shape: f32[128,128], index: 3, kind: input, shape index: {}]
  %s4 = inlined_call_operand.vmem [shape: f32[1,128], index: 4, kind: input, shape index: {}]
  %s5 = inlined_call_operand.vmem [shape: f32[2,64,128], index: 5, kind: output, shape index: {}]
  %s6 = sld [smem:[#allocation0]]
  $region57: #{fwd.33} parent=0
    _
  %s8 = ssub.s32 1, %s6
  %s9 = scalar_select 0, %s8, %s6
  loop: start=0, step=1, limit=4
  $region2: #{fwd.33} parent=0 // loop_pre_header
    _
  $region3: #{fwd.33} parent=0 // loop_header
    %s11 = sphi 0, %s15
    %p12 = scmp.ge.s32.totalorder %s11, 4
    %s18 = sphi 0, %s37
    %s19 = sphi 0, %s33
    %s20 = sphi 0, %s29
    %s21 = sphi 0, %s18
    %s22 = sphi 0, %s19
    %s23 = sphi 0, %s20
    %s24 = sphi 0, %s21
    %s25 = sphi 0, %s22
    %s26 = sphi 0, %s23
    %s42 = sphi 0, %s44
    %s45 = sphi 0, %s42
    %s46 = sphi 0, %s45
    %s62 = sphi 0, %s46
    %s68 = sphi 0, %s70
    %s71 = sphi 0, %s68
    %s72 = sphi 0, %s71
    %s88 = sphi 0, %s72
    %s94 = sphi 0, %s96
    %s97 = sphi 0, %s94
    %s98 = sphi 0, %s97
    %s114 = sphi 0, %s98
    %s120 = sphi 0, %s122
    %s123 = sphi 0, %s120
    %s124 = sphi 0, %s123
    %s140 = sphi 0, %s124
    %s146 = sphi 0, %s148
    %s149 = sphi 0, %s146
    %s150 = sphi 0, %s149
    %s166 = sphi 0, %s150
    %s176 = sphi 0, %s178
    %s179 = sphi 0, %s176
    %s180 = sphi 0, %s179
    %s196 = sphi 0, %s180
  $region4: #{fwd.33} parent=0 // loop_header_branch
    %14 = sbr.rel (%p12) target = $region8
  $region5: #{fwd.33} parent=0 // loop_body
    %s16 = ssub.s32 %s11, 1
    %s17 = ssub.s32 %s11, 2
    %s27 = sadd.s32 1, %s20
    %p28 = scmp.ge.s32.totalorder %s27, 1
    %s29 = scalar_select %p28, 0, %s27
    %s30 = sadd.s32 1, %s19
    %s31 = scalar_select %p28, %s30, %s19
    %p32 = scmp.ge.s32.totalorder %s31, 1
    %s33 = scalar_select %p32, 0, %s31
    %s34 = sadd.s32 1, %s18
    %s35 = scalar_select %p32, %s34, %s18
    %p36 = scmp.ge.s32.totalorder %s35, 2
    %s37 = scalar_select %p36, 0, %s35
    %s38 = ssub.s32 %s18, %s37
    %s39 = ssub.s32 %s19, %s33
    %s40 = sor.u32 %s38, %s39
    %p41 = scmp.eq.s32.totalorder %s40, 0
    %s43 = sadd.s32 %s42, 1
    %s44 = scalar_select %p41, %s42, %s43
    %p47 = pneg %p41
    %p48 = scmp.eq.s32.totalorder %s11, 1
    %p49 = por %p47, %p48
    %p50 = scmp.ne.s32.totalorder %s42, %s45
    %p51 = scmp.eq.s32.totalorder %s11, 0
    %p52 = por %p50, %p51
    %p53 = scmp.ne.s32.totalorder %s42, %s45
    %p54 = scmp.eq.s32.totalorder %s16, 1
    %p55 = por %p53, %p54
    %p56 = scmp.ne.s32.totalorder %s45, %s46
    %p57 = scmp.eq.s32.totalorder %s16, 0
    %p58 = por %p56, %p57
    %p59 = scmp.ne.s32.totalorder %s45, %s46
    %p60 = scmp.eq.s32.totalorder %s17, 1
    %p61 = por %p59, %p60
    %p63 = scmp.ne.s32.totalorder %s46, %s62
    %p64 = scmp.eq.s32.totalorder %s17, 0
    %p65 = por %p63, %p64
    %s66 = ssub.s32 %s18, %s37
    %p67 = scmp.eq.s32.totalorder %s66, 0
    %s69 = sadd.s32 %s68, 1
    %s70 = scalar_select %p67, %s68, %s69
    %p73 = pneg %p67
    %p74 = scmp.eq.s32.totalorder %s11, 1
    %p75 = por %p73, %p74
    %p76 = scmp.ne.s32.totalorder %s68, %s71
    %p77 = scmp.eq.s32.totalorder %s11, 0
    %p78 = por %p76, %p77
    %p79 = scmp.ne.s32.totalorder %s68, %s71
    %p80 = scmp.eq.s32.totalorder %s16, 1
    %p81 = por %p79, %p80
    %p82 = scmp.ne.s32.totalorder %s71, %s72
    %p83 = scmp.eq.s32.totalorder %s16, 0
    %p84 = por %p82, %p83
    %p85 = scmp.ne.s32.totalorder %s71, %s72
    %p86 = scmp.eq.s32.totalorder %s17, 1
    %p87 = por %p85, %p86
    %p89 = scmp.ne.s32.totalorder %s72, %s88
    %p90 = scmp.eq.s32.totalorder %s17, 0
    %p91 = por %p89, %p90
    %s92 = ssub.s32 %s18, %s37
    %p93 = scmp.eq.s32.totalorder %s92, 0
    %s95 = sadd.s32 %s94, 1
    %s96 = scalar_select %p93, %s94, %s95
    %p99 = pneg %p93
    %p100 = scmp.eq.s32.totalorder %s11, 1
    %p101 = por %p99, %p100
    %p102 = scmp.ne.s32.totalorder %s94, %s97
    %p103 = scmp.eq.s32.totalorder %s11, 0
    %p104 = por %p102, %p103
    %p105 = scmp.ne.s32.totalorder %s94, %s97
    %p106 = scmp.eq.s32.totalorder %s16, 1
    %p107 = por %p105, %p106
    %p108 = scmp.ne.s32.totalorder %s97, %s98
    %p109 = scmp.eq.s32.totalorder %s16, 0
    %p110 = por %p108, %p109
    %p111 = scmp.ne.s32.totalorder %s97, %s98
    %p112 = scmp.eq.s32.totalorder %s17, 1
    %p113 = por %p111, %p112
    %p115 = scmp.ne.s32.totalorder %s98, %s114
    %p116 = scmp.eq.s32.totalorder %s17, 0
    %p117 = por %p115, %p116
    %s118 = ssub.s32 %s20, %s29
    %p119 = scmp.eq.s32.totalorder %s118, 0
    %s121 = sadd.s32 %s120, 1
    %s122 = scalar_select %p119, %s120, %s121
    %p125 = pneg %p119
    %p126 = scmp.eq.s32.totalorder %s11, 1
    %p127 = por %p125, %p126
    %p128 = scmp.ne.s32.totalorder %s120, %s123
    %p129 = scmp.eq.s32.totalorder %s11, 0
    %p130 = por %p128, %p129
    %p131 = scmp.ne.s32.totalorder %s120, %s123
    %p132 = scmp.eq.s32.totalorder %s16, 1
    %p133 = por %p131, %p132
    %p134 = scmp.ne.s32.totalorder %s123, %s124
    %p135 = scmp.eq.s32.totalorder %s16, 0
    %p136 = por %p134, %p135
    %p137 = scmp.ne.s32.totalorder %s123, %s124
    %p138 = scmp.eq.s32.totalorder %s17, 1
    %p139 = por %p137, %p138
    %p141 = scmp.ne.s32.totalorder %s124, %s140
    %p142 = scmp.eq.s32.totalorder %s17, 0
    %p143 = por %p141, %p142
    %s144 = ssub.s32 %s20, %s29
    %p145 = scmp.eq.s32.totalorder %s144, 0
    %s147 = sadd.s32 %s146, 1
    %s148 = scalar_select %p145, %s146, %s147
    %p151 = pneg %p145
    %p152 = scmp.eq.s32.totalorder %s11, 1
    %p153 = por %p151, %p152
    %p154 = scmp.ne.s32.totalorder %s146, %s149
    %p155 = scmp.eq.s32.totalorder %s11, 0
    %p156 = por %p154, %p155
    %p157 = scmp.ne.s32.totalorder %s146, %s149
    %p158 = scmp.eq.s32.totalorder %s16, 1
    %p159 = por %p157, %p158
    %p160 = scmp.ne.s32.totalorder %s149, %s150
    %p161 = scmp.eq.s32.totalorder %s16, 0
    %p162 = por %p160, %p161
    %p163 = scmp.ne.s32.totalorder %s149, %s150
    %p164 = scmp.eq.s32.totalorder %s17, 1
    %p165 = por %p163, %p164
    %p167 = scmp.ne.s32.totalorder %s150, %s166
    %p168 = scmp.eq.s32.totalorder %s17, 0
    %p169 = por %p167, %p168
    %s170 = ssub.s32 %s18, %s37
    %s171 = ssub.s32 %s19, %s33
    %s172 = sor.u32 %s170, %s171
    %s173 = ssub.s32 %s20, %s29
    %s174 = sor.u32 %s172, %s173
    %p175 = scmp.eq.s32.totalorder %s174, 0
    %s177 = sadd.s32 %s176, 1
    %s178 = scalar_select %p175, %s176, %s177
    %p181 = pneg %p175
    %p182 = scmp.eq.s32.totalorder %s11, 1
    %p183 = por %p181, %p182
    %p184 = scmp.ne.s32.totalorder %s176, %s179
    %p185 = scmp.eq.s32.totalorder %s11, 0
    %p186 = por %p184, %p185
    %p187 = scmp.ne.s32.totalorder %s176, %s179
    %p188 = scmp.eq.s32.totalorder %s16, 1
    %p189 = por %p187, %p188
    %p190 = scmp.ne.s32.totalorder %s179, %s180
    %p191 = scmp.eq.s32.totalorder %s16, 0
    %p192 = por %p190, %p191
    %p193 = scmp.ne.s32.totalorder %s179, %s180
    %p194 = scmp.eq.s32.totalorder %s17, 1
    %p195 = por %p193, %p194
    %p197 = scmp.ne.s32.totalorder %s180, %s196
    %p198 = scmp.eq.s32.totalorder %s17, 0
    %p199 = por %p197, %p198
    %p200 = scmp.le.s32.totalorder 1, %s11
    %p201 = scmp.lt.s32.totalorder %s11, 3
    %p202 = pnand %p200, %p201
    %p203 = pneg %p202
    // Predicated region
    $region9: #{fwd.33} parent=5 // pred_check
      _
    $region10: #{fwd.33} parent=5 // pred_check_branch
      %205 = sbr.rel (%p202) target = $region12
    $region11: #{fwd.33} parent=5 // pred_region
      %s206 = ssub.s32 %s11, 1
      // Predicated region
      $region13: #{fwd.33} parent=11 // pred_check
        %p207 = pneg %p136
      $region14: #{fwd.33} parent=11 // pred_check_branch
        %209 = sbr.rel (%p207) target = $region16
      $region15: #{fwd.33} parent=11 // pred_region
        %p210 = scmp.lt.s32.totalorder %s23, 0
        %s211 = scalar_select %p210, %s23, 0
        %s212 = smul.addr %s211, 8
        %s213 = scalar_lea.vmem %s3, %s212
      $region16: #{fwd.33} parent=11 // pred_fallthru
        _
      // Predicated region
      $region17: #{fwd.33} parent=11 // pred_check
        %p214 = pneg %p162
      $region18: #{fwd.33} parent=11 // pred_check_branch
        %216 = sbr.rel (%p214) target = $region20
      $region19: #{fwd.33} parent=11 // pred_region
        %p217 = scmp.lt.s32.totalorder %s23, 0
        %s218 = scalar_select %p217, %s23, 0
        %s219 = scalar_lea.vmem %s4, %s218
      $region20: #{fwd.33} parent=11 // pred_fallthru
        _
    $region12: #{fwd.33} parent=5 // pred_fallthru
      _
    %p220 = scmp.lt.s32.totalorder %s11, 2
    // Predicated region
    $region21: #{fwd.33} parent=5 // pred_check
      %p221 = pneg %p220
    $region22: #{fwd.33} parent=5 // pred_check_branch
      %223 = sbr.rel (%p221) target = $region24
    $region23: #{fwd.33} parent=5 // pred_region
      // Predicated region
      $region25: #{fwd.33} parent=23 // pred_check
        %p224 = pneg %p52
      $region26: #{fwd.33} parent=23 // pred_check_branch
        %226 = sbr.rel (%p224) target = $region28
      $region27: #{fwd.33} parent=23 // pred_region
        %s227 = smul.u32 8, %s19
        %p228 = scmp.lt.s32.totalorder %s18, 1
        %s229 = scalar_select %p228, %s18, 1
        %p230 = scmp.lt.s32.totalorder %s227, 7
        %s231 = scalar_select %p230, %s227, 7
        %s232 = smul.addr %s229, 8
        %s233 = sadd.s32 %s231, %s232
        %s234 = smul.addr %s233, 8
        %s235 = scalar_lea.vmem %s0, %s234
        %s236 = smul.u32 8, %s19
      $region28: #{fwd.33} parent=23 // pred_fallthru
        _
      // Predicated region
      $region29: #{fwd.33} parent=23 // pred_check
        %p237 = pneg %p78
      $region30: #{fwd.33} parent=23 // pred_check_branch
        %239 = sbr.rel (%p237) target = $region32
      $region31: #{fwd.33} parent=23 // pred_region
        %p240 = scmp.lt.s32.totalorder %s18, 1
        %s241 = scalar_select %p240, %s18, 1
        %s242 = scalar_lea.vmem %s1, %s241
      $region32: #{fwd.33} parent=23 // pred_fallthru
        _
      // Predicated region
      $region33: #{fwd.33} parent=23 // pred_check
        %p243 = pneg %p104
      $region34: #{fwd.33} parent=23 // pred_check_branch
        %245 = sbr.rel (%p243) target = $region36
      $region35: #{fwd.33} parent=23 // pred_region
        %p246 = scmp.lt.s32.totalorder %s18, 1
        %s247 = scalar_select %p246, %s18, 1
        %s248 = scalar_lea.vmem %s2, %s247
      $region36: #{fwd.33} parent=23 // pred_fallthru
        _
    $region24: #{fwd.33} parent=5 // pred_fallthru
      _
    %p249 = scmp.le.s32.totalorder 1, %s11
    %p250 = scmp.lt.s32.totalorder %s11, 3
    %p251 = pnand %p249, %p250
    %p252 = pneg %p251
    // Predicated region
    $region37: #{fwd.33} parent=5 // pred_check
      _
    $region38: #{fwd.33} parent=5 // pred_check_branch
      %254 = sbr.rel (%p251) target = $region40
    $region39: #{fwd.33} parent=5 // pred_region
      %s255 = ssub.s32 %s11, 1
      %s256 = smul.u32 8, %s22
      %p257 = scmp.lt.s32.totalorder %s21, 1
      %s258 = scalar_select %p257, %s21, 1
      %p259 = scmp.lt.s32.totalorder %s256, 7
      %s260 = scalar_select %p259, %s256, 7
      %s261 = smul.addr %s258, 8
      %s262 = sadd.s32 %s260, %s261
      %s263 = smul.addr %s262, 8
      %s264 = scalar_lea.vmem %s0, %s263
      %p265 = pneg %p58
      %p266 = pneg %p55
      %p267 = scmp.lt.s32.totalorder %s21, 1
      %s268 = scalar_select %p267, %s21, 1
      %s269 = scalar_lea.vmem %s1, %s268
      %p270 = pneg %p84
      %p271 = pneg %p81
      %p272 = scmp.lt.s32.totalorder %s21, 1
      %s273 = scalar_select %p272, %s21, 1
      %s274 = scalar_lea.vmem %s2, %s273
      %p275 = pneg %p110
      %p276 = pneg %p107
      %p277 = scmp.lt.s32.totalorder %s23, 0
      %s278 = scalar_select %p277, %s23, 0
      %s279 = smul.addr %s278, 8
      %s280 = scalar_lea.vmem %s3, %s279
      %p281 = pneg %p136
      %p282 = pneg %p133
      %p283 = scmp.lt.s32.totalorder %s23, 0
      %s284 = scalar_select %p283, %s23, 0
      %s285 = scalar_lea.vmem %s4, %s284
      %p286 = pneg %p162
      %p287 = pneg %p159
      %p288 = pneg %p192
      %p289 = pneg %p189
      %s290 = smul.u32 8, %s22
      %p291 = scmp.lt.s32.totalorder %s21, 1
      %s292 = scalar_select %p291, %s21, 1
      %p293 = scmp.lt.s32.totalorder %s290, 7
      %s294 = scalar_select %p293, %s290, 7
      %p295 = scmp.lt.s32.totalorder %s23, 0
      %s296 = scalar_select %p295, %s23, 0
      %s297 = sadd.s32 %s296, %s294
      %s298 = smul.addr %s292, 8
      %s299 = sadd.s32 %s297, %s298
      %s300 = smul.addr %s299, 8
      %s301 = scalar_lea.vmem %s5, %s300
      %s302 = smul.u32 8, %s22
      %p303 = scmp.lt.s32.totalorder %s21, 1
      %s304 = scalar_select %p303, %s21, 1
      %p305 = scmp.lt.s32.totalorder %s302, 7
      %s306 = scalar_select %p305, %s302, 7
      %s307 = smul.addr %s304, 8
      %s308 = sadd.s32 %s306, %s307
      %s309 = smul.addr %s308, 8
      %s310 = scalar_lea.vmem %s0, %s309
      %s311 = smul.u32 8, %s22
      %p312 = scmp.lt.s32.totalorder %s21, 1
      %s313 = scalar_select %p312, %s21, 1
      %s314 = scalar_lea.vmem %s1, %s313
      %p315 = scmp.lt.s32.totalorder %s21, 1
      %s316 = scalar_select %p315, %s21, 1
      %s317 = scalar_lea.vmem %s2, %s316
      %p318 = scmp.lt.s32.totalorder %s23, 0
      %s319 = scalar_select %p318, %s23, 0
      %s320 = smul.addr %s319, 8
      %s321 = scalar_lea.vmem %s3, %s320
      %p322 = scmp.lt.s32.totalorder %s23, 0
      %s323 = scalar_select %p322, %s23, 0
      %s324 = scalar_lea.vmem %s4, %s323
      %s325 = smul.u32 8, %s22
      %p326 = scmp.lt.s32.totalorder %s21, 1
      %s327 = scalar_select %p326, %s21, 1
      %p328 = scmp.lt.s32.totalorder %s325, 7
      %s329 = scalar_select %p328, %s325, 7
      %p330 = scmp.lt.s32.totalorder %s23, 0
      %s331 = scalar_select %p330, %s23, 0
      %s332 = sadd.s32 %s331, %s329
      %s333 = smul.addr %s327, 8
      %s334 = sadd.s32 %s332, %s333
      %s335 = smul.addr %s334, 8
      %s336 = scalar_lea.vmem %s5, %s335
      %s337 = smul.u32 8, %s22
      %p339 = scmp.eq.s32.totalorder %s23, 0
      // Predicated region
      $region41: #{fwd.33} parent=39 // pred_check
        %p340 = pneg %p339
      $region42: #{fwd.33} parent=39 // pred_check_branch
        %342 = sbr.rel (%p340) target = $region44
      $region43: #{fwd.33} parent=39 // pred_region
        %v343 = vld [vmem:[%s310] sm:$0xff]
        %v344 = vld [vmem:[%s310 + $0x8] sm:$0xff]
        %v345 = vld [vmem:[%s310 + $0x10] sm:$0xff]
        %v346 = vld [vmem:[%s310 + $0x18] sm:$0xff]
        %v347 = vld [vmem:[%s310 + $0x20] sm:$0xff]
        %v348 = vld [vmem:[%s310 + $0x28] sm:$0xff]
        %v349 = vld [vmem:[%s310 + $0x30] sm:$0xff]
        %v350 = vld [vmem:[%s310 + $0x38] sm:$0xff]
        %351 = vadd.xlane.f32.xlu0 %v343
        %v352 = vpop.xlane.xlu0 %351
        %353 = vadd.xlane.f32.xlu0 %v344
        %v354 = vpop.xlane.xlu0 %353
        %355 = vadd.xlane.f32.xlu0 %v345
        %v356 = vpop.xlane.xlu0 %355
        %357 = vadd.xlane.f32.xlu0 %v346
        %v358 = vpop.xlane.xlu0 %357
        %359 = vadd.xlane.f32.xlu0 %v347
        %v360 = vpop.xlane.xlu0 %359
        %361 = vadd.xlane.f32.xlu0 %v348
        %v362 = vpop.xlane.xlu0 %361
        %363 = vadd.xlane.f32.xlu0 %v349
        %v364 = vpop.xlane.xlu0 %363
        %365 = vadd.xlane.f32.xlu0 %v350
        %v366 = vpop.xlane.xlu0 %365
        %v367 = vrcp.pop 128.0
        %v368 = vmul.f32 %v352, %v367
        %v369 = vmul.f32 %v354, %v367
        %v370 = vmul.f32 %v356, %v367
        %v371 = vmul.f32 %v358, %v367
        %v372 = vmul.f32 %v360, %v367
        %v373 = vmul.f32 %v362, %v367
        %v374 = vmul.f32 %v364, %v367
        %v375 = vmul.f32 %v366, %v367
        %v376 = vsub.f32 %v343, %v368
        %v377 = vsub.f32 %v344, %v369
        %v378 = vsub.f32 %v345, %v370
        %v379 = vsub.f32 %v346, %v371
        %v380 = vsub.f32 %v347, %v372
        %v381 = vsub.f32 %v348, %v373
        %v382 = vsub.f32 %v349, %v374
        %v383 = vsub.f32 %v350, %v375
        %v384 = vmul.f32 %v376, %v376
        %v385 = vmul.f32 %v377, %v377
        %v386 = vmul.f32 %v378, %v378
        %v387 = vmul.f32 %v379, %v379
        %v388 = vmul.f32 %v380, %v380
        %v389 = vmul.f32 %v381, %v381
        %v390 = vmul.f32 %v382, %v382
        %v391 = vmul.f32 %v383, %v383
        %392 = vadd.xlane.f32.xlu0 %v384
        %v393 = vpop.xlane.xlu0 %392
        %394 = vadd.xlane.f32.xlu0 %v385
        %v395 = vpop.xlane.xlu0 %394
        %396 = vadd.xlane.f32.xlu0 %v386
        %v397 = vpop.xlane.xlu0 %396
        %398 = vadd.xlane.f32.xlu0 %v387
        %v399 = vpop.xlane.xlu0 %398
        %400 = vadd.xlane.f32.xlu0 %v388
        %v401 = vpop.xlane.xlu0 %400
        %402 = vadd.xlane.f32.xlu0 %v389
        %v403 = vpop.xlane.xlu0 %402
        %404 = vadd.xlane.f32.xlu0 %v390
        %v405 = vpop.xlane.xlu0 %404
        %406 = vadd.xlane.f32.xlu0 %v391
        %v407 = vpop.xlane.xlu0 %406
        %v408 = vmul.f32 %v393, %v367
        %v409 = vmul.f32 %v395, %v367
        %v410 = vmul.f32 %v397, %v367
        %v411 = vmul.f32 %v399, %v367
        %v412 = vmul.f32 %v401, %v367
        %v413 = vmul.f32 %v403, %v367
        %v414 = vmul.f32 %v405, %v367
        %v415 = vmul.f32 %v407, %v367
        %v416 = vadd.f32 %v408, 1e-06
        %v417 = vadd.f32 %v409, 1e-06
        %v418 = vadd.f32 %v410, 1e-06
        %v419 = vadd.f32 %v411, 1e-06
        %v420 = vadd.f32 %v412, 1e-06
        %v421 = vadd.f32 %v413, 1e-06
        %v422 = vadd.f32 %v414, 1e-06
        %v423 = vadd.f32 %v415, 1e-06
        %v424 = vrsqrt.pop %v416
        %v425 = vrsqrt.pop %v417
        %v426 = vrsqrt.pop %v418
        %v427 = vrsqrt.pop %v419
        %v428 = vrsqrt.pop %v420
        %v429 = vrsqrt.pop %v421
        %v430 = vrsqrt.pop %v422
        %v431 = vrsqrt.pop %v423
        %v432 = vmul.f32 %v376, %v424
        %v433 = vmul.f32 %v377, %v425
        %v434 = vmul.f32 %v378, %v426
        %v435 = vmul.f32 %v379, %v427
        %v436 = vmul.f32 %v380, %v428
        %v437 = vmul.f32 %v381, %v429
        %v438 = vmul.f32 %v382, %v430
        %v439 = vmul.f32 %v383, %v431
        %v440 = vld [vmem:[%s317] sm:$0x1]
        %v441 = vadd.f32 %v440, 1.0
        %v443 = vlaneseq
        %v444 = vshrl.u32 %v443, 7
        %v445 = vsub.s32 0, %v444
        %v446 = vrot.slane %v441, %v445
        %v448 = vmul.f32 %v432, %v446
        %v449 = vmul.f32 %v433, %v446
        %v450 = vmul.f32 %v434, %v446
        %v451 = vmul.f32 %v435, %v446
        %v452 = vmul.f32 %v436, %v446
        %v453 = vmul.f32 %v437, %v446
        %v454 = vmul.f32 %v438, %v446
        %v455 = vmul.f32 %v439, %v446
        %v456 = vld [vmem:[%s314] sm:$0x1]
        %v458 = vlaneseq
        %v459 = vshrl.u32 %v458, 7
        %v460 = vsub.s32 0, %v459
        %v461 = vrot.slane %v456, %v460
        %v463 = vadd.f32 %v448, %v461
        %v464 = vadd.f32 %v449, %v461
        %v465 = vadd.f32 %v450, %v461
        %v466 = vadd.f32 %v451, %v461
        %v467 = vadd.f32 %v452, %v461
        %v468 = vadd.f32 %v453, %v461
        %v469 = vadd.f32 %v454, %v461
        %v470 = vadd.f32 %v455, %v461
        %v471 = vpack.c.bf16 %v464, %v463
        %v472 = vpack.c.bf16 %v466, %v465
        %v473 = vpack.c.bf16 %v468, %v467
        %v474 = vpack.c.bf16 %v470, %v469
        %v479 = vunpack.c.l.b16 %v471
        %v480 = vunpack.c.h.b16 %v471
        %v481 = vunpack.c.l.b16 %v472
        %v482 = vunpack.c.h.b16 %v472
        %v483 = vunpack.c.l.b16 %v473
        %v484 = vunpack.c.h.b16 %v473
        %v485 = vunpack.c.l.b16 %v474
        %v486 = vunpack.c.h.b16 %v474
        %v487 = vpack.c.b16 %v479, %v479
        %v488 = vpack.c.b16 %v480, %v480
        %v489 = vpack.c.b16 %v481, %v481
        %v490 = vpack.c.b16 %v482, %v482
        %v491 = vpack.c.b16 %v483, %v483
        %v492 = vpack.c.b16 %v484, %v484
        %v493 = vpack.c.b16 %v485, %v485
        %v494 = vpack.c.b16 %v486, %v486
        %503 = vst [vmem:[#allocation2] sm:$0xf] %v487
        %504 = vst [vmem:[#allocation2 + $0x4] sm:$0xf] %v488
        %505 = vst [vmem:[#allocation2 + $0x8] sm:$0xf] %v489
        %506 = vst [vmem:[#allocation2 + $0xc] sm:$0xf] %v490
        %507 = vst [vmem:[#allocation2 + $0x10] sm:$0xf] %v491
        %508 = vst [vmem:[#allocation2 + $0x14] sm:$0xf] %v492
        %509 = vst [vmem:[#allocation2 + $0x18] sm:$0xf] %v493
        %510 = vst [vmem:[#allocation2 + $0x1c] sm:$0xf] %v494
      $region44: #{fwd.33} parent=39 // pred_fallthru
        _
      %v511 = vld [vmem:[#allocation2] sm:$0xf]
      %v512 = vld [vmem:[#allocation2 + $0x4] sm:$0xf]
      %v513 = vld [vmem:[#allocation2 + $0x8] sm:$0xf]
      %v514 = vld [vmem:[#allocation2 + $0xc] sm:$0xf]
      %v515 = vld [vmem:[#allocation2 + $0x10] sm:$0xf]
      %v516 = vld [vmem:[#allocation2 + $0x14] sm:$0xf]
      %v517 = vld [vmem:[#allocation2 + $0x18] sm:$0xf]
      %v518 = vld [vmem:[#allocation2 + $0x1c] sm:$0xf]
      %v519 = vld [vmem:[%s321] sm:$0xff]
      %v520 = vld [vmem:[%s321 + $0x8] sm:$0xff]
      %v521 = vld [vmem:[%s321 + $0x10] sm:$0xff]
      %v522 = vld [vmem:[%s321 + $0x18] sm:$0xff]
      %v523 = vld [vmem:[%s321 + $0x20] sm:$0xff]
      %v524 = vld [vmem:[%s321 + $0x28] sm:$0xff]
      %v525 = vld [vmem:[%s321 + $0x30] sm:$0xff]
      %v526 = vld [vmem:[%s321 + $0x38] sm:$0xff]
      %v527 = vld [vmem:[%s321 + $0x40] sm:$0xff]
      %v528 = vld [vmem:[%s321 + $0x48] sm:$0xff]
      %v529 = vld [vmem:[%s321 + $0x50] sm:$0xff]
      %v530 = vld [vmem:[%s321 + $0x58] sm:$0xff]
      %v531 = vld [vmem:[%s321 + $0x60] sm:$0xff]
      %v532 = vld [vmem:[%s321 + $0x68] sm:$0xff]
      %v533 = vld [vmem:[%s321 + $0x70] sm:$0xff]
      %v534 = vld [vmem:[%s321 + $0x78] sm:$0xff]
      %v535 = vpack.c.bf16 %v520, %v519
      %v536 = vpack.c.bf16 %v522, %v521
      %v537 = vpack.c.bf16 %v524, %v523
      %v538 = vpack.c.bf16 %v526, %v525
      %v539 = vpack.c.bf16 %v528, %v527
      %v540 = vpack.c.bf16 %v530, %v529
      %v541 = vpack.c.bf16 %v532, %v531
      %v542 = vpack.c.bf16 %v534, %v533
      %v543 = vld [vmem:[%s324] sm:$0x1]
      %v545 = vlaneseq
      %v546 = vshrl.u32 %v545, 7
      %v547 = vsub.s32 0, %v546
      %v548 = vrot.slane %v543, %v547
      %v558 = vunpack.c.l.b16 %v511
      %v559 = vunpack.c.l.b16 %v512
      %v560 = vunpack.c.l.b16 %v513
      %v561 = vunpack.c.l.b16 %v514
      %v562 = vunpack.c.l.b16 %v515
      %v563 = vunpack.c.l.b16 %v516
      %v564 = vunpack.c.l.b16 %v517
      %v565 = vunpack.c.l.b16 %v518
      %v566 = vpack.c.b16 %v559, %v558
      %v567 = vpack.c.b16 %v561, %v560
      %v568 = vpack.c.b16 %v563, %v562
      %v569 = vpack.c.b16 %v565, %v564
      %574 = vmatprep.subr.bf16.mxu0 0
      %575 = vmatpush1.bf16.msra.mxu0 %v542
      %576 = vmatprep.subr.bf16.mxu0 0
      %577 = vmatpush1.bf16.msra.mxu0 %v541
      %578 = vmatprep.subr.bf16.mxu0 0
      %579 = vmatpush1.bf16.msra.mxu0 %v540
      %580 = vmatprep.subr.bf16.mxu0 0
      %581 = vmatpush1.bf16.msra.mxu0 %v539
      %582 = vmatprep.subr.bf16.mxu0 0
      %583 = vmatpush1.bf16.msra.mxu0 %v538
      %584 = vmatprep.subr.bf16.mxu0 0
      %585 = vmatpush1.bf16.msra.mxu0 %v537
      %586 = vmatprep.subr.bf16.mxu0 0
      %587 = vmatpush1.bf16.msra.mxu0 %v536
      %588 = vmatprep.subr.bf16.mxu0 0
      %589 = vmatpush1.bf16.msra.mxu0 %v535
      %590 = vmatprep.subr.bf16.mxu0 0
      %591 = vmatpush2.bf16.msra.mxu0 0
      %592 = vmatprep.subr.bf16.mxu0 0
      %593 = vmatpush2.bf16.msra.mxu0 0
      %594 = vmatprep.subr.bf16.mxu0 0
      %595 = vmatpush2.bf16.msra.mxu0 0
      %596 = vmatprep.subr.bf16.mxu0 0
      %597 = vmatpush2.bf16.msra.mxu0 0
      %598 = vmatprep.subr.bf16.mxu0 0
      %599 = vmatpush2.bf16.msra.mxu0 0
      %600 = vmatprep.subr.bf16.mxu0 0
      %601 = vmatpush2.bf16.msra.mxu0 0
      %602 = vmatprep.subr.bf16.mxu0 0
      %603 = vmatpush2.bf16.msra.mxu0 0
      %604 = vmatprep.subr.bf16.mxu0 0
      %605 = vmatpush2.bf16.msra.mxu0 0
      %606 = vmatprep.mubr.bf16.mxu0 0
      %607 = vmatmul.mubr.bf16.gmra.mxu0 %v566
      %v608 = vpop.f32.mrf.mxu0
      %v609 = vadd.f32 %v548, %v608
      %v610 = vpop.f32.mrf.mxu0
      %v611 = vpop.f32.mrf.mxu0
      %v612 = vadd.f32 %v548, %v611
      %v613 = vpop.f32.mrf.mxu0
      %614 = vmatprep.mubr.bf16.mxu0 0
      %615 = vmatmul.mubr.bf16.gmra.mxu0 %v567
      %v616 = vpop.f32.mrf.mxu0
      %v617 = vadd.f32 %v548, %v616
      %v618 = vpop.f32.mrf.mxu0
      %v619 = vpop.f32.mrf.mxu0
      %v620 = vadd.f32 %v548, %v619
      %v621 = vpop.f32.mrf.mxu0
      %622 = vmatprep.mubr.bf16.mxu0 0
      %623 = vmatmul.mubr.bf16.gmra.mxu0 %v568
      %v624 = vpop.f32.mrf.mxu0
      %v625 = vadd.f32 %v548, %v624
      %v626 = vpop.f32.mrf.mxu0
      %v627 = vpop.f32.mrf.mxu0
      %v628 = vadd.f32 %v548, %v627
      %v629 = vpop.f32.mrf.mxu0
      %630 = vmatprep.mubr.bf16.mxu0 0
      %631 = vmatmul.mubr.bf16.gmra.mxu0 %v569
      %v632 = vpop.f32.mrf.mxu0
      %v633 = vadd.f32 %v548, %v632
      %v634 = vpop.f32.mrf.mxu0
      %v635 = vpop.f32.mrf.mxu0
      %v636 = vadd.f32 %v548, %v635
      %v637 = vpop.f32.mrf.mxu0
      %638 = vdwg.mxu0
      %639 = vst [vmem:[%s336] sm:$0xff] %v609
      %640 = vst [vmem:[%s336 + $0x8] sm:$0xff] %v612
      %641 = vst [vmem:[%s336 + $0x10] sm:$0xff] %v617
      %642 = vst [vmem:[%s336 + $0x18] sm:$0xff] %v620
      %643 = vst [vmem:[%s336 + $0x20] sm:$0xff] %v625
      %644 = vst [vmem:[%s336 + $0x28] sm:$0xff] %v628
      %645 = vst [vmem:[%s336 + $0x30] sm:$0xff] %v633
      %646 = vst [vmem:[%s336 + $0x38] sm:$0xff] %v636
      %s647 = smul.u32 8, %s22
      %p648 = scmp.lt.s32.totalorder %s21, 1
      %s649 = scalar_select %p648, %s21, 1
      %p650 = scmp.lt.s32.totalorder %s647, 7
      %s651 = scalar_select %p650, %s647, 7
      %p652 = scmp.lt.s32.totalorder %s23, 0
      %s653 = scalar_select %p652, %s23, 0
      %s654 = sadd.s32 %s653, %s651
      %s655 = smul.addr %s649, 8
      %s656 = sadd.s32 %s654, %s655
      %s657 = smul.addr %s656, 8
      %s658 = scalar_lea.vmem %s5, %s657
      // Predicated region
      $region45: #{fwd.33} parent=39 // pred_check
        %p659 = pneg %p189
      $region46: #{fwd.33} parent=39 // pred_check_branch
        %661 = sbr.rel (%p659) target = $region48
      $region47: #{fwd.33} parent=39 // pred_region
        %s662 = smul.u32 8, %s22
      $region48: #{fwd.33} parent=39 // pred_fallthru
        _
    $region40: #{fwd.33} parent=5 // pred_fallthru
      _
    %p663 = scmp.le.s32.totalorder 2, %s11
    // Predicated region
    $region49: #{fwd.33} parent=5 // pred_check
      %p664 = pneg %p663
    $region50: #{fwd.33} parent=5 // pred_check_branch
      %666 = sbr.rel (%p664) target = $region52
    $region51: #{fwd.33} parent=5 // pred_region
      %s667 = ssub.s32 %s11, 2
      // Predicated region
      $region53: #{fwd.33} parent=51 // pred_check
        %p668 = pneg %p195
      $region54: #{fwd.33} parent=51 // pred_check_branch
        %670 = sbr.rel (%p668) target = $region56
      $region55: #{fwd.33} parent=51 // pred_region
        %s671 = smul.u32 8, %s25
        %p672 = scmp.lt.s32.totalorder %s24, 1
        %s673 = scalar_select %p672, %s24, 1
        %p674 = scmp.lt.s32.totalorder %s671, 7
        %s675 = scalar_select %p674, %s671, 7
        %p676 = scmp.lt.s32.totalorder %s26, 0
        %s677 = scalar_select %p676, %s26, 0
        %s678 = sadd.s32 %s677, %s675
        %s679 = smul.addr %s673, 8
        %s680 = sadd.s32 %s678, %s679
        %s681 = smul.addr %s680, 8
        %s682 = scalar_lea.vmem %s5, %s681
      $region56: #{fwd.33} parent=51 // pred_fallthru
        _
    $region52: #{fwd.33} parent=5 // pred_fallthru
      _
  $region6: #{fwd.33} parent=0 // loop_footer
    %s15 = sadd.s32 1, %s11
  $region7: #{fwd.33} parent=0 // loop_footer_branch
    %10 = sbr.rel target = $region3
  $region8: #{fwd.33} parent=0 // loop_exit
    _

</llo_original>
